<compile_context>
chip_gen: v6e
topology: v6e:2x2x1
jax: 0.10.0
libtpu: 0.0.40
codegen_flags: <defaults>
</compile_context>

<pallas_src>
import functools
import math

import jax
import jax.numpy as jnp
from jax.experimental import pallas as pl
from jax.experimental.pallas import tpu as pltpu

_VMEM = pl.BlockSpec(memory_space=pltpu.MemorySpace.VMEM)


# ----------------------------- in-kernel helpers -----------------------------

def _layer_norm_f32(x, g, b, eps):
    mu = jnp.mean(x, axis=-1, keepdims=True)
    var = jnp.mean(jnp.square(x - mu), axis=-1, keepdims=True)
    return (x - mu) * jax.lax.rsqrt(var + eps) * g + b


def _pick_rows(Bn, S):
    """Rows per grid step: fill the MXU M dim (~512 flattened rows target) while
    preferring >=2 row blocks so the parallel axis can shard across TensorCores."""
    cap = max(1, min(32, 512 // max(S, 1)))
    divisors = [r for r in range(1, Bn + 1) if Bn % r == 0]
    fitting = [r for r in divisors if r <= cap] or [1]
    r = max(fitting)
    if Bn // r < 2:
        smaller = [d for d in fitting if Bn // d >= 2 and d * S >= 16]
        if smaller:
            r = max(smaller)
    return r


def _stage_vmem_bytes(R, S, D, Hd, act_itemsize):
    RS = R * S
    w_layer = 2 * (3 * D * D + D * D + 2 * D * Hd)          # bf16 weights / layer
    b_layer = 4 * (9 * D + Hd)                              # f32 biases + LN params
    act = 2 * 2 * RS * D * act_itemsize + RS * D * 4        # in/out (double-buffered) + acc
    tmp = 4 * RS * (6 * D + Hd) + 4 * 2 * RS * S            # qkv/ffn/attention temporaries
    footprint = 2 * (w_layer + b_layer) + act + tmp
    return int(min(100 * 1024 * 1024, 16 * 1024 * 1024 + 2 * footprint))


# ------------------------------ Pallas kernels -------------------------------

def _patch_embed_kernel(xp_ref, w_ref, b_ref, tok_ref, pos_ref, o_ref):
    # xp_ref: (Rp, P, Cp)   w_ref: (Cp, D) bf16   tok_ref: (1, D)   pos_ref: (P+1, D)
    Rp, P, Cp = xp_ref.shape
    D = w_ref.shape[-1]
    xf = xp_ref[...].reshape(Rp * P, Cp).astype(jnp.bfloat16)
    proj = jnp.dot(xf, w_ref[...], preferred_element_type=jnp.float32) + b_ref[...]
    proj = proj.reshape(Rp, P, D)
    tok = jnp.broadcast_to(tok_ref[...].astype(jnp.float32)[None], (Rp, 1, D))
    z = jnp.concatenate([tok, proj], axis=1) + pos_ref[...].astype(jnp.float32)[None]
    o_ref[...] = z.astype(o_ref.dtype)


def _stage_kernel(num_heads, eps,
                  x_ref, ln1g_ref, ln1b_ref, wqkv_ref, bqkv_ref, wo_ref, bo_ref,
                  ln2g_ref, ln2b_ref, w1_ref, b1_ref, w2_ref, b2_ref,
                  o_ref, acc_ref):
    """One pre-norm transformer layer per grid step on an (R, S, D) row block.

    grid = (row_blocks, L): weights stream per layer (axis 1, "arbitrary"), the f32
    residual stream lives in acc_ref (resident across the layer axis)."""
    R, S, D = x_ref.shape
    RS = R * S
    H = num_heads
    Dh = D // H
    l = pl.program_id(1)

    @pl.when(l == 0)
    def _():
        acc_ref[...] = x_ref[...].reshape(RS, D).astype(jnp.float32)

    z = acc_ref[...]                                                # (RS, D) f32

    # ---------------- y = z + Wo . MHA(LN1(z)) ----------------
    h = _layer_norm_f32(z, ln1g_ref[0], ln1b_ref[0], eps)
    qkv = jnp.dot(h.astype(jnp.bfloat16), wqkv_ref[0],
                  preferred_element_type=jnp.float32) + bqkv_ref[0]  # (RS, 3D)
    # 1/sqrt(Dh) was folded into the q slice of wqkv/bqkv at prepare_params time.
    q = qkv[:, :D].astype(jnp.bfloat16).reshape(R, S, D)
    k = qkv[:, D:2 * D].astype(jnp.bfloat16).reshape(R, S, D)
    v = qkv[:, 2 * D:].astype(jnp.bfloat16).reshape(R, S, D)
    heads = []
    for hh in range(H):
        cols = slice(hh * Dh, (hh + 1) * Dh)
        s = jnp.einsum('rqd,rkd->rqk', q[:, :, cols], k[:, :, cols],
                       preferred_element_type=jnp.float32)           # bf16 MXU, f32 acc
        s = s - jnp.max(s, axis=-1, keepdims=True)
        p = jnp.exp(s)
        p = p * pl.reciprocal(jnp.sum(p, axis=-1, keepdims=True), approx=True)
        heads.append(jnp.einsum('rqk,rkd->rqd', p.astype(jnp.bfloat16), v[:, :, cols],
                                preferred_element_type=jnp.float32))
    attn = jnp.concatenate(heads, axis=-1).reshape(RS, D)
    y = z + jnp.dot(attn.astype(jnp.bfloat16), wo_ref[0],
                    preferred_element_type=jnp.float32) + bo_ref[0]

    # ---------------- z = y + W2 . GELU(W1 . LN2(y)) ----------------
    h2 = _layer_norm_f32(y, ln2g_ref[0], ln2b_ref[0], eps)
    f = jnp.dot(h2.astype(jnp.bfloat16), w1_ref[0],
                preferred_element_type=jnp.float32) + b1_ref[0]
    # TODO(synk): PyTorch nn.GELU default is the exact erf form; tanh approximation used in-kernel.
    f = jax.nn.gelu(f, approximate=True)
    z_new = y + jnp.dot(f.astype(jnp.bfloat16), w2_ref[0],
                        preferred_element_type=jnp.float32) + b2_ref[0]
    acc_ref[...] = z_new

    @pl.when(l == pl.num_programs(1) - 1)
    def _():
        o_ref[...] = z_new.reshape(R, S, D).astype(o_ref.dtype)


def _head_kernel(eps, x_ref, g_ref, b_ref, w_ref, hb_ref, o_ref):
    # Final LayerNorm (eps=1e-6) + fused pos/ori linear heads, lane-dense (D -> 128).
    y = _layer_norm_f32(x_ref[...].astype(jnp.float32), g_ref[...], b_ref[...], eps)
    o = jnp.dot(y.astype(jnp.bfloat16), w_ref[...],
                preferred_element_type=jnp.float32) + hb_ref[...]
    o_ref[...] = o.astype(o_ref.dtype)


# --------------------------------- wrappers ----------------------------------

def patch_embed(xp, w_bf16, b, token, pos_embed):
    """xp: (B*Tn, P, Cp) -> (B*Tn, P+1, D) bf16 with cls token and pos embedding fused."""
    BT, P, Cp = xp.shape
    D = w_bf16.shape[-1]
    Rp = _pick_rows(BT, P)
    nb = BT // Rp
    return pl.pallas_call(
        _patch_embed_kernel,
        grid=(nb,),
        in_specs=[
            pl.BlockSpec((Rp, P, Cp), lambda i: (i, 0, 0)),
            pl.BlockSpec((Cp, D), lambda i: (0, 0)),
            pl.BlockSpec((1, D), lambda i: (0, 0)),
            pl.BlockSpec((1, D), lambda i: (0, 0)),
            pl.BlockSpec((P + 1, D), lambda i: (0, 0)),
        ],
        out_specs=pl.BlockSpec((Rp, P + 1, D), lambda i: (i, 0, 0)),
        out_shape=jax.ShapeDtypeStruct((BT, P + 1, D), jnp.bfloat16),
        compiler_params=pltpu.CompilerParams(dimension_semantics=("parallel",)),
    )(xp, w_bf16, b, token, pos_embed)


def transformer_stage(x, sp, num_heads, eps=1e-5):
    """Apply all layers of one stage: grid=(row_blocks, L), per-layer weight streaming."""
    Bn, S, D = x.shape
    L = sp['wqkv'].shape[0]
    Hd = sp['w1'].shape[-1]
    R = _pick_rows(Bn, S)
    nb = Bn // R
    row = lambda b, l: (b, 0, 0)
    lay = lambda b, l: (l, 0, 0)
    kern = functools.partial(_stage_kernel, num_heads, eps)
    vmem_limit = _stage_vmem_bytes(R, S, D, Hd, jnp.dtype(x.dtype).itemsize)
    return pl.pallas_call(
        kern,
        grid=(nb, L),
        in_specs=[
            pl.BlockSpec((R, S, D), row),
            pl.BlockSpec((1, 1, D), lay),         # ln1_g
            pl.BlockSpec((1, 1, D), lay),         # ln1_b
            pl.BlockSpec((1, D, 3 * D), lay),     # wqkv (bf16, q-scale folded)
            pl.BlockSpec((1, 1, 3 * D), lay),     # bqkv
            pl.BlockSpec((1, D, D), lay),         # wo (bf16)
            pl.BlockSpec((1, 1, D), lay),         # bo
            pl.BlockSpec((1, 1, D), lay),         # ln2_g
            pl.BlockSpec((1, 1, D), lay),         # ln2_b
            pl.BlockSpec((1, D, Hd), lay),        # w1 (bf16)
            pl.BlockSpec((1, 1, Hd), lay),        # b1
            pl.BlockSpec((1, Hd, D), lay),        # w2 (bf16)
            pl.BlockSpec((1, 1, D), lay),         # b2
        ],
        out_specs=pl.BlockSpec((R, S, D), row),
        out_shape=jax.ShapeDtypeStruct((Bn, S, D), jnp.bfloat16),
        scratch_shapes=[pltpu.VMEM((R * S, D), jnp.float32)],
        compiler_params=pltpu.CompilerParams(
            dimension_semantics=("parallel", "arbitrary"),
            vmem_limit_bytes=vmem_limit),
    )(x,
      sp['ln1_g'], sp['ln1_b'],
      sp['wqkv'], sp['bqkv'],
      sp['wo'], sp['bo'],
      sp['ln2_g'], sp['ln2_b'],
      sp['w1'], sp['b1'],
      sp['w2'], sp['b2'])


# -------------------------------- parameters ---------------------------------

def _trunc_normal(key, shape, std=0.02):
    return std * jax.random.truncated_normal(key, -2.0, 2.0, shape, jnp.float32)


def init_stage_params(key, L, D, hidden):
    ks = jax.random.split(key, 4)
    return {
        'ln1_g': jnp.ones((L, 1, D), jnp.float32), 'ln1_b': jnp.zeros((L, 1, D), jnp.float32),
        'wqkv': _trunc_normal(ks[0], (L, D, 3 * D)), 'bqkv': jnp.zeros((L, 1, 3 * D), jnp.float32),
        'wo': _trunc_normal(ks[1], (L, D, D)), 'bo': jnp.zeros((L, 1, D), jnp.float32),
        'ln2_g': jnp.ones((L, 1, D), jnp.float32), 'ln2_b': jnp.zeros((L, 1, D), jnp.float32),
        'w1': _trunc_normal(ks[2], (L, D, hidden)), 'b1': jnp.zeros((L, 1, hidden), jnp.float32),
        'w2': _trunc_normal(ks[3], (L, hidden, D)), 'b2': jnp.zeros((L, 1, D), jnp.float32),
    }


def init_params(key, cfg):
    D = cfg['embed_dims']
    C = cfg['channels']
    pt, ph, pw = cfg['patch_time'], cfg['patch_height'], cfg['patch_width']
    Tn = cfg['num_frames'] // pt
    P = (cfg['height'] // ph) * (cfg['width'] // pw)
    hidden = 4 * D
    n_spatial = cfg['num_transformer_layers']
    n_temporal = 4            # hard-coded in the reference module (num_time_transformer_layers)
    keys = jax.random.split(key, 7)
    return {
        'patch_w': _trunc_normal(keys[0], (C * pt * ph * pw, D)),
        'patch_b': jnp.zeros((D,), jnp.float32),
        'token': jnp.zeros((1, 1, D), jnp.float32),            # nn.Parameter(torch.zeros)
        'pos_embed': _trunc_normal(keys[1], (1, P + 1, D)),
        'time_embed': _trunc_normal(keys[2], (1, Tn + 1, D)),
        'norm_g': jnp.ones((D,), jnp.float32), 'norm_b': jnp.zeros((D,), jnp.float32),
        # TODO(synk): modules.PosLinear / modules.OriLinear internals are not provided;
        # implemented as Linear(D,3) translation head and Linear(D,4) quaternion head.
        'pos_w': _trunc_normal(keys[3], (D, 3)), 'pos_b': jnp.zeros((3,), jnp.float32),
        'ori_w': _trunc_normal(keys[4], (D, 4)), 'ori_b': jnp.zeros((4,), jnp.float32),
        'spatial': init_stage_params(keys[5], n_spatial, D, hidden),
        'temporal': init_stage_params(keys[6], n_temporal, D, hidden),
    }


def prepare_params(params, cfg):
    """One-time (outside jit) weight prep: bf16 cast of matmul weights, fold the
    1/sqrt(Dh) scale into the q slice of wqkv/bqkv, build the lane-dense head weight."""
    D = cfg['embed_dims']
    H = cfg['num_heads']
    scale = 1.0 / math.sqrt(D // H)

    def prep_stage(sp):
        qscale = jnp.concatenate(
            [jnp.full((D,), scale, jnp.float32), jnp.ones((2 * D,), jnp.float32)], axis=0)
        return {
            'ln1_g': sp['ln1_g'], 'ln1_b': sp['ln1_b'],
            'wqkv': (sp['wqkv'] * qscale[None, None, :]).astype(jnp.bfloat16),
            'bqkv': sp['bqkv'] * qscale[None, None, :],
            'wo': sp['wo'].astype(jnp.bfloat16), 'bo': sp['bo'],
            'ln2_g': sp['ln2_g'], 'ln2_b': sp['ln2_b'],
            'w1': sp['w1'].astype(jnp.bfloat16), 'b1': sp['b1'],
            'w2': sp['w2'].astype(jnp.bfloat16), 'b2': sp['b2'],
        }

    wh = jnp.concatenate([params['pos_w'], params['ori_w']], axis=-1)        # (D, 7)
    bh = jnp.concatenate([params['pos_b'], params['ori_b']], axis=-1)        # (7,)
    head_w = jnp.zeros((D, 128), jnp.float32).at[:, :7].set(wh).astype(jnp.bfloat16)
    head_b = jnp.zeros((1, 128), jnp.float32).at[0, :7].set(bh)
    P1 = params['pos_embed'].shape[1]
    return {
        'patch_w': params['patch_w'].astype(jnp.bfloat16),
        'patch_b': params['patch_b'].reshape(1, D),
        'token': params['token'].reshape(1, D),
        'pos_embed': params['pos_embed'].reshape(P1, D),
        'time_embed': params['time_embed'],
        'norm_g': params['norm_g'].reshape(1, D), 'norm_b': params['norm_b'].reshape(1, D),
        'head_w': head_w, 'head_b': head_b,
        'spatial': prep_stage(params['spatial']),
        'temporal': prep_stage(params['temporal']),
    }


# ---------------------------------- forward ----------------------------------

def pose_transformer_forward(x, params, cfg):
    B, C, T, H, W = x.shape
    pt, ph, pw = cfg['patch_time'], cfg['patch_height'], cfg['patch_width']
    D = cfg['embed_dims']
    num_heads = cfg['num_heads']
    Tn, Hn, Wn = T // pt, H // ph, W // pw
    P = Hn * Wn

    # PatchEmbed: Conv3d(kernel=stride=(pt,ph,pw)) == patchify + matmul (fused with cls/pos).
    xp = x.reshape(B, C, Tn, pt, Hn, ph, Wn, pw)
    xp = xp.transpose(0, 2, 4, 6, 1, 3, 5, 7)                # (B, Tn, Hn, Wn, C, pt, ph, pw)
    xp = xp.reshape(B * Tn, P, C * pt * ph * pw)
    z = patch_embed(xp, params['patch_w'], params['patch_b'],
                    params['token'], params['pos_embed'])     # (B*Tn, P+1, D) bf16

    # spatial transformer (drop_after_pos identity at eval).
    z = transformer_stage(z, params['spatial'], num_heads)

    # temporal aggregation: cls of first B rows + mean over patches per frame (tiny; XLA).
    cls_out = z[:B, 0, :].astype(jnp.float32)[:, None, :]                    # (B, 1, D)
    zt = z[:, 1:, :].astype(jnp.float32).reshape(B, Tn, P, D).mean(axis=2)   # (B, Tn, D)
    zt = jnp.concatenate([cls_out, zt], axis=1) + params['time_embed']       # (B, Tn+1, D)

    # temporal transformer (drop_after_time identity at eval).
    z = transformer_stage(zt.astype(jnp.bfloat16), params['temporal'], num_heads)

    # final LayerNorm (per-row, so slice-before == norm-then-slice) + fused pos/ori heads,
    # lane-dense (D, 128) weight; real 7 columns sliced outside the kernel.
    zz = z[:, 1:, :].reshape(B * Tn, D)
    out = pl.pallas_call(
        functools.partial(_head_kernel, 1e-6),
        out_shape=jax.ShapeDtypeStruct((B * Tn, 128), jnp.float32),
        in_specs=[_VMEM] * 5,
        out_specs=_VMEM,
    )(zz, params['norm_g'], params['norm_b'], params['head_w'], params['head_b'])
    pos = out[:, :3].reshape(B, Tn, 3)
    ori = out[:, 3:7].reshape(B, Tn, 4)
    return pos, ori


if __name__ == "__main__":
    cfg = dict(num_frames=8, height=16, width=16,
               patch_time=2, patch_height=8, patch_width=8,
               channels=4, dim_out=3,
               embed_dims=32, num_heads=4, num_transformer_layers=2)

    key = jax.random.PRNGKey(0)
    kx, kp = jax.random.split(key)
    x = jax.random.normal(
        kx, (2, cfg['channels'], cfg['num_frames'], cfg['height'], cfg['width']),
        jnp.float32)                                          # (B, C, T, H, W) NCTHW
    params = prepare_params(init_params(kp, cfg), cfg)        # bf16 cast / scale fold once

    fwd = jax.jit(lambda xx, pp: pose_transformer_forward(xx, pp, cfg))
    pos, ori = fwd(x, params)
    jax.block_until_ready((pos, ori))

    Tn = cfg['num_frames'] // cfg['patch_time']
    assert pos.shape == (2, Tn, 3), pos.shape
    assert ori.shape == (2, Tn, 4), ori.shape
    assert bool(jnp.all(jnp.isfinite(pos))) and bool(jnp.all(jnp.isfinite(ori)))
    print("KERNEL_OK")
</pallas_src>

<mosaic_0001>
module attributes {stable_mosaic.version = 11 : i64} {
  func.func @_patch_embed_kernel(%arg0: i32, %arg1: memref<4x4x512xf32, #tpu.memory_space<vmem>>, %arg2: memref<512x32xbf16, #tpu.memory_space<vmem>>, %arg3: memref<1x32xf32, #tpu.memory_space<vmem>>, %arg4: memref<1x32xf32, #tpu.memory_space<vmem>>, %arg5: memref<5x32xf32, #tpu.memory_space<vmem>>, %arg6: memref<4x5x32xbf16, #tpu.memory_space<vmem>>) attributes {dimension_semantics = [#tpu.dimension_semantics<parallel>], iteration_bounds = array<i64: 2>, scalar_prefetch = 0 : i64, scratch_operands = 0 : i64, tpu.core_type = #tpu.core_type<tc>, window_params = [{transform_indices = @transform_0, window_bounds = array<i64: 4, 4, 512>}, {pipeline_mode = #tpu.pipeline_mode<synchronous>, transform_indices = @transform_1, window_bounds = array<i64: 512, 32>}, {pipeline_mode = #tpu.pipeline_mode<synchronous>, transform_indices = @transform_2, window_bounds = array<i64: 1, 32>}, {pipeline_mode = #tpu.pipeline_mode<synchronous>, transform_indices = @transform_3, window_bounds = array<i64: 1, 32>}, {pipeline_mode = #tpu.pipeline_mode<synchronous>, transform_indices = @transform_4, window_bounds = array<i64: 5, 32>}, {transform_indices = @transform_5, window_bounds = array<i64: 4, 5, 32>}]} {
    %c0 = arith.constant 0 : index
    %c0_0 = arith.constant 0 : index
    %c0_1 = arith.constant 0 : index
    %0 = vector.load %arg1[%c0, %c0_0, %c0_1] : memref<4x4x512xf32, #tpu.memory_space<vmem>>, vector<4x4x512xf32>
    %1 = vector.shape_cast %0 : vector<4x4x512xf32> to vector<16x512xf32>
    %2 = arith.truncf %1 : vector<16x512xf32> to vector<16x512xbf16>
    %c0_2 = arith.constant 0 : index
    %c0_3 = arith.constant 0 : index
    %3 = vector.load %arg2[%c0_2, %c0_3] : memref<512x32xbf16, #tpu.memory_space<vmem>>, vector<512x32xbf16>
    %cst = arith.constant dense<0.000000e+00> : vector<16x32xf32>
    %4 = tpu.matmul %2, %3, %cst {dimension_numbers = #tpu.dot_dimension_numbers<[1], [0], [0], [1], [0, 0, 1, 1], [], []>} : vector<16x512xbf16>, vector<512x32xbf16>, vector<16x32xf32> -> vector<16x32xf32>
    %c0_4 = arith.constant 0 : index
    %c0_5 = arith.constant 0 : index
    %5 = vector.load %arg3[%c0_4, %c0_5] : memref<1x32xf32, #tpu.memory_space<vmem>>, vector<1x32xf32>
    %6 = vector.broadcast %5 : vector<1x32xf32> to vector<16x32xf32>
    %7 = arith.addf %4, %6 : vector<16x32xf32>
    %8 = vector.shape_cast %7 : vector<16x32xf32> to vector<4x4x32xf32>
    %c0_6 = arith.constant 0 : index
    %c0_7 = arith.constant 0 : index
    %9 = vector.load %arg4[%c0_6, %c0_7] : memref<1x32xf32, #tpu.memory_space<vmem>>, vector<1x32xf32>
    %10 = vector.shape_cast %9 : vector<1x32xf32> to vector<1x1x32xf32>
    %11 = vector.shape_cast %10 : vector<1x1x32xf32> to vector<1x1x32xf32>
    %12 = vector.broadcast %11 : vector<1x1x32xf32> to vector<4x1x32xf32>
    %13 = tpu.concatenate %12, %8 in 1 : vector<4x1x32xf32>, vector<4x4x32xf32> -> vector<4x5x32xf32>
    %c0_8 = arith.constant 0 : index
    %c0_9 = arith.constant 0 : index
    %14 = vector.load %arg5[%c0_8, %c0_9] : memref<5x32xf32, #tpu.memory_space<vmem>>, vector<5x32xf32>
    %15 = vector.shape_cast %14 : vector<5x32xf32> to vector<1x5x32xf32>
    %16 = vector.broadcast %15 : vector<1x5x32xf32> to vector<4x5x32xf32>
    %17 = arith.addf %13, %16 : vector<4x5x32xf32>
    %18 = arith.truncf %17 : vector<4x5x32xf32> to vector<4x5x32xbf16>
    %c0_10 = arith.constant 0 : index
    %c0_11 = arith.constant 0 : index
    %c0_12 = arith.constant 0 : index
    %19 = vector.load %arg6[%c0_10, %c0_11, %c0_12] : memref<4x5x32xbf16, #tpu.memory_space<vmem>>, vector<4x5x32xbf16>
    tpu.vector_store %arg6[%c0_10, %c0_11, %c0_12], %18 {strides = array<i32>} : memref<4x5x32xbf16, #tpu.memory_space<vmem>>, vector<4x5x32xbf16>,
    return
  }
  func.func @transform_0(%arg0: i32) -> (i32, i32, i32) {
    %c0_i32 = arith.constant 0 : i32
    %c0_i32_0 = arith.constant 0 : i32
    %c0_i32_1 = arith.constant 0 : i32
    return %arg0, %c0_i32, %c0_i32_0 : i32, i32, i32
  }
  func.func @transform_1(%arg0: i32) -> (i32, i32) {
    %c0_i32 = arith.constant 0 : i32
    %c0_i32_0 = arith.constant 0 : i32
    %c0_i32_1 = arith.constant 0 : i32
    return %c0_i32, %c0_i32_0 : i32, i32
  }
  func.func @transform_2(%arg0: i32) -> (i32, i32) {
    %c0_i32 = arith.constant 0 : i32
    %c0_i32_0 = arith.constant 0 : i32
    %c0_i32_1 = arith.constant 0 : i32
    return %c0_i32, %c0_i32_0 : i32, i32
  }
  func.func @transform_3(%arg0: i32) -> (i32, i32) {
    %c0_i32 = arith.constant 0 : i32
    %c0_i32_0 = arith.constant 0 : i32
    %c0_i32_1 = arith.constant 0 : i32
    return %c0_i32, %c0_i32_0 : i32, i32
  }
  func.func @transform_4(%arg0: i32) -> (i32, i32) {
    %c0_i32 = arith.constant 0 : i32
    %c0_i32_0 = arith.constant 0 : i32
    %c0_i32_1 = arith.constant 0 : i32
    return %c0_i32, %c0_i32_0 : i32, i32
  }
  func.func @transform_5(%arg0: i32) -> (i32, i32, i32) {
    %c0_i32 = arith.constant 0 : i32
    %c0_i32_0 = arith.constant 0 : i32
    %c0_i32_1 = arith.constant 0 : i32
    return %arg0, %c0_i32, %c0_i32_0 : i32, i32, i32
  }
}

module attributes {stable_mosaic.version = 11 : i64} {
  func.func @_stage_kernel(%arg0: i32, %arg1: i32, %arg2: memref<4x5x32xbf16, #tpu.memory_space<vmem>>, %arg3: memref<1x1x32xf32, #tpu.memory_space<vmem>>, %arg4: memref<1x1x32xf32, #tpu.memory_space<vmem>>, %arg5: memref<1x32x96xbf16, #tpu.memory_space<vmem>>, %arg6: memref<1x1x96xf32, #tpu.memory_space<vmem>>, %arg7: memref<1x32x32xbf16, #tpu.memory_space<vmem>>, %arg8: memref<1x1x32xf32, #tpu.memory_space<vmem>>, %arg9: memref<1x1x32xf32, #tpu.memory_space<vmem>>, %arg10: memref<1x1x32xf32, #tpu.memory_space<vmem>>, %arg11: memref<1x32x128xbf16, #tpu.memory_space<vmem>>, %arg12: memref<1x1x128xf32, #tpu.memory_space<vmem>>, %arg13: memref<1x128x32xbf16, #tpu.memory_space<vmem>>, %arg14: memref<1x1x32xf32, #tpu.memory_space<vmem>>, %arg15: memref<4x5x32xbf16, #tpu.memory_space<vmem>>, %arg16: memref<20x32xf32, #tpu.memory_space<vmem>>) attributes {dimension_semantics = [#tpu.dimension_semantics<parallel>, #tpu.dimension_semantics<arbitrary>], iteration_bounds = array<i64: 2, 2>, scalar_prefetch = 0 : i64, scratch_operands = 1 : i64, tpu.core_type = #tpu.core_type<tc>, window_params = [{transform_indices = @transform_0, window_bounds = array<i64: 4, 5, 32>}, {transform_indices = @transform_1, window_bounds = array<i64: 1, 1, 32>}, {transform_indices = @transform_2, window_bounds = array<i64: 1, 1, 32>}, {transform_indices = @transform_3, window_bounds = array<i64: 1, 32, 96>}, {transform_indices = @transform_4, window_bounds = array<i64: 1, 1, 96>}, {transform_indices = @transform_5, window_bounds = array<i64: 1, 32, 32>}, {transform_indices = @transform_6, window_bounds = array<i64: 1, 1, 32>}, {transform_indices = @transform_7, window_bounds = array<i64: 1, 1, 32>}, {transform_indices = @transform_8, window_bounds = array<i64: 1, 1, 32>}, {transform_indices = @transform_9, window_bounds = array<i64: 1, 32, 128>}, {transform_indices = @transform_10, window_bounds = array<i64: 1, 1, 128>}, {transform_indices = @transform_11, window_bounds = array<i64: 1, 128, 32>}, {transform_indices = @transform_12, window_bounds = array<i64: 1, 1, 32>}, {transform_indices = @transform_13, window_bounds = array<i64: 4, 5, 32>}]} {
    %c0_i32 = arith.constant 0 : i32
    %0 = arith.cmpi eq, %arg1, %c0_i32 : i32
    %1 = arith.extui %0 : i1 to i32
    %c0_i32_0 = arith.constant 0 : i32
    %2 = arith.cmpi ne, %1, %c0_i32_0 : i32
    scf.if %2 {
      %c0_74 = arith.constant 0 : index
      %c0_75 = arith.constant 0 : index
      %c0_76 = arith.constant 0 : index
      %182 = vector.load %arg2[%c0_74, %c0_75, %c0_76] : memref<4x5x32xbf16, #tpu.memory_space<vmem>>, vector<4x5x32xbf16>
      %183 = vector.shape_cast %182 : vector<4x5x32xbf16> to vector<20x32xbf16>
      %184 = arith.extf %183 : vector<20x32xbf16> to vector<20x32xf32>
      %c0_77 = arith.constant 0 : index
      %c0_78 = arith.constant 0 : index
      %185 = vector.load %arg16[%c0_77, %c0_78] : memref<20x32xf32, #tpu.memory_space<vmem>>, vector<20x32xf32>
      tpu.vector_store %arg16[%c0_77, %c0_78], %184 {strides = array<i32>} : memref<20x32xf32, #tpu.memory_space<vmem>>, vector<20x32xf32>,
    } else {
    }
    %c0 = arith.constant 0 : index
    %c0_1 = arith.constant 0 : index
    %3 = vector.load %arg16[%c0, %c0_1] : memref<20x32xf32, #tpu.memory_space<vmem>>, vector<20x32xf32>
    %c0_2 = arith.constant 0 : index
    %c0_3 = arith.constant 0 : index
    %c0_4 = arith.constant 0 : index
    %4 = vector.load %arg3[%c0_2, %c0_3, %c0_4] : memref<1x1x32xf32, #tpu.memory_space<vmem>>, vector<1x1x32xf32>
    %5 = vector.shape_cast %4 : vector<1x1x32xf32> to vector<1x32xf32>
    %c0_5 = arith.constant 0 : index
    %c0_6 = arith.constant 0 : index
    %c0_7 = arith.constant 0 : index
    %6 = vector.load %arg4[%c0_5, %c0_6, %c0_7] : memref<1x1x32xf32, #tpu.memory_space<vmem>>, vector<1x1x32xf32>
    %7 = vector.shape_cast %6 : vector<1x1x32xf32> to vector<1x32xf32>
    %cst = arith.constant dense<0.000000e+00> : vector<20xf32>
    %8 = vector.multi_reduction <add>, %3, %cst [1] : vector<20x32xf32> to vector<20xf32>
    %9 = vector.shape_cast %8 : vector<20xf32> to vector<20x1xf32>
    %cst_8 = arith.constant 3.200000e+01 : f32
    %10 = vector.broadcast %cst_8 : f32 to vector<20x1xf32>
    %11 = arith.divf %9, %10 : vector<20x1xf32>
    %12 = vector.broadcast %11 : vector<20x1xf32> to vector<20x32xf32>
    %13 = arith.subf %3, %12 : vector<20x32xf32>
    %14 = arith.mulf %13, %13 : vector<20x32xf32>
    %cst_9 = arith.constant dense<0.000000e+00> : vector<20xf32>
    %15 = vector.multi_reduction <add>, %14, %cst_9 [1] : vector<20x32xf32> to vector<20xf32>
    %16 = vector.shape_cast %15 : vector<20xf32> to vector<20x1xf32>
    %cst_10 = arith.constant 3.200000e+01 : f32
    %17 = vector.broadcast %cst_10 : f32 to vector<20x1xf32>
    %18 = arith.divf %16, %17 : vector<20x1xf32>
    %19 = vector.broadcast %11 : vector<20x1xf32> to vector<20x32xf32>
    %20 = arith.subf %3, %19 : vector<20x32xf32>
    %cst_11 = arith.constant 9.99999974E-6 : f32
    %21 = vector.broadcast %cst_11 : f32 to vector<20x1xf32>
    %22 = arith.addf %18, %21 : vector<20x1xf32>
    %23 = math.rsqrt %22 : vector<20x1xf32>
    %24 = vector.broadcast %23 : vector<20x1xf32> to vector<20x32xf32>
    %25 = arith.mulf %20, %24 : vector<20x32xf32>
    %26 = vector.broadcast %5 : vector<1x32xf32> to vector<20x32xf32>
    %27 = arith.mulf %25, %26 : vector<20x32xf32>
    %28 = vector.broadcast %7 : vector<1x32xf32> to vector<20x32xf32>
    %29 = arith.addf %27, %28 : vector<20x32xf32>
    %30 = arith.truncf %29 : vector<20x32xf32> to vector<20x32xbf16>
    %c0_12 = arith.constant 0 : index
    %c0_13 = arith.constant 0 : index
    %c0_14 = arith.constant 0 : index
    %31 = vector.load %arg5[%c0_12, %c0_13, %c0_14] : memref<1x32x96xbf16, #tpu.memory_space<vmem>>, vector<1x32x96xbf16>
    %32 = vector.shape_cast %31 : vector<1x32x96xbf16> to vector<32x96xbf16>
    %cst_15 = arith.constant dense<0.000000e+00> : vector<20x96xf32>
    %33 = tpu.matmul %30, %32, %cst_15 {dimension_numbers = #tpu.dot_dimension_numbers<[1], [0], [0], [1], [0, 0, 1, 1], [], []>} : vector<20x32xbf16>, vector<32x96xbf16>, vector<20x96xf32> -> vector<20x96xf32>
    %c0_16 = arith.constant 0 : index
    %c0_17 = arith.constant 0 : index
    %c0_18 = arith.constant 0 : index
    %34 = vector.load %arg6[%c0_16, %c0_17, %c0_18] : memref<1x1x96xf32, #tpu.memory_space<vmem>>, vector<1x1x96xf32>
    %35 = vector.shape_cast %34 : vector<1x1x96xf32> to vector<1x96xf32>
    %36 = vector.broadcast %35 : vector<1x96xf32> to vector<20x96xf32>
    %37 = arith.addf %33, %36 : vector<20x96xf32>
    %38 = vector.extract_strided_slice %37 {offsets = [0, 0], sizes = [20, 32], strides = [1, 1]} : vector<20x96xf32> to vector<20x32xf32>
    %39 = arith.truncf %38 : vector<20x32xf32> to vector<20x32xbf16>
    %40 = vector.shape_cast %39 : vector<20x32xbf16> to vector<4x5x32xbf16>
    %41 = vector.extract_strided_slice %37 {offsets = [0, 32], sizes = [20, 32], strides = [1, 1]} : vector<20x96xf32> to vector<20x32xf32>
    %42 = arith.truncf %41 : vector<20x32xf32> to vector<20x32xbf16>
    %43 = vector.shape_cast %42 : vector<20x32xbf16> to vector<4x5x32xbf16>
    %44 = vector.extract_strided_slice %37 {offsets = [0, 64], sizes = [20, 32], strides = [1, 1]} : vector<20x96xf32> to vector<20x32xf32>
    %45 = arith.truncf %44 : vector<20x32xf32> to vector<20x32xbf16>
    %46 = vector.shape_cast %45 : vector<20x32xbf16> to vector<4x5x32xbf16>
    %47 = vector.extract_strided_slice %40 {offsets = [0, 0, 0], sizes = [4, 5, 8], strides = [1, 1, 1]} : vector<4x5x32xbf16> to vector<4x5x8xbf16>
    %48 = vector.extract_strided_slice %43 {offsets = [0, 0, 0], sizes = [4, 5, 8], strides = [1, 1, 1]} : vector<4x5x32xbf16> to vector<4x5x8xbf16>
    "tpu.trace_start"() <{level = 10 : i32, message = "rqd,rkd->rqk"}> : () -> ()
    %cst_19 = arith.constant dense<0.000000e+00> : vector<4x5x5xf32>
    %49 = tpu.matmul %47, %48, %cst_19 {dimension_numbers = #tpu.dot_dimension_numbers<[2], [2], [1], [1], [0, 0, 0, 1, 1, 1], [0], [0]>} : vector<4x5x8xbf16>, vector<4x5x8xbf16>, vector<4x5x5xf32> -> vector<4x5x5xf32>
    "tpu.trace_stop"() : () -> ()
    %cst_20 = arith.constant dense<0xFF800000> : vector<4x5xf32>
    %50 = vector.multi_reduction <maximumf>, %49, %cst_20 [2] : vector<4x5x5xf32> to vector<4x5xf32>
    %51 = vector.shape_cast %50 : vector<4x5xf32> to vector<4x5x1xf32>
    %52 = vector.broadcast %51 : vector<4x5x1xf32> to vector<4x5x5xf32>
    %53 = arith.subf %49, %52 : vector<4x5x5xf32>
    %54 = math.exp %53 : vector<4x5x5xf32>
    %cst_21 = arith.constant dense<0.000000e+00> : vector<4x5xf32>
    %55 = vector.multi_reduction <add>, %54, %cst_21 [2] : vector<4x5x5xf32> to vector<4x5xf32>
    %56 = vector.shape_cast %55 : vector<4x5xf32> to vector<4x5x1xf32>
    %57 = tpu.reciprocal %56 {approx = true} : vector<4x5x1xf32> -> vector<4x5x1xf32>
    %58 = vector.broadcast %57 : vector<4x5x1xf32> to vector<4x5x5xf32>
    %59 = arith.mulf %54, %58 : vector<4x5x5xf32>
    %60 = arith.truncf %59 : vector<4x5x5xf32> to vector<4x5x5xbf16>
    %61 = vector.extract_strided_slice %46 {offsets = [0, 0, 0], sizes = [4, 5, 8], strides = [1, 1, 1]} : vector<4x5x32xbf16> to vector<4x5x8xbf16>
    "tpu.trace_start"() <{level = 10 : i32, message = "rqk,rkd->rqd"}> : () -> ()
    %cst_22 = arith.constant dense<0.000000e+00> : vector<4x5x8xf32>
    %62 = tpu.matmul %60, %61, %cst_22 {dimension_numbers = #tpu.dot_dimension_numbers<[2], [1], [1], [2], [0, 0, 0, 1, 1, 2], [0], [0]>} : vector<4x5x5xbf16>, vector<4x5x8xbf16>, vector<4x5x8xf32> -> vector<4x5x8xf32>
    "tpu.trace_stop"() : () -> ()
    %63 = vector.extract_strided_slice %40 {offsets = [0, 0, 8], sizes = [4, 5, 8], strides = [1, 1, 1]} : vector<4x5x32xbf16> to vector<4x5x8xbf16>
    %64 = vector.extract_strided_slice %43 {offsets = [0, 0, 8], sizes = [4, 5, 8], strides = [1, 1, 1]} : vector<4x5x32xbf16> to vector<4x5x8xbf16>
    "tpu.trace_start"() <{level = 10 : i32, message = "rqd,rkd->rqk"}> : () -> ()
    %cst_23 = arith.constant dense<0.000000e+00> : vector<4x5x5xf32>
    %65 = tpu.matmul %63, %64, %cst_23 {dimension_numbers = #tpu.dot_dimension_numbers<[2], [2], [1], [1], [0, 0, 0, 1, 1, 1], [0], [0]>} : vector<4x5x8xbf16>, vector<4x5x8xbf16>, vector<4x5x5xf32> -> vector<4x5x5xf32>
    "tpu.trace_stop"() : () -> ()
    %cst_24 = arith.constant dense<0xFF800000> : vector<4x5xf32>
    %66 = vector.multi_reduction <maximumf>, %65, %cst_24 [2] : vector<4x5x5xf32> to vector<4x5xf32>
    %67 = vector.shape_cast %66 : vector<4x5xf32> to vector<4x5x1xf32>
    %68 = vector.broadcast %67 : vector<4x5x1xf32> to vector<4x5x5xf32>
    %69 = arith.subf %65, %68 : vector<4x5x5xf32>
    %70 = math.exp %69 : vector<4x5x5xf32>
    %cst_25 = arith.constant dense<0.000000e+00> : vector<4x5xf32>
    %71 = vector.multi_reduction <add>, %70, %cst_25 [2] : vector<4x5x5xf32> to vector<4x5xf32>
    %72 = vector.shape_cast %71 : vector<4x5xf32> to vector<4x5x1xf32>
    %73 = tpu.reciprocal %72 {approx = true} : vector<4x5x1xf32> -> vector<4x5x1xf32>
    %74 = vector.broadcast %73 : vector<4x5x1xf32> to vector<4x5x5xf32>
    %75 = arith.mulf %70, %74 : vector<4x5x5xf32>
    %76 = arith.truncf %75 : vector<4x5x5xf32> to vector<4x5x5xbf16>
    %77 = vector.extract_strided_slice %46 {offsets = [0, 0, 8], sizes = [4, 5, 8], strides = [1, 1, 1]} : vector<4x5x32xbf16> to vector<4x5x8xbf16>
    "tpu.trace_start"() <{level = 10 : i32, message = "rqk,rkd->rqd"}> : () -> ()
    %cst_26 = arith.constant dense<0.000000e+00> : vector<4x5x8xf32>
    %78 = tpu.matmul %76, %77, %cst_26 {dimension_numbers = #tpu.dot_dimension_numbers<[2], [1], [1], [2], [0, 0, 0, 1, 1, 2], [0], [0]>} : vector<4x5x5xbf16>, vector<4x5x8xbf16>, vector<4x5x8xf32> -> vector<4x5x8xf32>
    "tpu.trace_stop"() : () -> ()
    %79 = vector.extract_strided_slice %40 {offsets = [0, 0, 16], sizes = [4, 5, 8], strides = [1, 1, 1]} : vector<4x5x32xbf16> to vector<4x5x8xbf16>
    %80 = vector.extract_strided_slice %43 {offsets = [0, 0, 16], sizes = [4, 5, 8], strides = [1, 1, 1]} : vector<4x5x32xbf16> to vector<4x5x8xbf16>
    "tpu.trace_start"() <{level = 10 : i32, message = "rqd,rkd->rqk"}> : () -> ()
    %cst_27 = arith.constant dense<0.000000e+00> : vector<4x5x5xf32>
    %81 = tpu.matmul %79, %80, %cst_27 {dimension_numbers = #tpu.dot_dimension_numbers<[2], [2], [1], [1], [0, 0, 0, 1, 1, 1], [0], [0]>} : vector<4x5x8xbf16>, vector<4x5x8xbf16>, vector<4x5x5xf32> -> vector<4x5x5xf32>
    "tpu.trace_stop"() : () -> ()
    %cst_28 = arith.constant dense<0xFF800000> : vector<4x5xf32>
    %82 = vector.multi_reduction <maximumf>, %81, %cst_28 [2] : vector<4x5x5xf32> to vector<4x5xf32>
    %83 = vector.shape_cast %82 : vector<4x5xf32> to vector<4x5x1xf32>
    %84 = vector.broadcast %83 : vector<4x5x1xf32> to vector<4x5x5xf32>
    %85 = arith.subf %81, %84 : vector<4x5x5xf32>
    %86 = math.exp %85 : vector<4x5x5xf32>
    %cst_29 = arith.constant dense<0.000000e+00> : vector<4x5xf32>
    %87 = vector.multi_reduction <add>, %86, %cst_29 [2] : vector<4x5x5xf32> to vector<4x5xf32>
    %88 = vector.shape_cast %87 : vector<4x5xf32> to vector<4x5x1xf32>
    %89 = tpu.reciprocal %88 {approx = true} : vector<4x5x1xf32> -> vector<4x5x1xf32>
    %90 = vector.broadcast %89 : vector<4x5x1xf32> to vector<4x5x5xf32>
    %91 = arith.mulf %86, %90 : vector<4x5x5xf32>
    %92 = arith.truncf %91 : vector<4x5x5xf32> to vector<4x5x5xbf16>
    %93 = vector.extract_strided_slice %46 {offsets = [0, 0, 16], sizes = [4, 5, 8], strides = [1, 1, 1]} : vector<4x5x32xbf16> to vector<4x5x8xbf16>
    "tpu.trace_start"() <{level = 10 : i32, message = "rqk,rkd->rqd"}> : () -> ()
    %cst_30 = arith.constant dense<0.000000e+00> : vector<4x5x8xf32>
    %94 = tpu.matmul %92, %93, %cst_30 {dimension_numbers = #tpu.dot_dimension_numbers<[2], [1], [1], [2], [0, 0, 0, 1, 1, 2], [0], [0]>} : vector<4x5x5xbf16>, vector<4x5x8xbf16>, vector<4x5x8xf32> -> vector<4x5x8xf32>
    "tpu.trace_stop"() : () -> ()
    %95 = vector.extract_strided_slice %40 {offsets = [0, 0, 24], sizes = [4, 5, 8], strides = [1, 1, 1]} : vector<4x5x32xbf16> to vector<4x5x8xbf16>
    %96 = vector.extract_strided_slice %43 {offsets = [0, 0, 24], sizes = [4, 5, 8], strides = [1, 1, 1]} : vector<4x5x32xbf16> to vector<4x5x8xbf16>
    "tpu.trace_start"() <{level = 10 : i32, message = "rqd,rkd->rqk"}> : () -> ()
    %cst_31 = arith.constant dense<0.000000e+00> : vector<4x5x5xf32>
    %97 = tpu.matmul %95, %96, %cst_31 {dimension_numbers = #tpu.dot_dimension_numbers<[2], [2], [1], [1], [0, 0, 0, 1, 1, 1], [0], [0]>} : vector<4x5x8xbf16>, vector<4x5x8xbf16>, vector<4x5x5xf32> -> vector<4x5x5xf32>
    "tpu.trace_stop"() : () -> ()
    %cst_32 = arith.constant dense<0xFF800000> : vector<4x5xf32>
    %98 = vector.multi_reduction <maximumf>, %97, %cst_32 [2] : vector<4x5x5xf32> to vector<4x5xf32>
    %99 = vector.shape_cast %98 : vector<4x5xf32> to vector<4x5x1xf32>
    %100 = vector.broadcast %99 : vector<4x5x1xf32> to vector<4x5x5xf32>
    %101 = arith.subf %97, %100 : vector<4x5x5xf32>
    %102 = math.exp %101 : vector<4x5x5xf32>
    %cst_33 = arith.constant dense<0.000000e+00> : vector<4x5xf32>
    %103 = vector.multi_reduction <add>, %102, %cst_33 [2] : vector<4x5x5xf32> to vector<4x5xf32>
    %104 = vector.shape_cast %103 : vector<4x5xf32> to vector<4x5x1xf32>
    %105 = tpu.reciprocal %104 {approx = true} : vector<4x5x1xf32> -> vector<4x5x1xf32>
    %106 = vector.broadcast %105 : vector<4x5x1xf32> to vector<4x5x5xf32>
    %107 = arith.mulf %102, %106 : vector<4x5x5xf32>
    %108 = arith.truncf %107 : vector<4x5x5xf32> to vector<4x5x5xbf16>
    %109 = vector.extract_strided_slice %46 {offsets = [0, 0, 24], sizes = [4, 5, 8], strides = [1, 1, 1]} : vector<4x5x32xbf16> to vector<4x5x8xbf16>
    "tpu.trace_start"() <{level = 10 : i32, message = "rqk,rkd->rqd"}> : () -> ()
    %cst_34 = arith.constant dense<0.000000e+00> : vector<4x5x8xf32>
    %110 = tpu.matmul %108, %109, %cst_34 {dimension_numbers = #tpu.dot_dimension_numbers<[2], [1], [1], [2], [0, 0, 0, 1, 1, 2], [0], [0]>} : vector<4x5x5xbf16>, vector<4x5x8xbf16>, vector<4x5x8xf32> -> vector<4x5x8xf32>
    "tpu.trace_stop"() : () -> ()
    %111 = tpu.concatenate %62, %78, %94, %110 in 2 : vector<4x5x8xf32>, vector<4x5x8xf32>, vector<4x5x8xf32>, vector<4x5x8xf32> -> vector<4x5x32xf32>
    %112 = vector.shape_cast %111 : vector<4x5x32xf32> to vector<20x32xf32>
    %113 = arith.truncf %112 : vector<20x32xf32> to vector<20x32xbf16>
    %c0_35 = arith.constant 0 : index
    %c0_36 = arith.constant 0 : index
    %c0_37 = arith.constant 0 : index
    %114 = vector.load %arg7[%c0_35, %c0_36, %c0_37] : memref<1x32x32xbf16, #tpu.memory_space<vmem>>, vector<1x32x32xbf16>
    %115 = vector.shape_cast %114 : vector<1x32x32xbf16> to vector<32x32xbf16>
    %cst_38 = arith.constant dense<0.000000e+00> : vector<20x32xf32>
    %116 = tpu.matmul %113, %115, %cst_38 {dimension_numbers = #tpu.dot_dimension_numbers<[1], [0], [0], [1], [0, 0, 1, 1], [], []>} : vector<20x32xbf16>, vector<32x32xbf16>, vector<20x32xf32> -> vector<20x32xf32>
    %117 = arith.addf %3, %116 : vector<20x32xf32>
    %c0_39 = arith.constant 0 : index
    %c0_40 = arith.constant 0 : index
    %c0_41 = arith.constant 0 : index
    %118 = vector.load %arg8[%c0_39, %c0_40, %c0_41] : memref<1x1x32xf32, #tpu.memory_space<vmem>>, vector<1x1x32xf32>
    %119 = vector.shape_cast %118 : vector<1x1x32xf32> to vector<1x32xf32>
    %120 = vector.broadcast %119 : vector<1x32xf32> to vector<20x32xf32>
    %121 = arith.addf %117, %120 : vector<20x32xf32>
    %c0_42 = arith.constant 0 : index
    %c0_43 = arith.constant 0 : index
    %c0_44 = arith.constant 0 : index
    %122 = vector.load %arg9[%c0_42, %c0_43, %c0_44] : memref<1x1x32xf32, #tpu.memory_space<vmem>>, vector<1x1x32xf32>
    %123 = vector.shape_cast %122 : vector<1x1x32xf32> to vector<1x32xf32>
    %c0_45 = arith.constant 0 : index
    %c0_46 = arith.constant 0 : index
    %c0_47 = arith.constant 0 : index
    %124 = vector.load %arg10[%c0_45, %c0_46, %c0_47] : memref<1x1x32xf32, #tpu.memory_space<vmem>>, vector<1x1x32xf32>
    %125 = vector.shape_cast %124 : vector<1x1x32xf32> to vector<1x32xf32>
    %cst_48 = arith.constant dense<0.000000e+00> : vector<20xf32>
    %126 = vector.multi_reduction <add>, %121, %cst_48 [1] : vector<20x32xf32> to vector<20xf32>
    %127 = vector.shape_cast %126 : vector<20xf32> to vector<20x1xf32>
    %cst_49 = arith.constant 3.200000e+01 : f32
    %128 = vector.broadcast %cst_49 : f32 to vector<20x1xf32>
    %129 = arith.divf %127, %128 : vector<20x1xf32>
    %130 = vector.broadcast %129 : vector<20x1xf32> to vector<20x32xf32>
    %131 = arith.subf %121, %130 : vector<20x32xf32>
    %132 = arith.mulf %131, %131 : vector<20x32xf32>
    %cst_50 = arith.constant dense<0.000000e+00> : vector<20xf32>
    %133 = vector.multi_reduction <add>, %132, %cst_50 [1] : vector<20x32xf32> to vector<20xf32>
    %134 = vector.shape_cast %133 : vector<20xf32> to vector<20x1xf32>
    %cst_51 = arith.constant 3.200000e+01 : f32
    %135 = vector.broadcast %cst_51 : f32 to vector<20x1xf32>
    %136 = arith.divf %134, %135 : vector<20x1xf32>
    %137 = vector.broadcast %129 : vector<20x1xf32> to vector<20x32xf32>
    %138 = arith.subf %121, %137 : vector<20x32xf32>
    %cst_52 = arith.constant 9.99999974E-6 : f32
    %139 = vector.broadcast %cst_52 : f32 to vector<20x1xf32>
    %140 = arith.addf %136, %139 : vector<20x1xf32>
    %141 = math.rsqrt %140 : vector<20x1xf32>
    %142 = vector.broadcast %141 : vector<20x1xf32> to vector<20x32xf32>
    %143 = arith.mulf %138, %142 : vector<20x32xf32>
    %144 = vector.broadcast %123 : vector<1x32xf32> to vector<20x32xf32>
    %145 = arith.mulf %143, %144 : vector<20x32xf32>
    %146 = vector.broadcast %125 : vector<1x32xf32> to vector<20x32xf32>
    %147 = arith.addf %145, %146 : vector<20x32xf32>
    %148 = arith.truncf %147 : vector<20x32xf32> to vector<20x32xbf16>
    %c0_53 = arith.constant 0 : index
    %c0_54 = arith.constant 0 : index
    %c0_55 = arith.constant 0 : index
    %149 = vector.load %arg11[%c0_53, %c0_54, %c0_55] : memref<1x32x128xbf16, #tpu.memory_space<vmem>>, vector<1x32x128xbf16>
    %150 = vector.shape_cast %149 : vector<1x32x128xbf16> to vector<32x128xbf16>
    %cst_56 = arith.constant dense<0.000000e+00> : vector<20x128xf32>
    %151 = tpu.matmul %148, %150, %cst_56 {dimension_numbers = #tpu.dot_dimension_numbers<[1], [0], [0], [1], [0, 0, 1, 1], [], []>} : vector<20x32xbf16>, vector<32x128xbf16>, vector<20x128xf32> -> vector<20x128xf32>
    %c0_57 = arith.constant 0 : index
    %c0_58 = arith.constant 0 : index
    %c0_59 = arith.constant 0 : index
    %152 = vector.load %arg12[%c0_57, %c0_58, %c0_59] : memref<1x1x128xf32, #tpu.memory_space<vmem>>, vector<1x1x128xf32>
    %153 = vector.shape_cast %152 : vector<1x1x128xf32> to vector<1x128xf32>
    %154 = vector.broadcast %153 : vector<1x128xf32> to vector<20x128xf32>
    %155 = arith.addf %151, %154 : vector<20x128xf32>
    %156 = arith.mulf %155, %155 : vector<20x128xf32>
    %157 = arith.mulf %155, %156 : vector<20x128xf32>
    %cst_60 = arith.constant 4.471500e-02 : f32
    %158 = vector.broadcast %cst_60 : f32 to vector<20x128xf32>
    %159 = arith.mulf %158, %157 : vector<20x128xf32>
    %160 = arith.addf %155, %159 : vector<20x128xf32>
    %cst_61 = arith.constant 0.797884583 : f32
    %161 = vector.broadcast %cst_61 : f32 to vector<20x128xf32>
    %162 = arith.mulf %161, %160 : vector<20x128xf32>
    %163 = math.tanh %162 : vector<20x128xf32>
    %cst_62 = arith.constant 1.000000e+00 : f32
    %164 = vector.broadcast %cst_62 : f32 to vector<20x128xf32>
    %165 = arith.addf %164, %163 : vector<20x128xf32>
    %cst_63 = arith.constant 5.000000e-01 : f32
    %166 = vector.broadcast %cst_63 : f32 to vector<20x128xf32>
    %167 = arith.mulf %166, %165 : vector<20x128xf32>
    %168 = arith.mulf %155, %167 : vector<20x128xf32>
    %169 = arith.truncf %168 : vector<20x128xf32> to vector<20x128xbf16>
    %c0_64 = arith.constant 0 : index
    %c0_65 = arith.constant 0 : index
    %c0_66 = arith.constant 0 : index
    %170 = vector.load %arg13[%c0_64, %c0_65, %c0_66] : memref<1x128x32xbf16, #tpu.memory_space<vmem>>, vector<1x128x32xbf16>
    %171 = vector.shape_cast %170 : vector<1x128x32xbf16> to vector<128x32xbf16>
    %cst_67 = arith.constant dense<0.000000e+00> : vector<20x32xf32>
    %172 = tpu.matmul %169, %171, %cst_67 {dimension_numbers = #tpu.dot_dimension_numbers<[1], [0], [0], [1], [0, 0, 1, 1], [], []>} : vector<20x128xbf16>, vector<128x32xbf16>, vector<20x32xf32> -> vector<20x32xf32>
    %173 = arith.addf %121, %172 : vector<20x32xf32>
    %c0_68 = arith.constant 0 : index
    %c0_69 = arith.constant 0 : index
    %c0_70 = arith.constant 0 : index
    %174 = vector.load %arg14[%c0_68, %c0_69, %c0_70] : memref<1x1x32xf32, #tpu.memory_space<vmem>>, vector<1x1x32xf32>
    %175 = vector.shape_cast %174 : vector<1x1x32xf32> to vector<1x32xf32>
    %176 = vector.broadcast %175 : vector<1x32xf32> to vector<20x32xf32>
    %177 = arith.addf %173, %176 : vector<20x32xf32>
    %c0_71 = arith.constant 0 : index
    %c0_72 = arith.constant 0 : index
    %178 = vector.load %arg16[%c0_71, %c0_72] : memref<20x32xf32, #tpu.memory_space<vmem>>, vector<20x32xf32>
    tpu.vector_store %arg16[%c0_71, %c0_72], %177 {strides = array<i32>} : memref<20x32xf32, #tpu.memory_space<vmem>>, vector<20x32xf32>,
    %c1_i32 = arith.constant 1 : i32
    %179 = arith.cmpi eq, %arg1, %c1_i32 : i32
    %180 = arith.extui %179 : i1 to i32
    %c0_i32_73 = arith.constant 0 : i32
    %181 = arith.cmpi ne, %180, %c0_i32_73 : i32
    scf.if %181 {
      %182 = vector.shape_cast %177 : vector<20x32xf32> to vector<4x5x32xf32>
      %183 = arith.truncf %182 : vector<4x5x32xf32> to vector<4x5x32xbf16>
      %c0_74 = arith.constant 0 : index
      %c0_75 = arith.constant 0 : index
      %c0_76 = arith.constant 0 : index
      %184 = vector.load %arg15[%c0_74, %c0_75, %c0_76] : memref<4x5x32xbf16, #tpu.memory_space<vmem>>, vector<4x5x32xbf16>
      tpu.vector_store %arg15[%c0_74, %c0_75, %c0_76], %183 {strides = array<i32>} : memref<4x5x32xbf16, #tpu.memory_space<vmem>>, vector<4x5x32xbf16>,
    } else {
    }
    return
  }
  func.func @transform_0(%arg0: i32, %arg1: i32) -> (i32, i32, i32) {
    %c0_i32 = arith.constant 0 : i32
    %c0_i32_0 = arith.constant 0 : i32
    %c0_i32_1 = arith.constant 0 : i32
    return %arg0, %c0_i32, %c0_i32_0 : i32, i32, i32
  }
  func.func @transform_1(%arg0: i32, %arg1: i32) -> (i32, i32, i32) {
    %c0_i32 = arith.constant 0 : i32
    %c0_i32_0 = arith.constant 0 : i32
    %c0_i32_1 = arith.constant 0 : i32
    return %arg1, %c0_i32, %c0_i32_0 : i32, i32, i32
  }
  func.func @transform_2(%arg0: i32, %arg1: i32) -> (i32, i32, i32) {
    %c0_i32 = arith.constant 0 : i32
    %c0_i32_0 = arith.constant 0 : i32
    %c0_i32_1 = arith.constant 0 : i32
    return %arg1, %c0_i32, %c0_i32_0 : i32, i32, i32
  }
  func.func @transform_3(%arg0: i32, %arg1: i32) -> (i32, i32, i32) {
    %c0_i32 = arith.constant 0 : i32
    %c0_i32_0 = arith.constant 0 : i32
    %c0_i32_1 = arith.constant 0 : i32
    return %arg1, %c0_i32, %c0_i32_0 : i32, i32, i32
  }
  func.func @transform_4(%arg0: i32, %arg1: i32) -> (i32, i32, i32) {
    %c0_i32 = arith.constant 0 : i32
    %c0_i32_0 = arith.constant 0 : i32
    %c0_i32_1 = arith.constant 0 : i32
    return %arg1, %c0_i32, %c0_i32_0 : i32, i32, i32
  }
  func.func @transform_5(%arg0: i32, %arg1: i32) -> (i32, i32, i32) {
    %c0_i32 = arith.constant 0 : i32
    %c0_i32_0 = arith.constant 0 : i32
    %c0_i32_1 = arith.constant 0 : i32
    return %arg1, %c0_i32, %c0_i32_0 : i32, i32, i32
  }
  func.func @transform_6(%arg0: i32, %arg1: i32) -> (i32, i32, i32) {
    %c0_i32 = arith.constant 0 : i32
    %c0_i32_0 = arith.constant 0 : i32
    %c0_i32_1 = arith.constant 0 : i32
    return %arg1, %c0_i32, %c0_i32_0 : i32, i32, i32
  }
  func.func @transform_7(%arg0: i32, %arg1: i32) -> (i32, i32, i32) {
    %c0_i32 = arith.constant 0 : i32
    %c0_i32_0 = arith.constant 0 : i32
    %c0_i32_1 = arith.constant 0 : i32
    return %arg1, %c0_i32, %c0_i32_0 : i32, i32, i32
  }
  func.func @transform_8(%arg0: i32, %arg1: i32) -> (i32, i32, i32) {
    %c0_i32 = arith.constant 0 : i32
    %c0_i32_0 = arith.constant 0 : i32
    %c0_i32_1 = arith.constant 0 : i32
    return %arg1, %c0_i32, %c0_i32_0 : i32, i32, i32
  }
  func.func @transform_9(%arg0: i32, %arg1: i32) -> (i32, i32, i32) {
    %c0_i32 = arith.constant 0 : i32
    %c0_i32_0 = arith.constant 0 : i32
    %c0_i32_1 = arith.constant 0 : i32
    return %arg1, %c0_i32, %c0_i32_0 : i32, i32, i32
  }
  func.func @transform_10(%arg0: i32, %arg1: i32) -> (i32, i32, i32) {
    %c0_i32 = arith.constant 0 : i32
    %c0_i32_0 = arith.constant 0 : i32
    %c0_i32_1 = arith.constant 0 : i32
    return %arg1, %c0_i32, %c0_i32_0 : i32, i32, i32
  }
  func.func @transform_11(%arg0: i32, %arg1: i32) -> (i32, i32, i32) {
    %c0_i32 = arith.constant 0 : i32
    %c0_i32_0 = arith.constant 0 : i32
    %c0_i32_1 = arith.constant 0 : i32
    return %arg1, %c0_i32, %c0_i32_0 : i32, i32, i32
  }
  func.func @transform_12(%arg0: i32, %arg1: i32) -> (i32, i32, i32) {
    %c0_i32 = arith.constant 0 : i32
    %c0_i32_0 = arith.constant 0 : i32
    %c0_i32_1 = arith.constant 0 : i32
    return %arg1, %c0_i32, %c0_i32_0 : i32, i32, i32
  }
  func.func @transform_13(%arg0: i32, %arg1: i32) -> (i32, i32, i32) {
    %c0_i32 = arith.constant 0 : i32
    %c0_i32_0 = arith.constant 0 : i32
    %c0_i32_1 = arith.constant 0 : i32
    return %arg0, %c0_i32, %c0_i32_0 : i32, i32, i32
  }
}

module attributes {stable_mosaic.version = 11 : i64} {
  func.func @_head_kernel(%arg0: memref<8x32xbf16, #tpu.memory_space<vmem>>, %arg1: memref<1x32xf32, #tpu.memory_space<vmem>>, %arg2: memref<1x32xf32, #tpu.memory_space<vmem>>, %arg3: memref<32x128xbf16, #tpu.memory_space<vmem>>, %arg4: memref<1x128xf32, #tpu.memory_space<vmem>>, %arg5: memref<8x128xf32, #tpu.memory_space<vmem>>) attributes {dimension_semantics = [], scalar_prefetch = 0 : i64, scratch_operands = 0 : i64, tpu.core_type = #tpu.core_type<tc>} {
    %c0 = arith.constant 0 : index
    %c0_0 = arith.constant 0 : index
    %0 = vector.load %arg0[%c0, %c0_0] : memref<8x32xbf16, #tpu.memory_space<vmem>>, vector<8x32xbf16>
    %1 = arith.extf %0 : vector<8x32xbf16> to vector<8x32xf32>
    %c0_1 = arith.constant 0 : index
    %c0_2 = arith.constant 0 : index
    %2 = vector.load %arg1[%c0_1, %c0_2] : memref<1x32xf32, #tpu.memory_space<vmem>>, vector<1x32xf32>
    %c0_3 = arith.constant 0 : index
    %c0_4 = arith.constant 0 : index
    %3 = vector.load %arg2[%c0_3, %c0_4] : memref<1x32xf32, #tpu.memory_space<vmem>>, vector<1x32xf32>
    %cst = arith.constant dense<0.000000e+00> : vector<8xf32>
    %4 = vector.multi_reduction <add>, %1, %cst [1] : vector<8x32xf32> to vector<8xf32>
    %5 = vector.shape_cast %4 : vector<8xf32> to vector<8x1xf32>
    %cst_5 = arith.constant 3.200000e+01 : f32
    %6 = vector.broadcast %cst_5 : f32 to vector<8x1xf32>
    %7 = arith.divf %5, %6 : vector<8x1xf32>
    %8 = vector.broadcast %7 : vector<8x1xf32> to vector<8x32xf32>
    %9 = arith.subf %1, %8 : vector<8x32xf32>
    %10 = arith.mulf %9, %9 : vector<8x32xf32>
    %cst_6 = arith.constant dense<0.000000e+00> : vector<8xf32>
    %11 = vector.multi_reduction <add>, %10, %cst_6 [1] : vector<8x32xf32> to vector<8xf32>
    %12 = vector.shape_cast %11 : vector<8xf32> to vector<8x1xf32>
    %cst_7 = arith.constant 3.200000e+01 : f32
    %13 = vector.broadcast %cst_7 : f32 to vector<8x1xf32>
    %14 = arith.divf %12, %13 : vector<8x1xf32>
    %15 = vector.broadcast %7 : vector<8x1xf32> to vector<8x32xf32>
    %16 = arith.subf %1, %15 : vector<8x32xf32>
    %cst_8 = arith.constant 9.99999997E-7 : f32
    %17 = vector.broadcast %cst_8 : f32 to vector<8x1xf32>
    %18 = arith.addf %14, %17 : vector<8x1xf32>
    %19 = math.rsqrt %18 : vector<8x1xf32>
    %20 = vector.broadcast %19 : vector<8x1xf32> to vector<8x32xf32>
    %21 = arith.mulf %16, %20 : vector<8x32xf32>
    %22 = vector.broadcast %2 : vector<1x32xf32> to vector<8x32xf32>
    %23 = arith.mulf %21, %22 : vector<8x32xf32>
    %24 = vector.broadcast %3 : vector<1x32xf32> to vector<8x32xf32>
    %25 = arith.addf %23, %24 : vector<8x32xf32>
    %26 = arith.truncf %25 : vector<8x32xf32> to vector<8x32xbf16>
    %c0_9 = arith.constant 0 : index
    %c0_10 = arith.constant 0 : index
    %27 = vector.load %arg3[%c0_9, %c0_10] : memref<32x128xbf16, #tpu.memory_space<vmem>>, vector<32x128xbf16>
    %cst_11 = arith.constant dense<0.000000e+00> : vector<8x128xf32>
    %28 = tpu.matmul %26, %27, %cst_11 {dimension_numbers = #tpu.dot_dimension_numbers<[1], [0], [0], [1], [0, 0, 1, 1], [], []>} : vector<8x32xbf16>, vector<32x128xbf16>, vector<8x128xf32> -> vector<8x128xf32>
    %c0_12 = arith.constant 0 : index
    %c0_13 = arith.constant 0 : index
    %29 = vector.load %arg4[%c0_12, %c0_13] : memref<1x128xf32, #tpu.memory_space<vmem>>, vector<1x128xf32>
    %30 = vector.broadcast %29 : vector<1x128xf32> to vector<8x128xf32>
    %31 = arith.addf %28, %30 : vector<8x128xf32>
    %c0_14 = arith.constant 0 : index
    %c0_15 = arith.constant 0 : index
    %32 = vector.load %arg5[%c0_14, %c0_15] : memref<8x128xf32, #tpu.memory_space<vmem>>, vector<8x128xf32>
    tpu.vector_store %arg5[%c0_14, %c0_15], %31 {strides = array<i32>} : memref<8x128xf32, #tpu.memory_space<vmem>>, vector<8x128xf32>,
    return
  }
}

module attributes {stable_mosaic.version = 11 : i64} {
  func.func @_stage_kernel(%arg0: i32, %arg1: i32, %arg2: memref<2x5x32xbf16, #tpu.memory_space<vmem>>, %arg3: memref<1x1x32xf32, #tpu.memory_space<vmem>>, %arg4: memref<1x1x32xf32, #tpu.memory_space<vmem>>, %arg5: memref<1x32x96xbf16, #tpu.memory_space<vmem>>, %arg6: memref<1x1x96xf32, #tpu.memory_space<vmem>>, %arg7: memref<1x32x32xbf16, #tpu.memory_space<vmem>>, %arg8: memref<1x1x32xf32, #tpu.memory_space<vmem>>, %arg9: memref<1x1x32xf32, #tpu.memory_space<vmem>>, %arg10: memref<1x1x32xf32, #tpu.memory_space<vmem>>, %arg11: memref<1x32x128xbf16, #tpu.memory_space<vmem>>, %arg12: memref<1x1x128xf32, #tpu.memory_space<vmem>>, %arg13: memref<1x128x32xbf16, #tpu.memory_space<vmem>>, %arg14: memref<1x1x32xf32, #tpu.memory_space<vmem>>, %arg15: memref<2x5x32xbf16, #tpu.memory_space<vmem>>, %arg16: memref<10x32xf32, #tpu.memory_space<vmem>>) attributes {dimension_semantics = [#tpu.dimension_semantics<parallel>, #tpu.dimension_semantics<arbitrary>], iteration_bounds = array<i64: 1, 4>, scalar_prefetch = 0 : i64, scratch_operands = 1 : i64, tpu.core_type = #tpu.core_type<tc>, window_params = [{transform_indices = @transform_0, window_bounds = array<i64: 2, 5, 32>}, {transform_indices = @transform_1, window_bounds = array<i64: 1, 1, 32>}, {transform_indices = @transform_2, window_bounds = array<i64: 1, 1, 32>}, {transform_indices = @transform_3, window_bounds = array<i64: 1, 32, 96>}, {transform_indices = @transform_4, window_bounds = array<i64: 1, 1, 96>}, {transform_indices = @transform_5, window_bounds = array<i64: 1, 32, 32>}, {transform_indices = @transform_6, window_bounds = array<i64: 1, 1, 32>}, {transform_indices = @transform_7, window_bounds = array<i64: 1, 1, 32>}, {transform_indices = @transform_8, window_bounds = array<i64: 1, 1, 32>}, {transform_indices = @transform_9, window_bounds = array<i64: 1, 32, 128>}, {transform_indices = @transform_10, window_bounds = array<i64: 1, 1, 128>}, {transform_indices = @transform_11, window_bounds = array<i64: 1, 128, 32>}, {transform_indices = @transform_12, window_bounds = array<i64: 1, 1, 32>}, {transform_indices = @transform_13, window_bounds = array<i64: 2, 5, 32>}]} {
    %c0_i32 = arith.constant 0 : i32
    %0 = arith.cmpi eq, %arg1, %c0_i32 : i32
    %1 = arith.extui %0 : i1 to i32
    %c0_i32_0 = arith.constant 0 : i32
    %2 = arith.cmpi ne, %1, %c0_i32_0 : i32
    scf.if %2 {
      %c0_74 = arith.constant 0 : index
      %c0_75 = arith.constant 0 : index
      %c0_76 = arith.constant 0 : index
      %182 = vector.load %arg2[%c0_74, %c0_75, %c0_76] : memref<2x5x32xbf16, #tpu.memory_space<vmem>>, vector<2x5x32xbf16>
      %183 = vector.shape_cast %182 : vector<2x5x32xbf16> to vector<10x32xbf16>
      %184 = arith.extf %183 : vector<10x32xbf16> to vector<10x32xf32>
      %c0_77 = arith.constant 0 : index
      %c0_78 = arith.constant 0 : index
      %185 = vector.load %arg16[%c0_77, %c0_78] : memref<10x32xf32, #tpu.memory_space<vmem>>, vector<10x32xf32>
      tpu.vector_store %arg16[%c0_77, %c0_78], %184 {strides = array<i32>} : memref<10x32xf32, #tpu.memory_space<vmem>>, vector<10x32xf32>,
    } else {
    }
    %c0 = arith.constant 0 : index
    %c0_1 = arith.constant 0 : index
    %3 = vector.load %arg16[%c0, %c0_1] : memref<10x32xf32, #tpu.memory_space<vmem>>, vector<10x32xf32>
    %c0_2 = arith.constant 0 : index
    %c0_3 = arith.constant 0 : index
    %c0_4 = arith.constant 0 : index
    %4 = vector.load %arg3[%c0_2, %c0_3, %c0_4] : memref<1x1x32xf32, #tpu.memory_space<vmem>>, vector<1x1x32xf32>
    %5 = vector.shape_cast %4 : vector<1x1x32xf32> to vector<1x32xf32>
    %c0_5 = arith.constant 0 : index
    %c0_6 = arith.constant 0 : index
    %c0_7 = arith.constant 0 : index
    %6 = vector.load %arg4[%c0_5, %c0_6, %c0_7] : memref<1x1x32xf32, #tpu.memory_space<vmem>>, vector<1x1x32xf32>
    %7 = vector.shape_cast %6 : vector<1x1x32xf32> to vector<1x32xf32>
    %cst = arith.constant dense<0.000000e+00> : vector<10xf32>
    %8 = vector.multi_reduction <add>, %3, %cst [1] : vector<10x32xf32> to vector<10xf32>
    %9 = vector.shape_cast %8 : vector<10xf32> to vector<10x1xf32>
    %cst_8 = arith.constant 3.200000e+01 : f32
    %10 = vector.broadcast %cst_8 : f32 to vector<10x1xf32>
    %11 = arith.divf %9, %10 : vector<10x1xf32>
    %12 = vector.broadcast %11 : vector<10x1xf32> to vector<10x32xf32>
    %13 = arith.subf %3, %12 : vector<10x32xf32>
    %14 = arith.mulf %13, %13 : vector<10x32xf32>
    %cst_9 = arith.constant dense<0.000000e+00> : vector<10xf32>
    %15 = vector.multi_reduction <add>, %14, %cst_9 [1] : vector<10x32xf32> to vector<10xf32>
    %16 = vector.shape_cast %15 : vector<10xf32> to vector<10x1xf32>
    %cst_10 = arith.constant 3.200000e+01 : f32
    %17 = vector.broadcast %cst_10 : f32 to vector<10x1xf32>
    %18 = arith.divf %16, %17 : vector<10x1xf32>
    %19 = vector.broadcast %11 : vector<10x1xf32> to vector<10x32xf32>
    %20 = arith.subf %3, %19 : vector<10x32xf32>
    %cst_11 = arith.constant 9.99999974E-6 : f32
    %21 = vector.broadcast %cst_11 : f32 to vector<10x1xf32>
    %22 = arith.addf %18, %21 : vector<10x1xf32>
    %23 = math.rsqrt %22 : vector<10x1xf32>
    %24 = vector.broadcast %23 : vector<10x1xf32> to vector<10x32xf32>
    %25 = arith.mulf %20, %24 : vector<10x32xf32>
    %26 = vector.broadcast %5 : vector<1x32xf32> to vector<10x32xf32>
    %27 = arith.mulf %25, %26 : vector<10x32xf32>
    %28 = vector.broadcast %7 : vector<1x32xf32> to vector<10x32xf32>
    %29 = arith.addf %27, %28 : vector<10x32xf32>
    %30 = arith.truncf %29 : vector<10x32xf32> to vector<10x32xbf16>
    %c0_12 = arith.constant 0 : index
    %c0_13 = arith.constant 0 : index
    %c0_14 = arith.constant 0 : index
    %31 = vector.load %arg5[%c0_12, %c0_13, %c0_14] : memref<1x32x96xbf16, #tpu.memory_space<vmem>>, vector<1x32x96xbf16>
    %32 = vector.shape_cast %31 : vector<1x32x96xbf16> to vector<32x96xbf16>
    %cst_15 = arith.constant dense<0.000000e+00> : vector<10x96xf32>
    %33 = tpu.matmul %30, %32, %cst_15 {dimension_numbers = #tpu.dot_dimension_numbers<[1], [0], [0], [1], [0, 0, 1, 1], [], []>} : vector<10x32xbf16>, vector<32x96xbf16>, vector<10x96xf32> -> vector<10x96xf32>
    %c0_16 = arith.constant 0 : index
    %c0_17 = arith.constant 0 : index
    %c0_18 = arith.constant 0 : index
    %34 = vector.load %arg6[%c0_16, %c0_17, %c0_18] : memref<1x1x96xf32, #tpu.memory_space<vmem>>, vector<1x1x96xf32>
    %35 = vector.shape_cast %34 : vector<1x1x96xf32> to vector<1x96xf32>
    %36 = vector.broadcast %35 : vector<1x96xf32> to vector<10x96xf32>
    %37 = arith.addf %33, %36 : vector<10x96xf32>
    %38 = vector.extract_strided_slice %37 {offsets = [0, 0], sizes = [10, 32], strides = [1, 1]} : vector<10x96xf32> to vector<10x32xf32>
    %39 = arith.truncf %38 : vector<10x32xf32> to vector<10x32xbf16>
    %40 = vector.shape_cast %39 : vector<10x32xbf16> to vector<2x5x32xbf16>
    %41 = vector.extract_strided_slice %37 {offsets = [0, 32], sizes = [10, 32], strides = [1, 1]} : vector<10x96xf32> to vector<10x32xf32>
    %42 = arith.truncf %41 : vector<10x32xf32> to vector<10x32xbf16>
    %43 = vector.shape_cast %42 : vector<10x32xbf16> to vector<2x5x32xbf16>
    %44 = vector.extract_strided_slice %37 {offsets = [0, 64], sizes = [10, 32], strides = [1, 1]} : vector<10x96xf32> to vector<10x32xf32>
    %45 = arith.truncf %44 : vector<10x32xf32> to vector<10x32xbf16>
    %46 = vector.shape_cast %45 : vector<10x32xbf16> to vector<2x5x32xbf16>
    %47 = vector.extract_strided_slice %40 {offsets = [0, 0, 0], sizes = [2, 5, 8], strides = [1, 1, 1]} : vector<2x5x32xbf16> to vector<2x5x8xbf16>
    %48 = vector.extract_strided_slice %43 {offsets = [0, 0, 0], sizes = [2, 5, 8], strides = [1, 1, 1]} : vector<2x5x32xbf16> to vector<2x5x8xbf16>
    "tpu.trace_start"() <{level = 10 : i32, message = "rqd,rkd->rqk"}> : () -> ()
    %cst_19 = arith.constant dense<0.000000e+00> : vector<2x5x5xf32>
    %49 = tpu.matmul %47, %48, %cst_19 {dimension_numbers = #tpu.dot_dimension_numbers<[2], [2], [1], [1], [0, 0, 0, 1, 1, 1], [0], [0]>} : vector<2x5x8xbf16>, vector<2x5x8xbf16>, vector<2x5x5xf32> -> vector<2x5x5xf32>
    "tpu.trace_stop"() : () -> ()
    %cst_20 = arith.constant dense<0xFF800000> : vector<2x5xf32>
    %50 = vector.multi_reduction <maximumf>, %49, %cst_20 [2] : vector<2x5x5xf32> to vector<2x5xf32>
    %51 = vector.shape_cast %50 : vector<2x5xf32> to vector<2x5x1xf32>
    %52 = vector.broadcast %51 : vector<2x5x1xf32> to vector<2x5x5xf32>
    %53 = arith.subf %49, %52 : vector<2x5x5xf32>
    %54 = math.exp %53 : vector<2x5x5xf32>
    %cst_21 = arith.constant dense<0.000000e+00> : vector<2x5xf32>
    %55 = vector.multi_reduction <add>, %54, %cst_21 [2] : vector<2x5x5xf32> to vector<2x5xf32>
    %56 = vector.shape_cast %55 : vector<2x5xf32> to vector<2x5x1xf32>
    %57 = tpu.reciprocal %56 {approx = true} : vector<2x5x1xf32> -> vector<2x5x1xf32>
    %58 = vector.broadcast %57 : vector<2x5x1xf32> to vector<2x5x5xf32>
    %59 = arith.mulf %54, %58 : vector<2x5x5xf32>
    %60 = arith.truncf %59 : vector<2x5x5xf32> to vector<2x5x5xbf16>
    %61 = vector.extract_strided_slice %46 {offsets = [0, 0, 0], sizes = [2, 5, 8], strides = [1, 1, 1]} : vector<2x5x32xbf16> to vector<2x5x8xbf16>
    "tpu.trace_start"() <{level = 10 : i32, message = "rqk,rkd->rqd"}> : () -> ()
    %cst_22 = arith.constant dense<0.000000e+00> : vector<2x5x8xf32>
    %62 = tpu.matmul %60, %61, %cst_22 {dimension_numbers = #tpu.dot_dimension_numbers<[2], [1], [1], [2], [0, 0, 0, 1, 1, 2], [0], [0]>} : vector<2x5x5xbf16>, vector<2x5x8xbf16>, vector<2x5x8xf32> -> vector<2x5x8xf32>
    "tpu.trace_stop"() : () -> ()
    %63 = vector.extract_strided_slice %40 {offsets = [0, 0, 8], sizes = [2, 5, 8], strides = [1, 1, 1]} : vector<2x5x32xbf16> to vector<2x5x8xbf16>
    %64 = vector.extract_strided_slice %43 {offsets = [0, 0, 8], sizes = [2, 5, 8], strides = [1, 1, 1]} : vector<2x5x32xbf16> to vector<2x5x8xbf16>
    "tpu.trace_start"() <{level = 10 : i32, message = "rqd,rkd->rqk"}> : () -> ()
    %cst_23 = arith.constant dense<0.000000e+00> : vector<2x5x5xf32>
    %65 = tpu.matmul %63, %64, %cst_23 {dimension_numbers = #tpu.dot_dimension_numbers<[2], [2], [1], [1], [0, 0, 0, 1, 1, 1], [0], [0]>} : vector<2x5x8xbf16>, vector<2x5x8xbf16>, vector<2x5x5xf32> -> vector<2x5x5xf32>
    "tpu.trace_stop"() : () -> ()
    %cst_24 = arith.constant dense<0xFF800000> : vector<2x5xf32>
    %66 = vector.multi_reduction <maximumf>, %65, %cst_24 [2] : vector<2x5x5xf32> to vector<2x5xf32>
    %67 = vector.shape_cast %66 : vector<2x5xf32> to vector<2x5x1xf32>
    %68 = vector.broadcast %67 : vector<2x5x1xf32> to vector<2x5x5xf32>
    %69 = arith.subf %65, %68 : vector<2x5x5xf32>
    %70 = math.exp %69 : vector<2x5x5xf32>
    %cst_25 = arith.constant dense<0.000000e+00> : vector<2x5xf32>
    %71 = vector.multi_reduction <add>, %70, %cst_25 [2] : vector<2x5x5xf32> to vector<2x5xf32>
    %72 = vector.shape_cast %71 : vector<2x5xf32> to vector<2x5x1xf32>
    %73 = tpu.reciprocal %72 {approx = true} : vector<2x5x1xf32> -> vector<2x5x1xf32>
    %74 = vector.broadcast %73 : vector<2x5x1xf32> to vector<2x5x5xf32>
    %75 = arith.mulf %70, %74 : vector<2x5x5xf32>
    %76 = arith.truncf %75 : vector<2x5x5xf32> to vector<2x5x5xbf16>
    %77 = vector.extract_strided_slice %46 {offsets = [0, 0, 8], sizes = [2, 5, 8], strides = [1, 1, 1]} : vector<2x5x32xbf16> to vector<2x5x8xbf16>
    "tpu.trace_start"() <{level = 10 : i32, message = "rqk,rkd->rqd"}> : () -> ()
    %cst_26 = arith.constant dense<0.000000e+00> : vector<2x5x8xf32>
    %78 = tpu.matmul %76, %77, %cst_26 {dimension_numbers = #tpu.dot_dimension_numbers<[2], [1], [1], [2], [0, 0, 0, 1, 1, 2], [0], [0]>} : vector<2x5x5xbf16>, vector<2x5x8xbf16>, vector<2x5x8xf32> -> vector<2x5x8xf32>
    "tpu.trace_stop"() : () -> ()
    %79 = vector.extract_strided_slice %40 {offsets = [0, 0, 16], sizes = [2, 5, 8], strides = [1, 1, 1]} : vector<2x5x32xbf16> to vector<2x5x8xbf16>
    %80 = vector.extract_strided_slice %43 {offsets = [0, 0, 16], sizes = [2, 5, 8], strides = [1, 1, 1]} : vector<2x5x32xbf16> to vector<2x5x8xbf16>
    "tpu.trace_start"() <{level = 10 : i32, message = "rqd,rkd->rqk"}> : () -> ()
    %cst_27 = arith.constant dense<0.000000e+00> : vector<2x5x5xf32>
    %81 = tpu.matmul %79, %80, %cst_27 {dimension_numbers = #tpu.dot_dimension_numbers<[2], [2], [1], [1], [0, 0, 0, 1, 1, 1], [0], [0]>} : vector<2x5x8xbf16>, vector<2x5x8xbf16>, vector<2x5x5xf32> -> vector<2x5x5xf32>
    "tpu.trace_stop"() : () -> ()
    %cst_28 = arith.constant dense<0xFF800000> : vector<2x5xf32>
    %82 = vector.multi_reduction <maximumf>, %81, %cst_28 [2] : vector<2x5x5xf32> to vector<2x5xf32>
    %83 = vector.shape_cast %82 : vector<2x5xf32> to vector<2x5x1xf32>
    %84 = vector.broadcast %83 : vector<2x5x1xf32> to vector<2x5x5xf32>
    %85 = arith.subf %81, %84 : vector<2x5x5xf32>
    %86 = math.exp %85 : vector<2x5x5xf32>
    %cst_29 = arith.constant dense<0.000000e+00> : vector<2x5xf32>
    %87 = vector.multi_reduction <add>, %86, %cst_29 [2] : vector<2x5x5xf32> to vector<2x5xf32>
    %88 = vector.shape_cast %87 : vector<2x5xf32> to vector<2x5x1xf32>
    %89 = tpu.reciprocal %88 {approx = true} : vector<2x5x1xf32> -> vector<2x5x1xf32>
    %90 = vector.broadcast %89 : vector<2x5x1xf32> to vector<2x5x5xf32>
    %91 = arith.mulf %86, %90 : vector<2x5x5xf32>
    %92 = arith.truncf %91 : vector<2x5x5xf32> to vector<2x5x5xbf16>
    %93 = vector.extract_strided_slice %46 {offsets = [0, 0, 16], sizes = [2, 5, 8], strides = [1, 1, 1]} : vector<2x5x32xbf16> to vector<2x5x8xbf16>
    "tpu.trace_start"() <{level = 10 : i32, message = "rqk,rkd->rqd"}> : () -> ()
    %cst_30 = arith.constant dense<0.000000e+00> : vector<2x5x8xf32>
    %94 = tpu.matmul %92, %93, %cst_30 {dimension_numbers = #tpu.dot_dimension_numbers<[2], [1], [1], [2], [0, 0, 0, 1, 1, 2], [0], [0]>} : vector<2x5x5xbf16>, vector<2x5x8xbf16>, vector<2x5x8xf32> -> vector<2x5x8xf32>
    "tpu.trace_stop"() : () -> ()
    %95 = vector.extract_strided_slice %40 {offsets = [0, 0, 24], sizes = [2, 5, 8], strides = [1, 1, 1]} : vector<2x5x32xbf16> to vector<2x5x8xbf16>
    %96 = vector.extract_strided_slice %43 {offsets = [0, 0, 24], sizes = [2, 5, 8], strides = [1, 1, 1]} : vector<2x5x32xbf16> to vector<2x5x8xbf16>
    "tpu.trace_start"() <{level = 10 : i32, message = "rqd,rkd->rqk"}> : () -> ()
    %cst_31 = arith.constant dense<0.000000e+00> : vector<2x5x5xf32>
    %97 = tpu.matmul %95, %96, %cst_31 {dimension_numbers = #tpu.dot_dimension_numbers<[2], [2], [1], [1], [0, 0, 0, 1, 1, 1], [0], [0]>} : vector<2x5x8xbf16>, vector<2x5x8xbf16>, vector<2x5x5xf32> -> vector<2x5x5xf32>
    "tpu.trace_stop"() : () -> ()
    %cst_32 = arith.constant dense<0xFF800000> : vector<2x5xf32>
    %98 = vector.multi_reduction <maximumf>, %97, %cst_32 [2] : vector<2x5x5xf32> to vector<2x5xf32>
    %99 = vector.shape_cast %98 : vector<2x5xf32> to vector<2x5x1xf32>
    %100 = vector.broadcast %99 : vector<2x5x1xf32> to vector<2x5x5xf32>
    %101 = arith.subf %97, %100 : vector<2x5x5xf32>
    %102 = math.exp %101 : vector<2x5x5xf32>
    %cst_33 = arith.constant dense<0.000000e+00> : vector<2x5xf32>
    %103 = vector.multi_reduction <add>, %102, %cst_33 [2] : vector<2x5x5xf32> to vector<2x5xf32>
    %104 = vector.shape_cast %103 : vector<2x5xf32> to vector<2x5x1xf32>
    %105 = tpu.reciprocal %104 {approx = true} : vector<2x5x1xf32> -> vector<2x5x1xf32>
    %106 = vector.broadcast %105 : vector<2x5x1xf32> to vector<2x5x5xf32>
    %107 = arith.mulf %102, %106 : vector<2x5x5xf32>
    %108 = arith.truncf %107 : vector<2x5x5xf32> to vector<2x5x5xbf16>
    %109 = vector.extract_strided_slice %46 {offsets = [0, 0, 24], sizes = [2, 5, 8], strides = [1, 1, 1]} : vector<2x5x32xbf16> to vector<2x5x8xbf16>
    "tpu.trace_start"() <{level = 10 : i32, message = "rqk,rkd->rqd"}> : () -> ()
    %cst_34 = arith.constant dense<0.000000e+00> : vector<2x5x8xf32>
    %110 = tpu.matmul %108, %109, %cst_34 {dimension_numbers = #tpu.dot_dimension_numbers<[2], [1], [1], [2], [0, 0, 0, 1, 1, 2], [0], [0]>} : vector<2x5x5xbf16>, vector<2x5x8xbf16>, vector<2x5x8xf32> -> vector<2x5x8xf32>
    "tpu.trace_stop"() : () -> ()
    %111 = tpu.concatenate %62, %78, %94, %110 in 2 : vector<2x5x8xf32>, vector<2x5x8xf32>, vector<2x5x8xf32>, vector<2x5x8xf32> -> vector<2x5x32xf32>
    %112 = vector.shape_cast %111 : vector<2x5x32xf32> to vector<10x32xf32>
    %113 = arith.truncf %112 : vector<10x32xf32> to vector<10x32xbf16>
    %c0_35 = arith.constant 0 : index
    %c0_36 = arith.constant 0 : index
    %c0_37 = arith.constant 0 : index
    %114 = vector.load %arg7[%c0_35, %c0_36, %c0_37] : memref<1x32x32xbf16, #tpu.memory_space<vmem>>, vector<1x32x32xbf16>
    %115 = vector.shape_cast %114 : vector<1x32x32xbf16> to vector<32x32xbf16>
    %cst_38 = arith.constant dense<0.000000e+00> : vector<10x32xf32>
    %116 = tpu.matmul %113, %115, %cst_38 {dimension_numbers = #tpu.dot_dimension_numbers<[1], [0], [0], [1], [0, 0, 1, 1], [], []>} : vector<10x32xbf16>, vector<32x32xbf16>, vector<10x32xf32> -> vector<10x32xf32>
    %117 = arith.addf %3, %116 : vector<10x32xf32>
    %c0_39 = arith.constant 0 : index
    %c0_40 = arith.constant 0 : index
    %c0_41 = arith.constant 0 : index
    %118 = vector.load %arg8[%c0_39, %c0_40, %c0_41] : memref<1x1x32xf32, #tpu.memory_space<vmem>>, vector<1x1x32xf32>
    %119 = vector.shape_cast %118 : vector<1x1x32xf32> to vector<1x32xf32>
    %120 = vector.broadcast %119 : vector<1x32xf32> to vector<10x32xf32>
    %121 = arith.addf %117, %120 : vector<10x32xf32>
    %c0_42 = arith.constant 0 : index
    %c0_43 = arith.constant 0 : index
    %c0_44 = arith.constant 0 : index
    %122 = vector.load %arg9[%c0_42, %c0_43, %c0_44] : memref<1x1x32xf32, #tpu.memory_space<vmem>>, vector<1x1x32xf32>
    %123 = vector.shape_cast %122 : vector<1x1x32xf32> to vector<1x32xf32>
    %c0_45 = arith.constant 0 : index
    %c0_46 = arith.constant 0 : index
    %c0_47 = arith.constant 0 : index
    %124 = vector.load %arg10[%c0_45, %c0_46, %c0_47] : memref<1x1x32xf32, #tpu.memory_space<vmem>>, vector<1x1x32xf32>
    %125 = vector.shape_cast %124 : vector<1x1x32xf32> to vector<1x32xf32>
    %cst_48 = arith.constant dense<0.000000e+00> : vector<10xf32>
    %126 = vector.multi_reduction <add>, %121, %cst_48 [1] : vector<10x32xf32> to vector<10xf32>
    %127 = vector.shape_cast %126 : vector<10xf32> to vector<10x1xf32>
    %cst_49 = arith.constant 3.200000e+01 : f32
    %128 = vector.broadcast %cst_49 : f32 to vector<10x1xf32>
    %129 = arith.divf %127, %128 : vector<10x1xf32>
    %130 = vector.broadcast %129 : vector<10x1xf32> to vector<10x32xf32>
    %131 = arith.subf %121, %130 : vector<10x32xf32>
    %132 = arith.mulf %131, %131 : vector<10x32xf32>
    %cst_50 = arith.constant dense<0.000000e+00> : vector<10xf32>
    %133 = vector.multi_reduction <add>, %132, %cst_50 [1] : vector<10x32xf32> to vector<10xf32>
    %134 = vector.shape_cast %133 : vector<10xf32> to vector<10x1xf32>
    %cst_51 = arith.constant 3.200000e+01 : f32
    %135 = vector.broadcast %cst_51 : f32 to vector<10x1xf32>
    %136 = arith.divf %134, %135 : vector<10x1xf32>
    %137 = vector.broadcast %129 : vector<10x1xf32> to vector<10x32xf32>
    %138 = arith.subf %121, %137 : vector<10x32xf32>
    %cst_52 = arith.constant 9.99999974E-6 : f32
    %139 = vector.broadcast %cst_52 : f32 to vector<10x1xf32>
    %140 = arith.addf %136, %139 : vector<10x1xf32>
    %141 = math.rsqrt %140 : vector<10x1xf32>
    %142 = vector.broadcast %141 : vector<10x1xf32> to vector<10x32xf32>
    %143 = arith.mulf %138, %142 : vector<10x32xf32>
    %144 = vector.broadcast %123 : vector<1x32xf32> to vector<10x32xf32>
    %145 = arith.mulf %143, %144 : vector<10x32xf32>
    %146 = vector.broadcast %125 : vector<1x32xf32> to vector<10x32xf32>
    %147 = arith.addf %145, %146 : vector<10x32xf32>
    %148 = arith.truncf %147 : vector<10x32xf32> to vector<10x32xbf16>
    %c0_53 = arith.constant 0 : index
    %c0_54 = arith.constant 0 : index
    %c0_55 = arith.constant 0 : index
    %149 = vector.load %arg11[%c0_53, %c0_54, %c0_55] : memref<1x32x128xbf16, #tpu.memory_space<vmem>>, vector<1x32x128xbf16>
    %150 = vector.shape_cast %149 : vector<1x32x128xbf16> to vector<32x128xbf16>
    %cst_56 = arith.constant dense<0.000000e+00> : vector<10x128xf32>
    %151 = tpu.matmul %148, %150, %cst_56 {dimension_numbers = #tpu.dot_dimension_numbers<[1], [0], [0], [1], [0, 0, 1, 1], [], []>} : vector<10x32xbf16>, vector<32x128xbf16>, vector<10x128xf32> -> vector<10x128xf32>
    %c0_57 = arith.constant 0 : index
    %c0_58 = arith.constant 0 : index
    %c0_59 = arith.constant 0 : index
    %152 = vector.load %arg12[%c0_57, %c0_58, %c0_59] : memref<1x1x128xf32, #tpu.memory_space<vmem>>, vector<1x1x128xf32>
    %153 = vector.shape_cast %152 : vector<1x1x128xf32> to vector<1x128xf32>
    %154 = vector.broadcast %153 : vector<1x128xf32> to vector<10x128xf32>
    %155 = arith.addf %151, %154 : vector<10x128xf32>
    %156 = arith.mulf %155, %155 : vector<10x128xf32>
    %157 = arith.mulf %155, %156 : vector<10x128xf32>
    %cst_60 = arith.constant 4.471500e-02 : f32
    %158 = vector.broadcast %cst_60 : f32 to vector<10x128xf32>
    %159 = arith.mulf %158, %157 : vector<10x128xf32>
    %160 = arith.addf %155, %159 : vector<10x128xf32>
    %cst_61 = arith.constant 0.797884583 : f32
    %161 = vector.broadcast %cst_61 : f32 to vector<10x128xf32>
    %162 = arith.mulf %161, %160 : vector<10x128xf32>
    %163 = math.tanh %162 : vector<10x128xf32>
    %cst_62 = arith.constant 1.000000e+00 : f32
    %164 = vector.broadcast %cst_62 : f32 to vector<10x128xf32>
    %165 = arith.addf %164, %163 : vector<10x128xf32>
    %cst_63 = arith.constant 5.000000e-01 : f32
    %166 = vector.broadcast %cst_63 : f32 to vector<10x128xf32>
    %167 = arith.mulf %166, %165 : vector<10x128xf32>
    %168 = arith.mulf %155, %167 : vector<10x128xf32>
    %169 = arith.truncf %168 : vector<10x128xf32> to vector<10x128xbf16>
    %c0_64 = arith.constant 0 : index
    %c0_65 = arith.constant 0 : index
    %c0_66 = arith.constant 0 : index
    %170 = vector.load %arg13[%c0_64, %c0_65, %c0_66] : memref<1x128x32xbf16, #tpu.memory_space<vmem>>, vector<1x128x32xbf16>
    %171 = vector.shape_cast %170 : vector<1x128x32xbf16> to vector<128x32xbf16>
    %cst_67 = arith.constant dense<0.000000e+00> : vector<10x32xf32>
    %172 = tpu.matmul %169, %171, %cst_67 {dimension_numbers = #tpu.dot_dimension_numbers<[1], [0], [0], [1], [0, 0, 1, 1], [], []>} : vector<10x128xbf16>, vector<128x32xbf16>, vector<10x32xf32> -> vector<10x32xf32>
    %173 = arith.addf %121, %172 : vector<10x32xf32>
    %c0_68 = arith.constant 0 : index
    %c0_69 = arith.constant 0 : index
    %c0_70 = arith.constant 0 : index
    %174 = vector.load %arg14[%c0_68, %c0_69, %c0_70] : memref<1x1x32xf32, #tpu.memory_space<vmem>>, vector<1x1x32xf32>
    %175 = vector.shape_cast %174 : vector<1x1x32xf32> to vector<1x32xf32>
    %176 = vector.broadcast %175 : vector<1x32xf32> to vector<10x32xf32>
    %177 = arith.addf %173, %176 : vector<10x32xf32>
    %c0_71 = arith.constant 0 : index
    %c0_72 = arith.constant 0 : index
    %178 = vector.load %arg16[%c0_71, %c0_72] : memref<10x32xf32, #tpu.memory_space<vmem>>, vector<10x32xf32>
    tpu.vector_store %arg16[%c0_71, %c0_72], %177 {strides = array<i32>} : memref<10x32xf32, #tpu.memory_space<vmem>>, vector<10x32xf32>,
    %c3_i32 = arith.constant 3 : i32
    %179 = arith.cmpi eq, %arg1, %c3_i32 : i32
    %180 = arith.extui %179 : i1 to i32
    %c0_i32_73 = arith.constant 0 : i32
    %181 = arith.cmpi ne, %180, %c0_i32_73 : i32
    scf.if %181 {
      %182 = vector.shape_cast %177 : vector<10x32xf32> to vector<2x5x32xf32>
      %183 = arith.truncf %182 : vector<2x5x32xf32> to vector<2x5x32xbf16>
      %c0_74 = arith.constant 0 : index
      %c0_75 = arith.constant 0 : index
      %c0_76 = arith.constant 0 : index
      %184 = vector.load %arg15[%c0_74, %c0_75, %c0_76] : memref<2x5x32xbf16, #tpu.memory_space<vmem>>, vector<2x5x32xbf16>
      tpu.vector_store %arg15[%c0_74, %c0_75, %c0_76], %183 {strides = array<i32>} : memref<2x5x32xbf16, #tpu.memory_space<vmem>>, vector<2x5x32xbf16>,
    } else {
    }
    return
  }
  func.func @transform_0(%arg0: i32, %arg1: i32) -> (i32, i32, i32) {
    %c0_i32 = arith.constant 0 : i32
    %c0_i32_0 = arith.constant 0 : i32
    %c0_i32_1 = arith.constant 0 : i32
    return %arg0, %c0_i32, %c0_i32_0 : i32, i32, i32
  }
  func.func @transform_1(%arg0: i32, %arg1: i32) -> (i32, i32, i32) {
    %c0_i32 = arith.constant 0 : i32
    %c0_i32_0 = arith.constant 0 : i32
    %c0_i32_1 = arith.constant 0 : i32
    return %arg1, %c0_i32, %c0_i32_0 : i32, i32, i32
  }
  func.func @transform_2(%arg0: i32, %arg1: i32) -> (i32, i32, i32) {
    %c0_i32 = arith.constant 0 : i32
    %c0_i32_0 = arith.constant 0 : i32
    %c0_i32_1 = arith.constant 0 : i32
    return %arg1, %c0_i32, %c0_i32_0 : i32, i32, i32
  }
  func.func @transform_3(%arg0: i32, %arg1: i32) -> (i32, i32, i32) {
    %c0_i32 = arith.constant 0 : i32
    %c0_i32_0 = arith.constant 0 : i32
    %c0_i32_1 = arith.constant 0 : i32
    return %arg1, %c0_i32, %c0_i32_0 : i32, i32, i32
  }
  func.func @transform_4(%arg0: i32, %arg1: i32) -> (i32, i32, i32) {
    %c0_i32 = arith.constant 0 : i32
    %c0_i32_0 = arith.constant 0 : i32
    %c0_i32_1 = arith.constant 0 : i32
    return %arg1, %c0_i32, %c0_i32_0 : i32, i32, i32
  }
  func.func @transform_5(%arg0: i32, %arg1: i32) -> (i32, i32, i32) {
    %c0_i32 = arith.constant 0 : i32
    %c0_i32_0 = arith.constant 0 : i32
    %c0_i32_1 = arith.constant 0 : i32
    return %arg1, %c0_i32, %c0_i32_0 : i32, i32, i32
  }
  func.func @transform_6(%arg0: i32, %arg1: i32) -> (i32, i32, i32) {
    %c0_i32 = arith.constant 0 : i32
    %c0_i32_0 = arith.constant 0 : i32
    %c0_i32_1 = arith.constant 0 : i32
    return %arg1, %c0_i32, %c0_i32_0 : i32, i32, i32
  }
  func.func @transform_7(%arg0: i32, %arg1: i32) -> (i32, i32, i32) {
    %c0_i32 = arith.constant 0 : i32
    %c0_i32_0 = arith.constant 0 : i32
    %c0_i32_1 = arith.constant 0 : i32
    return %arg1, %c0_i32, %c0_i32_0 : i32, i32, i32
  }
  func.func @transform_8(%arg0: i32, %arg1: i32) -> (i32, i32, i32) {
    %c0_i32 = arith.constant 0 : i32
    %c0_i32_0 = arith.constant 0 : i32
    %c0_i32_1 = arith.constant 0 : i32
    return %arg1, %c0_i32, %c0_i32_0 : i32, i32, i32
  }
  func.func @transform_9(%arg0: i32, %arg1: i32) -> (i32, i32, i32) {
    %c0_i32 = arith.constant 0 : i32
    %c0_i32_0 = arith.constant 0 : i32
    %c0_i32_1 = arith.constant 0 : i32
    return %arg1, %c0_i32, %c0_i32_0 : i32, i32, i32
  }
  func.func @transform_10(%arg0: i32, %arg1: i32) -> (i32, i32, i32) {
    %c0_i32 = arith.constant 0 : i32
    %c0_i32_0 = arith.constant 0 : i32
    %c0_i32_1 = arith.constant 0 : i32
    return %arg1, %c0_i32, %c0_i32_0 : i32, i32, i32
  }
  func.func @transform_11(%arg0: i32, %arg1: i32) -> (i32, i32, i32) {
    %c0_i32 = arith.constant 0 : i32
    %c0_i32_0 = arith.constant 0 : i32
    %c0_i32_1 = arith.constant 0 : i32
    return %arg1, %c0_i32, %c0_i32_0 : i32, i32, i32
  }
  func.func @transform_12(%arg0: i32, %arg1: i32) -> (i32, i32, i32) {
    %c0_i32 = arith.constant 0 : i32
    %c0_i32_0 = arith.constant 0 : i32
    %c0_i32_1 = arith.constant 0 : i32
    return %arg1, %c0_i32, %c0_i32_0 : i32, i32, i32
  }
  func.func @transform_13(%arg0: i32, %arg1: i32) -> (i32, i32, i32) {
    %c0_i32 = arith.constant 0 : i32
    %c0_i32_0 = arith.constant 0 : i32
    %c0_i32_1 = arith.constant 0 : i32
    return %arg0, %c0_i32, %c0_i32_0 : i32, i32, i32
  }
}

</mosaic_0001>

<llo_original>
// kernel: _lambda_.4
$region0: #{_lambda_.4}
  #allocation0 [shape = 'u32[]', space=smem, size = 0x4, offset = 0x4, fixed_abs, tag = 'smem constant byte address 0x4 - core index']
  #allocation1 [shape = 'u32[144,128]{1,0:T(1,128)}', space=vmem, size = 0x12000, scoped, tag = 'internal scratch']
  %s0 = inlined_call_operand.vmem [shape: f32[8,4,512], index: 0, kind: input, shape index: {}]
  %s1 = inlined_call_operand.vmem [shape: bf16[512,32], index: 1, kind: input, shape index: {}]
  %s2 = inlined_call_operand.vmem [shape: f32[1,32], index: 2, kind: input, shape index: {}]
  %s3 = inlined_call_operand.vmem [shape: f32[1,32], index: 3, kind: input, shape index: {}]
  %s4 = inlined_call_operand.vmem [shape: f32[5,32], index: 4, kind: input, shape index: {}]
  %s5 = inlined_call_operand.vmem [shape: bf16[8,5,32], index: 5, kind: output, shape index: {}]
  %s6 = sld [smem:[#allocation0]]
  $region53: #{_lambda_.4} parent=0
    _
  %s8 = ssub.s32 1, %s6
  %s9 = scalar_select 0, %s8, %s6
  loop: start=0, step=1, limit=4
  $region2: #{_lambda_.4} parent=0 // loop_pre_header
    _
  $region3: #{_lambda_.4} parent=0 // loop_header
    %s11 = sphi 0, %s15
    %p12 = scmp.ge.s32.totalorder %s11, 4
    %s21 = sphi 0, %s23
    %s24 = sphi 0, %s21
    %s25 = sphi 0, %s24
    %s41 = sphi 0, %s25
    %s45 = sphi 0, %s45
    %s47 = sphi 0, %s45
    %s48 = sphi 0, %s47
    %s62 = sphi 0, %s48
    %s66 = sphi 0, %s66
    %s68 = sphi 0, %s66
    %s69 = sphi 0, %s68
    %s83 = sphi 0, %s69
    %s87 = sphi 0, %s87
    %s89 = sphi 0, %s87
    %s90 = sphi 0, %s89
    %s104 = sphi 0, %s90
    %s108 = sphi 0, %s108
    %s110 = sphi 0, %s108
    %s111 = sphi 0, %s110
    %s125 = sphi 0, %s111
    %s131 = sphi 0, %s133
    %s134 = sphi 0, %s131
    %s135 = sphi 0, %s134
    %s151 = sphi 0, %s135
  $region4: #{_lambda_.4} parent=0 // loop_header_branch
    %14 = sbr.rel (%p12) target = $region8
  $region5: #{_lambda_.4} parent=0 // loop_body
    %s16 = ssub.s32 %s11, 1
    %s17 = ssub.s32 %s11, 2
    %s18 = sadd.s32 %s11, 1
    %s19 = ssub.s32 %s11, %s18
    %p20 = scmp.eq.s32.totalorder %s19, 0
    %s22 = sadd.s32 %s21, 1
    %s23 = scalar_select %p20, %s21, %s22
    %p26 = pneg %p20
    %p27 = scmp.eq.s32.totalorder %s11, 1
    %p28 = por %p26, %p27
    %p29 = scmp.ne.s32.totalorder %s21, %s24
    %p30 = scmp.eq.s32.totalorder %s11, 0
    %p31 = por %p29, %p30
    %p32 = scmp.ne.s32.totalorder %s21, %s24
    %p33 = scmp.eq.s32.totalorder %s16, 1
    %p34 = por %p32, %p33
    %p35 = scmp.ne.s32.totalorder %s24, %s25
    %p36 = scmp.eq.s32.totalorder %s16, 0
    %p37 = por %p35, %p36
    %p38 = scmp.ne.s32.totalorder %s24, %s25
    %p39 = scmp.eq.s32.totalorder %s17, 1
    %p40 = por %p38, %p39
    %p42 = scmp.ne.s32.totalorder %s25, %s41
    %p43 = scmp.eq.s32.totalorder %s17, 0
    %p44 = por %p42, %p43
    %s46 = sadd.s32 %s45, 1
    %p49 = scmp.eq.s32.totalorder %s11, 1
    %p50 = scmp.ne.s32.totalorder %s45, %s47
    %p51 = scmp.eq.s32.totalorder %s11, 0
    %p52 = por %p50, %p51
    %p53 = scmp.ne.s32.totalorder %s45, %s47
    %p54 = scmp.eq.s32.totalorder %s16, 1
    %p55 = por %p53, %p54
    %p56 = scmp.ne.s32.totalorder %s47, %s48
    %p57 = scmp.eq.s32.totalorder %s16, 0
    %p58 = por %p56, %p57
    %p59 = scmp.ne.s32.totalorder %s47, %s48
    %p60 = scmp.eq.s32.totalorder %s17, 1
    %p61 = por %p59, %p60
    %p63 = scmp.ne.s32.totalorder %s48, %s62
    %p64 = scmp.eq.s32.totalorder %s17, 0
    %p65 = por %p63, %p64
    %s67 = sadd.s32 %s66, 1
    %p70 = scmp.eq.s32.totalorder %s11, 1
    %p71 = scmp.ne.s32.totalorder %s66, %s68
    %p72 = scmp.eq.s32.totalorder %s11, 0
    %p73 = por %p71, %p72
    %p74 = scmp.ne.s32.totalorder %s66, %s68
    %p75 = scmp.eq.s32.totalorder %s16, 1
    %p76 = por %p74, %p75
    %p77 = scmp.ne.s32.totalorder %s68, %s69
    %p78 = scmp.eq.s32.totalorder %s16, 0
    %p79 = por %p77, %p78
    %p80 = scmp.ne.s32.totalorder %s68, %s69
    %p81 = scmp.eq.s32.totalorder %s17, 1
    %p82 = por %p80, %p81
    %p84 = scmp.ne.s32.totalorder %s69, %s83
    %p85 = scmp.eq.s32.totalorder %s17, 0
    %p86 = por %p84, %p85
    %s88 = sadd.s32 %s87, 1
    %p91 = scmp.eq.s32.totalorder %s11, 1
    %p92 = scmp.ne.s32.totalorder %s87, %s89
    %p93 = scmp.eq.s32.totalorder %s11, 0
    %p94 = por %p92, %p93
    %p95 = scmp.ne.s32.totalorder %s87, %s89
    %p96 = scmp.eq.s32.totalorder %s16, 1
    %p97 = por %p95, %p96
    %p98 = scmp.ne.s32.totalorder %s89, %s90
    %p99 = scmp.eq.s32.totalorder %s16, 0
    %p100 = por %p98, %p99
    %p101 = scmp.ne.s32.totalorder %s89, %s90
    %p102 = scmp.eq.s32.totalorder %s17, 1
    %p103 = por %p101, %p102
    %p105 = scmp.ne.s32.totalorder %s90, %s104
    %p106 = scmp.eq.s32.totalorder %s17, 0
    %p107 = por %p105, %p106
    %s109 = sadd.s32 %s108, 1
    %p112 = scmp.eq.s32.totalorder %s11, 1
    %p113 = scmp.ne.s32.totalorder %s108, %s110
    %p114 = scmp.eq.s32.totalorder %s11, 0
    %p115 = por %p113, %p114
    %p116 = scmp.ne.s32.totalorder %s108, %s110
    %p117 = scmp.eq.s32.totalorder %s16, 1
    %p118 = por %p116, %p117
    %p119 = scmp.ne.s32.totalorder %s110, %s111
    %p120 = scmp.eq.s32.totalorder %s16, 0
    %p121 = por %p119, %p120
    %p122 = scmp.ne.s32.totalorder %s110, %s111
    %p123 = scmp.eq.s32.totalorder %s17, 1
    %p124 = por %p122, %p123
    %p126 = scmp.ne.s32.totalorder %s111, %s125
    %p127 = scmp.eq.s32.totalorder %s17, 0
    %p128 = por %p126, %p127
    %s129 = ssub.s32 %s11, %s18
    %p130 = scmp.eq.s32.totalorder %s129, 0
    %s132 = sadd.s32 %s131, 1
    %s133 = scalar_select %p130, %s131, %s132
    %p136 = pneg %p130
    %p137 = scmp.eq.s32.totalorder %s11, 1
    %p138 = por %p136, %p137
    %p139 = scmp.ne.s32.totalorder %s131, %s134
    %p140 = scmp.eq.s32.totalorder %s11, 0
    %p141 = por %p139, %p140
    %p142 = scmp.ne.s32.totalorder %s131, %s134
    %p143 = scmp.eq.s32.totalorder %s16, 1
    %p144 = por %p142, %p143
    %p145 = scmp.ne.s32.totalorder %s134, %s135
    %p146 = scmp.eq.s32.totalorder %s16, 0
    %p147 = por %p145, %p146
    %p148 = scmp.ne.s32.totalorder %s134, %s135
    %p149 = scmp.eq.s32.totalorder %s17, 1
    %p150 = por %p148, %p149
    %p152 = scmp.ne.s32.totalorder %s135, %s151
    %p153 = scmp.eq.s32.totalorder %s17, 0
    %p154 = por %p152, %p153
    %p155 = scmp.le.s32.totalorder 1, %s11
    %p156 = scmp.lt.s32.totalorder %s11, 3
    %p157 = pnand %p155, %p156
    %p158 = pneg %p157
    // Predicated region
    $region9: #{_lambda_.4} parent=5 // pred_check
      _
    $region10: #{_lambda_.4} parent=5 // pred_check_branch
      %160 = sbr.rel (%p157) target = $region12
    $region11: #{_lambda_.4} parent=5 // pred_region
      %s161 = ssub.s32 %s11, 1
      // Predicated region
      $region13: #{_lambda_.4} parent=11 // pred_check
        %p162 = pneg %p58
      $region14: #{_lambda_.4} parent=11 // pred_check_branch
        %164 = sbr.rel (%p162) target = $region16
      $region15: #{_lambda_.4} parent=11 // pred_region
        _
      $region16: #{_lambda_.4} parent=11 // pred_fallthru
        _
      // Predicated region
      $region17: #{_lambda_.4} parent=11 // pred_check
        %p165 = pneg %p79
      $region18: #{_lambda_.4} parent=11 // pred_check_branch
        %167 = sbr.rel (%p165) target = $region20
      $region19: #{_lambda_.4} parent=11 // pred_region
        _
      $region20: #{_lambda_.4} parent=11 // pred_fallthru
        _
      // Predicated region
      $region21: #{_lambda_.4} parent=11 // pred_check
        %p168 = pneg %p100
      $region22: #{_lambda_.4} parent=11 // pred_check_branch
        %170 = sbr.rel (%p168) target = $region24
      $region23: #{_lambda_.4} parent=11 // pred_region
        _
      $region24: #{_lambda_.4} parent=11 // pred_fallthru
        _
      // Predicated region
      $region25: #{_lambda_.4} parent=11 // pred_check
        %p171 = pneg %p121
      $region26: #{_lambda_.4} parent=11 // pred_check_branch
        %173 = sbr.rel (%p171) target = $region28
      $region27: #{_lambda_.4} parent=11 // pred_region
        _
      $region28: #{_lambda_.4} parent=11 // pred_fallthru
        _
    $region12: #{_lambda_.4} parent=5 // pred_fallthru
      _
    %p174 = scmp.lt.s32.totalorder %s11, 2
    // Predicated region
    $region29: #{_lambda_.4} parent=5 // pred_check
      %p175 = pneg %p174
    $region30: #{_lambda_.4} parent=5 // pred_check_branch
      %177 = sbr.rel (%p175) target = $region32
    $region31: #{_lambda_.4} parent=5 // pred_region
      // Predicated region
      $region33: #{_lambda_.4} parent=31 // pred_check
        %p178 = pneg %p31
      $region34: #{_lambda_.4} parent=31 // pred_check_branch
        %180 = sbr.rel (%p178) target = $region36
      $region35: #{_lambda_.4} parent=31 // pred_region
        %s181 = smul.u32 4, %s11
        %p182 = scmp.lt.s32.totalorder %s181, 7
        %s183 = scalar_select %p182, %s181, 7
        %s184 = smul.addr %s183, 4
        %s185 = smul.addr %s184, 4
        %s186 = scalar_lea.vmem %s0, %s185
        %s187 = smul.u32 4, %s11
      $region36: #{_lambda_.4} parent=31 // pred_fallthru
        _
    $region32: #{_lambda_.4} parent=5 // pred_fallthru
      _
    %p188 = scmp.le.s32.totalorder 1, %s11
    %p189 = scmp.lt.s32.totalorder %s11, 3
    %p190 = pnand %p188, %p189
    %p191 = pneg %p190
    // Predicated region
    $region37: #{_lambda_.4} parent=5 // pred_check
      _
    $region38: #{_lambda_.4} parent=5 // pred_check_branch
      %193 = sbr.rel (%p190) target = $region40
    $region39: #{_lambda_.4} parent=5 // pred_region
      %s194 = ssub.s32 %s11, 1
      %s195 = smul.u32 4, %s16
      %p196 = scmp.lt.s32.totalorder %s195, 7
      %s197 = scalar_select %p196, %s195, 7
      %s198 = smul.addr %s197, 4
      %s199 = smul.addr %s198, 4
      %s200 = scalar_lea.vmem %s0, %s199
      %p201 = pneg %p37
      %p202 = pneg %p34
      %p203 = pneg %p58
      %p204 = pneg %p55
      %p205 = pneg %p79
      %p206 = pneg %p76
      %p207 = pneg %p100
      %p208 = pneg %p97
      %p209 = pneg %p121
      %p210 = pneg %p118
      %p211 = pneg %p147
      %p212 = pneg %p144
      %s213 = smul.u32 4, %s16
      %p214 = scmp.lt.s32.totalorder %s213, 7
      %s215 = scalar_select %p214, %s213, 7
      %s216 = smul.addr %s215, 4
      %s217 = scalar_lea.vmem %s5, %s216
      %s218 = smul.u32 4, %s16
      %p219 = scmp.lt.s32.totalorder %s218, 7
      %s220 = scalar_select %p219, %s218, 7
      %s221 = smul.addr %s220, 4
      %s222 = smul.addr %s221, 4
      %s223 = scalar_lea.vmem %s0, %s222
      %s224 = smul.u32 4, %s16
      %s225 = smul.u32 4, %s16
      %p226 = scmp.lt.s32.totalorder %s225, 7
      %s227 = scalar_select %p226, %s225, 7
      %s228 = smul.addr %s227, 4
      %s229 = scalar_lea.vmem %s5, %s228
      %s230 = smul.u32 4, %s16
      %v232 = vld [vmem:[%s223] sm:$0xff]
      %v233 = vld [vmem:[%s223 + $0x8] sm:$0xff]
      %v234 = vld [vmem:[%s223 + $0x10] sm:$0xff]
      %v235 = vld [vmem:[%s223 + $0x18] sm:$0xff]
      %v236 = vld [vmem:[%s223 + $0x20] sm:$0xff]
      %v237 = vld [vmem:[%s223 + $0x28] sm:$0xff]
      %v238 = vld [vmem:[%s223 + $0x30] sm:$0xff]
      %v239 = vld [vmem:[%s223 + $0x38] sm:$0xff]
      %v248 = vcombine.low %v232, %v234
      %v249 = vcombine.high %v232, %v234
      %v250 = vcombine.low %v233, %v235
      %v251 = vcombine.high %v233, %v235
      %v252 = vcombine.low %v236, %v238
      %v253 = vcombine.high %v236, %v238
      %v254 = vcombine.low %v237, %v239
      %v255 = vcombine.high %v237, %v239
      %v264 = vpack.c.bf16 %v252, %v248
      %v265 = vpack.c.bf16 %v253, %v249
      %v266 = vpack.c.bf16 %v254, %v250
      %v267 = vpack.c.bf16 %v255, %v251
      %v268 = vld [vmem:[%s1] sm:$0xf]
      %v269 = vld [vmem:[%s1 + $0x4] sm:$0xf]
      %v270 = vld [vmem:[%s1 + $0x8] sm:$0xf]
      %v271 = vld [vmem:[%s1 + $0xc] sm:$0xf]
      %v272 = vld [vmem:[%s1 + $0x10] sm:$0xf]
      %v273 = vld [vmem:[%s1 + $0x14] sm:$0xf]
      %v274 = vld [vmem:[%s1 + $0x18] sm:$0xf]
      %v275 = vld [vmem:[%s1 + $0x1c] sm:$0xf]
      %v276 = vld [vmem:[%s1 + $0x20] sm:$0xf]
      %v277 = vld [vmem:[%s1 + $0x24] sm:$0xf]
      %v278 = vld [vmem:[%s1 + $0x28] sm:$0xf]
      %v279 = vld [vmem:[%s1 + $0x2c] sm:$0xf]
      %v280 = vld [vmem:[%s1 + $0x30] sm:$0xf]
      %v281 = vld [vmem:[%s1 + $0x34] sm:$0xf]
      %v282 = vld [vmem:[%s1 + $0x38] sm:$0xf]
      %v283 = vld [vmem:[%s1 + $0x3c] sm:$0xf]
      %v284 = vld [vmem:[%s1 + $0x40] sm:$0xf]
      %v285 = vld [vmem:[%s1 + $0x44] sm:$0xf]
      %v286 = vld [vmem:[%s1 + $0x48] sm:$0xf]
      %v287 = vld [vmem:[%s1 + $0x4c] sm:$0xf]
      %v288 = vld [vmem:[%s1 + $0x50] sm:$0xf]
      %v289 = vld [vmem:[%s1 + $0x54] sm:$0xf]
      %v290 = vld [vmem:[%s1 + $0x58] sm:$0xf]
      %v291 = vld [vmem:[%s1 + $0x5c] sm:$0xf]
      %v292 = vld [vmem:[%s1 + $0x60] sm:$0xf]
      %v293 = vld [vmem:[%s1 + $0x64] sm:$0xf]
      %v294 = vld [vmem:[%s1 + $0x68] sm:$0xf]
      %v295 = vld [vmem:[%s1 + $0x6c] sm:$0xf]
      %v296 = vld [vmem:[%s1 + $0x70] sm:$0xf]
      %v297 = vld [vmem:[%s1 + $0x74] sm:$0xf]
      %v298 = vld [vmem:[%s1 + $0x78] sm:$0xf]
      %v299 = vld [vmem:[%s1 + $0x7c] sm:$0xf]
      %v300 = vld [vmem:[%s1 + $0x80] sm:$0xf]
      %v301 = vld [vmem:[%s1 + $0x84] sm:$0xf]
      %v302 = vld [vmem:[%s1 + $0x88] sm:$0xf]
      %v303 = vld [vmem:[%s1 + $0x8c] sm:$0xf]
      %v304 = vld [vmem:[%s1 + $0x90] sm:$0xf]
      %v305 = vld [vmem:[%s1 + $0x94] sm:$0xf]
      %v306 = vld [vmem:[%s1 + $0x98] sm:$0xf]
      %v307 = vld [vmem:[%s1 + $0x9c] sm:$0xf]
      %v308 = vld [vmem:[%s1 + $0xa0] sm:$0xf]
      %v309 = vld [vmem:[%s1 + $0xa4] sm:$0xf]
      %v310 = vld [vmem:[%s1 + $0xa8] sm:$0xf]
      %v311 = vld [vmem:[%s1 + $0xac] sm:$0xf]
      %v312 = vld [vmem:[%s1 + $0xb0] sm:$0xf]
      %v313 = vld [vmem:[%s1 + $0xb4] sm:$0xf]
      %v314 = vld [vmem:[%s1 + $0xb8] sm:$0xf]
      %v315 = vld [vmem:[%s1 + $0xbc] sm:$0xf]
      %v316 = vld [vmem:[%s1 + $0xc0] sm:$0xf]
      %v317 = vld [vmem:[%s1 + $0xc4] sm:$0xf]
      %v318 = vld [vmem:[%s1 + $0xc8] sm:$0xf]
      %v319 = vld [vmem:[%s1 + $0xcc] sm:$0xf]
      %v320 = vld [vmem:[%s1 + $0xd0] sm:$0xf]
      %v321 = vld [vmem:[%s1 + $0xd4] sm:$0xf]
      %v322 = vld [vmem:[%s1 + $0xd8] sm:$0xf]
      %v323 = vld [vmem:[%s1 + $0xdc] sm:$0xf]
      %v324 = vld [vmem:[%s1 + $0xe0] sm:$0xf]
      %v325 = vld [vmem:[%s1 + $0xe4] sm:$0xf]
      %v326 = vld [vmem:[%s1 + $0xe8] sm:$0xf]
      %v327 = vld [vmem:[%s1 + $0xec] sm:$0xf]
      %v328 = vld [vmem:[%s1 + $0xf0] sm:$0xf]
      %v329 = vld [vmem:[%s1 + $0xf4] sm:$0xf]
      %v330 = vld [vmem:[%s1 + $0xf8] sm:$0xf]
      %v331 = vld [vmem:[%s1 + $0xfc] sm:$0xf]
      %v332 = vld [vmem:[%s2] sm:$0x1]
      %v334 = vlaneseq
      %v335 = vshrl.u32 %v334, 7
      %v336 = vsub.s32 0, %v335
      %v337 = vrot.slane %v332, %v336
      %v403 = vunpack.c.l.b16 %v268
      %v404 = vunpack.c.l.b16 %v269
      %v405 = vunpack.c.l.b16 %v270
      %v406 = vunpack.c.l.b16 %v271
      %v407 = vunpack.c.l.b16 %v272
      %v408 = vunpack.c.l.b16 %v273
      %v409 = vunpack.c.l.b16 %v274
      %v410 = vunpack.c.l.b16 %v275
      %v411 = vunpack.c.l.b16 %v276
      %v412 = vunpack.c.l.b16 %v277
      %v413 = vunpack.c.l.b16 %v278
      %v414 = vunpack.c.l.b16 %v279
      %v415 = vunpack.c.l.b16 %v280
      %v416 = vunpack.c.l.b16 %v281
      %v417 = vunpack.c.l.b16 %v282
      %v418 = vunpack.c.l.b16 %v283
      %v419 = vunpack.c.l.b16 %v284
      %v420 = vunpack.c.l.b16 %v285
      %v421 = vunpack.c.l.b16 %v286
      %v422 = vunpack.c.l.b16 %v287
      %v423 = vunpack.c.l.b16 %v288
      %v424 = vunpack.c.l.b16 %v289
      %v425 = vunpack.c.l.b16 %v290
      %v426 = vunpack.c.l.b16 %v291
      %v427 = vunpack.c.l.b16 %v292
      %v428 = vunpack.c.l.b16 %v293
      %v429 = vunpack.c.l.b16 %v294
      %v430 = vunpack.c.l.b16 %v295
      %v431 = vunpack.c.l.b16 %v296
      %v432 = vunpack.c.l.b16 %v297
      %v433 = vunpack.c.l.b16 %v298
      %v434 = vunpack.c.l.b16 %v299
      %v435 = vunpack.c.l.b16 %v300
      %v436 = vunpack.c.l.b16 %v301
      %v437 = vunpack.c.l.b16 %v302
      %v438 = vunpack.c.l.b16 %v303
      %v439 = vunpack.c.l.b16 %v304
      %v440 = vunpack.c.l.b16 %v305
      %v441 = vunpack.c.l.b16 %v306
      %v442 = vunpack.c.l.b16 %v307
      %v443 = vunpack.c.l.b16 %v308
      %v444 = vunpack.c.l.b16 %v309
      %v445 = vunpack.c.l.b16 %v310
      %v446 = vunpack.c.l.b16 %v311
      %v447 = vunpack.c.l.b16 %v312
      %v448 = vunpack.c.l.b16 %v313
      %v449 = vunpack.c.l.b16 %v314
      %v450 = vunpack.c.l.b16 %v315
      %v451 = vunpack.c.l.b16 %v316
      %v452 = vunpack.c.l.b16 %v317
      %v453 = vunpack.c.l.b16 %v318
      %v454 = vunpack.c.l.b16 %v319
      %v455 = vunpack.c.l.b16 %v320
      %v456 = vunpack.c.l.b16 %v321
      %v457 = vunpack.c.l.b16 %v322
      %v458 = vunpack.c.l.b16 %v323
      %v459 = vunpack.c.l.b16 %v324
      %v460 = vunpack.c.l.b16 %v325
      %v461 = vunpack.c.l.b16 %v326
      %v462 = vunpack.c.l.b16 %v327
      %v463 = vunpack.c.l.b16 %v328
      %v464 = vunpack.c.l.b16 %v329
      %v465 = vunpack.c.l.b16 %v330
      %v466 = vunpack.c.l.b16 %v331
      %v467 = vpack.c.b16 %v404, %v403
      %v468 = vpack.c.b16 %v406, %v405
      %v469 = vpack.c.b16 %v408, %v407
      %v470 = vpack.c.b16 %v410, %v409
      %v471 = vpack.c.b16 %v412, %v411
      %v472 = vpack.c.b16 %v414, %v413
      %v473 = vpack.c.b16 %v416, %v415
      %v474 = vpack.c.b16 %v418, %v417
      %v475 = vpack.c.b16 %v420, %v419
      %v476 = vpack.c.b16 %v422, %v421
      %v477 = vpack.c.b16 %v424, %v423
      %v478 = vpack.c.b16 %v426, %v425
      %v479 = vpack.c.b16 %v428, %v427
      %v480 = vpack.c.b16 %v430, %v429
      %v481 = vpack.c.b16 %v432, %v431
      %v482 = vpack.c.b16 %v434, %v433
      %v483 = vpack.c.b16 %v436, %v435
      %v484 = vpack.c.b16 %v438, %v437
      %v485 = vpack.c.b16 %v440, %v439
      %v486 = vpack.c.b16 %v442, %v441
      %v487 = vpack.c.b16 %v444, %v443
      %v488 = vpack.c.b16 %v446, %v445
      %v489 = vpack.c.b16 %v448, %v447
      %v490 = vpack.c.b16 %v450, %v449
      %v491 = vpack.c.b16 %v452, %v451
      %v492 = vpack.c.b16 %v454, %v453
      %v493 = vpack.c.b16 %v456, %v455
      %v494 = vpack.c.b16 %v458, %v457
      %v495 = vpack.c.b16 %v460, %v459
      %v496 = vpack.c.b16 %v462, %v461
      %v497 = vpack.c.b16 %v464, %v463
      %v498 = vpack.c.b16 %v466, %v465
      %531 = vmatprep.subr.bf16.mxu0 0
      %532 = vmatpush1.bf16.msra.mxu0 %v474
      %533 = vmatprep.subr.bf16.mxu0 0
      %534 = vmatpush1.bf16.msra.mxu0 %v473
      %535 = vmatprep.subr.bf16.mxu0 0
      %536 = vmatpush1.bf16.msra.mxu0 %v472
      %537 = vmatprep.subr.bf16.mxu0 0
      %538 = vmatpush1.bf16.msra.mxu0 %v471
      %539 = vmatprep.subr.bf16.mxu0 0
      %540 = vmatpush1.bf16.msra.mxu0 %v470
      %541 = vmatprep.subr.bf16.mxu0 0
      %542 = vmatpush1.bf16.msra.mxu0 %v469
      %543 = vmatprep.subr.bf16.mxu0 0
      %544 = vmatpush1.bf16.msra.mxu0 %v468
      %545 = vmatprep.subr.bf16.mxu0 0
      %546 = vmatpush1.bf16.msra.mxu0 %v467
      %547 = vmatprep.subr.bf16.mxu0 0
      %548 = vmatpush2.bf16.msra.mxu0 %v482
      %549 = vmatprep.subr.bf16.mxu0 0
      %550 = vmatpush2.bf16.msra.mxu0 %v481
      %551 = vmatprep.subr.bf16.mxu0 0
      %552 = vmatpush2.bf16.msra.mxu0 %v480
      %553 = vmatprep.subr.bf16.mxu0 0
      %554 = vmatpush2.bf16.msra.mxu0 %v479
      %555 = vmatprep.subr.bf16.mxu0 0
      %556 = vmatpush2.bf16.msra.mxu0 %v478
      %557 = vmatprep.subr.bf16.mxu0 0
      %558 = vmatpush2.bf16.msra.mxu0 %v477
      %559 = vmatprep.subr.bf16.mxu0 0
      %560 = vmatpush2.bf16.msra.mxu0 %v476
      %561 = vmatprep.subr.bf16.mxu0 0
      %562 = vmatpush2.bf16.msra.mxu0 %v475
      %563 = vmatprep.mubr.bf16.mxu0 %v265
      %564 = vmatmul.mubr.bf16.gmra.mxu0 %v264
      %v565 = vpop.f32.mrf.mxu0
      %v566 = vadd.f32 %v337, %v565
      %v567 = vpop.f32.mrf.mxu0
      %v568 = vpop.f32.mrf.mxu0
      %v569 = vadd.f32 %v337, %v568
      %v570 = vpop.f32.mrf.mxu0
      %571 = vdwg.mxu0
      %572 = vmatprep.subr.bf16.mxu0 0
      %573 = vmatpush1.bf16.msra.mxu0 %v490
      %574 = vmatprep.subr.bf16.mxu0 0
      %575 = vmatpush1.bf16.msra.mxu0 %v489
      %576 = vmatprep.subr.bf16.mxu0 0
      %577 = vmatpush1.bf16.msra.mxu0 %v488
      %578 = vmatprep.subr.bf16.mxu0 0
      %579 = vmatpush1.bf16.msra.mxu0 %v487
      %580 = vmatprep.subr.bf16.mxu0 0
      %581 = vmatpush1.bf16.msra.mxu0 %v486
      %582 = vmatprep.subr.bf16.mxu0 0
      %583 = vmatpush1.bf16.msra.mxu0 %v485
      %584 = vmatprep.subr.bf16.mxu0 0
      %585 = vmatpush1.bf16.msra.mxu0 %v484
      %586 = vmatprep.subr.bf16.mxu0 0
      %587 = vmatpush1.bf16.msra.mxu0 %v483
      %588 = vmatprep.subr.bf16.mxu0 0
      %589 = vmatpush2.bf16.msra.mxu0 %v498
      %590 = vmatprep.subr.bf16.mxu0 0
      %591 = vmatpush2.bf16.msra.mxu0 %v497
      %592 = vmatprep.subr.bf16.mxu0 0
      %593 = vmatpush2.bf16.msra.mxu0 %v496
      %594 = vmatprep.subr.bf16.mxu0 0
      %595 = vmatpush2.bf16.msra.mxu0 %v495
      %596 = vmatprep.subr.bf16.mxu0 0
      %597 = vmatpush2.bf16.msra.mxu0 %v494
      %598 = vmatprep.subr.bf16.mxu0 0
      %599 = vmatpush2.bf16.msra.mxu0 %v493
      %600 = vmatprep.subr.bf16.mxu0 0
      %601 = vmatpush2.bf16.msra.mxu0 %v492
      %602 = vmatprep.subr.bf16.mxu0 0
      %603 = vmatpush2.bf16.msra.mxu0 %v491
      %604 = vmatprep.mubr.bf16.mxu0 %v267
      %605 = vmatmul.mubr.bf16.gmra.mxu0 %v266
      %v606 = vpop.f32.mrf.mxu0
      %v607 = vadd.f32 %v566, %v606
      %v608 = vpop.f32.mrf.mxu0
      %v609 = vpop.f32.mrf.mxu0
      %v610 = vadd.f32 %v569, %v609
      %v611 = vpop.f32.mrf.mxu0
      %612 = vdwg.mxu0
      %v615 = vcombine.high %v607, %v607
      %v616 = vcombine.high %v610, %v610
      %v617 = vld [vmem:[%s3] sm:$0x1]
      %v618 = vrot.slane %v607, 7
      %v619 = vrot.slane %v615, 7
      %v620 = vrot.slane %v610, 7
      %v621 = vrot.slane %v616, 7
      %vm626 = vcmask 1040384
      %v627 = vsel %vm626, %v617, %v618
      %v628 = vsel %vm626, %v617, %v619
      %v629 = vsel %vm626, %v617, %v620
      %v630 = vsel %vm626, %v617, %v621
      %v631 = vld [vmem:[%s4] sm:$0x1f]
      %v632 = vadd.f32 %v627, %v631
      %v633 = vadd.f32 %v628, %v631
      %v634 = vadd.f32 %v629, %v631
      %v635 = vadd.f32 %v630, %v631
      %v636 = vpack.c.bf16 %v632, %v632
      %v637 = vpack.c.bf16 %v633, %v633
      %v638 = vpack.c.bf16 %v634, %v634
      %v639 = vpack.c.bf16 %v635, %v635
      %vm640 = vcmask 256000
      %vm641 = vsmask.f32 2304
      %vm642 = vmand %vm640, %vm641
      %v643 = vld [vmem:[%s229] sm:$0x7]
      %v644 = vsel %vm642, %v636, %v643
      %645 = vst [vmem:[%s229] sm:$0x7] %v644
      %v646 = vld [vmem:[%s229 + $0x4] sm:$0x7]
      %v647 = vsel %vm642, %v637, %v646
      %648 = vst [vmem:[%s229 + $0x4] sm:$0x7] %v647
      %v649 = vld [vmem:[%s229 + $0x8] sm:$0x7]
      %v650 = vsel %vm642, %v638, %v649
      %651 = vst [vmem:[%s229 + $0x8] sm:$0x7] %v650
      %v652 = vld [vmem:[%s229 + $0xc] sm:$0x7]
      %v653 = vsel %vm642, %v639, %v652
      %654 = vst [vmem:[%s229 + $0xc] sm:$0x7] %v653
      %s655 = smul.u32 4, %s16
      %p656 = scmp.lt.s32.totalorder %s655, 7
      %s657 = scalar_select %p656, %s655, 7
      %s658 = smul.addr %s657, 4
      %s659 = scalar_lea.vmem %s5, %s658
      // Predicated region
      $region41: #{_lambda_.4} parent=39 // pred_check
        %p660 = pneg %p144
      $region42: #{_lambda_.4} parent=39 // pred_check_branch
        %662 = sbr.rel (%p660) target = $region44
      $region43: #{_lambda_.4} parent=39 // pred_region
        %s663 = smul.u32 4, %s16
      $region44: #{_lambda_.4} parent=39 // pred_fallthru
        _
    $region40: #{_lambda_.4} parent=5 // pred_fallthru
      _
    %p664 = scmp.le.s32.totalorder 2, %s11
    // Predicated region
    $region45: #{_lambda_.4} parent=5 // pred_check
      %p665 = pneg %p664
    $region46: #{_lambda_.4} parent=5 // pred_check_branch
      %667 = sbr.rel (%p665) target = $region48
    $region47: #{_lambda_.4} parent=5 // pred_region
      %s668 = ssub.s32 %s11, 2
      // Predicated region
      $region49: #{_lambda_.4} parent=47 // pred_check
        %p669 = pneg %p150
      $region50: #{_lambda_.4} parent=47 // pred_check_branch
        %671 = sbr.rel (%p669) target = $region52
      $region51: #{_lambda_.4} parent=47 // pred_region
        %s672 = smul.u32 4, %s17
        %p673 = scmp.lt.s32.totalorder %s672, 7
        %s674 = scalar_select %p673, %s672, 7
        %s675 = smul.addr %s674, 4
        %s676 = scalar_lea.vmem %s5, %s675
      $region52: #{_lambda_.4} parent=47 // pred_fallthru
        _
    $region48: #{_lambda_.4} parent=5 // pred_fallthru
      _
  $region6: #{_lambda_.4} parent=0 // loop_footer
    %s15 = sadd.s32 1, %s11
  $region7: #{_lambda_.4} parent=0 // loop_footer_branch
    %10 = sbr.rel target = $region3
  $region8: #{_lambda_.4} parent=0 // loop_exit
    _

// kernel: _lambda_.7
$region0: #{_lambda_.7}
  #allocation0 [shape = 'u32[]', space=smem, size = 0x4, offset = 0x4, fixed_abs, tag = 'smem constant byte address 0x4 - core index']
  #allocation1 [shape = 'u32[144,128]{1,0:T(1,128)}', space=vmem, size = 0x12000, scoped, tag = 'internal scratch']
  %s0 = inlined_call_operand.vmem [shape: bf16[8,32], index: 0, kind: input, shape index: {}]
  %s1 = inlined_call_operand.vmem [shape: f32[1,32], index: 1, kind: input, shape index: {}]
  %s2 = inlined_call_operand.vmem [shape: f32[1,32], index: 2, kind: input, shape index: {}]
  %s3 = inlined_call_operand.vmem [shape: bf16[32,128], index: 3, kind: input, shape index: {}]
  %s4 = inlined_call_operand.vmem [shape: f32[1,128], index: 4, kind: input, shape index: {}]
  %s5 = inlined_call_operand.vmem [shape: f32[8,128], index: 5, kind: output, shape index: {}]
  %s6 = sld [smem:[#allocation0]]
  $region30: #{_lambda_.7} parent=0
    _
  %s8 = ssub.s32 1, %s6
  %s9 = scalar_select 0, %s8, %s6
  // Predicated region
  $region2: #{_lambda_.7} parent=0 // pred_check
    _
  $region3: #{_lambda_.7} parent=0 // pred_check_branch
    %11 = sbr.rel (0) target = $region5
  $region4: #{_lambda_.7} parent=0 // pred_region
    _
  $region5: #{_lambda_.7} parent=0 // pred_fallthru
    _
  // Predicated region
  $region6: #{_lambda_.7} parent=0 // pred_check
    _
  $region7: #{_lambda_.7} parent=0 // pred_check_branch
    %13 = sbr.rel (0) target = $region9
  $region8: #{_lambda_.7} parent=0 // pred_region
    _
  $region9: #{_lambda_.7} parent=0 // pred_fallthru
    _
  // Predicated region
  $region10: #{_lambda_.7} parent=0 // pred_check
    _
  $region11: #{_lambda_.7} parent=0 // pred_check_branch
    %15 = sbr.rel (0) target = $region13
  $region12: #{_lambda_.7} parent=0 // pred_region
    _
  $region13: #{_lambda_.7} parent=0 // pred_fallthru
    _
  // Predicated region
  $region14: #{_lambda_.7} parent=0 // pred_check
    _
  $region15: #{_lambda_.7} parent=0 // pred_check_branch
    %17 = sbr.rel (0) target = $region17
  $region16: #{_lambda_.7} parent=0 // pred_region
    _
  $region17: #{_lambda_.7} parent=0 // pred_fallthru
    _
  // Predicated region
  $region18: #{_lambda_.7} parent=0 // pred_check
    _
  $region19: #{_lambda_.7} parent=0 // pred_check_branch
    %19 = sbr.rel (0) target = $region21
  $region20: #{_lambda_.7} parent=0 // pred_region
    _
  $region21: #{_lambda_.7} parent=0 // pred_fallthru
    _
  %v21 = vld [vmem:[%s0] sm:$0xf]
  %v22 = vunpack.c.l.bf16 %v21
  %v23 = vld [vmem:[%s1] sm:$0x1]
  %v24 = vld [vmem:[%s2] sm:$0x1]
  %vm25 = vcmask 261120
  %v26 = vsel %vm25, %v22, 0.0
  %27 = vadd.xlane.f32.xlu0 %v26
  %v28 = vpop.xlane.xlu0 %27
  %v29 = vrcp.pop 32.0
  %v30 = vmul.f32 %v28, %v29
  %v31 = vsub.f32 %v22, %v30
  %v32 = vmul.f32 %v31, %v31
  %v33 = vsel %vm25, %v32, 0.0
  %34 = vadd.xlane.f32.xlu0 %v33
  %v35 = vpop.xlane.xlu0 %34
  %v36 = vmul.f32 %v35, %v29
  %v37 = vadd.f32 %v36, 1e-06
  %v38 = vrsqrt.pop %v37
  %v39 = vmul.f32 %v31, %v38
  %v41 = vlaneseq
  %v42 = vshrl.u32 %v41, 7
  %v43 = vsub.s32 0, %v42
  %v44 = vrot.slane %v23, %v43
  %v46 = vmul.f32 %v39, %v44
  %v48 = vlaneseq
  %v49 = vshrl.u32 %v48, 7
  %v50 = vsub.s32 0, %v49
  %v51 = vrot.slane %v24, %v50
  %v53 = vadd.f32 %v46, %v51
  %v54 = vpack.c.bf16 %v53, %v53
  %v55 = vld [vmem:[%s3] sm:$0xf]
  %v56 = vld [vmem:[%s3 + $0x4] sm:$0xf]
  %v57 = vld [vmem:[%s3 + $0x8] sm:$0xf]
  %v58 = vld [vmem:[%s3 + $0xc] sm:$0xf]
  %v59 = vld [vmem:[%s4] sm:$0x1]
  %v61 = vlaneseq
  %v62 = vshrl.u32 %v61, 7
  %v63 = vsub.s32 0, %v62
  %v64 = vrot.slane %v59, %v63
  %v70 = vunpack.c.l.b16 %v55
  %v71 = vunpack.c.l.b16 %v56
  %v72 = vunpack.c.l.b16 %v57
  %v73 = vunpack.c.l.b16 %v58
  %v74 = vpack.c.b16 %v71, %v70
  %v75 = vpack.c.b16 %v73, %v72
  %v79 = vsel %vm25, %v54, 0
  %81 = vmatprep.subr.bf16.mxu0 0
  %82 = vmatpush1.bf16.msra.mxu0 0
  %83 = vmatprep.subr.bf16.mxu0 0
  %84 = vmatpush1.bf16.msra.mxu0 0
  %85 = vmatprep.subr.bf16.mxu0 0
  %86 = vmatpush1.bf16.msra.mxu0 0
  %87 = vmatprep.subr.bf16.mxu0 0
  %88 = vmatpush1.bf16.msra.mxu0 0
  %89 = vmatprep.subr.bf16.mxu0 0
  %90 = vmatpush1.bf16.msra.mxu0 0
  %91 = vmatprep.subr.bf16.mxu0 0
  %92 = vmatpush1.bf16.msra.mxu0 0
  %93 = vmatprep.subr.bf16.mxu0 0
  %94 = vmatpush1.bf16.msra.mxu0 %v75
  %95 = vmatprep.subr.bf16.mxu0 0
  %96 = vmatpush1.bf16.msra.mxu0 %v74
  %97 = vmatprep.subr.bf16.mxu0 0
  %98 = vmatpush2.bf16.msra.mxu0 0
  %99 = vmatprep.subr.bf16.mxu0 0
  %100 = vmatpush2.bf16.msra.mxu0 0
  %101 = vmatprep.subr.bf16.mxu0 0
  %102 = vmatpush2.bf16.msra.mxu0 0
  %103 = vmatprep.subr.bf16.mxu0 0
  %104 = vmatpush2.bf16.msra.mxu0 0
  %105 = vmatprep.subr.bf16.mxu0 0
  %106 = vmatpush2.bf16.msra.mxu0 0
  %107 = vmatprep.subr.bf16.mxu0 0
  %108 = vmatpush2.bf16.msra.mxu0 0
  %109 = vmatprep.subr.bf16.mxu0 0
  %110 = vmatpush2.bf16.msra.mxu0 0
  %111 = vmatprep.subr.bf16.mxu0 0
  %112 = vmatpush2.bf16.msra.mxu0 0
  %113 = vmatprep.mubr.bf16.mxu0 0
  %114 = vmatmul.mubr.bf16.gmra.mxu0 %v79
  %v115 = vpop.f32.mrf.mxu0
  %v116 = vadd.f32 %v64, %v115
  %v117 = vpop.f32.mrf.mxu0
  %v118 = vpop.f32.mrf.mxu0
  %v119 = vpop.f32.mrf.mxu0
  %120 = vdwg.mxu0
  %121 = vst [vmem:[%s5] sm:$0xff] %v116
  // Predicated region
  $region22: #{_lambda_.7} parent=0 // pred_check
    _
  $region23: #{_lambda_.7} parent=0 // pred_check_branch
    %123 = sbr.rel (0) target = $region25
  $region24: #{_lambda_.7} parent=0 // pred_region
    _
  $region25: #{_lambda_.7} parent=0 // pred_fallthru
    _
  // Predicated region
  $region26: #{_lambda_.7} parent=0 // pred_check
    _
  $region27: #{_lambda_.7} parent=0 // pred_check_branch
    %125 = sbr.rel (0) target = $region29
  $region28: #{_lambda_.7} parent=0 // pred_region
    _
  $region29: #{_lambda_.7} parent=0 // pred_fallthru
    _

// kernel: _lambda_.5
$region0: #{_lambda_.5}
  #allocation0 [shape = 'u32[]', space=smem, size = 0x4, offset = 0x4, fixed_abs, tag = 'smem constant byte address 0x4 - core index']
  #allocation1 [shape = 'u32[144,128]{1,0:T(1,128)}', space=vmem, size = 0x12000, scoped, tag = 'internal scratch']
  #allocation2 [shape = 'f32[20,32]{1,0:T(8,128)}', space=vmem, size = 0x3000, scoped, tag = 'scratch operand']
  %s0 = inlined_call_operand.vmem [shape: bf16[8,5,32], index: 0, kind: input, shape index: {}]
  %s1 = inlined_call_operand.vmem [shape: f32[2,1,32], index: 1, kind: input, shape index: {}]
  %s2 = inlined_call_operand.vmem [shape: f32[2,1,32], index: 2, kind: input, shape index: {}]
  %s3 = inlined_call_operand.vmem [shape: bf16[2,32,96], index: 3, kind: input, shape index: {}]
  %s4 = inlined_call_operand.vmem [shape: f32[2,1,96], index: 4, kind: input, shape index: {}]
  %s5 = inlined_call_operand.vmem [shape: bf16[2,32,32], index: 5, kind: input, shape index: {}]
  %s6 = inlined_call_operand.vmem [shape: f32[2,1,32], index: 6, kind: input, shape index: {}]
  %s7 = inlined_call_operand.vmem [shape: f32[2,1,32], index: 7, kind: input, shape index: {}]
  %s8 = inlined_call_operand.vmem [shape: f32[2,1,32], index: 8, kind: input, shape index: {}]
  %s9 = inlined_call_operand.vmem [shape: bf16[2,32,128], index: 9, kind: input, shape index: {}]
  %s10 = inlined_call_operand.vmem [shape: f32[2,1,128], index: 10, kind: input, shape index: {}]
  %s11 = inlined_call_operand.vmem [shape: bf16[2,128,32], index: 11, kind: input, shape index: {}]
  %s12 = inlined_call_operand.vmem [shape: f32[2,1,32], index: 12, kind: input, shape index: {}]
  %s13 = inlined_call_operand.vmem [shape: bf16[8,5,32], index: 13, kind: output, shape index: {}]
  %s14 = sld [smem:[#allocation0]]
  $region93: #{_lambda_.5} parent=0
    _
  %s16 = ssub.s32 1, %s14
  %s17 = scalar_select 0, %s16, %s14
  loop: start=0, step=1, limit=6
  $region2: #{_lambda_.5} parent=0 // loop_pre_header
    _
  $region3: #{_lambda_.5} parent=0 // loop_header
    %s19 = sphi 0, %s23
    %p20 = scmp.ge.s32.totalorder %s19, 6
    %s26 = sphi 0, %s38
    %s27 = sphi 0, %s34
    %s28 = sphi 0, %s26
    %s29 = sphi 0, %s27
    %s30 = sphi 0, %s28
    %s31 = sphi 0, %s29
    %s41 = sphi 0, %s43
    %s44 = sphi 0, %s41
    %s45 = sphi 0, %s44
    %s61 = sphi 0, %s45
    %s67 = sphi 0, %s69
    %s70 = sphi 0, %s67
    %s71 = sphi 0, %s70
    %s87 = sphi 0, %s71
    %s93 = sphi 0, %s95
    %s96 = sphi 0, %s93
    %s97 = sphi 0, %s96
    %s113 = sphi 0, %s97
    %s119 = sphi 0, %s121
    %s122 = sphi 0, %s119
    %s123 = sphi 0, %s122
    %s139 = sphi 0, %s123
    %s145 = sphi 0, %s147
    %s148 = sphi 0, %s145
    %s149 = sphi 0, %s148
    %s165 = sphi 0, %s149
    %s171 = sphi 0, %s173
    %s174 = sphi 0, %s171
    %s175 = sphi 0, %s174
    %s191 = sphi 0, %s175
    %s197 = sphi 0, %s199
    %s200 = sphi 0, %s197
    %s201 = sphi 0, %s200
    %s217 = sphi 0, %s201
    %s223 = sphi 0, %s225
    %s226 = sphi 0, %s223
    %s227 = sphi 0, %s226
    %s243 = sphi 0, %s227
    %s249 = sphi 0, %s251
    %s252 = sphi 0, %s249
    %s253 = sphi 0, %s252
    %s269 = sphi 0, %s253
    %s275 = sphi 0, %s277
    %s278 = sphi 0, %s275
    %s279 = sphi 0, %s278
    %s295 = sphi 0, %s279
    %s301 = sphi 0, %s303
    %s304 = sphi 0, %s301
    %s305 = sphi 0, %s304
    %s321 = sphi 0, %s305
    %s327 = sphi 0, %s329
    %s330 = sphi 0, %s327
    %s331 = sphi 0, %s330
    %s347 = sphi 0, %s331
    %s353 = sphi 0, %s355
    %s356 = sphi 0, %s353
    %s357 = sphi 0, %s356
    %s373 = sphi 0, %s357
    %s379 = sphi 0, %s381
    %s382 = sphi 0, %s379
    %s383 = sphi 0, %s382
    %s399 = sphi 0, %s383
  $region4: #{_lambda_.5} parent=0 // loop_header_branch
    %22 = sbr.rel (%p20) target = $region8
  $region5: #{_lambda_.5} parent=0 // loop_body
    %s24 = ssub.s32 %s19, 1
    %s25 = ssub.s32 %s19, 2
    %s32 = sadd.s32 1, %s27
    %p33 = scmp.ge.s32.totalorder %s32, 2
    %s34 = scalar_select %p33, 0, %s32
    %s35 = sadd.s32 1, %s26
    %s36 = scalar_select %p33, %s35, %s26
    %p37 = scmp.ge.s32.totalorder %s36, 2
    %s38 = scalar_select %p37, 0, %s36
    %s39 = ssub.s32 %s26, %s38
    %p40 = scmp.eq.s32.totalorder %s39, 0
    %s42 = sadd.s32 %s41, 1
    %s43 = scalar_select %p40, %s41, %s42
    %p46 = pneg %p40
    %p47 = scmp.eq.s32.totalorder %s19, 3
    %p48 = por %p46, %p47
    %p49 = scmp.ne.s32.totalorder %s41, %s44
    %p50 = scmp.eq.s32.totalorder %s19, 0
    %p51 = por %p49, %p50
    %p52 = scmp.ne.s32.totalorder %s41, %s44
    %p53 = scmp.eq.s32.totalorder %s24, 3
    %p54 = por %p52, %p53
    %p55 = scmp.ne.s32.totalorder %s44, %s45
    %p56 = scmp.eq.s32.totalorder %s24, 0
    %p57 = por %p55, %p56
    %p58 = scmp.ne.s32.totalorder %s44, %s45
    %p59 = scmp.eq.s32.totalorder %s25, 3
    %p60 = por %p58, %p59
    %p62 = scmp.ne.s32.totalorder %s45, %s61
    %p63 = scmp.eq.s32.totalorder %s25, 0
    %p64 = por %p62, %p63
    %s65 = ssub.s32 %s27, %s34
    %p66 = scmp.eq.s32.totalorder %s65, 0
    %s68 = sadd.s32 %s67, 1
    %s69 = scalar_select %p66, %s67, %s68
    %p72 = pneg %p66
    %p73 = scmp.eq.s32.totalorder %s19, 3
    %p74 = por %p72, %p73
    %p75 = scmp.ne.s32.totalorder %s67, %s70
    %p76 = scmp.eq.s32.totalorder %s19, 0
    %p77 = por %p75, %p76
    %p78 = scmp.ne.s32.totalorder %s67, %s70
    %p79 = scmp.eq.s32.totalorder %s24, 3
    %p80 = por %p78, %p79
    %p81 = scmp.ne.s32.totalorder %s70, %s71
    %p82 = scmp.eq.s32.totalorder %s24, 0
    %p83 = por %p81, %p82
    %p84 = scmp.ne.s32.totalorder %s70, %s71
    %p85 = scmp.eq.s32.totalorder %s25, 3
    %p86 = por %p84, %p85
    %p88 = scmp.ne.s32.totalorder %s71, %s87
    %p89 = scmp.eq.s32.totalorder %s25, 0
    %p90 = por %p88, %p89
    %s91 = ssub.s32 %s27, %s34
    %p92 = scmp.eq.s32.totalorder %s91, 0
    %s94 = sadd.s32 %s93, 1
    %s95 = scalar_select %p92, %s93, %s94
    %p98 = pneg %p92
    %p99 = scmp.eq.s32.totalorder %s19, 3
    %p100 = por %p98, %p99
    %p101 = scmp.ne.s32.totalorder %s93, %s96
    %p102 = scmp.eq.s32.totalorder %s19, 0
    %p103 = por %p101, %p102
    %p104 = scmp.ne.s32.totalorder %s93, %s96
    %p105 = scmp.eq.s32.totalorder %s24, 3
    %p106 = por %p104, %p105
    %p107 = scmp.ne.s32.totalorder %s96, %s97
    %p108 = scmp.eq.s32.totalorder %s24, 0
    %p109 = por %p107, %p108
    %p110 = scmp.ne.s32.totalorder %s96, %s97
    %p111 = scmp.eq.s32.totalorder %s25, 3
    %p112 = por %p110, %p111
    %p114 = scmp.ne.s32.totalorder %s97, %s113
    %p115 = scmp.eq.s32.totalorder %s25, 0
    %p116 = por %p114, %p115
    %s117 = ssub.s32 %s27, %s34
    %p118 = scmp.eq.s32.totalorder %s117, 0
    %s120 = sadd.s32 %s119, 1
    %s121 = scalar_select %p118, %s119, %s120
    %p124 = pneg %p118
    %p125 = scmp.eq.s32.totalorder %s19, 3
    %p126 = por %p124, %p125
    %p127 = scmp.ne.s32.totalorder %s119, %s122
    %p128 = scmp.eq.s32.totalorder %s19, 0
    %p129 = por %p127, %p128
    %p130 = scmp.ne.s32.totalorder %s119, %s122
    %p131 = scmp.eq.s32.totalorder %s24, 3
    %p132 = por %p130, %p131
    %p133 = scmp.ne.s32.totalorder %s122, %s123
    %p134 = scmp.eq.s32.totalorder %s24, 0
    %p135 = por %p133, %p134
    %p136 = scmp.ne.s32.totalorder %s122, %s123
    %p137 = scmp.eq.s32.totalorder %s25, 3
    %p138 = por %p136, %p137
    %p140 = scmp.ne.s32.totalorder %s123, %s139
    %p141 = scmp.eq.s32.totalorder %s25, 0
    %p142 = por %p140, %p141
    %s143 = ssub.s32 %s27, %s34
    %p144 = scmp.eq.s32.totalorder %s143, 0
    %s146 = sadd.s32 %s145, 1
    %s147 = scalar_select %p144, %s145, %s146
    %p150 = pneg %p144
    %p151 = scmp.eq.s32.totalorder %s19, 3
    %p152 = por %p150, %p151
    %p153 = scmp.ne.s32.totalorder %s145, %s148
    %p154 = scmp.eq.s32.totalorder %s19, 0
    %p155 = por %p153, %p154
    %p156 = scmp.ne.s32.totalorder %s145, %s148
    %p157 = scmp.eq.s32.totalorder %s24, 3
    %p158 = por %p156, %p157
    %p159 = scmp.ne.s32.totalorder %s148, %s149
    %p160 = scmp.eq.s32.totalorder %s24, 0
    %p161 = por %p159, %p160
    %p162 = scmp.ne.s32.totalorder %s148, %s149
    %p163 = scmp.eq.s32.totalorder %s25, 3
    %p164 = por %p162, %p163
    %p166 = scmp.ne.s32.totalorder %s149, %s165
    %p167 = scmp.eq.s32.totalorder %s25, 0
    %p168 = por %p166, %p167
    %s169 = ssub.s32 %s27, %s34
    %p170 = scmp.eq.s32.totalorder %s169, 0
    %s172 = sadd.s32 %s171, 1
    %s173 = scalar_select %p170, %s171, %s172
    %p176 = pneg %p170
    %p177 = scmp.eq.s32.totalorder %s19, 3
    %p178 = por %p176, %p177
    %p179 = scmp.ne.s32.totalorder %s171, %s174
    %p180 = scmp.eq.s32.totalorder %s19, 0
    %p181 = por %p179, %p180
    %p182 = scmp.ne.s32.totalorder %s171, %s174
    %p183 = scmp.eq.s32.totalorder %s24, 3
    %p184 = por %p182, %p183
    %p185 = scmp.ne.s32.totalorder %s174, %s175
    %p186 = scmp.eq.s32.totalorder %s24, 0
    %p187 = por %p185, %p186
    %p188 = scmp.ne.s32.totalorder %s174, %s175
    %p189 = scmp.eq.s32.totalorder %s25, 3
    %p190 = por %p188, %p189
    %p192 = scmp.ne.s32.totalorder %s175, %s191
    %p193 = scmp.eq.s32.totalorder %s25, 0
    %p194 = por %p192, %p193
    %s195 = ssub.s32 %s27, %s34
    %p196 = scmp.eq.s32.totalorder %s195, 0
    %s198 = sadd.s32 %s197, 1
    %s199 = scalar_select %p196, %s197, %s198
    %p202 = pneg %p196
    %p203 = scmp.eq.s32.totalorder %s19, 3
    %p204 = por %p202, %p203
    %p205 = scmp.ne.s32.totalorder %s197, %s200
    %p206 = scmp.eq.s32.totalorder %s19, 0
    %p207 = por %p205, %p206
    %p208 = scmp.ne.s32.totalorder %s197, %s200
    %p209 = scmp.eq.s32.totalorder %s24, 3
    %p210 = por %p208, %p209
    %p211 = scmp.ne.s32.totalorder %s200, %s201
    %p212 = scmp.eq.s32.totalorder %s24, 0
    %p213 = por %p211, %p212
    %p214 = scmp.ne.s32.totalorder %s200, %s201
    %p215 = scmp.eq.s32.totalorder %s25, 3
    %p216 = por %p214, %p215
    %p218 = scmp.ne.s32.totalorder %s201, %s217
    %p219 = scmp.eq.s32.totalorder %s25, 0
    %p220 = por %p218, %p219
    %s221 = ssub.s32 %s27, %s34
    %p222 = scmp.eq.s32.totalorder %s221, 0
    %s224 = sadd.s32 %s223, 1
    %s225 = scalar_select %p222, %s223, %s224
    %p228 = pneg %p222
    %p229 = scmp.eq.s32.totalorder %s19, 3
    %p230 = por %p228, %p229
    %p231 = scmp.ne.s32.totalorder %s223, %s226
    %p232 = scmp.eq.s32.totalorder %s19, 0
    %p233 = por %p231, %p232
    %p234 = scmp.ne.s32.totalorder %s223, %s226
    %p235 = scmp.eq.s32.totalorder %s24, 3
    %p236 = por %p234, %p235
    %p237 = scmp.ne.s32.totalorder %s226, %s227
    %p238 = scmp.eq.s32.totalorder %s24, 0
    %p239 = por %p237, %p238
    %p240 = scmp.ne.s32.totalorder %s226, %s227
    %p241 = scmp.eq.s32.totalorder %s25, 3
    %p242 = por %p240, %p241
    %p244 = scmp.ne.s32.totalorder %s227, %s243
    %p245 = scmp.eq.s32.totalorder %s25, 0
    %p246 = por %p244, %p245
    %s247 = ssub.s32 %s27, %s34
    %p248 = scmp.eq.s32.totalorder %s247, 0
    %s250 = sadd.s32 %s249, 1
    %s251 = scalar_select %p248, %s249, %s250
    %p254 = pneg %p248
    %p255 = scmp.eq.s32.totalorder %s19, 3
    %p256 = por %p254, %p255
    %p257 = scmp.ne.s32.totalorder %s249, %s252
    %p258 = scmp.eq.s32.totalorder %s19, 0
    %p259 = por %p257, %p258
    %p260 = scmp.ne.s32.totalorder %s249, %s252
    %p261 = scmp.eq.s32.totalorder %s24, 3
    %p262 = por %p260, %p261
    %p263 = scmp.ne.s32.totalorder %s252, %s253
    %p264 = scmp.eq.s32.totalorder %s24, 0
    %p265 = por %p263, %p264
    %p266 = scmp.ne.s32.totalorder %s252, %s253
    %p267 = scmp.eq.s32.totalorder %s25, 3
    %p268 = por %p266, %p267
    %p270 = scmp.ne.s32.totalorder %s253, %s269
    %p271 = scmp.eq.s32.totalorder %s25, 0
    %p272 = por %p270, %p271
    %s273 = ssub.s32 %s27, %s34
    %p274 = scmp.eq.s32.totalorder %s273, 0
    %s276 = sadd.s32 %s275, 1
    %s277 = scalar_select %p274, %s275, %s276
    %p280 = pneg %p274
    %p281 = scmp.eq.s32.totalorder %s19, 3
    %p282 = por %p280, %p281
    %p283 = scmp.ne.s32.totalorder %s275, %s278
    %p284 = scmp.eq.s32.totalorder %s19, 0
    %p285 = por %p283, %p284
    %p286 = scmp.ne.s32.totalorder %s275, %s278
    %p287 = scmp.eq.s32.totalorder %s24, 3
    %p288 = por %p286, %p287
    %p289 = scmp.ne.s32.totalorder %s278, %s279
    %p290 = scmp.eq.s32.totalorder %s24, 0
    %p291 = por %p289, %p290
    %p292 = scmp.ne.s32.totalorder %s278, %s279
    %p293 = scmp.eq.s32.totalorder %s25, 3
    %p294 = por %p292, %p293
    %p296 = scmp.ne.s32.totalorder %s279, %s295
    %p297 = scmp.eq.s32.totalorder %s25, 0
    %p298 = por %p296, %p297
    %s299 = ssub.s32 %s27, %s34
    %p300 = scmp.eq.s32.totalorder %s299, 0
    %s302 = sadd.s32 %s301, 1
    %s303 = scalar_select %p300, %s301, %s302
    %p306 = pneg %p300
    %p307 = scmp.eq.s32.totalorder %s19, 3
    %p308 = por %p306, %p307
    %p309 = scmp.ne.s32.totalorder %s301, %s304
    %p310 = scmp.eq.s32.totalorder %s19, 0
    %p311 = por %p309, %p310
    %p312 = scmp.ne.s32.totalorder %s301, %s304
    %p313 = scmp.eq.s32.totalorder %s24, 3
    %p314 = por %p312, %p313
    %p315 = scmp.ne.s32.totalorder %s304, %s305
    %p316 = scmp.eq.s32.totalorder %s24, 0
    %p317 = por %p315, %p316
    %p318 = scmp.ne.s32.totalorder %s304, %s305
    %p319 = scmp.eq.s32.totalorder %s25, 3
    %p320 = por %p318, %p319
    %p322 = scmp.ne.s32.totalorder %s305, %s321
    %p323 = scmp.eq.s32.totalorder %s25, 0
    %p324 = por %p322, %p323
    %s325 = ssub.s32 %s27, %s34
    %p326 = scmp.eq.s32.totalorder %s325, 0
    %s328 = sadd.s32 %s327, 1
    %s329 = scalar_select %p326, %s327, %s328
    %p332 = pneg %p326
    %p333 = scmp.eq.s32.totalorder %s19, 3
    %p334 = por %p332, %p333
    %p335 = scmp.ne.s32.totalorder %s327, %s330
    %p336 = scmp.eq.s32.totalorder %s19, 0
    %p337 = por %p335, %p336
    %p338 = scmp.ne.s32.totalorder %s327, %s330
    %p339 = scmp.eq.s32.totalorder %s24, 3
    %p340 = por %p338, %p339
    %p341 = scmp.ne.s32.totalorder %s330, %s331
    %p342 = scmp.eq.s32.totalorder %s24, 0
    %p343 = por %p341, %p342
    %p344 = scmp.ne.s32.totalorder %s330, %s331
    %p345 = scmp.eq.s32.totalorder %s25, 3
    %p346 = por %p344, %p345
    %p348 = scmp.ne.s32.totalorder %s331, %s347
    %p349 = scmp.eq.s32.totalorder %s25, 0
    %p350 = por %p348, %p349
    %s351 = ssub.s32 %s27, %s34
    %p352 = scmp.eq.s32.totalorder %s351, 0
    %s354 = sadd.s32 %s353, 1
    %s355 = scalar_select %p352, %s353, %s354
    %p358 = pneg %p352
    %p359 = scmp.eq.s32.totalorder %s19, 3
    %p360 = por %p358, %p359
    %p361 = scmp.ne.s32.totalorder %s353, %s356
    %p362 = scmp.eq.s32.totalorder %s19, 0
    %p363 = por %p361, %p362
    %p364 = scmp.ne.s32.totalorder %s353, %s356
    %p365 = scmp.eq.s32.totalorder %s24, 3
    %p366 = por %p364, %p365
    %p367 = scmp.ne.s32.totalorder %s356, %s357
    %p368 = scmp.eq.s32.totalorder %s24, 0
    %p369 = por %p367, %p368
    %p370 = scmp.ne.s32.totalorder %s356, %s357
    %p371 = scmp.eq.s32.totalorder %s25, 3
    %p372 = por %p370, %p371
    %p374 = scmp.ne.s32.totalorder %s357, %s373
    %p375 = scmp.eq.s32.totalorder %s25, 0
    %p376 = por %p374, %p375
    %s377 = ssub.s32 %s26, %s38
    %p378 = scmp.eq.s32.totalorder %s377, 0
    %s380 = sadd.s32 %s379, 1
    %s381 = scalar_select %p378, %s379, %s380
    %p384 = pneg %p378
    %p385 = scmp.eq.s32.totalorder %s19, 3
    %p386 = por %p384, %p385
    %p387 = scmp.ne.s32.totalorder %s379, %s382
    %p388 = scmp.eq.s32.totalorder %s19, 0
    %p389 = por %p387, %p388
    %p390 = scmp.ne.s32.totalorder %s379, %s382
    %p391 = scmp.eq.s32.totalorder %s24, 3
    %p392 = por %p390, %p391
    %p393 = scmp.ne.s32.totalorder %s382, %s383
    %p394 = scmp.eq.s32.totalorder %s24, 0
    %p395 = por %p393, %p394
    %p396 = scmp.ne.s32.totalorder %s382, %s383
    %p397 = scmp.eq.s32.totalorder %s25, 3
    %p398 = por %p396, %p397
    %p400 = scmp.ne.s32.totalorder %s383, %s399
    %p401 = scmp.eq.s32.totalorder %s25, 0
    %p402 = por %p400, %p401
    %p403 = scmp.le.s32.totalorder 1, %s19
    %p404 = scmp.lt.s32.totalorder %s19, 5
    %p405 = pnand %p403, %p404
    %p406 = pneg %p405
    // Predicated region
    $region9: #{_lambda_.5} parent=5 // pred_check
      _
    $region10: #{_lambda_.5} parent=5 // pred_check_branch
      %408 = sbr.rel (%p405) target = $region12
    $region11: #{_lambda_.5} parent=5 // pred_region
      %s409 = ssub.s32 %s19, 1
    $region12: #{_lambda_.5} parent=5 // pred_fallthru
      _
    %p410 = scmp.lt.s32.totalorder %s19, 4
    // Predicated region
    $region13: #{_lambda_.5} parent=5 // pred_check
      %p411 = pneg %p410
    $region14: #{_lambda_.5} parent=5 // pred_check_branch
      %413 = sbr.rel (%p411) target = $region16
    $region15: #{_lambda_.5} parent=5 // pred_region
      // Predicated region
      $region17: #{_lambda_.5} parent=15 // pred_check
        %p414 = pneg %p51
      $region18: #{_lambda_.5} parent=15 // pred_check_branch
        %416 = sbr.rel (%p414) target = $region20
      $region19: #{_lambda_.5} parent=15 // pred_region
        %s417 = smul.u32 4, %s26
        %p418 = scmp.lt.s32.totalorder %s417, 7
        %s419 = scalar_select %p418, %s417, 7
        %s420 = smul.addr %s419, 4
        %s421 = scalar_lea.vmem %s0, %s420
        %s422 = smul.u32 4, %s26
      $region20: #{_lambda_.5} parent=15 // pred_fallthru
        _
      // Predicated region
      $region21: #{_lambda_.5} parent=15 // pred_check
        %p423 = pneg %p77
      $region22: #{_lambda_.5} parent=15 // pred_check_branch
        %425 = sbr.rel (%p423) target = $region24
      $region23: #{_lambda_.5} parent=15 // pred_region
        %p426 = scmp.lt.s32.totalorder %s27, 1
        %s427 = scalar_select %p426, %s27, 1
        %s428 = scalar_lea.vmem %s1, %s427
      $region24: #{_lambda_.5} parent=15 // pred_fallthru
        _
      // Predicated region
      $region25: #{_lambda_.5} parent=15 // pred_check
        %p429 = pneg %p103
      $region26: #{_lambda_.5} parent=15 // pred_check_branch
        %431 = sbr.rel (%p429) target = $region28
      $region27: #{_lambda_.5} parent=15 // pred_region
        %p432 = scmp.lt.s32.totalorder %s27, 1
        %s433 = scalar_select %p432, %s27, 1
        %s434 = scalar_lea.vmem %s2, %s433
      $region28: #{_lambda_.5} parent=15 // pred_fallthru
        _
      // Predicated region
      $region29: #{_lambda_.5} parent=15 // pred_check
        %p435 = pneg %p129
      $region30: #{_lambda_.5} parent=15 // pred_check_branch
        %437 = sbr.rel (%p435) target = $region32
      $region31: #{_lambda_.5} parent=15 // pred_region
        %p438 = scmp.lt.s32.totalorder %s27, 1
        %s439 = scalar_select %p438, %s27, 1
        %s440 = smul.addr %s439, 4
        %s441 = smul.addr %s440, 4
        %s442 = scalar_lea.vmem %s3, %s441
      $region32: #{_lambda_.5} parent=15 // pred_fallthru
        _
      // Predicated region
      $region33: #{_lambda_.5} parent=15 // pred_check
        %p443 = pneg %p155
      $region34: #{_lambda_.5} parent=15 // pred_check_branch
        %445 = sbr.rel (%p443) target = $region36
      $region35: #{_lambda_.5} parent=15 // pred_region
        %p446 = scmp.lt.s32.totalorder %s27, 1
        %s447 = scalar_select %p446, %s27, 1
        %s448 = scalar_lea.vmem %s4, %s447
      $region36: #{_lambda_.5} parent=15 // pred_fallthru
        _
      // Predicated region
      $region37: #{_lambda_.5} parent=15 // pred_check
        %p449 = pneg %p181
      $region38: #{_lambda_.5} parent=15 // pred_check_branch
        %451 = sbr.rel (%p449) target = $region40
      $region39: #{_lambda_.5} parent=15 // pred_region
        %p452 = scmp.lt.s32.totalorder %s27, 1
        %s453 = scalar_select %p452, %s27, 1
        %s454 = smul.addr %s453, 4
        %s455 = smul.addr %s454, 4
        %s456 = scalar_lea.vmem %s5, %s455
      $region40: #{_lambda_.5} parent=15 // pred_fallthru
        _
      // Predicated region
      $region41: #{_lambda_.5} parent=15 // pred_check
        %p457 = pneg %p207
      $region42: #{_lambda_.5} parent=15 // pred_check_branch
        %459 = sbr.rel (%p457) target = $region44
      $region43: #{_lambda_.5} parent=15 // pred_region
        %p460 = scmp.lt.s32.totalorder %s27, 1
        %s461 = scalar_select %p460, %s27, 1
        %s462 = scalar_lea.vmem %s6, %s461
      $region44: #{_lambda_.5} parent=15 // pred_fallthru
        _
      // Predicated region
      $region45: #{_lambda_.5} parent=15 // pred_check
        %p463 = pneg %p233
      $region46: #{_lambda_.5} parent=15 // pred_check_branch
        %465 = sbr.rel (%p463) target = $region48
      $region47: #{_lambda_.5} parent=15 // pred_region
        %p466 = scmp.lt.s32.totalorder %s27, 1
        %s467 = scalar_select %p466, %s27, 1
        %s468 = scalar_lea.vmem %s7, %s467
      $region48: #{_lambda_.5} parent=15 // pred_fallthru
        _
      // Predicated region
      $region49: #{_lambda_.5} parent=15 // pred_check
        %p469 = pneg %p259
      $region50: #{_lambda_.5} parent=15 // pred_check_branch
        %471 = sbr.rel (%p469) target = $region52
      $region51: #{_lambda_.5} parent=15 // pred_region
        %p472 = scmp.lt.s32.totalorder %s27, 1
        %s473 = scalar_select %p472, %s27, 1
        %s474 = scalar_lea.vmem %s8, %s473
      $region52: #{_lambda_.5} parent=15 // pred_fallthru
        _
      // Predicated region
      $region53: #{_lambda_.5} parent=15 // pred_check
        %p475 = pneg %p285
      $region54: #{_lambda_.5} parent=15 // pred_check_branch
        %477 = sbr.rel (%p475) target = $region56
      $region55: #{_lambda_.5} parent=15 // pred_region
        %p478 = scmp.lt.s32.totalorder %s27, 1
        %s479 = scalar_select %p478, %s27, 1
        %s480 = smul.addr %s479, 4
        %s481 = smul.addr %s480, 4
        %s482 = scalar_lea.vmem %s9, %s481
      $region56: #{_lambda_.5} parent=15 // pred_fallthru
        _
      // Predicated region
      $region57: #{_lambda_.5} parent=15 // pred_check
        %p483 = pneg %p311
      $region58: #{_lambda_.5} parent=15 // pred_check_branch
        %485 = sbr.rel (%p483) target = $region60
      $region59: #{_lambda_.5} parent=15 // pred_region
        %p486 = scmp.lt.s32.totalorder %s27, 1
        %s487 = scalar_select %p486, %s27, 1
        %s488 = scalar_lea.vmem %s10, %s487
      $region60: #{_lambda_.5} parent=15 // pred_fallthru
        _
      // Predicated region
      $region61: #{_lambda_.5} parent=15 // pred_check
        %p489 = pneg %p337
      $region62: #{_lambda_.5} parent=15 // pred_check_branch
        %491 = sbr.rel (%p489) target = $region64
      $region63: #{_lambda_.5} parent=15 // pred_region
        %p492 = scmp.lt.s32.totalorder %s27, 1
        %s493 = scalar_select %p492, %s27, 1
        %s494 = smul.addr %s493, 16
        %s495 = smul.addr %s494, 4
        %s496 = scalar_lea.vmem %s11, %s495
      $region64: #{_lambda_.5} parent=15 // pred_fallthru
        _
      // Predicated region
      $region65: #{_lambda_.5} parent=15 // pred_check
        %p497 = pneg %p363
      $region66: #{_lambda_.5} parent=15 // pred_check_branch
        %499 = sbr.rel (%p497) target = $region68
      $region67: #{_lambda_.5} parent=15 // pred_region
        %p500 = scmp.lt.s32.totalorder %s27, 1
        %s501 = scalar_select %p500, %s27, 1
        %s502 = scalar_lea.vmem %s12, %s501
      $region68: #{_lambda_.5} parent=15 // pred_fallthru
        _
    $region16: #{_lambda_.5} parent=5 // pred_fallthru
      _
    %p503 = scmp.le.s32.totalorder 1, %s19
    %p504 = scmp.lt.s32.totalorder %s19, 5
    %p505 = pnand %p503, %p504
    %p506 = pneg %p505
    // Predicated region
    $region69: #{_lambda_.5} parent=5 // pred_check
      _
    $region70: #{_lambda_.5} parent=5 // pred_check_branch
      %508 = sbr.rel (%p505) target = $region72
    $region71: #{_lambda_.5} parent=5 // pred_region
      %s509 = ssub.s32 %s19, 1
      %s510 = smul.u32 4, %s28
      %p511 = scmp.lt.s32.totalorder %s510, 7
      %s512 = scalar_select %p511, %s510, 7
      %s513 = smul.addr %s512, 4
      %s514 = scalar_lea.vmem %s0, %s513
      %p515 = pneg %p57
      %p516 = pneg %p54
      %p517 = scmp.lt.s32.totalorder %s29, 1
      %s518 = scalar_select %p517, %s29, 1
      %s519 = scalar_lea.vmem %s1, %s518
      %p520 = pneg %p83
      %p521 = pneg %p80
      %p522 = scmp.lt.s32.totalorder %s29, 1
      %s523 = scalar_select %p522, %s29, 1
      %s524 = scalar_lea.vmem %s2, %s523
      %p525 = pneg %p109
      %p526 = pneg %p106
      %p527 = scmp.lt.s32.totalorder %s29, 1
      %s528 = scalar_select %p527, %s29, 1
      %s529 = smul.addr %s528, 4
      %s530 = smul.addr %s529, 4
      %s531 = scalar_lea.vmem %s3, %s530
      %p532 = pneg %p135
      %p533 = pneg %p132
      %p534 = scmp.lt.s32.totalorder %s29, 1
      %s535 = scalar_select %p534, %s29, 1
      %s536 = scalar_lea.vmem %s4, %s535
      %p537 = pneg %p161
      %p538 = pneg %p158
      %p539 = scmp.lt.s32.totalorder %s29, 1
      %s540 = scalar_select %p539, %s29, 1
      %s541 = smul.addr %s540, 4
      %s542 = smul.addr %s541, 4
      %s543 = scalar_lea.vmem %s5, %s542
      %p544 = pneg %p187
      %p545 = pneg %p184
      %p546 = scmp.lt.s32.totalorder %s29, 1
      %s547 = scalar_select %p546, %s29, 1
      %s548 = scalar_lea.vmem %s6, %s547
      %p549 = pneg %p213
      %p550 = pneg %p210
      %p551 = scmp.lt.s32.totalorder %s29, 1
      %s552 = scalar_select %p551, %s29, 1
      %s553 = scalar_lea.vmem %s7, %s552
      %p554 = pneg %p239
      %p555 = pneg %p236
      %p556 = scmp.lt.s32.totalorder %s29, 1
      %s557 = scalar_select %p556, %s29, 1
      %s558 = scalar_lea.vmem %s8, %s557
      %p559 = pneg %p265
      %p560 = pneg %p262
      %p561 = scmp.lt.s32.totalorder %s29, 1
      %s562 = scalar_select %p561, %s29, 1
      %s563 = smul.addr %s562, 4
      %s564 = smul.addr %s563, 4
      %s565 = scalar_lea.vmem %s9, %s564
      %p566 = pneg %p291
      %p567 = pneg %p288
      %p568 = scmp.lt.s32.totalorder %s29, 1
      %s569 = scalar_select %p568, %s29, 1
      %s570 = scalar_lea.vmem %s10, %s569
      %p571 = pneg %p317
      %p572 = pneg %p314
      %p573 = scmp.lt.s32.totalorder %s29, 1
      %s574 = scalar_select %p573, %s29, 1
      %s575 = smul.addr %s574, 16
      %s576 = smul.addr %s575, 4
      %s577 = scalar_lea.vmem %s11, %s576
      %p578 = pneg %p343
      %p579 = pneg %p340
      %p580 = scmp.lt.s32.totalorder %s29, 1
      %s581 = scalar_select %p580, %s29, 1
      %s582 = scalar_lea.vmem %s12, %s581
      %p583 = pneg %p369
      %p584 = pneg %p366
      %p585 = pneg %p395
      %p586 = pneg %p392
      %s587 = smul.u32 4, %s28
      %p588 = scmp.lt.s32.totalorder %s587, 7
      %s589 = scalar_select %p588, %s587, 7
      %s590 = smul.addr %s589, 4
      %s591 = scalar_lea.vmem %s13, %s590
      %s592 = smul.u32 4, %s28
      %p593 = scmp.lt.s32.totalorder %s592, 7
      %s594 = scalar_select %p593, %s592, 7
      %s595 = smul.addr %s594, 4
      %s596 = scalar_lea.vmem %s0, %s595
      %s597 = smul.u32 4, %s28
      %p598 = scmp.lt.s32.totalorder %s29, 1
      %s599 = scalar_select %p598, %s29, 1
      %s600 = scalar_lea.vmem %s1, %s599
      %p601 = scmp.lt.s32.totalorder %s29, 1
      %s602 = scalar_select %p601, %s29, 1
      %s603 = scalar_lea.vmem %s2, %s602
      %p604 = scmp.lt.s32.totalorder %s29, 1
      %s605 = scalar_select %p604, %s29, 1
      %s606 = smul.addr %s605, 4
      %s607 = smul.addr %s606, 4
      %s608 = scalar_lea.vmem %s3, %s607
      %p609 = scmp.lt.s32.totalorder %s29, 1
      %s610 = scalar_select %p609, %s29, 1
      %s611 = scalar_lea.vmem %s4, %s610
      %p612 = scmp.lt.s32.totalorder %s29, 1
      %s613 = scalar_select %p612, %s29, 1
      %s614 = smul.addr %s613, 4
      %s615 = smul.addr %s614, 4
      %s616 = scalar_lea.vmem %s5, %s615
      %p617 = scmp.lt.s32.totalorder %s29, 1
      %s618 = scalar_select %p617, %s29, 1
      %s619 = scalar_lea.vmem %s6, %s618
      %p620 = scmp.lt.s32.totalorder %s29, 1
      %s621 = scalar_select %p620, %s29, 1
      %s622 = scalar_lea.vmem %s7, %s621
      %p623 = scmp.lt.s32.totalorder %s29, 1
      %s624 = scalar_select %p623, %s29, 1
      %s625 = scalar_lea.vmem %s8, %s624
      %p626 = scmp.lt.s32.totalorder %s29, 1
      %s627 = scalar_select %p626, %s29, 1
      %s628 = smul.addr %s627, 4
      %s629 = smul.addr %s628, 4
      %s630 = scalar_lea.vmem %s9, %s629
      %p631 = scmp.lt.s32.totalorder %s29, 1
      %s632 = scalar_select %p631, %s29, 1
      %s633 = scalar_lea.vmem %s10, %s632
      %p634 = scmp.lt.s32.totalorder %s29, 1
      %s635 = scalar_select %p634, %s29, 1
      %s636 = smul.addr %s635, 16
      %s637 = smul.addr %s636, 4
      %s638 = scalar_lea.vmem %s11, %s637
      %p639 = scmp.lt.s32.totalorder %s29, 1
      %s640 = scalar_select %p639, %s29, 1
      %s641 = scalar_lea.vmem %s12, %s640
      %s642 = smul.u32 4, %s28
      %p643 = scmp.lt.s32.totalorder %s642, 7
      %s644 = scalar_select %p643, %s642, 7
      %s645 = smul.addr %s644, 4
      %s646 = scalar_lea.vmem %s13, %s645
      %s647 = smul.u32 4, %s28
      %p649 = scmp.eq.s32.totalorder %s29, 0
      // Predicated region
      $region73: #{_lambda_.5} parent=71 // pred_check
        %p650 = pneg %p649
      $region74: #{_lambda_.5} parent=71 // pred_check_branch
        %652 = sbr.rel (%p650) target = $region76
      $region75: #{_lambda_.5} parent=71 // pred_region
        %v653 = vld [vmem:[%s596] sm:$0x7]
        %v654 = vld [vmem:[%s596 + $0x4] sm:$0x7]
        %v655 = vld [vmem:[%s596 + $0x8] sm:$0x7]
        %v656 = vld [vmem:[%s596 + $0xc] sm:$0x7]
        %v662 = vunpack.c.l.s4 1966171168
        %v663 = vunpack.c.0.s8 %v662
        %v664 = vlaneseq
        %v665 = vshrl.u32 %v664, 7
        %v666 = vsub.s32 %v663, %v665
        %v667 = vrot.slane %v653, %v666
        %v668 = vcombine.high %v667, %v667
        %v670 = vunpack.c.l.s4 1966171168
        %v671 = vunpack.c.0.s8 %v670
        %v672 = vlaneseq
        %v673 = vshrl.u32 %v672, 7
        %v674 = vsub.s32 %v671, %v673
        %v675 = vrot.slane %v667, %v674
        %v677 = vunpack.c.l.s4 1966171168
        %v678 = vunpack.c.0.s8 %v677
        %v679 = vlaneseq
        %v680 = vshrl.u32 %v679, 7
        %v681 = vsub.s32 %v678, %v680
        %v682 = vrot.slane %v668, %v681
        %v683 = vcombine.high %v675, %v675
        %v685 = vunpack.c.l.s4 1966171168
        %v686 = vunpack.c.0.s8 %v685
        %v687 = vlaneseq
        %v688 = vshrl.u32 %v687, 7
        %v689 = vsub.s32 %v686, %v688
        %v690 = vrot.slane %v654, %v689
        %v691 = vcombine.high %v690, %v690
        %v693 = vunpack.c.l.s4 1966171168
        %v694 = vunpack.c.0.s8 %v693
        %v695 = vlaneseq
        %v696 = vshrl.u32 %v695, 7
        %v697 = vsub.s32 %v694, %v696
        %v698 = vrot.slane %v690, %v697
        %v700 = vunpack.c.l.s4 1966171168
        %v701 = vunpack.c.0.s8 %v700
        %v702 = vlaneseq
        %v703 = vshrl.u32 %v702, 7
        %v704 = vsub.s32 %v701, %v703
        %v705 = vrot.slane %v691, %v704
        %v706 = vcombine.high %v698, %v698
        %v708 = vunpack.c.l.s4 1966171168
        %v709 = vunpack.c.0.s8 %v708
        %v710 = vlaneseq
        %v711 = vshrl.u32 %v710, 7
        %v712 = vsub.s32 %v709, %v711
        %v713 = vrot.slane %v655, %v712
        %v714 = vcombine.high %v713, %v713
        %v716 = vunpack.c.l.s4 1966171168
        %v717 = vunpack.c.0.s8 %v716
        %v718 = vlaneseq
        %v719 = vshrl.u32 %v718, 7
        %v720 = vsub.s32 %v717, %v719
        %v721 = vrot.slane %v713, %v720
        %v723 = vunpack.c.l.s4 1966171168
        %v724 = vunpack.c.0.s8 %v723
        %v725 = vlaneseq
        %v726 = vshrl.u32 %v725, 7
        %v727 = vsub.s32 %v724, %v726
        %v728 = vrot.slane %v714, %v727
        %v729 = vcombine.high %v721, %v721
        %v731 = vunpack.c.l.s4 1966171168
        %v732 = vunpack.c.0.s8 %v731
        %v733 = vlaneseq
        %v734 = vshrl.u32 %v733, 7
        %v735 = vsub.s32 %v732, %v734
        %v736 = vrot.slane %v656, %v735
        %v737 = vcombine.high %v736, %v736
        %v739 = vunpack.c.l.s4 1966171168
        %v740 = vunpack.c.0.s8 %v739
        %v741 = vlaneseq
        %v742 = vshrl.u32 %v741, 7
        %v743 = vsub.s32 %v740, %v742
        %v744 = vrot.slane %v736, %v743
        %v746 = vunpack.c.l.s4 1966171168
        %v747 = vunpack.c.0.s8 %v746
        %v748 = vlaneseq
        %v749 = vshrl.u32 %v748, 7
        %v750 = vsub.s32 %v747, %v749
        %v751 = vrot.slane %v737, %v750
        %v752 = vcombine.high %v744, %v744
        %v753 = vunpack.i.l.s16 %v675
        %v754 = vunpack.i.h.s16 %v675
        %v755 = vunpack.i.l.s16 %v682
        %v756 = vunpack.i.h.s16 %v682
        %v757 = vunpack.i.l.s16 %v683
        %v758 = vunpack.i.l.s16 %v698
        %v759 = vunpack.i.h.s16 %v698
        %v760 = vunpack.i.l.s16 %v705
        %v761 = vunpack.i.h.s16 %v705
        %v762 = vunpack.i.l.s16 %v706
        %v763 = vunpack.i.l.s16 %v721
        %v764 = vunpack.i.h.s16 %v721
        %v765 = vunpack.i.l.s16 %v728
        %v766 = vunpack.i.h.s16 %v728
        %v767 = vunpack.i.l.s16 %v729
        %v768 = vunpack.i.l.s16 %v744
        %v769 = vunpack.i.h.s16 %v744
        %v770 = vunpack.i.l.s16 %v751
        %v771 = vunpack.i.h.s16 %v751
        %v772 = vunpack.i.l.s16 %v752
        %v773 = vpack.i.b16 %v754, %v753
        %v774 = vpack.i.b16 %v756, %v755
        %v775 = vpack.i.b16 %v758, %v757
        %v776 = vpack.i.b16 %v760, %v759
        %v777 = vpack.i.b16 %v762, %v761
        %v778 = vpack.i.b16 %v764, %v763
        %v779 = vpack.i.b16 %v766, %v765
        %v780 = vpack.i.b16 %v768, %v767
        %v781 = vpack.i.b16 %v770, %v769
        %v782 = vpack.i.b16 %v772, %v771
        %v783 = vcombine.low %v773, %v775
        %v784 = vcombine.low %v774, %v776
        %v786 = vunpack.c.l.s4 1935823168
        %v787 = vunpack.c.0.s8 %v786
        %v788 = vlaneseq
        %v789 = vshrl.u32 %v788, 7
        %v790 = vsub.s32 %v787, %v789
        %v791 = vrot.slane %v783, %v790
        %v793 = vunpack.c.l.s4 1935823168
        %v794 = vunpack.c.0.s8 %v793
        %v795 = vlaneseq
        %v796 = vshrl.u32 %v795, 7
        %v797 = vsub.s32 %v794, %v796
        %v798 = vrot.slane %v784, %v797
        %v799 = vcombine.low %v791, %v798
        %v801 = vunpack.c.l.s4 1935823168
        %v802 = vunpack.c.0.s8 %v801
        %v803 = vlaneseq
        %v804 = vshrl.u32 %v803, 7
        %v805 = vsub.s32 %v802, %v804
        %v806 = vrot.slane %v799, %v805
        %v807 = vcombine.low %v777, %v779
        %v808 = vcombine.low %v778, %v780
        %v810 = vunpack.c.l.s4 1935823168
        %v811 = vunpack.c.0.s8 %v810
        %v812 = vlaneseq
        %v813 = vshrl.u32 %v812, 7
        %v814 = vsub.s32 %v811, %v813
        %v815 = vrot.slane %v807, %v814
        %v817 = vunpack.c.l.s4 1935823168
        %v818 = vunpack.c.0.s8 %v817
        %v819 = vlaneseq
        %v820 = vshrl.u32 %v819, 7
        %v821 = vsub.s32 %v818, %v820
        %v822 = vrot.slane %v808, %v821
        %v823 = vcombine.low %v815, %v822
        %v825 = vunpack.c.l.s4 1935823168
        %v826 = vunpack.c.0.s8 %v825
        %v827 = vlaneseq
        %v828 = vshrl.u32 %v827, 7
        %v829 = vsub.s32 %v826, %v828
        %v830 = vrot.slane %v823, %v829
        %v832 = vunpack.c.l.s4 1935823168
        %v833 = vunpack.c.0.s8 %v832
        %v834 = vlaneseq
        %v835 = vshrl.u32 %v834, 7
        %v836 = vsub.s32 %v833, %v835
        %v837 = vrot.slane %v781, %v836
        %v839 = vunpack.c.l.s4 1935823168
        %v840 = vunpack.c.0.s8 %v839
        %v841 = vlaneseq
        %v842 = vshrl.u32 %v841, 7
        %v843 = vsub.s32 %v840, %v842
        %v844 = vrot.slane %v782, %v843
        %v845 = vcombine.low %v837, %v844
        %v847 = vunpack.c.l.s4 1935823168
        %v848 = vunpack.c.0.s8 %v847
        %v849 = vlaneseq
        %v850 = vshrl.u32 %v849, 7
        %v851 = vsub.s32 %v848, %v850
        %v852 = vrot.slane %v845, %v851
        %v856 = vunpack.c.l.bf16 %v806
        %v857 = vunpack.c.l.bf16 %v830
        %v858 = vunpack.c.l.bf16 %v852
        %vm859 = vcmask 261120
        %860 = vst.msk [vmem:[#allocation2] sm:$0xff] %vm859, %v856
        %861 = vst.msk [vmem:[#allocation2 + $0x8] sm:$0xff] %vm859, %v857
        %vm862 = vcmask 257024
        %863 = vst.msk [vmem:[#allocation2 + $0x10] sm:$0xf] %vm862, %v858
      $region76: #{_lambda_.5} parent=71 // pred_fallthru
        _
      %v864 = vld [vmem:[#allocation2] sm:$0xff]
      %v865 = vld [vmem:[#allocation2 + $0x8] sm:$0xff]
      %v866 = vld [vmem:[#allocation2 + $0x10] sm:$0xf]
      %v867 = vld [vmem:[%s600] sm:$0x1]
      %v868 = vld [vmem:[%s603] sm:$0x1]
      %vm869 = vcmask 261120
      %v870 = vsel %vm869, %v864, 0.0
      %871 = vadd.xlane.f32.xlu0 %v870
      %v872 = vpop.xlane.xlu0 %871
      %v873 = vsel %vm869, %v865, 0.0
      %874 = vadd.xlane.f32.xlu0 %v873
      %v875 = vpop.xlane.xlu0 %874
      %vm876 = vcmask 257024
      %v877 = vsel %vm876, %v866, 0.0
      %878 = vadd.xlane.f32.xlu0 %v877
      %v879 = vpop.xlane.xlu0 %878
      %v880 = vrcp.pop 32.0
      %v881 = vmul.f32 %v872, %v880
      %v882 = vmul.f32 %v875, %v880
      %v883 = vmul.f32 %v879, %v880
      %v884 = vsub.f32 %v864, %v881
      %v885 = vsub.f32 %v865, %v882
      %v886 = vsub.f32 %v866, %v883
      %v887 = vmul.f32 %v884, %v884
      %v888 = vmul.f32 %v885, %v885
      %v889 = vmul.f32 %v886, %v886
      %v890 = vsel %vm869, %v887, 0.0
      %891 = vadd.xlane.f32.xlu0 %v890
      %v892 = vpop.xlane.xlu0 %891
      %v893 = vsel %vm869, %v888, 0.0
      %894 = vadd.xlane.f32.xlu0 %v893
      %v895 = vpop.xlane.xlu0 %894
      %v896 = vsel %vm876, %v889, 0.0
      %897 = vadd.xlane.f32.xlu0 %v896
      %v898 = vpop.xlane.xlu0 %897
      %v899 = vmul.f32 %v892, %v880
      %v900 = vmul.f32 %v895, %v880
      %v901 = vmul.f32 %v898, %v880
      %v902 = vadd.f32 %v899, 1e-05
      %v903 = vadd.f32 %v900, 1e-05
      %v904 = vadd.f32 %v901, 1e-05
      %v905 = vrsqrt.pop %v902
      %v906 = vrsqrt.pop %v903
      %v907 = vrsqrt.pop %v904
      %v908 = vmul.f32 %v884, %v905
      %v909 = vmul.f32 %v885, %v906
      %v910 = vmul.f32 %v886, %v907
      %v912 = vlaneseq
      %v913 = vshrl.u32 %v912, 7
      %v914 = vsub.s32 0, %v913
      %v915 = vrot.slane %v867, %v914
      %v917 = vmul.f32 %v908, %v915
      %v918 = vmul.f32 %v909, %v915
      %v919 = vmul.f32 %v910, %v915
      %v921 = vlaneseq
      %v922 = vshrl.u32 %v921, 7
      %v923 = vsub.s32 0, %v922
      %v924 = vrot.slane %v868, %v923
      %v926 = vadd.f32 %v917, %v924
      %v927 = vadd.f32 %v918, %v924
      %v928 = vadd.f32 %v919, %v924
      %v929 = vpack.c.bf16 %v927, %v926
      %v930 = vpack.c.bf16 %v928, %v928
      %v931 = vld [vmem:[%s608] sm:$0xf]
      %v932 = vld [vmem:[%s608 + $0x4] sm:$0xf]
      %v933 = vld [vmem:[%s608 + $0x8] sm:$0xf]
      %v934 = vld [vmem:[%s608 + $0xc] sm:$0xf]
      %v935 = vld [vmem:[%s611] sm:$0x1]
      %v937 = vlaneseq
      %v938 = vshrl.u32 %v937, 7
      %v939 = vsub.s32 0, %v938
      %v940 = vrot.slane %v935, %v939
      %v946 = vunpack.c.l.b16 %v931
      %v947 = vunpack.c.l.b16 %v932
      %v948 = vunpack.c.l.b16 %v933
      %v949 = vunpack.c.l.b16 %v934
      %v950 = vpack.c.b16 %v947, %v946
      %v951 = vpack.c.b16 %v949, %v948
      %v955 = vsel %vm869, %v929, 0
      %v958 = vsel %vm869, %v930, 0
      %960 = vmatprep.subr.bf16.mxu0 0
      %961 = vmatpush1.bf16.msra.mxu0 0
      %962 = vmatprep.subr.bf16.mxu0 0
      %963 = vmatpush1.bf16.msra.mxu0 0
      %964 = vmatprep.subr.bf16.mxu0 0
      %965 = vmatpush1.bf16.msra.mxu0 0
      %966 = vmatprep.subr.bf16.mxu0 0
      %967 = vmatpush1.bf16.msra.mxu0 0
      %968 = vmatprep.subr.bf16.mxu0 0
      %969 = vmatpush1.bf16.msra.mxu0 0
      %970 = vmatprep.subr.bf16.mxu0 0
      %971 = vmatpush1.bf16.msra.mxu0 0
      %972 = vmatprep.subr.bf16.mxu0 0
      %973 = vmatpush1.bf16.msra.mxu0 %v951
      %974 = vmatprep.subr.bf16.mxu0 0
      %975 = vmatpush1.bf16.msra.mxu0 %v950
      %976 = vmatprep.subr.bf16.mxu0 0
      %977 = vmatpush2.bf16.msra.mxu0 0
      %978 = vmatprep.subr.bf16.mxu0 0
      %979 = vmatpush2.bf16.msra.mxu0 0
      %980 = vmatprep.subr.bf16.mxu0 0
      %981 = vmatpush2.bf16.msra.mxu0 0
      %982 = vmatprep.subr.bf16.mxu0 0
      %983 = vmatpush2.bf16.msra.mxu0 0
      %984 = vmatprep.subr.bf16.mxu0 0
      %985 = vmatpush2.bf16.msra.mxu0 0
      %986 = vmatprep.subr.bf16.mxu0 0
      %987 = vmatpush2.bf16.msra.mxu0 0
      %988 = vmatprep.subr.bf16.mxu0 0
      %989 = vmatpush2.bf16.msra.mxu0 0
      %990 = vmatprep.subr.bf16.mxu0 0
      %991 = vmatpush2.bf16.msra.mxu0 0
      %992 = vmatprep.mubr.bf16.mxu0 0
      %993 = vmatmul.mubr.bf16.gmra.mxu0 %v955
      %v994 = vpop.f32.mrf.mxu0
      %v995 = vadd.f32 %v940, %v994
      %v996 = vpop.f32.mrf.mxu0
      %v997 = vpop.f32.mrf.mxu0
      %v998 = vadd.f32 %v940, %v997
      %v999 = vpop.f32.mrf.mxu0
      %1000 = vmatprep.mubr.bf16.mxu0 0
      %1001 = vmatmul.mubr.bf16.gmra.mxu0 %v958
      %v1002 = vpop.f32.mrf.mxu0
      %v1003 = vadd.f32 %v940, %v1002
      %v1004 = vpop.f32.mrf.mxu0
      %v1005 = vpop.f32.mrf.mxu0
      %v1006 = vpop.f32.mrf.mxu0
      %1007 = vdwg.mxu0
      %v1008 = vpack.c.bf16 %v998, %v995
      %v1009 = vpack.c.bf16 %v1003, %v1003
      %v1012 = vcombine.high %v1008, %v1008
      %v1014 = vunpack.c.l.s4 1966171168
      %v1015 = vunpack.c.0.s8 %v1014
      %v1016 = vlaneseq
      %v1017 = vshrl.u32 %v1016, 7
      %v1018 = vsub.s32 %v1015, %v1017
      %v1019 = vrot.slane %v1008, %v1018
      %v1021 = vunpack.c.l.s4 1966171168
      %v1022 = vunpack.c.0.s8 %v1021
      %v1023 = vlaneseq
      %v1024 = vshrl.u32 %v1023, 7
      %v1025 = vsub.s32 %v1022, %v1024
      %v1026 = vrot.slane %v1012, %v1025
      %v1027 = vcombine.high %v1019, %v1019
      %v1028 = vcombine.high %v1026, %v1026
      %v1030 = vunpack.c.l.s4 1966171168
      %v1031 = vunpack.c.0.s8 %v1030
      %v1032 = vlaneseq
      %v1033 = vshrl.u32 %v1032, 7
      %v1034 = vsub.s32 %v1031, %v1033
      %v1035 = vrot.slane %v1019, %v1034
      %v1037 = vunpack.c.l.s4 1966171168
      %v1038 = vunpack.c.0.s8 %v1037
      %v1039 = vlaneseq
      %v1040 = vshrl.u32 %v1039, 7
      %v1041 = vsub.s32 %v1038, %v1040
      %v1042 = vrot.slane %v1026, %v1041
      %v1044 = vunpack.c.l.s4 1966171168
      %v1045 = vunpack.c.0.s8 %v1044
      %v1046 = vlaneseq
      %v1047 = vshrl.u32 %v1046, 7
      %v1048 = vsub.s32 %v1045, %v1047
      %v1049 = vrot.slane %v1027, %v1048
      %v1051 = vunpack.c.l.s4 1966171168
      %v1052 = vunpack.c.0.s8 %v1051
      %v1053 = vlaneseq
      %v1054 = vshrl.u32 %v1053, 7
      %v1055 = vsub.s32 %v1052, %v1054
      %v1056 = vrot.slane %v1028, %v1055
      %v1057 = vcombine.high %v1035, %v1035
      %v1058 = vcombine.high %v1042, %v1042
      %v1059 = vcombine.high %v1049, %v1049
      %v1060 = vcombine.high %v1056, %v1056
      %v1062 = vunpack.c.l.s4 1966171168
      %v1063 = vunpack.c.0.s8 %v1062
      %v1064 = vlaneseq
      %v1065 = vshrl.u32 %v1064, 7
      %v1066 = vsub.s32 %v1063, %v1065
      %v1067 = vrot.slane %v1009, %v1066
      %v1068 = vcombine.high %v1067, %v1067
      %v1070 = vunpack.c.l.s4 1966171168
      %v1071 = vunpack.c.0.s8 %v1070
      %v1072 = vlaneseq
      %v1073 = vshrl.u32 %v1072, 7
      %v1074 = vsub.s32 %v1071, %v1073
      %v1075 = vrot.slane %v1067, %v1074
      %v1077 = vunpack.c.l.s4 1966171168
      %v1078 = vunpack.c.0.s8 %v1077
      %v1079 = vlaneseq
      %v1080 = vshrl.u32 %v1079, 7
      %v1081 = vsub.s32 %v1078, %v1080
      %v1082 = vrot.slane %v1068, %v1081
      %v1083 = vunpack.i.l.s16 %v1035
      %v1084 = vunpack.i.h.s16 %v1035
      %v1085 = vunpack.i.l.s16 %v1049
      %v1086 = vunpack.i.h.s16 %v1049
      %v1087 = vunpack.i.l.s16 %v1057
      %v1088 = vunpack.i.h.s16 %v1057
      %v1089 = vunpack.i.l.s16 %v1059
      %v1090 = vunpack.i.h.s16 %v1059
      %v1091 = vunpack.i.l.s16 %v1042
      %v1092 = vunpack.i.h.s16 %v1042
      %v1093 = vunpack.i.l.s16 %v1056
      %v1094 = vunpack.i.h.s16 %v1056
      %v1095 = vunpack.i.l.s16 %v1058
      %v1096 = vunpack.i.h.s16 %v1058
      %v1097 = vunpack.i.l.s16 %v1060
      %v1098 = vunpack.i.h.s16 %v1060
      %v1099 = vunpack.i.l.s16 %v1075
      %v1100 = vunpack.i.h.s16 %v1075
      %v1101 = vunpack.i.l.s16 %v1082
      %v1102 = vunpack.i.h.s16 %v1082
      %v1103 = vpack.i.b16 %v1084, %v1083
      %v1104 = vpack.i.b16 %v1086, %v1085
      %v1106 = vcombine.low %v1103, %v1104
      %v1108 = vunpack.c.l.s4 1966171168
      %v1109 = vunpack.c.0.s8 %v1108
      %v1110 = vlaneseq
      %v1111 = vshrl.u32 %v1110, 7
      %v1112 = vsub.s32 %v1109, %v1111
      %v1113 = vrot.slane %v1106, %v1112
      %v1115 = vunpack.c.l.s4 1966171168
      %v1116 = vunpack.c.0.s8 %v1115
      %v1117 = vlaneseq
      %v1118 = vshrl.u32 %v1117, 7
      %v1119 = vsub.s32 %v1116, %v1118
      %v1120 = vrot.slane %v1087, %v1119
      %v1121 = vcombine.low %v1113, %v1120
      %v1123 = vunpack.c.l.s4 1966171168
      %v1124 = vunpack.c.0.s8 %v1123
      %v1125 = vlaneseq
      %v1126 = vshrl.u32 %v1125, 7
      %v1127 = vsub.s32 %v1124, %v1126
      %v1128 = vrot.slane %v1121, %v1127
      %1129 = vrot.lane.b32.xlu0 %v1128, 96
      %v1130 = vpop.permute.xlu0 %1129
      %vm1131 = vcmask 64512
      %v1133 = vsel %vm1131, %v1128, 0
      %v1136 = vsel %vm1131, %v1130, 0
      %1138 = vmatprep.subr.bf16.mxu0 0
      %1139 = vmatpush1.bf16.xpose.msra.mxu0 0
      %1140 = vmatprep.subr.bf16.mxu0 0
      %1141 = vmatpush1.bf16.xpose.msra.mxu0 0
      %1142 = vmatprep.subr.bf16.mxu0 0
      %1143 = vmatpush1.bf16.xpose.msra.mxu0 0
      %1144 = vmatprep.subr.bf16.mxu0 0
      %1145 = vmatpush1.bf16.xpose.msra.mxu0 0
      %1146 = vmatprep.subr.bf16.mxu0 0
      %1147 = vmatpush1.bf16.xpose.msra.mxu0 0
      %1148 = vmatprep.subr.bf16.mxu0 0
      %1149 = vmatpush1.bf16.xpose.msra.mxu0 0
      %1150 = vmatprep.subr.bf16.mxu0 0
      %1151 = vmatpush1.bf16.xpose.msra.mxu0 0
      %1152 = vmatprep.subr.bf16.mxu0 0
      %1153 = vmatpush1.bf16.xpose.msra.mxu0 %v1136
      %1154 = vmatprep.subr.bf16.mxu0 0
      %1155 = vmatpush2.bf16.xpose.msra.mxu0 0
      %1156 = vmatprep.subr.bf16.mxu0 0
      %1157 = vmatpush2.bf16.xpose.msra.mxu0 0
      %1158 = vmatprep.subr.bf16.mxu0 0
      %1159 = vmatpush2.bf16.xpose.msra.mxu0 0
      %1160 = vmatprep.subr.bf16.mxu0 0
      %1161 = vmatpush2.bf16.xpose.msra.mxu0 0
      %1162 = vmatprep.subr.bf16.mxu0 0
      %1163 = vmatpush2.bf16.xpose.msra.mxu0 0
      %1164 = vmatprep.subr.bf16.mxu0 0
      %1165 = vmatpush2.bf16.xpose.msra.mxu0 0
      %1166 = vmatprep.subr.bf16.mxu0 0
      %1167 = vmatpush2.bf16.xpose.msra.mxu0 0
      %1168 = vmatprep.subr.bf16.mxu0 0
      %1169 = vmatpush2.bf16.xpose.msra.mxu0 0
      %1170 = vmatprep.mubr.bf16.mxu0 0
      %1171 = vmatmul.mubr.bf16.gmra.mxu0 %v1133
      %v1172 = vpop.f32.mrf.mxu0
      %v1173 = vadd.f32 0.0, %v1172
      %v1174 = vpop.f32.mrf.mxu0
      %v1175 = vpop.f32.mrf.mxu0
      %v1176 = vpop.f32.mrf.mxu0
      %1177 = vdwg.mxu0
      %v1178 = vpack.i.b16 %v1089, %v1088
      %v1179 = vpack.i.b16 %v1091, %v1090
      %v1181 = vcombine.low %v1178, %v1179
      %v1183 = vunpack.c.l.s4 1966171168
      %v1184 = vunpack.c.0.s8 %v1183
      %v1185 = vlaneseq
      %v1186 = vshrl.u32 %v1185, 7
      %v1187 = vsub.s32 %v1184, %v1186
      %v1188 = vrot.slane %v1181, %v1187
      %v1190 = vunpack.c.l.s4 1966171168
      %v1191 = vunpack.c.0.s8 %v1190
      %v1192 = vlaneseq
      %v1193 = vshrl.u32 %v1192, 7
      %v1194 = vsub.s32 %v1191, %v1193
      %v1195 = vrot.slane %v1092, %v1194
      %v1196 = vcombine.low %v1188, %v1195
      %v1198 = vunpack.c.l.s4 1966171168
      %v1199 = vunpack.c.0.s8 %v1198
      %v1200 = vlaneseq
      %v1201 = vshrl.u32 %v1200, 7
      %v1202 = vsub.s32 %v1199, %v1201
      %v1203 = vrot.slane %v1196, %v1202
      %1204 = vrot.lane.b32.xlu0 %v1203, 96
      %v1205 = vpop.permute.xlu0 %1204
      %v1207 = vsel %vm1131, %v1203, 0
      %v1210 = vsel %vm1131, %v1205, 0
      %1212 = vmatprep.subr.bf16.mxu0 0
      %1213 = vmatpush1.bf16.xpose.msra.mxu0 0
      %1214 = vmatprep.subr.bf16.mxu0 0
      %1215 = vmatpush1.bf16.xpose.msra.mxu0 0
      %1216 = vmatprep.subr.bf16.mxu0 0
      %1217 = vmatpush1.bf16.xpose.msra.mxu0 0
      %1218 = vmatprep.subr.bf16.mxu0 0
      %1219 = vmatpush1.bf16.xpose.msra.mxu0 0
      %1220 = vmatprep.subr.bf16.mxu0 0
      %1221 = vmatpush1.bf16.xpose.msra.mxu0 0
      %1222 = vmatprep.subr.bf16.mxu0 0
      %1223 = vmatpush1.bf16.xpose.msra.mxu0 0
      %1224 = vmatprep.subr.bf16.mxu0 0
      %1225 = vmatpush1.bf16.xpose.msra.mxu0 0
      %1226 = vmatprep.subr.bf16.mxu0 0
      %1227 = vmatpush1.bf16.xpose.msra.mxu0 %v1210
      %1228 = vmatprep.subr.bf16.mxu0 0
      %1229 = vmatpush2.bf16.xpose.msra.mxu0 0
      %1230 = vmatprep.subr.bf16.mxu0 0
      %1231 = vmatpush2.bf16.xpose.msra.mxu0 0
      %1232 = vmatprep.subr.bf16.mxu0 0
      %1233 = vmatpush2.bf16.xpose.msra.mxu0 0
      %1234 = vmatprep.subr.bf16.mxu0 0
      %1235 = vmatpush2.bf16.xpose.msra.mxu0 0
      %1236 = vmatprep.subr.bf16.mxu0 0
      %1237 = vmatpush2.bf16.xpose.msra.mxu0 0
      %1238 = vmatprep.subr.bf16.mxu0 0
      %1239 = vmatpush2.bf16.xpose.msra.mxu0 0
      %1240 = vmatprep.subr.bf16.mxu0 0
      %1241 = vmatpush2.bf16.xpose.msra.mxu0 0
      %1242 = vmatprep.subr.bf16.mxu0 0
      %1243 = vmatpush2.bf16.xpose.msra.mxu0 0
      %1244 = vmatprep.mubr.bf16.mxu0 0
      %1245 = vmatmul.mubr.bf16.gmra.mxu0 %v1207
      %v1246 = vpop.f32.mrf.mxu0
      %v1247 = vadd.f32 0.0, %v1246
      %v1248 = vpop.f32.mrf.mxu0
      %v1249 = vpop.f32.mrf.mxu0
      %v1250 = vpop.f32.mrf.mxu0
      %1251 = vdwg.mxu0
      %v1252 = vpack.i.b16 %v1094, %v1093
      %v1253 = vpack.i.b16 %v1096, %v1095
      %v1255 = vcombine.low %v1252, %v1253
      %v1257 = vunpack.c.l.s4 1966171168
      %v1258 = vunpack.c.0.s8 %v1257
      %v1259 = vlaneseq
      %v1260 = vshrl.u32 %v1259, 7
      %v1261 = vsub.s32 %v1258, %v1260
      %v1262 = vrot.slane %v1255, %v1261
      %v1264 = vunpack.c.l.s4 1966171168
      %v1265 = vunpack.c.0.s8 %v1264
      %v1266 = vlaneseq
      %v1267 = vshrl.u32 %v1266, 7
      %v1268 = vsub.s32 %v1265, %v1267
      %v1269 = vrot.slane %v1097, %v1268
      %v1270 = vcombine.low %v1262, %v1269
      %v1272 = vunpack.c.l.s4 1966171168
      %v1273 = vunpack.c.0.s8 %v1272
      %v1274 = vlaneseq
      %v1275 = vshrl.u32 %v1274, 7
      %v1276 = vsub.s32 %v1273, %v1275
      %v1277 = vrot.slane %v1270, %v1276
      %1278 = vrot.lane.b32.xlu0 %v1277, 96
      %v1279 = vpop.permute.xlu0 %1278
      %v1281 = vsel %vm1131, %v1277, 0
      %v1284 = vsel %vm1131, %v1279, 0
      %1286 = vmatprep.subr.bf16.mxu0 0
      %1287 = vmatpush1.bf16.xpose.msra.mxu0 0
      %1288 = vmatprep.subr.bf16.mxu0 0
      %1289 = vmatpush1.bf16.xpose.msra.mxu0 0
      %1290 = vmatprep.subr.bf16.mxu0 0
      %1291 = vmatpush1.bf16.xpose.msra.mxu0 0
      %1292 = vmatprep.subr.bf16.mxu0 0
      %1293 = vmatpush1.bf16.xpose.msra.mxu0 0
      %1294 = vmatprep.subr.bf16.mxu0 0
      %1295 = vmatpush1.bf16.xpose.msra.mxu0 0
      %1296 = vmatprep.subr.bf16.mxu0 0
      %1297 = vmatpush1.bf16.xpose.msra.mxu0 0
      %1298 = vmatprep.subr.bf16.mxu0 0
      %1299 = vmatpush1.bf16.xpose.msra.mxu0 0
      %1300 = vmatprep.subr.bf16.mxu0 0
      %1301 = vmatpush1.bf16.xpose.msra.mxu0 %v1284
      %1302 = vmatprep.subr.bf16.mxu0 0
      %1303 = vmatpush2.bf16.xpose.msra.mxu0 0
      %1304 = vmatprep.subr.bf16.mxu0 0
      %1305 = vmatpush2.bf16.xpose.msra.mxu0 0
      %1306 = vmatprep.subr.bf16.mxu0 0
      %1307 = vmatpush2.bf16.xpose.msra.mxu0 0
      %1308 = vmatprep.subr.bf16.mxu0 0
      %1309 = vmatpush2.bf16.xpose.msra.mxu0 0
      %1310 = vmatprep.subr.bf16.mxu0 0
      %1311 = vmatpush2.bf16.xpose.msra.mxu0 0
      %1312 = vmatprep.subr.bf16.mxu0 0
      %1313 = vmatpush2.bf16.xpose.msra.mxu0 0
      %1314 = vmatprep.subr.bf16.mxu0 0
      %1315 = vmatpush2.bf16.xpose.msra.mxu0 0
      %1316 = vmatprep.subr.bf16.mxu0 0
      %1317 = vmatpush2.bf16.xpose.msra.mxu0 0
      %1318 = vmatprep.mubr.bf16.mxu0 0
      %1319 = vmatmul.mubr.bf16.gmra.mxu0 %v1281
      %v1320 = vpop.f32.mrf.mxu0
      %v1321 = vadd.f32 0.0, %v1320
      %v1322 = vpop.f32.mrf.mxu0
      %v1323 = vpop.f32.mrf.mxu0
      %v1324 = vpop.f32.mrf.mxu0
      %1325 = vdwg.mxu0
      %v1326 = vpack.i.b16 %v1099, %v1098
      %v1327 = vpack.i.b16 %v1101, %v1100
      %v1329 = vcombine.low %v1326, %v1327
      %v1331 = vunpack.c.l.s4 1966171168
      %v1332 = vunpack.c.0.s8 %v1331
      %v1333 = vlaneseq
      %v1334 = vshrl.u32 %v1333, 7
      %v1335 = vsub.s32 %v1332, %v1334
      %v1336 = vrot.slane %v1329, %v1335
      %v1338 = vunpack.c.l.s4 1966171168
      %v1339 = vunpack.c.0.s8 %v1338
      %v1340 = vlaneseq
      %v1341 = vshrl.u32 %v1340, 7
      %v1342 = vsub.s32 %v1339, %v1341
      %v1343 = vrot.slane %v1102, %v1342
      %v1344 = vcombine.low %v1336, %v1343
      %v1346 = vunpack.c.l.s4 1966171168
      %v1347 = vunpack.c.0.s8 %v1346
      %v1348 = vlaneseq
      %v1349 = vshrl.u32 %v1348, 7
      %v1350 = vsub.s32 %v1347, %v1349
      %v1351 = vrot.slane %v1344, %v1350
      %1352 = vrot.lane.b32.xlu0 %v1351, 96
      %v1353 = vpop.permute.xlu0 %1352
      %v1355 = vsel %vm1131, %v1351, 0
      %v1358 = vsel %vm1131, %v1353, 0
      %1360 = vmatprep.subr.bf16.mxu0 0
      %1361 = vmatpush1.bf16.xpose.msra.mxu0 0
      %1362 = vmatprep.subr.bf16.mxu0 0
      %1363 = vmatpush1.bf16.xpose.msra.mxu0 0
      %1364 = vmatprep.subr.bf16.mxu0 0
      %1365 = vmatpush1.bf16.xpose.msra.mxu0 0
      %1366 = vmatprep.subr.bf16.mxu0 0
      %1367 = vmatpush1.bf16.xpose.msra.mxu0 0
      %1368 = vmatprep.subr.bf16.mxu0 0
      %1369 = vmatpush1.bf16.xpose.msra.mxu0 0
      %1370 = vmatprep.subr.bf16.mxu0 0
      %1371 = vmatpush1.bf16.xpose.msra.mxu0 0
      %1372 = vmatprep.subr.bf16.mxu0 0
      %1373 = vmatpush1.bf16.xpose.msra.mxu0 0
      %1374 = vmatprep.subr.bf16.mxu0 0
      %1375 = vmatpush1.bf16.xpose.msra.mxu0 %v1358
      %1376 = vmatprep.subr.bf16.mxu0 0
      %1377 = vmatpush2.bf16.xpose.msra.mxu0 0
      %1378 = vmatprep.subr.bf16.mxu0 0
      %1379 = vmatpush2.bf16.xpose.msra.mxu0 0
      %1380 = vmatprep.subr.bf16.mxu0 0
      %1381 = vmatpush2.bf16.xpose.msra.mxu0 0
      %1382 = vmatprep.subr.bf16.mxu0 0
      %1383 = vmatpush2.bf16.xpose.msra.mxu0 0
      %1384 = vmatprep.subr.bf16.mxu0 0
      %1385 = vmatpush2.bf16.xpose.msra.mxu0 0
      %1386 = vmatprep.subr.bf16.mxu0 0
      %1387 = vmatpush2.bf16.xpose.msra.mxu0 0
      %1388 = vmatprep.subr.bf16.mxu0 0
      %1389 = vmatpush2.bf16.xpose.msra.mxu0 0
      %1390 = vmatprep.subr.bf16.mxu0 0
      %1391 = vmatpush2.bf16.xpose.msra.mxu0 0
      %1392 = vmatprep.mubr.bf16.mxu0 0
      %1393 = vmatmul.mubr.bf16.gmra.mxu0 %v1355
      %v1394 = vpop.f32.mrf.mxu0
      %v1395 = vadd.f32 0.0, %v1394
      %v1396 = vpop.f32.mrf.mxu0
      %v1397 = vpop.f32.mrf.mxu0
      %v1398 = vpop.f32.mrf.mxu0
      %1399 = vdwg.mxu0
      %vm1400 = vcmask 36864
      %v1401 = vsel %vm1400, %v1173, -inf
      %1402 = vmax.xlane.f32.xlu0 %v1401
      %v1403 = vpop.xlane.xlu0 %1402
      %v1404 = vsel %vm1400, %v1247, -inf
      %1405 = vmax.xlane.f32.xlu0 %v1404
      %v1406 = vpop.xlane.xlu0 %1405
      %v1407 = vsel %vm1400, %v1321, -inf
      %1408 = vmax.xlane.f32.xlu0 %v1407
      %v1409 = vpop.xlane.xlu0 %1408
      %v1410 = vsel %vm1400, %v1395, -inf
      %1411 = vmax.xlane.f32.xlu0 %v1410
      %v1412 = vpop.xlane.xlu0 %1411
      %v1413 = vsub.f32 %v1173, %v1403
      %v1414 = vsub.f32 %v1247, %v1406
      %v1415 = vsub.f32 %v1321, %v1409
      %v1416 = vsub.f32 %v1395, %v1412
      %v1417 = vmul.f32 %v1413, 1.442695
      %v1418 = vpow.pop %v1417
      %v1419 = vmul.f32 %v1414, 1.442695
      %v1420 = vpow.pop %v1419
      %v1421 = vmul.f32 %v1415, 1.442695
      %v1422 = vpow.pop %v1421
      %v1423 = vmul.f32 %v1416, 1.442695
      %v1424 = vpow.pop %v1423
      %v1425 = vsel %vm1400, %v1418, 0.0
      %1426 = vadd.xlane.f32.xlu0 %v1425
      %v1427 = vpop.xlane.xlu0 %1426
      %v1428 = vsel %vm1400, %v1420, 0.0
      %1429 = vadd.xlane.f32.xlu0 %v1428
      %v1430 = vpop.xlane.xlu0 %1429
      %v1431 = vsel %vm1400, %v1422, 0.0
      %1432 = vadd.xlane.f32.xlu0 %v1431
      %v1433 = vpop.xlane.xlu0 %1432
      %v1434 = vsel %vm1400, %v1424, 0.0
      %1435 = vadd.xlane.f32.xlu0 %v1434
      %v1436 = vpop.xlane.xlu0 %1435
      %v1437 = vrcp.pop %v1427
      %v1438 = vrcp.pop %v1430
      %v1439 = vrcp.pop %v1433
      %v1440 = vrcp.pop %v1436
      %v1441 = vmul.f32 %v1418, %v1437
      %v1442 = vmul.f32 %v1420, %v1438
      %v1443 = vmul.f32 %v1422, %v1439
      %v1444 = vmul.f32 %v1424, %v1440
      %v1445 = vpack.c.bf16 %v1441, %v1441
      %v1446 = vpack.c.bf16 %v1442, %v1442
      %v1447 = vpack.c.bf16 %v1443, %v1443
      %v1448 = vpack.c.bf16 %v1444, %v1444
      %1449 = vrot.lane.b32.xlu0 %v1128, 64
      %v1450 = vpop.permute.xlu0 %1449
      %vm1451 = vcmask 39936
      %v1453 = vsel %vm1451, %v1445, 0
      %vm1455 = vcmask 1041408
      %vm1456 = vcmask 1042432
      %v1457 = vsel %vm1455, 4294967295, 65535
      %v1458 = vsel %vm1456, %v1457, 0
      %v1460 = vand.u32 %v1450, %v1458
      %1462 = vmatprep.subr.bf16.mxu0 0
      %1463 = vmatpush1.bf16.msra.mxu0 0
      %1464 = vmatprep.subr.bf16.mxu0 0
      %1465 = vmatpush1.bf16.msra.mxu0 0
      %1466 = vmatprep.subr.bf16.mxu0 0
      %1467 = vmatpush1.bf16.msra.mxu0 0
      %1468 = vmatprep.subr.bf16.mxu0 0
      %1469 = vmatpush1.bf16.msra.mxu0 0
      %1470 = vmatprep.subr.bf16.mxu0 0
      %1471 = vmatpush1.bf16.msra.mxu0 0
      %1472 = vmatprep.subr.bf16.mxu0 0
      %1473 = vmatpush1.bf16.msra.mxu0 0
      %1474 = vmatprep.subr.bf16.mxu0 0
      %1475 = vmatpush1.bf16.msra.mxu0 0
      %1476 = vmatprep.subr.bf16.mxu0 0
      %1477 = vmatpush1.bf16.msra.mxu0 %v1460
      %1478 = vmatprep.subr.bf16.mxu0 0
      %1479 = vmatpush2.bf16.msra.mxu0 0
      %1480 = vmatprep.subr.bf16.mxu0 0
      %1481 = vmatpush2.bf16.msra.mxu0 0
      %1482 = vmatprep.subr.bf16.mxu0 0
      %1483 = vmatpush2.bf16.msra.mxu0 0
      %1484 = vmatprep.subr.bf16.mxu0 0
      %1485 = vmatpush2.bf16.msra.mxu0 0
      %1486 = vmatprep.subr.bf16.mxu0 0
      %1487 = vmatpush2.bf16.msra.mxu0 0
      %1488 = vmatprep.subr.bf16.mxu0 0
      %1489 = vmatpush2.bf16.msra.mxu0 0
      %1490 = vmatprep.subr.bf16.mxu0 0
      %1491 = vmatpush2.bf16.msra.mxu0 0
      %1492 = vmatprep.subr.bf16.mxu0 0
      %1493 = vmatpush2.bf16.msra.mxu0 0
      %1494 = vmatprep.mubr.bf16.mxu0 0
      %1495 = vmatmul.mubr.bf16.gmra.mxu0 %v1453
      %v1496 = vpop.f32.mrf.mxu0
      %v1497 = vadd.f32 0.0, %v1496
      %v1498 = vpop.f32.mrf.mxu0
      %v1499 = vpop.f32.mrf.mxu0
      %v1500 = vpop.f32.mrf.mxu0
      %1501 = vdwg.mxu0
      %1502 = vrot.lane.b32.xlu0 %v1203, 64
      %v1503 = vpop.permute.xlu0 %1502
      %v1505 = vsel %vm1451, %v1446, 0
      %v1508 = vand.u32 %v1503, %v1458
      %1510 = vmatprep.subr.bf16.mxu0 0
      %1511 = vmatpush1.bf16.msra.mxu0 0
      %1512 = vmatprep.subr.bf16.mxu0 0
      %1513 = vmatpush1.bf16.msra.mxu0 0
      %1514 = vmatprep.subr.bf16.mxu0 0
      %1515 = vmatpush1.bf16.msra.mxu0 0
      %1516 = vmatprep.subr.bf16.mxu0 0
      %1517 = vmatpush1.bf16.msra.mxu0 0
      %1518 = vmatprep.subr.bf16.mxu0 0
      %1519 = vmatpush1.bf16.msra.mxu0 0
      %1520 = vmatprep.subr.bf16.mxu0 0
      %1521 = vmatpush1.bf16.msra.mxu0 0
      %1522 = vmatprep.subr.bf16.mxu0 0
      %1523 = vmatpush1.bf16.msra.mxu0 0
      %1524 = vmatprep.subr.bf16.mxu0 0
      %1525 = vmatpush1.bf16.msra.mxu0 %v1508
      %1526 = vmatprep.subr.bf16.mxu0 0
      %1527 = vmatpush2.bf16.msra.mxu0 0
      %1528 = vmatprep.subr.bf16.mxu0 0
      %1529 = vmatpush2.bf16.msra.mxu0 0
      %1530 = vmatprep.subr.bf16.mxu0 0
      %1531 = vmatpush2.bf16.msra.mxu0 0
      %1532 = vmatprep.subr.bf16.mxu0 0
      %1533 = vmatpush2.bf16.msra.mxu0 0
      %1534 = vmatprep.subr.bf16.mxu0 0
      %1535 = vmatpush2.bf16.msra.mxu0 0
      %1536 = vmatprep.subr.bf16.mxu0 0
      %1537 = vmatpush2.bf16.msra.mxu0 0
      %1538 = vmatprep.subr.bf16.mxu0 0
      %1539 = vmatpush2.bf16.msra.mxu0 0
      %1540 = vmatprep.subr.bf16.mxu0 0
      %1541 = vmatpush2.bf16.msra.mxu0 0
      %1542 = vmatprep.mubr.bf16.mxu0 0
      %1543 = vmatmul.mubr.bf16.gmra.mxu0 %v1505
      %v1544 = vpop.f32.mrf.mxu0
      %v1545 = vadd.f32 0.0, %v1544
      %v1546 = vpop.f32.mrf.mxu0
      %v1547 = vpop.f32.mrf.mxu0
      %v1548 = vpop.f32.mrf.mxu0
      %1549 = vdwg.mxu0
      %1550 = vrot.lane.b32.xlu0 %v1277, 64
      %v1551 = vpop.permute.xlu0 %1550
      %v1553 = vsel %vm1451, %v1447, 0
      %v1556 = vand.u32 %v1551, %v1458
      %1558 = vmatprep.subr.bf16.mxu0 0
      %1559 = vmatpush1.bf16.msra.mxu0 0
      %1560 = vmatprep.subr.bf16.mxu0 0
      %1561 = vmatpush1.bf16.msra.mxu0 0
      %1562 = vmatprep.subr.bf16.mxu0 0
      %1563 = vmatpush1.bf16.msra.mxu0 0
      %1564 = vmatprep.subr.bf16.mxu0 0
      %1565 = vmatpush1.bf16.msra.mxu0 0
      %1566 = vmatprep.subr.bf16.mxu0 0
      %1567 = vmatpush1.bf16.msra.mxu0 0
      %1568 = vmatprep.subr.bf16.mxu0 0
      %1569 = vmatpush1.bf16.msra.mxu0 0
      %1570 = vmatprep.subr.bf16.mxu0 0
      %1571 = vmatpush1.bf16.msra.mxu0 0
      %1572 = vmatprep.subr.bf16.mxu0 0
      %1573 = vmatpush1.bf16.msra.mxu0 %v1556
      %1574 = vmatprep.subr.bf16.mxu0 0
      %1575 = vmatpush2.bf16.msra.mxu0 0
      %1576 = vmatprep.subr.bf16.mxu0 0
      %1577 = vmatpush2.bf16.msra.mxu0 0
      %1578 = vmatprep.subr.bf16.mxu0 0
      %1579 = vmatpush2.bf16.msra.mxu0 0
      %1580 = vmatprep.subr.bf16.mxu0 0
      %1581 = vmatpush2.bf16.msra.mxu0 0
      %1582 = vmatprep.subr.bf16.mxu0 0
      %1583 = vmatpush2.bf16.msra.mxu0 0
      %1584 = vmatprep.subr.bf16.mxu0 0
      %1585 = vmatpush2.bf16.msra.mxu0 0
      %1586 = vmatprep.subr.bf16.mxu0 0
      %1587 = vmatpush2.bf16.msra.mxu0 0
      %1588 = vmatprep.subr.bf16.mxu0 0
      %1589 = vmatpush2.bf16.msra.mxu0 0
      %1590 = vmatprep.mubr.bf16.mxu0 0
      %1591 = vmatmul.mubr.bf16.gmra.mxu0 %v1553
      %v1592 = vpop.f32.mrf.mxu0
      %v1593 = vadd.f32 0.0, %v1592
      %v1594 = vpop.f32.mrf.mxu0
      %v1595 = vpop.f32.mrf.mxu0
      %v1596 = vpop.f32.mrf.mxu0
      %1597 = vdwg.mxu0
      %1598 = vrot.lane.b32.xlu0 %v1351, 64
      %v1599 = vpop.permute.xlu0 %1598
      %v1601 = vsel %vm1451, %v1448, 0
      %v1604 = vand.u32 %v1599, %v1458
      %1606 = vmatprep.subr.bf16.mxu0 0
      %1607 = vmatpush1.bf16.msra.mxu0 0
      %1608 = vmatprep.subr.bf16.mxu0 0
      %1609 = vmatpush1.bf16.msra.mxu0 0
      %1610 = vmatprep.subr.bf16.mxu0 0
      %1611 = vmatpush1.bf16.msra.mxu0 0
      %1612 = vmatprep.subr.bf16.mxu0 0
      %1613 = vmatpush1.bf16.msra.mxu0 0
      %1614 = vmatprep.subr.bf16.mxu0 0
      %1615 = vmatpush1.bf16.msra.mxu0 0
      %1616 = vmatprep.subr.bf16.mxu0 0
      %1617 = vmatpush1.bf16.msra.mxu0 0
      %1618 = vmatprep.subr.bf16.mxu0 0
      %1619 = vmatpush1.bf16.msra.mxu0 0
      %1620 = vmatprep.subr.bf16.mxu0 0
      %1621 = vmatpush1.bf16.msra.mxu0 %v1604
      %1622 = vmatprep.subr.bf16.mxu0 0
      %1623 = vmatpush2.bf16.msra.mxu0 0
      %1624 = vmatprep.subr.bf16.mxu0 0
      %1625 = vmatpush2.bf16.msra.mxu0 0
      %1626 = vmatprep.subr.bf16.mxu0 0
      %1627 = vmatpush2.bf16.msra.mxu0 0
      %1628 = vmatprep.subr.bf16.mxu0 0
      %1629 = vmatpush2.bf16.msra.mxu0 0
      %1630 = vmatprep.subr.bf16.mxu0 0
      %1631 = vmatpush2.bf16.msra.mxu0 0
      %1632 = vmatprep.subr.bf16.mxu0 0
      %1633 = vmatpush2.bf16.msra.mxu0 0
      %1634 = vmatprep.subr.bf16.mxu0 0
      %1635 = vmatpush2.bf16.msra.mxu0 0
      %1636 = vmatprep.subr.bf16.mxu0 0
      %1637 = vmatpush2.bf16.msra.mxu0 0
      %1638 = vmatprep.mubr.bf16.mxu0 0
      %1639 = vmatmul.mubr.bf16.gmra.mxu0 %v1601
      %v1640 = vpop.f32.mrf.mxu0
      %v1641 = vadd.f32 0.0, %v1640
      %v1642 = vpop.f32.mrf.mxu0
      %v1643 = vpop.f32.mrf.mxu0
      %v1644 = vpop.f32.mrf.mxu0
      %1645 = vdwg.mxu0
      %1646 = vrot.lane.b32.xlu0 %v1128, 120
      %v1647 = vpop.permute.xlu0 %1646
      %1648 = vrot.lane.b32.xlu0 %v1128, 88
      %v1649 = vpop.permute.xlu0 %1648
      %v1651 = vsel %vm1131, %v1647, 0
      %v1654 = vsel %vm1131, %v1649, 0
      %1656 = vmatprep.subr.bf16.mxu0 0
      %1657 = vmatpush1.bf16.xpose.msra.mxu0 0
      %1658 = vmatprep.subr.bf16.mxu0 0
      %1659 = vmatpush1.bf16.xpose.msra.mxu0 0
      %1660 = vmatprep.subr.bf16.mxu0 0
      %1661 = vmatpush1.bf16.xpose.msra.mxu0 0
      %1662 = vmatprep.subr.bf16.mxu0 0
      %1663 = vmatpush1.bf16.xpose.msra.mxu0 0
      %1664 = vmatprep.subr.bf16.mxu0 0
      %1665 = vmatpush1.bf16.xpose.msra.mxu0 0
      %1666 = vmatprep.subr.bf16.mxu0 0
      %1667 = vmatpush1.bf16.xpose.msra.mxu0 0
      %1668 = vmatprep.subr.bf16.mxu0 0
      %1669 = vmatpush1.bf16.xpose.msra.mxu0 0
      %1670 = vmatprep.subr.bf16.mxu0 0
      %1671 = vmatpush1.bf16.xpose.msra.mxu0 %v1654
      %1672 = vmatprep.subr.bf16.mxu0 0
      %1673 = vmatpush2.bf16.xpose.msra.mxu0 0
      %1674 = vmatprep.subr.bf16.mxu0 0
      %1675 = vmatpush2.bf16.xpose.msra.mxu0 0
      %1676 = vmatprep.subr.bf16.mxu0 0
      %1677 = vmatpush2.bf16.xpose.msra.mxu0 0
      %1678 = vmatprep.subr.bf16.mxu0 0
      %1679 = vmatpush2.bf16.xpose.msra.mxu0 0
      %1680 = vmatprep.subr.bf16.mxu0 0
      %1681 = vmatpush2.bf16.xpose.msra.mxu0 0
      %1682 = vmatprep.subr.bf16.mxu0 0
      %1683 = vmatpush2.bf16.xpose.msra.mxu0 0
      %1684 = vmatprep.subr.bf16.mxu0 0
      %1685 = vmatpush2.bf16.xpose.msra.mxu0 0
      %1686 = vmatprep.subr.bf16.mxu0 0
      %1687 = vmatpush2.bf16.xpose.msra.mxu0 0
      %1688 = vmatprep.mubr.bf16.mxu0 0
      %1689 = vmatmul.mubr.bf16.gmra.mxu0 %v1651
      %v1690 = vpop.f32.mrf.mxu0
      %v1691 = vadd.f32 0.0, %v1690
      %v1692 = vpop.f32.mrf.mxu0
      %v1693 = vpop.f32.mrf.mxu0
      %v1694 = vpop.f32.mrf.mxu0
      %1695 = vdwg.mxu0
      %1696 = vrot.lane.b32.xlu0 %v1203, 120
      %v1697 = vpop.permute.xlu0 %1696
      %1698 = vrot.lane.b32.xlu0 %v1203, 88
      %v1699 = vpop.permute.xlu0 %1698
      %v1701 = vsel %vm1131, %v1697, 0
      %v1704 = vsel %vm1131, %v1699, 0
      %1706 = vmatprep.subr.bf16.mxu0 0
      %1707 = vmatpush1.bf16.xpose.msra.mxu0 0
      %1708 = vmatprep.subr.bf16.mxu0 0
      %1709 = vmatpush1.bf16.xpose.msra.mxu0 0
      %1710 = vmatprep.subr.bf16.mxu0 0
      %1711 = vmatpush1.bf16.xpose.msra.mxu0 0
      %1712 = vmatprep.subr.bf16.mxu0 0
      %1713 = vmatpush1.bf16.xpose.msra.mxu0 0
      %1714 = vmatprep.subr.bf16.mxu0 0
      %1715 = vmatpush1.bf16.xpose.msra.mxu0 0
      %1716 = vmatprep.subr.bf16.mxu0 0
      %1717 = vmatpush1.bf16.xpose.msra.mxu0 0
      %1718 = vmatprep.subr.bf16.mxu0 0
      %1719 = vmatpush1.bf16.xpose.msra.mxu0 0
      %1720 = vmatprep.subr.bf16.mxu0 0
      %1721 = vmatpush1.bf16.xpose.msra.mxu0 %v1704
      %1722 = vmatprep.subr.bf16.mxu0 0
      %1723 = vmatpush2.bf16.xpose.msra.mxu0 0
      %1724 = vmatprep.subr.bf16.mxu0 0
      %1725 = vmatpush2.bf16.xpose.msra.mxu0 0
      %1726 = vmatprep.subr.bf16.mxu0 0
      %1727 = vmatpush2.bf16.xpose.msra.mxu0 0
      %1728 = vmatprep.subr.bf16.mxu0 0
      %1729 = vmatpush2.bf16.xpose.msra.mxu0 0
      %1730 = vmatprep.subr.bf16.mxu0 0
      %1731 = vmatpush2.bf16.xpose.msra.mxu0 0
      %1732 = vmatprep.subr.bf16.mxu0 0
      %1733 = vmatpush2.bf16.xpose.msra.mxu0 0
      %1734 = vmatprep.subr.bf16.mxu0 0
      %1735 = vmatpush2.bf16.xpose.msra.mxu0 0
      %1736 = vmatprep.subr.bf16.mxu0 0
      %1737 = vmatpush2.bf16.xpose.msra.mxu0 0
      %1738 = vmatprep.mubr.bf16.mxu0 0
      %1739 = vmatmul.mubr.bf16.gmra.mxu0 %v1701
      %v1740 = vpop.f32.mrf.mxu0
      %v1741 = vadd.f32 0.0, %v1740
      %v1742 = vpop.f32.mrf.mxu0
      %v1743 = vpop.f32.mrf.mxu0
      %v1744 = vpop.f32.mrf.mxu0
      %1745 = vdwg.mxu0
      %1746 = vrot.lane.b32.xlu0 %v1277, 120
      %v1747 = vpop.permute.xlu0 %1746
      %1748 = vrot.lane.b32.xlu0 %v1277, 88
      %v1749 = vpop.permute.xlu0 %1748
      %v1751 = vsel %vm1131, %v1747, 0
      %v1754 = vsel %vm1131, %v1749, 0
      %1756 = vmatprep.subr.bf16.mxu0 0
      %1757 = vmatpush1.bf16.xpose.msra.mxu0 0
      %1758 = vmatprep.subr.bf16.mxu0 0
      %1759 = vmatpush1.bf16.xpose.msra.mxu0 0
      %1760 = vmatprep.subr.bf16.mxu0 0
      %1761 = vmatpush1.bf16.xpose.msra.mxu0 0
      %1762 = vmatprep.subr.bf16.mxu0 0
      %1763 = vmatpush1.bf16.xpose.msra.mxu0 0
      %1764 = vmatprep.subr.bf16.mxu0 0
      %1765 = vmatpush1.bf16.xpose.msra.mxu0 0
      %1766 = vmatprep.subr.bf16.mxu0 0
      %1767 = vmatpush1.bf16.xpose.msra.mxu0 0
      %1768 = vmatprep.subr.bf16.mxu0 0
      %1769 = vmatpush1.bf16.xpose.msra.mxu0 0
      %1770 = vmatprep.subr.bf16.mxu0 0
      %1771 = vmatpush1.bf16.xpose.msra.mxu0 %v1754
      %1772 = vmatprep.subr.bf16.mxu0 0
      %1773 = vmatpush2.bf16.xpose.msra.mxu0 0
      %1774 = vmatprep.subr.bf16.mxu0 0
      %1775 = vmatpush2.bf16.xpose.msra.mxu0 0
      %1776 = vmatprep.subr.bf16.mxu0 0
      %1777 = vmatpush2.bf16.xpose.msra.mxu0 0
      %1778 = vmatprep.subr.bf16.mxu0 0
      %1779 = vmatpush2.bf16.xpose.msra.mxu0 0
      %1780 = vmatprep.subr.bf16.mxu0 0
      %1781 = vmatpush2.bf16.xpose.msra.mxu0 0
      %1782 = vmatprep.subr.bf16.mxu0 0
      %1783 = vmatpush2.bf16.xpose.msra.mxu0 0
      %1784 = vmatprep.subr.bf16.mxu0 0
      %1785 = vmatpush2.bf16.xpose.msra.mxu0 0
      %1786 = vmatprep.subr.bf16.mxu0 0
      %1787 = vmatpush2.bf16.xpose.msra.mxu0 0
      %1788 = vmatprep.mubr.bf16.mxu0 0
      %1789 = vmatmul.mubr.bf16.gmra.mxu0 %v1751
      %v1790 = vpop.f32.mrf.mxu0
      %v1791 = vadd.f32 0.0, %v1790
      %v1792 = vpop.f32.mrf.mxu0
      %v1793 = vpop.f32.mrf.mxu0
      %v1794 = vpop.f32.mrf.mxu0
      %1795 = vdwg.mxu0
      %1796 = vrot.lane.b32.xlu0 %v1351, 120
      %v1797 = vpop.permute.xlu0 %1796
      %1798 = vrot.lane.b32.xlu0 %v1351, 88
      %v1799 = vpop.permute.xlu0 %1798
      %v1801 = vsel %vm1131, %v1797, 0
      %v1804 = vsel %vm1131, %v1799, 0
      %1806 = vmatprep.subr.bf16.mxu0 0
      %1807 = vmatpush1.bf16.xpose.msra.mxu0 0
      %1808 = vmatprep.subr.bf16.mxu0 0
      %1809 = vmatpush1.bf16.xpose.msra.mxu0 0
      %1810 = vmatprep.subr.bf16.mxu0 0
      %1811 = vmatpush1.bf16.xpose.msra.mxu0 0
      %1812 = vmatprep.subr.bf16.mxu0 0
      %1813 = vmatpush1.bf16.xpose.msra.mxu0 0
      %1814 = vmatprep.subr.bf16.mxu0 0
      %1815 = vmatpush1.bf16.xpose.msra.mxu0 0
      %1816 = vmatprep.subr.bf16.mxu0 0
      %1817 = vmatpush1.bf16.xpose.msra.mxu0 0
      %1818 = vmatprep.subr.bf16.mxu0 0
      %1819 = vmatpush1.bf16.xpose.msra.mxu0 0
      %1820 = vmatprep.subr.bf16.mxu0 0
      %1821 = vmatpush1.bf16.xpose.msra.mxu0 %v1804
      %1822 = vmatprep.subr.bf16.mxu0 0
      %1823 = vmatpush2.bf16.xpose.msra.mxu0 0
      %1824 = vmatprep.subr.bf16.mxu0 0
      %1825 = vmatpush2.bf16.xpose.msra.mxu0 0
      %1826 = vmatprep.subr.bf16.mxu0 0
      %1827 = vmatpush2.bf16.xpose.msra.mxu0 0
      %1828 = vmatprep.subr.bf16.mxu0 0
      %1829 = vmatpush2.bf16.xpose.msra.mxu0 0
      %1830 = vmatprep.subr.bf16.mxu0 0
      %1831 = vmatpush2.bf16.xpose.msra.mxu0 0
      %1832 = vmatprep.subr.bf16.mxu0 0
      %1833 = vmatpush2.bf16.xpose.msra.mxu0 0
      %1834 = vmatprep.subr.bf16.mxu0 0
      %1835 = vmatpush2.bf16.xpose.msra.mxu0 0
      %1836 = vmatprep.subr.bf16.mxu0 0
      %1837 = vmatpush2.bf16.xpose.msra.mxu0 0
      %1838 = vmatprep.mubr.bf16.mxu0 0
      %1839 = vmatmul.mubr.bf16.gmra.mxu0 %v1801
      %v1840 = vpop.f32.mrf.mxu0
      %v1841 = vadd.f32 0.0, %v1840
      %v1842 = vpop.f32.mrf.mxu0
      %v1843 = vpop.f32.mrf.mxu0
      %v1844 = vpop.f32.mrf.mxu0
      %1845 = vdwg.mxu0
      %v1846 = vsel %vm1400, %v1691, -inf
      %1847 = vmax.xlane.f32.xlu0 %v1846
      %v1848 = vpop.xlane.xlu0 %1847
      %v1849 = vsel %vm1400, %v1741, -inf
      %1850 = vmax.xlane.f32.xlu0 %v1849
      %v1851 = vpop.xlane.xlu0 %1850
      %v1852 = vsel %vm1400, %v1791, -inf
      %1853 = vmax.xlane.f32.xlu0 %v1852
      %v1854 = vpop.xlane.xlu0 %1853
      %v1855 = vsel %vm1400, %v1841, -inf
      %1856 = vmax.xlane.f32.xlu0 %v1855
      %v1857 = vpop.xlane.xlu0 %1856
      %v1858 = vsub.f32 %v1691, %v1848
      %v1859 = vsub.f32 %v1741, %v1851
      %v1860 = vsub.f32 %v1791, %v1854
      %v1861 = vsub.f32 %v1841, %v1857
      %v1862 = vmul.f32 %v1858, 1.442695
      %v1863 = vpow.pop %v1862
      %v1864 = vmul.f32 %v1859, 1.442695
      %v1865 = vpow.pop %v1864
      %v1866 = vmul.f32 %v1860, 1.442695
      %v1867 = vpow.pop %v1866
      %v1868 = vmul.f32 %v1861, 1.442695
      %v1869 = vpow.pop %v1868
      %v1870 = vsel %vm1400, %v1863, 0.0
      %1871 = vadd.xlane.f32.xlu0 %v1870
      %v1872 = vpop.xlane.xlu0 %1871
      %v1873 = vsel %vm1400, %v1865, 0.0
      %1874 = vadd.xlane.f32.xlu0 %v1873
      %v1875 = vpop.xlane.xlu0 %1874
      %v1876 = vsel %vm1400, %v1867, 0.0
      %1877 = vadd.xlane.f32.xlu0 %v1876
      %v1878 = vpop.xlane.xlu0 %1877
      %v1879 = vsel %vm1400, %v1869, 0.0
      %1880 = vadd.xlane.f32.xlu0 %v1879
      %v1881 = vpop.xlane.xlu0 %1880
      %v1882 = vrcp.pop %v1872
      %v1883 = vrcp.pop %v1875
      %v1884 = vrcp.pop %v1878
      %v1885 = vrcp.pop %v1881
      %v1886 = vmul.f32 %v1863, %v1882
      %v1887 = vmul.f32 %v1865, %v1883
      %v1888 = vmul.f32 %v1867, %v1884
      %v1889 = vmul.f32 %v1869, %v1885
      %v1890 = vpack.c.bf16 %v1886, %v1886
      %v1891 = vpack.c.bf16 %v1887, %v1887
      %v1892 = vpack.c.bf16 %v1888, %v1888
      %v1893 = vpack.c.bf16 %v1889, %v1889
      %1894 = vrot.lane.b32.xlu0 %v1128, 56
      %v1895 = vpop.permute.xlu0 %1894
      %v1897 = vsel %vm1451, %v1890, 0
      %v1900 = vand.u32 %v1895, %v1458
      %1902 = vmatprep.subr.bf16.mxu0 0
      %1903 = vmatpush1.bf16.msra.mxu0 0
      %1904 = vmatprep.subr.bf16.mxu0 0
      %1905 = vmatpush1.bf16.msra.mxu0 0
      %1906 = vmatprep.subr.bf16.mxu0 0
      %1907 = vmatpush1.bf16.msra.mxu0 0
      %1908 = vmatprep.subr.bf16.mxu0 0
      %1909 = vmatpush1.bf16.msra.mxu0 0
      %1910 = vmatprep.subr.bf16.mxu0 0
      %1911 = vmatpush1.bf16.msra.mxu0 0
      %1912 = vmatprep.subr.bf16.mxu0 0
      %1913 = vmatpush1.bf16.msra.mxu0 0
      %1914 = vmatprep.subr.bf16.mxu0 0
      %1915 = vmatpush1.bf16.msra.mxu0 0
      %1916 = vmatprep.subr.bf16.mxu0 0
      %1917 = vmatpush1.bf16.msra.mxu0 %v1900
      %1918 = vmatprep.subr.bf16.mxu0 0
      %1919 = vmatpush2.bf16.msra.mxu0 0
      %1920 = vmatprep.subr.bf16.mxu0 0
      %1921 = vmatpush2.bf16.msra.mxu0 0
      %1922 = vmatprep.subr.bf16.mxu0 0
      %1923 = vmatpush2.bf16.msra.mxu0 0
      %1924 = vmatprep.subr.bf16.mxu0 0
      %1925 = vmatpush2.bf16.msra.mxu0 0
      %1926 = vmatprep.subr.bf16.mxu0 0
      %1927 = vmatpush2.bf16.msra.mxu0 0
      %1928 = vmatprep.subr.bf16.mxu0 0
      %1929 = vmatpush2.bf16.msra.mxu0 0
      %1930 = vmatprep.subr.bf16.mxu0 0
      %1931 = vmatpush2.bf16.msra.mxu0 0
      %1932 = vmatprep.subr.bf16.mxu0 0
      %1933 = vmatpush2.bf16.msra.mxu0 0
      %1934 = vmatprep.mubr.bf16.mxu0 0
      %1935 = vmatmul.mubr.bf16.gmra.mxu0 %v1897
      %v1936 = vpop.f32.mrf.mxu0
      %v1937 = vadd.f32 0.0, %v1936
      %v1938 = vpop.f32.mrf.mxu0
      %v1939 = vpop.f32.mrf.mxu0
      %v1940 = vpop.f32.mrf.mxu0
      %1941 = vdwg.mxu0
      %1942 = vrot.lane.b32.xlu0 %v1203, 56
      %v1943 = vpop.permute.xlu0 %1942
      %v1945 = vsel %vm1451, %v1891, 0
      %v1948 = vand.u32 %v1943, %v1458
      %1950 = vmatprep.subr.bf16.mxu0 0
      %1951 = vmatpush1.bf16.msra.mxu0 0
      %1952 = vmatprep.subr.bf16.mxu0 0
      %1953 = vmatpush1.bf16.msra.mxu0 0
      %1954 = vmatprep.subr.bf16.mxu0 0
      %1955 = vmatpush1.bf16.msra.mxu0 0
      %1956 = vmatprep.subr.bf16.mxu0 0
      %1957 = vmatpush1.bf16.msra.mxu0 0
      %1958 = vmatprep.subr.bf16.mxu0 0
      %1959 = vmatpush1.bf16.msra.mxu0 0
      %1960 = vmatprep.subr.bf16.mxu0 0
      %1961 = vmatpush1.bf16.msra.mxu0 0
      %1962 = vmatprep.subr.bf16.mxu0 0
      %1963 = vmatpush1.bf16.msra.mxu0 0
      %1964 = vmatprep.subr.bf16.mxu0 0
      %1965 = vmatpush1.bf16.msra.mxu0 %v1948
      %1966 = vmatprep.subr.bf16.mxu0 0
      %1967 = vmatpush2.bf16.msra.mxu0 0
      %1968 = vmatprep.subr.bf16.mxu0 0
      %1969 = vmatpush2.bf16.msra.mxu0 0
      %1970 = vmatprep.subr.bf16.mxu0 0
      %1971 = vmatpush2.bf16.msra.mxu0 0
      %1972 = vmatprep.subr.bf16.mxu0 0
      %1973 = vmatpush2.bf16.msra.mxu0 0
      %1974 = vmatprep.subr.bf16.mxu0 0
      %1975 = vmatpush2.bf16.msra.mxu0 0
      %1976 = vmatprep.subr.bf16.mxu0 0
      %1977 = vmatpush2.bf16.msra.mxu0 0
      %1978 = vmatprep.subr.bf16.mxu0 0
      %1979 = vmatpush2.bf16.msra.mxu0 0
      %1980 = vmatprep.subr.bf16.mxu0 0
      %1981 = vmatpush2.bf16.msra.mxu0 0
      %1982 = vmatprep.mubr.bf16.mxu0 0
      %1983 = vmatmul.mubr.bf16.gmra.mxu0 %v1945
      %v1984 = vpop.f32.mrf.mxu0
      %v1985 = vadd.f32 0.0, %v1984
      %v1986 = vpop.f32.mrf.mxu0
      %v1987 = vpop.f32.mrf.mxu0
      %v1988 = vpop.f32.mrf.mxu0
      %1989 = vdwg.mxu0
      %1990 = vrot.lane.b32.xlu0 %v1277, 56
      %v1991 = vpop.permute.xlu0 %1990
      %v1993 = vsel %vm1451, %v1892, 0
      %v1996 = vand.u32 %v1991, %v1458
      %1998 = vmatprep.subr.bf16.mxu0 0
      %1999 = vmatpush1.bf16.msra.mxu0 0
      %2000 = vmatprep.subr.bf16.mxu0 0
      %2001 = vmatpush1.bf16.msra.mxu0 0
      %2002 = vmatprep.subr.bf16.mxu0 0
      %2003 = vmatpush1.bf16.msra.mxu0 0
      %2004 = vmatprep.subr.bf16.mxu0 0
      %2005 = vmatpush1.bf16.msra.mxu0 0
      %2006 = vmatprep.subr.bf16.mxu0 0
      %2007 = vmatpush1.bf16.msra.mxu0 0
      %2008 = vmatprep.subr.bf16.mxu0 0
      %2009 = vmatpush1.bf16.msra.mxu0 0
      %2010 = vmatprep.subr.bf16.mxu0 0
      %2011 = vmatpush1.bf16.msra.mxu0 0
      %2012 = vmatprep.subr.bf16.mxu0 0
      %2013 = vmatpush1.bf16.msra.mxu0 %v1996
      %2014 = vmatprep.subr.bf16.mxu0 0
      %2015 = vmatpush2.bf16.msra.mxu0 0
      %2016 = vmatprep.subr.bf16.mxu0 0
      %2017 = vmatpush2.bf16.msra.mxu0 0
      %2018 = vmatprep.subr.bf16.mxu0 0
      %2019 = vmatpush2.bf16.msra.mxu0 0
      %2020 = vmatprep.subr.bf16.mxu0 0
      %2021 = vmatpush2.bf16.msra.mxu0 0
      %2022 = vmatprep.subr.bf16.mxu0 0
      %2023 = vmatpush2.bf16.msra.mxu0 0
      %2024 = vmatprep.subr.bf16.mxu0 0
      %2025 = vmatpush2.bf16.msra.mxu0 0
      %2026 = vmatprep.subr.bf16.mxu0 0
      %2027 = vmatpush2.bf16.msra.mxu0 0
      %2028 = vmatprep.subr.bf16.mxu0 0
      %2029 = vmatpush2.bf16.msra.mxu0 0
      %2030 = vmatprep.mubr.bf16.mxu0 0
      %2031 = vmatmul.mubr.bf16.gmra.mxu0 %v1993
      %v2032 = vpop.f32.mrf.mxu0
      %v2033 = vadd.f32 0.0, %v2032
      %v2034 = vpop.f32.mrf.mxu0
      %v2035 = vpop.f32.mrf.mxu0
      %v2036 = vpop.f32.mrf.mxu0
      %2037 = vdwg.mxu0
      %2038 = vrot.lane.b32.xlu0 %v1351, 56
      %v2039 = vpop.permute.xlu0 %2038
      %v2041 = vsel %vm1451, %v1893, 0
      %v2044 = vand.u32 %v2039, %v1458
      %2046 = vmatprep.subr.bf16.mxu0 0
      %2047 = vmatpush1.bf16.msra.mxu0 0
      %2048 = vmatprep.subr.bf16.mxu0 0
      %2049 = vmatpush1.bf16.msra.mxu0 0
      %2050 = vmatprep.subr.bf16.mxu0 0
      %2051 = vmatpush1.bf16.msra.mxu0 0
      %2052 = vmatprep.subr.bf16.mxu0 0
      %2053 = vmatpush1.bf16.msra.mxu0 0
      %2054 = vmatprep.subr.bf16.mxu0 0
      %2055 = vmatpush1.bf16.msra.mxu0 0
      %2056 = vmatprep.subr.bf16.mxu0 0
      %2057 = vmatpush1.bf16.msra.mxu0 0
      %2058 = vmatprep.subr.bf16.mxu0 0
      %2059 = vmatpush1.bf16.msra.mxu0 0
      %2060 = vmatprep.subr.bf16.mxu0 0
      %2061 = vmatpush1.bf16.msra.mxu0 %v2044
      %2062 = vmatprep.subr.bf16.mxu0 0
      %2063 = vmatpush2.bf16.msra.mxu0 0
      %2064 = vmatprep.subr.bf16.mxu0 0
      %2065 = vmatpush2.bf16.msra.mxu0 0
      %2066 = vmatprep.subr.bf16.mxu0 0
      %2067 = vmatpush2.bf16.msra.mxu0 0
      %2068 = vmatprep.subr.bf16.mxu0 0
      %2069 = vmatpush2.bf16.msra.mxu0 0
      %2070 = vmatprep.subr.bf16.mxu0 0
      %2071 = vmatpush2.bf16.msra.mxu0 0
      %2072 = vmatprep.subr.bf16.mxu0 0
      %2073 = vmatpush2.bf16.msra.mxu0 0
      %2074 = vmatprep.subr.bf16.mxu0 0
      %2075 = vmatpush2.bf16.msra.mxu0 0
      %2076 = vmatprep.subr.bf16.mxu0 0
      %2077 = vmatpush2.bf16.msra.mxu0 0
      %2078 = vmatprep.mubr.bf16.mxu0 0
      %2079 = vmatmul.mubr.bf16.gmra.mxu0 %v2041
      %v2080 = vpop.f32.mrf.mxu0
      %v2081 = vadd.f32 0.0, %v2080
      %v2082 = vpop.f32.mrf.mxu0
      %v2083 = vpop.f32.mrf.mxu0
      %v2084 = vpop.f32.mrf.mxu0
      %2085 = vdwg.mxu0
      %2086 = vrot.lane.b32.xlu0 %v1128, 112
      %v2087 = vpop.permute.xlu0 %2086
      %2088 = vrot.lane.b32.xlu0 %v1128, 80
      %v2089 = vpop.permute.xlu0 %2088
      %v2091 = vsel %vm1131, %v2087, 0
      %v2094 = vsel %vm1131, %v2089, 0
      %2096 = vmatprep.subr.bf16.mxu0 0
      %2097 = vmatpush1.bf16.xpose.msra.mxu0 0
      %2098 = vmatprep.subr.bf16.mxu0 0
      %2099 = vmatpush1.bf16.xpose.msra.mxu0 0
      %2100 = vmatprep.subr.bf16.mxu0 0
      %2101 = vmatpush1.bf16.xpose.msra.mxu0 0
      %2102 = vmatprep.subr.bf16.mxu0 0
      %2103 = vmatpush1.bf16.xpose.msra.mxu0 0
      %2104 = vmatprep.subr.bf16.mxu0 0
      %2105 = vmatpush1.bf16.xpose.msra.mxu0 0
      %2106 = vmatprep.subr.bf16.mxu0 0
      %2107 = vmatpush1.bf16.xpose.msra.mxu0 0
      %2108 = vmatprep.subr.bf16.mxu0 0
      %2109 = vmatpush1.bf16.xpose.msra.mxu0 0
      %2110 = vmatprep.subr.bf16.mxu0 0
      %2111 = vmatpush1.bf16.xpose.msra.mxu0 %v2094
      %2112 = vmatprep.subr.bf16.mxu0 0
      %2113 = vmatpush2.bf16.xpose.msra.mxu0 0
      %2114 = vmatprep.subr.bf16.mxu0 0
      %2115 = vmatpush2.bf16.xpose.msra.mxu0 0
      %2116 = vmatprep.subr.bf16.mxu0 0
      %2117 = vmatpush2.bf16.xpose.msra.mxu0 0
      %2118 = vmatprep.subr.bf16.mxu0 0
      %2119 = vmatpush2.bf16.xpose.msra.mxu0 0
      %2120 = vmatprep.subr.bf16.mxu0 0
      %2121 = vmatpush2.bf16.xpose.msra.mxu0 0
      %2122 = vmatprep.subr.bf16.mxu0 0
      %2123 = vmatpush2.bf16.xpose.msra.mxu0 0
      %2124 = vmatprep.subr.bf16.mxu0 0
      %2125 = vmatpush2.bf16.xpose.msra.mxu0 0
      %2126 = vmatprep.subr.bf16.mxu0 0
      %2127 = vmatpush2.bf16.xpose.msra.mxu0 0
      %2128 = vmatprep.mubr.bf16.mxu0 0
      %2129 = vmatmul.mubr.bf16.gmra.mxu0 %v2091
      %v2130 = vpop.f32.mrf.mxu0
      %v2131 = vadd.f32 0.0, %v2130
      %v2132 = vpop.f32.mrf.mxu0
      %v2133 = vpop.f32.mrf.mxu0
      %v2134 = vpop.f32.mrf.mxu0
      %2135 = vdwg.mxu0
      %2136 = vrot.lane.b32.xlu0 %v1203, 112
      %v2137 = vpop.permute.xlu0 %2136
      %2138 = vrot.lane.b32.xlu0 %v1203, 80
      %v2139 = vpop.permute.xlu0 %2138
      %v2141 = vsel %vm1131, %v2137, 0
      %v2144 = vsel %vm1131, %v2139, 0
      %2146 = vmatprep.subr.bf16.mxu0 0
      %2147 = vmatpush1.bf16.xpose.msra.mxu0 0
      %2148 = vmatprep.subr.bf16.mxu0 0
      %2149 = vmatpush1.bf16.xpose.msra.mxu0 0
      %2150 = vmatprep.subr.bf16.mxu0 0
      %2151 = vmatpush1.bf16.xpose.msra.mxu0 0
      %2152 = vmatprep.subr.bf16.mxu0 0
      %2153 = vmatpush1.bf16.xpose.msra.mxu0 0
      %2154 = vmatprep.subr.bf16.mxu0 0
      %2155 = vmatpush1.bf16.xpose.msra.mxu0 0
      %2156 = vmatprep.subr.bf16.mxu0 0
      %2157 = vmatpush1.bf16.xpose.msra.mxu0 0
      %2158 = vmatprep.subr.bf16.mxu0 0
      %2159 = vmatpush1.bf16.xpose.msra.mxu0 0
      %2160 = vmatprep.subr.bf16.mxu0 0
      %2161 = vmatpush1.bf16.xpose.msra.mxu0 %v2144
      %2162 = vmatprep.subr.bf16.mxu0 0
      %2163 = vmatpush2.bf16.xpose.msra.mxu0 0
      %2164 = vmatprep.subr.bf16.mxu0 0
      %2165 = vmatpush2.bf16.xpose.msra.mxu0 0
      %2166 = vmatprep.subr.bf16.mxu0 0
      %2167 = vmatpush2.bf16.xpose.msra.mxu0 0
      %2168 = vmatprep.subr.bf16.mxu0 0
      %2169 = vmatpush2.bf16.xpose.msra.mxu0 0
      %2170 = vmatprep.subr.bf16.mxu0 0
      %2171 = vmatpush2.bf16.xpose.msra.mxu0 0
      %2172 = vmatprep.subr.bf16.mxu0 0
      %2173 = vmatpush2.bf16.xpose.msra.mxu0 0
      %2174 = vmatprep.subr.bf16.mxu0 0
      %2175 = vmatpush2.bf16.xpose.msra.mxu0 0
      %2176 = vmatprep.subr.bf16.mxu0 0
      %2177 = vmatpush2.bf16.xpose.msra.mxu0 0
      %2178 = vmatprep.mubr.bf16.mxu0 0
      %2179 = vmatmul.mubr.bf16.gmra.mxu0 %v2141
      %v2180 = vpop.f32.mrf.mxu0
      %v2181 = vadd.f32 0.0, %v2180
      %v2182 = vpop.f32.mrf.mxu0
      %v2183 = vpop.f32.mrf.mxu0
      %v2184 = vpop.f32.mrf.mxu0
      %2185 = vdwg.mxu0
      %2186 = vrot.lane.b32.xlu0 %v1277, 112
      %v2187 = vpop.permute.xlu0 %2186
      %2188 = vrot.lane.b32.xlu0 %v1277, 80
      %v2189 = vpop.permute.xlu0 %2188
      %v2191 = vsel %vm1131, %v2187, 0
      %v2194 = vsel %vm1131, %v2189, 0
      %2196 = vmatprep.subr.bf16.mxu0 0
      %2197 = vmatpush1.bf16.xpose.msra.mxu0 0
      %2198 = vmatprep.subr.bf16.mxu0 0
      %2199 = vmatpush1.bf16.xpose.msra.mxu0 0
      %2200 = vmatprep.subr.bf16.mxu0 0
      %2201 = vmatpush1.bf16.xpose.msra.mxu0 0
      %2202 = vmatprep.subr.bf16.mxu0 0
      %2203 = vmatpush1.bf16.xpose.msra.mxu0 0
      %2204 = vmatprep.subr.bf16.mxu0 0
      %2205 = vmatpush1.bf16.xpose.msra.mxu0 0
      %2206 = vmatprep.subr.bf16.mxu0 0
      %2207 = vmatpush1.bf16.xpose.msra.mxu0 0
      %2208 = vmatprep.subr.bf16.mxu0 0
      %2209 = vmatpush1.bf16.xpose.msra.mxu0 0
      %2210 = vmatprep.subr.bf16.mxu0 0
      %2211 = vmatpush1.bf16.xpose.msra.mxu0 %v2194
      %2212 = vmatprep.subr.bf16.mxu0 0
      %2213 = vmatpush2.bf16.xpose.msra.mxu0 0
      %2214 = vmatprep.subr.bf16.mxu0 0
      %2215 = vmatpush2.bf16.xpose.msra.mxu0 0
      %2216 = vmatprep.subr.bf16.mxu0 0
      %2217 = vmatpush2.bf16.xpose.msra.mxu0 0
      %2218 = vmatprep.subr.bf16.mxu0 0
      %2219 = vmatpush2.bf16.xpose.msra.mxu0 0
      %2220 = vmatprep.subr.bf16.mxu0 0
      %2221 = vmatpush2.bf16.xpose.msra.mxu0 0
      %2222 = vmatprep.subr.bf16.mxu0 0
      %2223 = vmatpush2.bf16.xpose.msra.mxu0 0
      %2224 = vmatprep.subr.bf16.mxu0 0
      %2225 = vmatpush2.bf16.xpose.msra.mxu0 0
      %2226 = vmatprep.subr.bf16.mxu0 0
      %2227 = vmatpush2.bf16.xpose.msra.mxu0 0
      %2228 = vmatprep.mubr.bf16.mxu0 0
      %2229 = vmatmul.mubr.bf16.gmra.mxu0 %v2191
      %v2230 = vpop.f32.mrf.mxu0
      %v2231 = vadd.f32 0.0, %v2230
      %v2232 = vpop.f32.mrf.mxu0
      %v2233 = vpop.f32.mrf.mxu0
      %v2234 = vpop.f32.mrf.mxu0
      %2235 = vdwg.mxu0
      %2236 = vrot.lane.b32.xlu0 %v1351, 112
      %v2237 = vpop.permute.xlu0 %2236
      %2238 = vrot.lane.b32.xlu0 %v1351, 80
      %v2239 = vpop.permute.xlu0 %2238
      %v2241 = vsel %vm1131, %v2237, 0
      %v2244 = vsel %vm1131, %v2239, 0
      %2246 = vmatprep.subr.bf16.mxu0 0
      %2247 = vmatpush1.bf16.xpose.msra.mxu0 0
      %2248 = vmatprep.subr.bf16.mxu0 0
      %2249 = vmatpush1.bf16.xpose.msra.mxu0 0
      %2250 = vmatprep.subr.bf16.mxu0 0
      %2251 = vmatpush1.bf16.xpose.msra.mxu0 0
      %2252 = vmatprep.subr.bf16.mxu0 0
      %2253 = vmatpush1.bf16.xpose.msra.mxu0 0
      %2254 = vmatprep.subr.bf16.mxu0 0
      %2255 = vmatpush1.bf16.xpose.msra.mxu0 0
      %2256 = vmatprep.subr.bf16.mxu0 0
      %2257 = vmatpush1.bf16.xpose.msra.mxu0 0
      %2258 = vmatprep.subr.bf16.mxu0 0
      %2259 = vmatpush1.bf16.xpose.msra.mxu0 0
      %2260 = vmatprep.subr.bf16.mxu0 0
      %2261 = vmatpush1.bf16.xpose.msra.mxu0 %v2244
      %2262 = vmatprep.subr.bf16.mxu0 0
      %2263 = vmatpush2.bf16.xpose.msra.mxu0 0
      %2264 = vmatprep.subr.bf16.mxu0 0
      %2265 = vmatpush2.bf16.xpose.msra.mxu0 0
      %2266 = vmatprep.subr.bf16.mxu0 0
      %2267 = vmatpush2.bf16.xpose.msra.mxu0 0
      %2268 = vmatprep.subr.bf16.mxu0 0
      %2269 = vmatpush2.bf16.xpose.msra.mxu0 0
      %2270 = vmatprep.subr.bf16.mxu0 0
      %2271 = vmatpush2.bf16.xpose.msra.mxu0 0
      %2272 = vmatprep.subr.bf16.mxu0 0
      %2273 = vmatpush2.bf16.xpose.msra.mxu0 0
      %2274 = vmatprep.subr.bf16.mxu0 0
      %2275 = vmatpush2.bf16.xpose.msra.mxu0 0
      %2276 = vmatprep.subr.bf16.mxu0 0
      %2277 = vmatpush2.bf16.xpose.msra.mxu0 0
      %2278 = vmatprep.mubr.bf16.mxu0 0
      %2279 = vmatmul.mubr.bf16.gmra.mxu0 %v2241
      %v2280 = vpop.f32.mrf.mxu0
      %v2281 = vadd.f32 0.0, %v2280
      %v2282 = vpop.f32.mrf.mxu0
      %v2283 = vpop.f32.mrf.mxu0
      %v2284 = vpop.f32.mrf.mxu0
      %2285 = vdwg.mxu0
      %v2286 = vsel %vm1400, %v2131, -inf
      %2287 = vmax.xlane.f32.xlu0 %v2286
      %v2288 = vpop.xlane.xlu0 %2287
      %v2289 = vsel %vm1400, %v2181, -inf
      %2290 = vmax.xlane.f32.xlu0 %v2289
      %v2291 = vpop.xlane.xlu0 %2290
      %v2292 = vsel %vm1400, %v2231, -inf
      %2293 = vmax.xlane.f32.xlu0 %v2292
      %v2294 = vpop.xlane.xlu0 %2293
      %v2295 = vsel %vm1400, %v2281, -inf
      %2296 = vmax.xlane.f32.xlu0 %v2295
      %v2297 = vpop.xlane.xlu0 %2296
      %v2298 = vsub.f32 %v2131, %v2288
      %v2299 = vsub.f32 %v2181, %v2291
      %v2300 = vsub.f32 %v2231, %v2294
      %v2301 = vsub.f32 %v2281, %v2297
      %v2302 = vmul.f32 %v2298, 1.442695
      %v2303 = vpow.pop %v2302
      %v2304 = vmul.f32 %v2299, 1.442695
      %v2305 = vpow.pop %v2304
      %v2306 = vmul.f32 %v2300, 1.442695
      %v2307 = vpow.pop %v2306
      %v2308 = vmul.f32 %v2301, 1.442695
      %v2309 = vpow.pop %v2308
      %v2310 = vsel %vm1400, %v2303, 0.0
      %2311 = vadd.xlane.f32.xlu0 %v2310
      %v2312 = vpop.xlane.xlu0 %2311
      %v2313 = vsel %vm1400, %v2305, 0.0
      %2314 = vadd.xlane.f32.xlu0 %v2313
      %v2315 = vpop.xlane.xlu0 %2314
      %v2316 = vsel %vm1400, %v2307, 0.0
      %2317 = vadd.xlane.f32.xlu0 %v2316
      %v2318 = vpop.xlane.xlu0 %2317
      %v2319 = vsel %vm1400, %v2309, 0.0
      %2320 = vadd.xlane.f32.xlu0 %v2319
      %v2321 = vpop.xlane.xlu0 %2320
      %v2322 = vrcp.pop %v2312
      %v2323 = vrcp.pop %v2315
      %v2324 = vrcp.pop %v2318
      %v2325 = vrcp.pop %v2321
      %v2326 = vmul.f32 %v2303, %v2322
      %v2327 = vmul.f32 %v2305, %v2323
      %v2328 = vmul.f32 %v2307, %v2324
      %v2329 = vmul.f32 %v2309, %v2325
      %v2330 = vpack.c.bf16 %v2326, %v2326
      %v2331 = vpack.c.bf16 %v2327, %v2327
      %v2332 = vpack.c.bf16 %v2328, %v2328
      %v2333 = vpack.c.bf16 %v2329, %v2329
      %2334 = vrot.lane.b32.xlu0 %v1128, 48
      %v2335 = vpop.permute.xlu0 %2334
      %v2337 = vsel %vm1451, %v2330, 0
      %v2340 = vand.u32 %v2335, %v1458
      %2342 = vmatprep.subr.bf16.mxu0 0
      %2343 = vmatpush1.bf16.msra.mxu0 0
      %2344 = vmatprep.subr.bf16.mxu0 0
      %2345 = vmatpush1.bf16.msra.mxu0 0
      %2346 = vmatprep.subr.bf16.mxu0 0
      %2347 = vmatpush1.bf16.msra.mxu0 0
      %2348 = vmatprep.subr.bf16.mxu0 0
      %2349 = vmatpush1.bf16.msra.mxu0 0
      %2350 = vmatprep.subr.bf16.mxu0 0
      %2351 = vmatpush1.bf16.msra.mxu0 0
      %2352 = vmatprep.subr.bf16.mxu0 0
      %2353 = vmatpush1.bf16.msra.mxu0 0
      %2354 = vmatprep.subr.bf16.mxu0 0
      %2355 = vmatpush1.bf16.msra.mxu0 0
      %2356 = vmatprep.subr.bf16.mxu0 0
      %2357 = vmatpush1.bf16.msra.mxu0 %v2340
      %2358 = vmatprep.subr.bf16.mxu0 0
      %2359 = vmatpush2.bf16.msra.mxu0 0
      %2360 = vmatprep.subr.bf16.mxu0 0
      %2361 = vmatpush2.bf16.msra.mxu0 0
      %2362 = vmatprep.subr.bf16.mxu0 0
      %2363 = vmatpush2.bf16.msra.mxu0 0
      %2364 = vmatprep.subr.bf16.mxu0 0
      %2365 = vmatpush2.bf16.msra.mxu0 0
      %2366 = vmatprep.subr.bf16.mxu0 0
      %2367 = vmatpush2.bf16.msra.mxu0 0
      %2368 = vmatprep.subr.bf16.mxu0 0
      %2369 = vmatpush2.bf16.msra.mxu0 0
      %2370 = vmatprep.subr.bf16.mxu0 0
      %2371 = vmatpush2.bf16.msra.mxu0 0
      %2372 = vmatprep.subr.bf16.mxu0 0
      %2373 = vmatpush2.bf16.msra.mxu0 0
      %2374 = vmatprep.mubr.bf16.mxu0 0
      %2375 = vmatmul.mubr.bf16.gmra.mxu0 %v2337
      %v2376 = vpop.f32.mrf.mxu0
      %v2377 = vadd.f32 0.0, %v2376
      %v2378 = vpop.f32.mrf.mxu0
      %v2379 = vpop.f32.mrf.mxu0
      %v2380 = vpop.f32.mrf.mxu0
      %2381 = vdwg.mxu0
      %2382 = vrot.lane.b32.xlu0 %v1203, 48
      %v2383 = vpop.permute.xlu0 %2382
      %v2385 = vsel %vm1451, %v2331, 0
      %v2388 = vand.u32 %v2383, %v1458
      %2390 = vmatprep.subr.bf16.mxu0 0
      %2391 = vmatpush1.bf16.msra.mxu0 0
      %2392 = vmatprep.subr.bf16.mxu0 0
      %2393 = vmatpush1.bf16.msra.mxu0 0
      %2394 = vmatprep.subr.bf16.mxu0 0
      %2395 = vmatpush1.bf16.msra.mxu0 0
      %2396 = vmatprep.subr.bf16.mxu0 0
      %2397 = vmatpush1.bf16.msra.mxu0 0
      %2398 = vmatprep.subr.bf16.mxu0 0
      %2399 = vmatpush1.bf16.msra.mxu0 0
      %2400 = vmatprep.subr.bf16.mxu0 0
      %2401 = vmatpush1.bf16.msra.mxu0 0
      %2402 = vmatprep.subr.bf16.mxu0 0
      %2403 = vmatpush1.bf16.msra.mxu0 0
      %2404 = vmatprep.subr.bf16.mxu0 0
      %2405 = vmatpush1.bf16.msra.mxu0 %v2388
      %2406 = vmatprep.subr.bf16.mxu0 0
      %2407 = vmatpush2.bf16.msra.mxu0 0
      %2408 = vmatprep.subr.bf16.mxu0 0
      %2409 = vmatpush2.bf16.msra.mxu0 0
      %2410 = vmatprep.subr.bf16.mxu0 0
      %2411 = vmatpush2.bf16.msra.mxu0 0
      %2412 = vmatprep.subr.bf16.mxu0 0
      %2413 = vmatpush2.bf16.msra.mxu0 0
      %2414 = vmatprep.subr.bf16.mxu0 0
      %2415 = vmatpush2.bf16.msra.mxu0 0
      %2416 = vmatprep.subr.bf16.mxu0 0
      %2417 = vmatpush2.bf16.msra.mxu0 0
      %2418 = vmatprep.subr.bf16.mxu0 0
      %2419 = vmatpush2.bf16.msra.mxu0 0
      %2420 = vmatprep.subr.bf16.mxu0 0
      %2421 = vmatpush2.bf16.msra.mxu0 0
      %2422 = vmatprep.mubr.bf16.mxu0 0
      %2423 = vmatmul.mubr.bf16.gmra.mxu0 %v2385
      %v2424 = vpop.f32.mrf.mxu0
      %v2425 = vadd.f32 0.0, %v2424
      %v2426 = vpop.f32.mrf.mxu0
      %v2427 = vpop.f32.mrf.mxu0
      %v2428 = vpop.f32.mrf.mxu0
      %2429 = vdwg.mxu0
      %2430 = vrot.lane.b32.xlu0 %v1277, 48
      %v2431 = vpop.permute.xlu0 %2430
      %v2433 = vsel %vm1451, %v2332, 0
      %v2436 = vand.u32 %v2431, %v1458
      %2438 = vmatprep.subr.bf16.mxu0 0
      %2439 = vmatpush1.bf16.msra.mxu0 0
      %2440 = vmatprep.subr.bf16.mxu0 0
      %2441 = vmatpush1.bf16.msra.mxu0 0
      %2442 = vmatprep.subr.bf16.mxu0 0
      %2443 = vmatpush1.bf16.msra.mxu0 0
      %2444 = vmatprep.subr.bf16.mxu0 0
      %2445 = vmatpush1.bf16.msra.mxu0 0
      %2446 = vmatprep.subr.bf16.mxu0 0
      %2447 = vmatpush1.bf16.msra.mxu0 0
      %2448 = vmatprep.subr.bf16.mxu0 0
      %2449 = vmatpush1.bf16.msra.mxu0 0
      %2450 = vmatprep.subr.bf16.mxu0 0
      %2451 = vmatpush1.bf16.msra.mxu0 0
      %2452 = vmatprep.subr.bf16.mxu0 0
      %2453 = vmatpush1.bf16.msra.mxu0 %v2436
      %2454 = vmatprep.subr.bf16.mxu0 0
      %2455 = vmatpush2.bf16.msra.mxu0 0
      %2456 = vmatprep.subr.bf16.mxu0 0
      %2457 = vmatpush2.bf16.msra.mxu0 0
      %2458 = vmatprep.subr.bf16.mxu0 0
      %2459 = vmatpush2.bf16.msra.mxu0 0
      %2460 = vmatprep.subr.bf16.mxu0 0
      %2461 = vmatpush2.bf16.msra.mxu0 0
      %2462 = vmatprep.subr.bf16.mxu0 0
      %2463 = vmatpush2.bf16.msra.mxu0 0
      %2464 = vmatprep.subr.bf16.mxu0 0
      %2465 = vmatpush2.bf16.msra.mxu0 0
      %2466 = vmatprep.subr.bf16.mxu0 0
      %2467 = vmatpush2.bf16.msra.mxu0 0
      %2468 = vmatprep.subr.bf16.mxu0 0
      %2469 = vmatpush2.bf16.msra.mxu0 0
      %2470 = vmatprep.mubr.bf16.mxu0 0
      %2471 = vmatmul.mubr.bf16.gmra.mxu0 %v2433
      %v2472 = vpop.f32.mrf.mxu0
      %v2473 = vadd.f32 0.0, %v2472
      %v2474 = vpop.f32.mrf.mxu0
      %v2475 = vpop.f32.mrf.mxu0
      %v2476 = vpop.f32.mrf.mxu0
      %2477 = vdwg.mxu0
      %2478 = vrot.lane.b32.xlu0 %v1351, 48
      %v2479 = vpop.permute.xlu0 %2478
      %v2481 = vsel %vm1451, %v2333, 0
      %v2484 = vand.u32 %v2479, %v1458
      %2486 = vmatprep.subr.bf16.mxu0 0
      %2487 = vmatpush1.bf16.msra.mxu0 0
      %2488 = vmatprep.subr.bf16.mxu0 0
      %2489 = vmatpush1.bf16.msra.mxu0 0
      %2490 = vmatprep.subr.bf16.mxu0 0
      %2491 = vmatpush1.bf16.msra.mxu0 0
      %2492 = vmatprep.subr.bf16.mxu0 0
      %2493 = vmatpush1.bf16.msra.mxu0 0
      %2494 = vmatprep.subr.bf16.mxu0 0
      %2495 = vmatpush1.bf16.msra.mxu0 0
      %2496 = vmatprep.subr.bf16.mxu0 0
      %2497 = vmatpush1.bf16.msra.mxu0 0
      %2498 = vmatprep.subr.bf16.mxu0 0
      %2499 = vmatpush1.bf16.msra.mxu0 0
      %2500 = vmatprep.subr.bf16.mxu0 0
      %2501 = vmatpush1.bf16.msra.mxu0 %v2484
      %2502 = vmatprep.subr.bf16.mxu0 0
      %2503 = vmatpush2.bf16.msra.mxu0 0
      %2504 = vmatprep.subr.bf16.mxu0 0
      %2505 = vmatpush2.bf16.msra.mxu0 0
      %2506 = vmatprep.subr.bf16.mxu0 0
      %2507 = vmatpush2.bf16.msra.mxu0 0
      %2508 = vmatprep.subr.bf16.mxu0 0
      %2509 = vmatpush2.bf16.msra.mxu0 0
      %2510 = vmatprep.subr.bf16.mxu0 0
      %2511 = vmatpush2.bf16.msra.mxu0 0
      %2512 = vmatprep.subr.bf16.mxu0 0
      %2513 = vmatpush2.bf16.msra.mxu0 0
      %2514 = vmatprep.subr.bf16.mxu0 0
      %2515 = vmatpush2.bf16.msra.mxu0 0
      %2516 = vmatprep.subr.bf16.mxu0 0
      %2517 = vmatpush2.bf16.msra.mxu0 0
      %2518 = vmatprep.mubr.bf16.mxu0 0
      %2519 = vmatmul.mubr.bf16.gmra.mxu0 %v2481
      %v2520 = vpop.f32.mrf.mxu0
      %v2521 = vadd.f32 0.0, %v2520
      %v2522 = vpop.f32.mrf.mxu0
      %v2523 = vpop.f32.mrf.mxu0
      %v2524 = vpop.f32.mrf.mxu0
      %2525 = vdwg.mxu0
      %2526 = vrot.lane.b32.xlu0 %v1128, 104
      %v2527 = vpop.permute.xlu0 %2526
      %2528 = vrot.lane.b32.xlu0 %v1128, 72
      %v2529 = vpop.permute.xlu0 %2528
      %v2531 = vsel %vm1131, %v2527, 0
      %v2534 = vsel %vm1131, %v2529, 0
      %2536 = vmatprep.subr.bf16.mxu0 0
      %2537 = vmatpush1.bf16.xpose.msra.mxu0 0
      %2538 = vmatprep.subr.bf16.mxu0 0
      %2539 = vmatpush1.bf16.xpose.msra.mxu0 0
      %2540 = vmatprep.subr.bf16.mxu0 0
      %2541 = vmatpush1.bf16.xpose.msra.mxu0 0
      %2542 = vmatprep.subr.bf16.mxu0 0
      %2543 = vmatpush1.bf16.xpose.msra.mxu0 0
      %2544 = vmatprep.subr.bf16.mxu0 0
      %2545 = vmatpush1.bf16.xpose.msra.mxu0 0
      %2546 = vmatprep.subr.bf16.mxu0 0
      %2547 = vmatpush1.bf16.xpose.msra.mxu0 0
      %2548 = vmatprep.subr.bf16.mxu0 0
      %2549 = vmatpush1.bf16.xpose.msra.mxu0 0
      %2550 = vmatprep.subr.bf16.mxu0 0
      %2551 = vmatpush1.bf16.xpose.msra.mxu0 %v2534
      %2552 = vmatprep.subr.bf16.mxu0 0
      %2553 = vmatpush2.bf16.xpose.msra.mxu0 0
      %2554 = vmatprep.subr.bf16.mxu0 0
      %2555 = vmatpush2.bf16.xpose.msra.mxu0 0
      %2556 = vmatprep.subr.bf16.mxu0 0
      %2557 = vmatpush2.bf16.xpose.msra.mxu0 0
      %2558 = vmatprep.subr.bf16.mxu0 0
      %2559 = vmatpush2.bf16.xpose.msra.mxu0 0
      %2560 = vmatprep.subr.bf16.mxu0 0
      %2561 = vmatpush2.bf16.xpose.msra.mxu0 0
      %2562 = vmatprep.subr.bf16.mxu0 0
      %2563 = vmatpush2.bf16.xpose.msra.mxu0 0
      %2564 = vmatprep.subr.bf16.mxu0 0
      %2565 = vmatpush2.bf16.xpose.msra.mxu0 0
      %2566 = vmatprep.subr.bf16.mxu0 0
      %2567 = vmatpush2.bf16.xpose.msra.mxu0 0
      %2568 = vmatprep.mubr.bf16.mxu0 0
      %2569 = vmatmul.mubr.bf16.gmra.mxu0 %v2531
      %v2570 = vpop.f32.mrf.mxu0
      %v2571 = vadd.f32 0.0, %v2570
      %v2572 = vpop.f32.mrf.mxu0
      %v2573 = vpop.f32.mrf.mxu0
      %v2574 = vpop.f32.mrf.mxu0
      %2575 = vdwg.mxu0
      %2576 = vrot.lane.b32.xlu0 %v1203, 104
      %v2577 = vpop.permute.xlu0 %2576
      %2578 = vrot.lane.b32.xlu0 %v1203, 72
      %v2579 = vpop.permute.xlu0 %2578
      %v2581 = vsel %vm1131, %v2577, 0
      %v2584 = vsel %vm1131, %v2579, 0
      %2586 = vmatprep.subr.bf16.mxu0 0
      %2587 = vmatpush1.bf16.xpose.msra.mxu0 0
      %2588 = vmatprep.subr.bf16.mxu0 0
      %2589 = vmatpush1.bf16.xpose.msra.mxu0 0
      %2590 = vmatprep.subr.bf16.mxu0 0
      %2591 = vmatpush1.bf16.xpose.msra.mxu0 0
      %2592 = vmatprep.subr.bf16.mxu0 0
      %2593 = vmatpush1.bf16.xpose.msra.mxu0 0
      %2594 = vmatprep.subr.bf16.mxu0 0
      %2595 = vmatpush1.bf16.xpose.msra.mxu0 0
      %2596 = vmatprep.subr.bf16.mxu0 0
      %2597 = vmatpush1.bf16.xpose.msra.mxu0 0
      %2598 = vmatprep.subr.bf16.mxu0 0
      %2599 = vmatpush1.bf16.xpose.msra.mxu0 0
      %2600 = vmatprep.subr.bf16.mxu0 0
      %2601 = vmatpush1.bf16.xpose.msra.mxu0 %v2584
      %2602 = vmatprep.subr.bf16.mxu0 0
      %2603 = vmatpush2.bf16.xpose.msra.mxu0 0
      %2604 = vmatprep.subr.bf16.mxu0 0
      %2605 = vmatpush2.bf16.xpose.msra.mxu0 0
      %2606 = vmatprep.subr.bf16.mxu0 0
      %2607 = vmatpush2.bf16.xpose.msra.mxu0 0
      %2608 = vmatprep.subr.bf16.mxu0 0
      %2609 = vmatpush2.bf16.xpose.msra.mxu0 0
      %2610 = vmatprep.subr.bf16.mxu0 0
      %2611 = vmatpush2.bf16.xpose.msra.mxu0 0
      %2612 = vmatprep.subr.bf16.mxu0 0
      %2613 = vmatpush2.bf16.xpose.msra.mxu0 0
      %2614 = vmatprep.subr.bf16.mxu0 0
      %2615 = vmatpush2.bf16.xpose.msra.mxu0 0
      %2616 = vmatprep.subr.bf16.mxu0 0
      %2617 = vmatpush2.bf16.xpose.msra.mxu0 0
      %2618 = vmatprep.mubr.bf16.mxu0 0
      %2619 = vmatmul.mubr.bf16.gmra.mxu0 %v2581
      %v2620 = vpop.f32.mrf.mxu0
      %v2621 = vadd.f32 0.0, %v2620
      %v2622 = vpop.f32.mrf.mxu0
      %v2623 = vpop.f32.mrf.mxu0
      %v2624 = vpop.f32.mrf.mxu0
      %2625 = vdwg.mxu0
      %2626 = vrot.lane.b32.xlu0 %v1277, 104
      %v2627 = vpop.permute.xlu0 %2626
      %2628 = vrot.lane.b32.xlu0 %v1277, 72
      %v2629 = vpop.permute.xlu0 %2628
      %v2631 = vsel %vm1131, %v2627, 0
      %v2634 = vsel %vm1131, %v2629, 0
      %2636 = vmatprep.subr.bf16.mxu0 0
      %2637 = vmatpush1.bf16.xpose.msra.mxu0 0
      %2638 = vmatprep.subr.bf16.mxu0 0
      %2639 = vmatpush1.bf16.xpose.msra.mxu0 0
      %2640 = vmatprep.subr.bf16.mxu0 0
      %2641 = vmatpush1.bf16.xpose.msra.mxu0 0
      %2642 = vmatprep.subr.bf16.mxu0 0
      %2643 = vmatpush1.bf16.xpose.msra.mxu0 0
      %2644 = vmatprep.subr.bf16.mxu0 0
      %2645 = vmatpush1.bf16.xpose.msra.mxu0 0
      %2646 = vmatprep.subr.bf16.mxu0 0
      %2647 = vmatpush1.bf16.xpose.msra.mxu0 0
      %2648 = vmatprep.subr.bf16.mxu0 0
      %2649 = vmatpush1.bf16.xpose.msra.mxu0 0
      %2650 = vmatprep.subr.bf16.mxu0 0
      %2651 = vmatpush1.bf16.xpose.msra.mxu0 %v2634
      %2652 = vmatprep.subr.bf16.mxu0 0
      %2653 = vmatpush2.bf16.xpose.msra.mxu0 0
      %2654 = vmatprep.subr.bf16.mxu0 0
      %2655 = vmatpush2.bf16.xpose.msra.mxu0 0
      %2656 = vmatprep.subr.bf16.mxu0 0
      %2657 = vmatpush2.bf16.xpose.msra.mxu0 0
      %2658 = vmatprep.subr.bf16.mxu0 0
      %2659 = vmatpush2.bf16.xpose.msra.mxu0 0
      %2660 = vmatprep.subr.bf16.mxu0 0
      %2661 = vmatpush2.bf16.xpose.msra.mxu0 0
      %2662 = vmatprep.subr.bf16.mxu0 0
      %2663 = vmatpush2.bf16.xpose.msra.mxu0 0
      %2664 = vmatprep.subr.bf16.mxu0 0
      %2665 = vmatpush2.bf16.xpose.msra.mxu0 0
      %2666 = vmatprep.subr.bf16.mxu0 0
      %2667 = vmatpush2.bf16.xpose.msra.mxu0 0
      %2668 = vmatprep.mubr.bf16.mxu0 0
      %2669 = vmatmul.mubr.bf16.gmra.mxu0 %v2631
      %v2670 = vpop.f32.mrf.mxu0
      %v2671 = vadd.f32 0.0, %v2670
      %v2672 = vpop.f32.mrf.mxu0
      %v2673 = vpop.f32.mrf.mxu0
      %v2674 = vpop.f32.mrf.mxu0
      %2675 = vdwg.mxu0
      %2676 = vrot.lane.b32.xlu0 %v1351, 104
      %v2677 = vpop.permute.xlu0 %2676
      %2678 = vrot.lane.b32.xlu0 %v1351, 72
      %v2679 = vpop.permute.xlu0 %2678
      %v2681 = vsel %vm1131, %v2677, 0
      %v2684 = vsel %vm1131, %v2679, 0
      %2686 = vmatprep.subr.bf16.mxu0 0
      %2687 = vmatpush1.bf16.xpose.msra.mxu0 0
      %2688 = vmatprep.subr.bf16.mxu0 0
      %2689 = vmatpush1.bf16.xpose.msra.mxu0 0
      %2690 = vmatprep.subr.bf16.mxu0 0
      %2691 = vmatpush1.bf16.xpose.msra.mxu0 0
      %2692 = vmatprep.subr.bf16.mxu0 0
      %2693 = vmatpush1.bf16.xpose.msra.mxu0 0
      %2694 = vmatprep.subr.bf16.mxu0 0
      %2695 = vmatpush1.bf16.xpose.msra.mxu0 0
      %2696 = vmatprep.subr.bf16.mxu0 0
      %2697 = vmatpush1.bf16.xpose.msra.mxu0 0
      %2698 = vmatprep.subr.bf16.mxu0 0
      %2699 = vmatpush1.bf16.xpose.msra.mxu0 0
      %2700 = vmatprep.subr.bf16.mxu0 0
      %2701 = vmatpush1.bf16.xpose.msra.mxu0 %v2684
      %2702 = vmatprep.subr.bf16.mxu0 0
      %2703 = vmatpush2.bf16.xpose.msra.mxu0 0
      %2704 = vmatprep.subr.bf16.mxu0 0
      %2705 = vmatpush2.bf16.xpose.msra.mxu0 0
      %2706 = vmatprep.subr.bf16.mxu0 0
      %2707 = vmatpush2.bf16.xpose.msra.mxu0 0
      %2708 = vmatprep.subr.bf16.mxu0 0
      %2709 = vmatpush2.bf16.xpose.msra.mxu0 0
      %2710 = vmatprep.subr.bf16.mxu0 0
      %2711 = vmatpush2.bf16.xpose.msra.mxu0 0
      %2712 = vmatprep.subr.bf16.mxu0 0
      %2713 = vmatpush2.bf16.xpose.msra.mxu0 0
      %2714 = vmatprep.subr.bf16.mxu0 0
      %2715 = vmatpush2.bf16.xpose.msra.mxu0 0
      %2716 = vmatprep.subr.bf16.mxu0 0
      %2717 = vmatpush2.bf16.xpose.msra.mxu0 0
      %2718 = vmatprep.mubr.bf16.mxu0 0
      %2719 = vmatmul.mubr.bf16.gmra.mxu0 %v2681
      %v2720 = vpop.f32.mrf.mxu0
      %v2721 = vadd.f32 0.0, %v2720
      %v2722 = vpop.f32.mrf.mxu0
      %v2723 = vpop.f32.mrf.mxu0
      %v2724 = vpop.f32.mrf.mxu0
      %2725 = vdwg.mxu0
      %v2726 = vsel %vm1400, %v2571, -inf
      %2727 = vmax.xlane.f32.xlu0 %v2726
      %v2728 = vpop.xlane.xlu0 %2727
      %v2729 = vsel %vm1400, %v2621, -inf
      %2730 = vmax.xlane.f32.xlu0 %v2729
      %v2731 = vpop.xlane.xlu0 %2730
      %v2732 = vsel %vm1400, %v2671, -inf
      %2733 = vmax.xlane.f32.xlu0 %v2732
      %v2734 = vpop.xlane.xlu0 %2733
      %v2735 = vsel %vm1400, %v2721, -inf
      %2736 = vmax.xlane.f32.xlu0 %v2735
      %v2737 = vpop.xlane.xlu0 %2736
      %v2738 = vsub.f32 %v2571, %v2728
      %v2739 = vsub.f32 %v2621, %v2731
      %v2740 = vsub.f32 %v2671, %v2734
      %v2741 = vsub.f32 %v2721, %v2737
      %v2742 = vmul.f32 %v2738, 1.442695
      %v2743 = vpow.pop %v2742
      %v2744 = vmul.f32 %v2739, 1.442695
      %v2745 = vpow.pop %v2744
      %v2746 = vmul.f32 %v2740, 1.442695
      %v2747 = vpow.pop %v2746
      %v2748 = vmul.f32 %v2741, 1.442695
      %v2749 = vpow.pop %v2748
      %v2750 = vsel %vm1400, %v2743, 0.0
      %2751 = vadd.xlane.f32.xlu0 %v2750
      %v2752 = vpop.xlane.xlu0 %2751
      %v2753 = vsel %vm1400, %v2745, 0.0
      %2754 = vadd.xlane.f32.xlu0 %v2753
      %v2755 = vpop.xlane.xlu0 %2754
      %v2756 = vsel %vm1400, %v2747, 0.0
      %2757 = vadd.xlane.f32.xlu0 %v2756
      %v2758 = vpop.xlane.xlu0 %2757
      %v2759 = vsel %vm1400, %v2749, 0.0
      %2760 = vadd.xlane.f32.xlu0 %v2759
      %v2761 = vpop.xlane.xlu0 %2760
      %v2762 = vrcp.pop %v2752
      %v2763 = vrcp.pop %v2755
      %v2764 = vrcp.pop %v2758
      %v2765 = vrcp.pop %v2761
      %v2766 = vmul.f32 %v2743, %v2762
      %v2767 = vmul.f32 %v2745, %v2763
      %v2768 = vmul.f32 %v2747, %v2764
      %v2769 = vmul.f32 %v2749, %v2765
      %v2770 = vpack.c.bf16 %v2766, %v2766
      %v2771 = vpack.c.bf16 %v2767, %v2767
      %v2772 = vpack.c.bf16 %v2768, %v2768
      %v2773 = vpack.c.bf16 %v2769, %v2769
      %2774 = vrot.lane.b32.xlu0 %v1128, 40
      %v2775 = vpop.permute.xlu0 %2774
      %v2777 = vsel %vm1451, %v2770, 0
      %v2780 = vand.u32 %v2775, %v1458
      %2782 = vmatprep.subr.bf16.mxu0 0
      %2783 = vmatpush1.bf16.msra.mxu0 0
      %2784 = vmatprep.subr.bf16.mxu0 0
      %2785 = vmatpush1.bf16.msra.mxu0 0
      %2786 = vmatprep.subr.bf16.mxu0 0
      %2787 = vmatpush1.bf16.msra.mxu0 0
      %2788 = vmatprep.subr.bf16.mxu0 0
      %2789 = vmatpush1.bf16.msra.mxu0 0
      %2790 = vmatprep.subr.bf16.mxu0 0
      %2791 = vmatpush1.bf16.msra.mxu0 0
      %2792 = vmatprep.subr.bf16.mxu0 0
      %2793 = vmatpush1.bf16.msra.mxu0 0
      %2794 = vmatprep.subr.bf16.mxu0 0
      %2795 = vmatpush1.bf16.msra.mxu0 0
      %2796 = vmatprep.subr.bf16.mxu0 0
      %2797 = vmatpush1.bf16.msra.mxu0 %v2780
      %2798 = vmatprep.subr.bf16.mxu0 0
      %2799 = vmatpush2.bf16.msra.mxu0 0
      %2800 = vmatprep.subr.bf16.mxu0 0
      %2801 = vmatpush2.bf16.msra.mxu0 0
      %2802 = vmatprep.subr.bf16.mxu0 0
      %2803 = vmatpush2.bf16.msra.mxu0 0
      %2804 = vmatprep.subr.bf16.mxu0 0
      %2805 = vmatpush2.bf16.msra.mxu0 0
      %2806 = vmatprep.subr.bf16.mxu0 0
      %2807 = vmatpush2.bf16.msra.mxu0 0
      %2808 = vmatprep.subr.bf16.mxu0 0
      %2809 = vmatpush2.bf16.msra.mxu0 0
      %2810 = vmatprep.subr.bf16.mxu0 0
      %2811 = vmatpush2.bf16.msra.mxu0 0
      %2812 = vmatprep.subr.bf16.mxu0 0
      %2813 = vmatpush2.bf16.msra.mxu0 0
      %2814 = vmatprep.mubr.bf16.mxu0 0
      %2815 = vmatmul.mubr.bf16.gmra.mxu0 %v2777
      %v2816 = vpop.f32.mrf.mxu0
      %v2817 = vadd.f32 0.0, %v2816
      %v2818 = vpop.f32.mrf.mxu0
      %v2819 = vpop.f32.mrf.mxu0
      %v2820 = vpop.f32.mrf.mxu0
      %2821 = vdwg.mxu0
      %2822 = vrot.lane.b32.xlu0 %v1203, 40
      %v2823 = vpop.permute.xlu0 %2822
      %v2825 = vsel %vm1451, %v2771, 0
      %v2828 = vand.u32 %v2823, %v1458
      %2830 = vmatprep.subr.bf16.mxu0 0
      %2831 = vmatpush1.bf16.msra.mxu0 0
      %2832 = vmatprep.subr.bf16.mxu0 0
      %2833 = vmatpush1.bf16.msra.mxu0 0
      %2834 = vmatprep.subr.bf16.mxu0 0
      %2835 = vmatpush1.bf16.msra.mxu0 0
      %2836 = vmatprep.subr.bf16.mxu0 0
      %2837 = vmatpush1.bf16.msra.mxu0 0
      %2838 = vmatprep.subr.bf16.mxu0 0
      %2839 = vmatpush1.bf16.msra.mxu0 0
      %2840 = vmatprep.subr.bf16.mxu0 0
      %2841 = vmatpush1.bf16.msra.mxu0 0
      %2842 = vmatprep.subr.bf16.mxu0 0
      %2843 = vmatpush1.bf16.msra.mxu0 0
      %2844 = vmatprep.subr.bf16.mxu0 0
      %2845 = vmatpush1.bf16.msra.mxu0 %v2828
      %2846 = vmatprep.subr.bf16.mxu0 0
      %2847 = vmatpush2.bf16.msra.mxu0 0
      %2848 = vmatprep.subr.bf16.mxu0 0
      %2849 = vmatpush2.bf16.msra.mxu0 0
      %2850 = vmatprep.subr.bf16.mxu0 0
      %2851 = vmatpush2.bf16.msra.mxu0 0
      %2852 = vmatprep.subr.bf16.mxu0 0
      %2853 = vmatpush2.bf16.msra.mxu0 0
      %2854 = vmatprep.subr.bf16.mxu0 0
      %2855 = vmatpush2.bf16.msra.mxu0 0
      %2856 = vmatprep.subr.bf16.mxu0 0
      %2857 = vmatpush2.bf16.msra.mxu0 0
      %2858 = vmatprep.subr.bf16.mxu0 0
      %2859 = vmatpush2.bf16.msra.mxu0 0
      %2860 = vmatprep.subr.bf16.mxu0 0
      %2861 = vmatpush2.bf16.msra.mxu0 0
      %2862 = vmatprep.mubr.bf16.mxu0 0
      %2863 = vmatmul.mubr.bf16.gmra.mxu0 %v2825
      %v2864 = vpop.f32.mrf.mxu0
      %v2865 = vadd.f32 0.0, %v2864
      %v2866 = vpop.f32.mrf.mxu0
      %v2867 = vpop.f32.mrf.mxu0
      %v2868 = vpop.f32.mrf.mxu0
      %2869 = vdwg.mxu0
      %2870 = vrot.lane.b32.xlu0 %v1277, 40
      %v2871 = vpop.permute.xlu0 %2870
      %v2873 = vsel %vm1451, %v2772, 0
      %v2876 = vand.u32 %v2871, %v1458
      %2878 = vmatprep.subr.bf16.mxu0 0
      %2879 = vmatpush1.bf16.msra.mxu0 0
      %2880 = vmatprep.subr.bf16.mxu0 0
      %2881 = vmatpush1.bf16.msra.mxu0 0
      %2882 = vmatprep.subr.bf16.mxu0 0
      %2883 = vmatpush1.bf16.msra.mxu0 0
      %2884 = vmatprep.subr.bf16.mxu0 0
      %2885 = vmatpush1.bf16.msra.mxu0 0
      %2886 = vmatprep.subr.bf16.mxu0 0
      %2887 = vmatpush1.bf16.msra.mxu0 0
      %2888 = vmatprep.subr.bf16.mxu0 0
      %2889 = vmatpush1.bf16.msra.mxu0 0
      %2890 = vmatprep.subr.bf16.mxu0 0
      %2891 = vmatpush1.bf16.msra.mxu0 0
      %2892 = vmatprep.subr.bf16.mxu0 0
      %2893 = vmatpush1.bf16.msra.mxu0 %v2876
      %2894 = vmatprep.subr.bf16.mxu0 0
      %2895 = vmatpush2.bf16.msra.mxu0 0
      %2896 = vmatprep.subr.bf16.mxu0 0
      %2897 = vmatpush2.bf16.msra.mxu0 0
      %2898 = vmatprep.subr.bf16.mxu0 0
      %2899 = vmatpush2.bf16.msra.mxu0 0
      %2900 = vmatprep.subr.bf16.mxu0 0
      %2901 = vmatpush2.bf16.msra.mxu0 0
      %2902 = vmatprep.subr.bf16.mxu0 0
      %2903 = vmatpush2.bf16.msra.mxu0 0
      %2904 = vmatprep.subr.bf16.mxu0 0
      %2905 = vmatpush2.bf16.msra.mxu0 0
      %2906 = vmatprep.subr.bf16.mxu0 0
      %2907 = vmatpush2.bf16.msra.mxu0 0
      %2908 = vmatprep.subr.bf16.mxu0 0
      %2909 = vmatpush2.bf16.msra.mxu0 0
      %2910 = vmatprep.mubr.bf16.mxu0 0
      %2911 = vmatmul.mubr.bf16.gmra.mxu0 %v2873
      %v2912 = vpop.f32.mrf.mxu0
      %v2913 = vadd.f32 0.0, %v2912
      %v2914 = vpop.f32.mrf.mxu0
      %v2915 = vpop.f32.mrf.mxu0
      %v2916 = vpop.f32.mrf.mxu0
      %2917 = vdwg.mxu0
      %2918 = vrot.lane.b32.xlu0 %v1351, 40
      %v2919 = vpop.permute.xlu0 %2918
      %v2921 = vsel %vm1451, %v2773, 0
      %v2924 = vand.u32 %v2919, %v1458
      %2926 = vmatprep.subr.bf16.mxu0 0
      %2927 = vmatpush1.bf16.msra.mxu0 0
      %2928 = vmatprep.subr.bf16.mxu0 0
      %2929 = vmatpush1.bf16.msra.mxu0 0
      %2930 = vmatprep.subr.bf16.mxu0 0
      %2931 = vmatpush1.bf16.msra.mxu0 0
      %2932 = vmatprep.subr.bf16.mxu0 0
      %2933 = vmatpush1.bf16.msra.mxu0 0
      %2934 = vmatprep.subr.bf16.mxu0 0
      %2935 = vmatpush1.bf16.msra.mxu0 0
      %2936 = vmatprep.subr.bf16.mxu0 0
      %2937 = vmatpush1.bf16.msra.mxu0 0
      %2938 = vmatprep.subr.bf16.mxu0 0
      %2939 = vmatpush1.bf16.msra.mxu0 0
      %2940 = vmatprep.subr.bf16.mxu0 0
      %2941 = vmatpush1.bf16.msra.mxu0 %v2924
      %2942 = vmatprep.subr.bf16.mxu0 0
      %2943 = vmatpush2.bf16.msra.mxu0 0
      %2944 = vmatprep.subr.bf16.mxu0 0
      %2945 = vmatpush2.bf16.msra.mxu0 0
      %2946 = vmatprep.subr.bf16.mxu0 0
      %2947 = vmatpush2.bf16.msra.mxu0 0
      %2948 = vmatprep.subr.bf16.mxu0 0
      %2949 = vmatpush2.bf16.msra.mxu0 0
      %2950 = vmatprep.subr.bf16.mxu0 0
      %2951 = vmatpush2.bf16.msra.mxu0 0
      %2952 = vmatprep.subr.bf16.mxu0 0
      %2953 = vmatpush2.bf16.msra.mxu0 0
      %2954 = vmatprep.subr.bf16.mxu0 0
      %2955 = vmatpush2.bf16.msra.mxu0 0
      %2956 = vmatprep.subr.bf16.mxu0 0
      %2957 = vmatpush2.bf16.msra.mxu0 0
      %2958 = vmatprep.mubr.bf16.mxu0 0
      %2959 = vmatmul.mubr.bf16.gmra.mxu0 %v2921
      %v2960 = vpop.f32.mrf.mxu0
      %v2961 = vadd.f32 0.0, %v2960
      %v2962 = vpop.f32.mrf.mxu0
      %v2963 = vpop.f32.mrf.mxu0
      %v2964 = vpop.f32.mrf.mxu0
      %2965 = vdwg.mxu0
      %2970 = vrot.lane.b32.xlu0 %v1937, 8
      %v2971 = vpop.permute.xlu0 %2970
      %2972 = vrot.lane.b32.xlu0 %v1985, 8
      %v2973 = vpop.permute.xlu0 %2972
      %2974 = vrot.lane.b32.xlu0 %v2033, 8
      %v2975 = vpop.permute.xlu0 %2974
      %2976 = vrot.lane.b32.xlu0 %v2081, 8
      %v2977 = vpop.permute.xlu0 %2976
      %2986 = vrot.lane.b32.xlu0 %v2377, 16
      %v2987 = vpop.permute.xlu0 %2986
      %2988 = vrot.lane.b32.xlu0 %v2425, 16
      %v2989 = vpop.permute.xlu0 %2988
      %2990 = vrot.lane.b32.xlu0 %v2473, 16
      %v2991 = vpop.permute.xlu0 %2990
      %2992 = vrot.lane.b32.xlu0 %v2521, 16
      %v2993 = vpop.permute.xlu0 %2992
      %3002 = vrot.lane.b32.xlu0 %v2817, 24
      %v3003 = vpop.permute.xlu0 %3002
      %3004 = vrot.lane.b32.xlu0 %v2865, 24
      %v3005 = vpop.permute.xlu0 %3004
      %3006 = vrot.lane.b32.xlu0 %v2913, 24
      %v3007 = vpop.permute.xlu0 %3006
      %3008 = vrot.lane.b32.xlu0 %v2961, 24
      %v3009 = vpop.permute.xlu0 %3008
      %v3014 = vsel %vm1131, %v1497, %v2971
      %v3015 = vsel %vm1131, %v1545, %v2973
      %v3016 = vsel %vm1131, %v1593, %v2975
      %v3017 = vsel %vm1131, %v1641, %v2977
      %vm3018 = vcmask 130048
      %v3019 = vsel %vm3018, %v3014, %v2987
      %v3020 = vsel %vm3018, %v3015, %v2989
      %v3021 = vsel %vm3018, %v3016, %v2991
      %v3022 = vsel %vm3018, %v3017, %v2993
      %vm3023 = vcmask 195584
      %v3024 = vsel %vm3023, %v3019, %v3003
      %v3025 = vsel %vm3023, %v3020, %v3005
      %v3026 = vsel %vm3023, %v3021, %v3007
      %v3027 = vsel %vm3023, %v3022, %v3009
      %v3032 = vcombine.high %v3024, %v3024
      %v3034 = vunpack.c.l.s4 1966171168
      %v3035 = vunpack.c.0.s8 %v3034
      %v3036 = vlaneseq
      %v3037 = vshrl.u32 %v3036, 7
      %v3038 = vsub.s32 %v3035, %v3037
      %v3039 = vrot.slane %v3024, %v3038
      %v3041 = vunpack.c.l.s4 1966171168
      %v3042 = vunpack.c.0.s8 %v3041
      %v3043 = vlaneseq
      %v3044 = vshrl.u32 %v3043, 7
      %v3045 = vsub.s32 %v3042, %v3044
      %v3046 = vrot.slane %v3032, %v3045
      %v3047 = vcombine.high %v3039, %v3039
      %v3049 = vunpack.c.l.s4 1966171168
      %v3050 = vunpack.c.0.s8 %v3049
      %v3051 = vlaneseq
      %v3052 = vshrl.u32 %v3051, 7
      %v3053 = vsub.s32 %v3050, %v3052
      %v3054 = vrot.slane %v3039, %v3053
      %v3056 = vunpack.c.l.s4 1966171168
      %v3057 = vunpack.c.0.s8 %v3056
      %v3058 = vlaneseq
      %v3059 = vshrl.u32 %v3058, 7
      %v3060 = vsub.s32 %v3057, %v3059
      %v3061 = vrot.slane %v3046, %v3060
      %v3063 = vunpack.c.l.s4 1966171168
      %v3064 = vunpack.c.0.s8 %v3063
      %v3065 = vlaneseq
      %v3066 = vshrl.u32 %v3065, 7
      %v3067 = vsub.s32 %v3064, %v3066
      %v3068 = vrot.slane %v3047, %v3067
      %v3069 = vcombine.high %v3054, %v3054
      %v3070 = vcombine.high %v3068, %v3068
      %v3071 = vcombine.high %v3025, %v3025
      %v3073 = vunpack.c.l.s4 1966171168
      %v3074 = vunpack.c.0.s8 %v3073
      %v3075 = vlaneseq
      %v3076 = vshrl.u32 %v3075, 7
      %v3077 = vsub.s32 %v3074, %v3076
      %v3078 = vrot.slane %v3025, %v3077
      %v3080 = vunpack.c.l.s4 1966171168
      %v3081 = vunpack.c.0.s8 %v3080
      %v3082 = vlaneseq
      %v3083 = vshrl.u32 %v3082, 7
      %v3084 = vsub.s32 %v3081, %v3083
      %v3085 = vrot.slane %v3071, %v3084
      %v3086 = vcombine.high %v3078, %v3078
      %v3088 = vunpack.c.l.s4 1966171168
      %v3089 = vunpack.c.0.s8 %v3088
      %v3090 = vlaneseq
      %v3091 = vshrl.u32 %v3090, 7
      %v3092 = vsub.s32 %v3089, %v3091
      %v3093 = vrot.slane %v3078, %v3092
      %v3095 = vunpack.c.l.s4 1966171168
      %v3096 = vunpack.c.0.s8 %v3095
      %v3097 = vlaneseq
      %v3098 = vshrl.u32 %v3097, 7
      %v3099 = vsub.s32 %v3096, %v3098
      %v3100 = vrot.slane %v3085, %v3099
      %v3102 = vunpack.c.l.s4 1966171168
      %v3103 = vunpack.c.0.s8 %v3102
      %v3104 = vlaneseq
      %v3105 = vshrl.u32 %v3104, 7
      %v3106 = vsub.s32 %v3103, %v3105
      %v3107 = vrot.slane %v3086, %v3106
      %v3108 = vcombine.high %v3093, %v3093
      %v3109 = vcombine.high %v3107, %v3107
      %v3110 = vcombine.high %v3026, %v3026
      %v3112 = vunpack.c.l.s4 1966171168
      %v3113 = vunpack.c.0.s8 %v3112
      %v3114 = vlaneseq
      %v3115 = vshrl.u32 %v3114, 7
      %v3116 = vsub.s32 %v3113, %v3115
      %v3117 = vrot.slane %v3026, %v3116
      %v3119 = vunpack.c.l.s4 1966171168
      %v3120 = vunpack.c.0.s8 %v3119
      %v3121 = vlaneseq
      %v3122 = vshrl.u32 %v3121, 7
      %v3123 = vsub.s32 %v3120, %v3122
      %v3124 = vrot.slane %v3110, %v3123
      %v3125 = vcombine.high %v3117, %v3117
      %v3127 = vunpack.c.l.s4 1966171168
      %v3128 = vunpack.c.0.s8 %v3127
      %v3129 = vlaneseq
      %v3130 = vshrl.u32 %v3129, 7
      %v3131 = vsub.s32 %v3128, %v3130
      %v3132 = vrot.slane %v3117, %v3131
      %v3134 = vunpack.c.l.s4 1966171168
      %v3135 = vunpack.c.0.s8 %v3134
      %v3136 = vlaneseq
      %v3137 = vshrl.u32 %v3136, 7
      %v3138 = vsub.s32 %v3135, %v3137
      %v3139 = vrot.slane %v3124, %v3138
      %v3141 = vunpack.c.l.s4 1966171168
      %v3142 = vunpack.c.0.s8 %v3141
      %v3143 = vlaneseq
      %v3144 = vshrl.u32 %v3143, 7
      %v3145 = vsub.s32 %v3142, %v3144
      %v3146 = vrot.slane %v3125, %v3145
      %v3147 = vcombine.high %v3132, %v3132
      %v3148 = vcombine.high %v3146, %v3146
      %v3149 = vcombine.high %v3027, %v3027
      %v3151 = vunpack.c.l.s4 1966171168
      %v3152 = vunpack.c.0.s8 %v3151
      %v3153 = vlaneseq
      %v3154 = vshrl.u32 %v3153, 7
      %v3155 = vsub.s32 %v3152, %v3154
      %v3156 = vrot.slane %v3027, %v3155
      %v3158 = vunpack.c.l.s4 1966171168
      %v3159 = vunpack.c.0.s8 %v3158
      %v3160 = vlaneseq
      %v3161 = vshrl.u32 %v3160, 7
      %v3162 = vsub.s32 %v3159, %v3161
      %v3163 = vrot.slane %v3149, %v3162
      %v3164 = vcombine.high %v3156, %v3156
      %v3166 = vunpack.c.l.s4 1966171168
      %v3167 = vunpack.c.0.s8 %v3166
      %v3168 = vlaneseq
      %v3169 = vshrl.u32 %v3168, 7
      %v3170 = vsub.s32 %v3167, %v3169
      %v3171 = vrot.slane %v3156, %v3170
      %v3173 = vunpack.c.l.s4 1966171168
      %v3174 = vunpack.c.0.s8 %v3173
      %v3175 = vlaneseq
      %v3176 = vshrl.u32 %v3175, 7
      %v3177 = vsub.s32 %v3174, %v3176
      %v3178 = vrot.slane %v3163, %v3177
      %v3180 = vunpack.c.l.s4 1966171168
      %v3181 = vunpack.c.0.s8 %v3180
      %v3182 = vlaneseq
      %v3183 = vshrl.u32 %v3182, 7
      %v3184 = vsub.s32 %v3181, %v3183
      %v3185 = vrot.slane %v3164, %v3184
      %v3186 = vcombine.high %v3171, %v3171
      %v3187 = vcombine.high %v3185, %v3185
      %v3188 = vcombine.low %v3054, %v3068
      %v3189 = vcombine.low %v3069, %v3070
      %v3190 = vcombine.low %v3061, %v3093
      %v3191 = vcombine.low %v3107, %v3108
      %v3193 = vunpack.c.l.s4 1966171168
      %v3194 = vunpack.c.0.s8 %v3193
      %v3195 = vlaneseq
      %v3196 = vshrl.u32 %v3195, 7
      %v3197 = vsub.s32 %v3194, %v3196
      %v3198 = vrot.slane %v3188, %v3197
      %v3200 = vunpack.c.l.s4 1966171168
      %v3201 = vunpack.c.0.s8 %v3200
      %v3202 = vlaneseq
      %v3203 = vshrl.u32 %v3202, 7
      %v3204 = vsub.s32 %v3201, %v3203
      %v3205 = vrot.slane %v3189, %v3204
      %v3207 = vunpack.c.l.s4 1966171168
      %v3208 = vunpack.c.0.s8 %v3207
      %v3209 = vlaneseq
      %v3210 = vshrl.u32 %v3209, 7
      %v3211 = vsub.s32 %v3208, %v3210
      %v3212 = vrot.slane %v3190, %v3211
      %v3214 = vunpack.c.l.s4 1966171168
      %v3215 = vunpack.c.0.s8 %v3214
      %v3216 = vlaneseq
      %v3217 = vshrl.u32 %v3216, 7
      %v3218 = vsub.s32 %v3215, %v3217
      %v3219 = vrot.slane %v3191, %v3218
      %v3220 = vcombine.low %v3198, %v3205
      %v3221 = vcombine.low %v3212, %v3219
      %v3223 = vunpack.c.l.s4 1966171168
      %v3224 = vunpack.c.0.s8 %v3223
      %v3225 = vlaneseq
      %v3226 = vshrl.u32 %v3225, 7
      %v3227 = vsub.s32 %v3224, %v3226
      %v3228 = vrot.slane %v3220, %v3227
      %v3230 = vunpack.c.l.s4 1966171168
      %v3231 = vunpack.c.0.s8 %v3230
      %v3232 = vlaneseq
      %v3233 = vshrl.u32 %v3232, 7
      %v3234 = vsub.s32 %v3231, %v3233
      %v3235 = vrot.slane %v3221, %v3234
      %v3236 = vcombine.low %v3228, %v3235
      %v3237 = vcombine.low %v3109, %v3100
      %v3238 = vcombine.low %v3132, %v3146
      %v3239 = vcombine.low %v3147, %v3148
      %v3240 = vcombine.low %v3139, %v3171
      %v3242 = vunpack.c.l.s4 1966171168
      %v3243 = vunpack.c.0.s8 %v3242
      %v3244 = vlaneseq
      %v3245 = vshrl.u32 %v3244, 7
      %v3246 = vsub.s32 %v3243, %v3245
      %v3247 = vrot.slane %v3237, %v3246
      %v3249 = vunpack.c.l.s4 1966171168
      %v3250 = vunpack.c.0.s8 %v3249
      %v3251 = vlaneseq
      %v3252 = vshrl.u32 %v3251, 7
      %v3253 = vsub.s32 %v3250, %v3252
      %v3254 = vrot.slane %v3238, %v3253
      %v3256 = vunpack.c.l.s4 1966171168
      %v3257 = vunpack.c.0.s8 %v3256
      %v3258 = vlaneseq
      %v3259 = vshrl.u32 %v3258, 7
      %v3260 = vsub.s32 %v3257, %v3259
      %v3261 = vrot.slane %v3239, %v3260
      %v3263 = vunpack.c.l.s4 1966171168
      %v3264 = vunpack.c.0.s8 %v3263
      %v3265 = vlaneseq
      %v3266 = vshrl.u32 %v3265, 7
      %v3267 = vsub.s32 %v3264, %v3266
      %v3268 = vrot.slane %v3240, %v3267
      %v3269 = vcombine.low %v3247, %v3254
      %v3270 = vcombine.low %v3261, %v3268
      %v3272 = vunpack.c.l.s4 1966171168
      %v3273 = vunpack.c.0.s8 %v3272
      %v3274 = vlaneseq
      %v3275 = vshrl.u32 %v3274, 7
      %v3276 = vsub.s32 %v3273, %v3275
      %v3277 = vrot.slane %v3269, %v3276
      %v3279 = vunpack.c.l.s4 1966171168
      %v3280 = vunpack.c.0.s8 %v3279
      %v3281 = vlaneseq
      %v3282 = vshrl.u32 %v3281, 7
      %v3283 = vsub.s32 %v3280, %v3282
      %v3284 = vrot.slane %v3270, %v3283
      %v3285 = vcombine.low %v3277, %v3284
      %v3286 = vcombine.low %v3185, %v3186
      %v3287 = vcombine.low %v3187, %v3178
      %v3289 = vunpack.c.l.s4 1966171168
      %v3290 = vunpack.c.0.s8 %v3289
      %v3291 = vlaneseq
      %v3292 = vshrl.u32 %v3291, 7
      %v3293 = vsub.s32 %v3290, %v3292
      %v3294 = vrot.slane %v3286, %v3293
      %v3296 = vunpack.c.l.s4 1966171168
      %v3297 = vunpack.c.0.s8 %v3296
      %v3298 = vlaneseq
      %v3299 = vshrl.u32 %v3298, 7
      %v3300 = vsub.s32 %v3297, %v3299
      %v3301 = vrot.slane %v3287, %v3300
      %v3302 = vcombine.low %v3294, %v3301
      %v3304 = vunpack.c.l.s4 1966171168
      %v3305 = vunpack.c.0.s8 %v3304
      %v3306 = vlaneseq
      %v3307 = vshrl.u32 %v3306, 7
      %v3308 = vsub.s32 %v3305, %v3307
      %v3309 = vrot.slane %v3302, %v3308
      %v3313 = vpack.c.bf16 %v3285, %v3236
      %v3314 = vpack.c.bf16 %v3309, %v3309
      %v3315 = vld [vmem:[%s616] sm:$0xf]
      %v3316 = vld [vmem:[%s616 + $0x4] sm:$0xf]
      %v3317 = vld [vmem:[%s616 + $0x8] sm:$0xf]
      %v3318 = vld [vmem:[%s616 + $0xc] sm:$0xf]
      %v3323 = vunpack.c.l.b16 %v3315
      %v3324 = vunpack.c.l.b16 %v3316
      %v3325 = vunpack.c.l.b16 %v3317
      %v3326 = vunpack.c.l.b16 %v3318
      %v3327 = vpack.c.b16 %v3324, %v3323
      %v3328 = vpack.c.b16 %v3326, %v3325
      %v3332 = vsel %vm869, %v3313, 0
      %v3335 = vsel %vm869, %v3314, 0
      %3337 = vmatprep.subr.bf16.mxu0 0
      %3338 = vmatpush1.bf16.msra.mxu0 0
      %3339 = vmatprep.subr.bf16.mxu0 0
      %3340 = vmatpush1.bf16.msra.mxu0 0
      %3341 = vmatprep.subr.bf16.mxu0 0
      %3342 = vmatpush1.bf16.msra.mxu0 0
      %3343 = vmatprep.subr.bf16.mxu0 0
      %3344 = vmatpush1.bf16.msra.mxu0 0
      %3345 = vmatprep.subr.bf16.mxu0 0
      %3346 = vmatpush1.bf16.msra.mxu0 0
      %3347 = vmatprep.subr.bf16.mxu0 0
      %3348 = vmatpush1.bf16.msra.mxu0 0
      %3349 = vmatprep.subr.bf16.mxu0 0
      %3350 = vmatpush1.bf16.msra.mxu0 %v3328
      %3351 = vmatprep.subr.bf16.mxu0 0
      %3352 = vmatpush1.bf16.msra.mxu0 %v3327
      %3353 = vmatprep.subr.bf16.mxu0 0
      %3354 = vmatpush2.bf16.msra.mxu0 0
      %3355 = vmatprep.subr.bf16.mxu0 0
      %3356 = vmatpush2.bf16.msra.mxu0 0
      %3357 = vmatprep.subr.bf16.mxu0 0
      %3358 = vmatpush2.bf16.msra.mxu0 0
      %3359 = vmatprep.subr.bf16.mxu0 0
      %3360 = vmatpush2.bf16.msra.mxu0 0
      %3361 = vmatprep.subr.bf16.mxu0 0
      %3362 = vmatpush2.bf16.msra.mxu0 0
      %3363 = vmatprep.subr.bf16.mxu0 0
      %3364 = vmatpush2.bf16.msra.mxu0 0
      %3365 = vmatprep.subr.bf16.mxu0 0
      %3366 = vmatpush2.bf16.msra.mxu0 0
      %3367 = vmatprep.subr.bf16.mxu0 0
      %3368 = vmatpush2.bf16.msra.mxu0 0
      %3369 = vmatprep.mubr.bf16.mxu0 0
      %3370 = vmatmul.mubr.bf16.gmra.mxu0 %v3332
      %v3371 = vpop.f32.mrf.mxu0
      %v3372 = vadd.f32 0.0, %v3371
      %v3373 = vpop.f32.mrf.mxu0
      %v3374 = vpop.f32.mrf.mxu0
      %v3375 = vadd.f32 0.0, %v3374
      %v3376 = vpop.f32.mrf.mxu0
      %3377 = vmatprep.mubr.bf16.mxu0 0
      %3378 = vmatmul.mubr.bf16.gmra.mxu0 %v3335
      %v3379 = vpop.f32.mrf.mxu0
      %v3380 = vadd.f32 0.0, %v3379
      %v3381 = vpop.f32.mrf.mxu0
      %v3382 = vpop.f32.mrf.mxu0
      %v3383 = vpop.f32.mrf.mxu0
      %3384 = vdwg.mxu0
      %v3385 = vadd.f32 %v864, %v3372
      %v3386 = vadd.f32 %v865, %v3375
      %v3387 = vadd.f32 %v866, %v3380
      %v3388 = vld [vmem:[%s619] sm:$0x1]
      %v3390 = vlaneseq
      %v3391 = vshrl.u32 %v3390, 7
      %v3392 = vsub.s32 0, %v3391
      %v3393 = vrot.slane %v3388, %v3392
      %v3395 = vadd.f32 %v3385, %v3393
      %v3396 = vadd.f32 %v3386, %v3393
      %v3397 = vadd.f32 %v3387, %v3393
      %v3398 = vld [vmem:[%s622] sm:$0x1]
      %v3399 = vld [vmem:[%s625] sm:$0x1]
      %v3400 = vsel %vm869, %v3395, 0.0
      %3401 = vadd.xlane.f32.xlu0 %v3400
      %v3402 = vpop.xlane.xlu0 %3401
      %v3403 = vsel %vm869, %v3396, 0.0
      %3404 = vadd.xlane.f32.xlu0 %v3403
      %v3405 = vpop.xlane.xlu0 %3404
      %v3406 = vsel %vm876, %v3397, 0.0
      %3407 = vadd.xlane.f32.xlu0 %v3406
      %v3408 = vpop.xlane.xlu0 %3407
      %v3409 = vmul.f32 %v3402, %v880
      %v3410 = vmul.f32 %v3405, %v880
      %v3411 = vmul.f32 %v3408, %v880
      %v3412 = vsub.f32 %v3395, %v3409
      %v3413 = vsub.f32 %v3396, %v3410
      %v3414 = vsub.f32 %v3397, %v3411
      %v3415 = vmul.f32 %v3412, %v3412
      %v3416 = vmul.f32 %v3413, %v3413
      %v3417 = vmul.f32 %v3414, %v3414
      %v3418 = vsel %vm869, %v3415, 0.0
      %3419 = vadd.xlane.f32.xlu0 %v3418
      %v3420 = vpop.xlane.xlu0 %3419
      %v3421 = vsel %vm869, %v3416, 0.0
      %3422 = vadd.xlane.f32.xlu0 %v3421
      %v3423 = vpop.xlane.xlu0 %3422
      %v3424 = vsel %vm876, %v3417, 0.0
      %3425 = vadd.xlane.f32.xlu0 %v3424
      %v3426 = vpop.xlane.xlu0 %3425
      %v3427 = vmul.f32 %v3420, %v880
      %v3428 = vmul.f32 %v3423, %v880
      %v3429 = vmul.f32 %v3426, %v880
      %v3430 = vadd.f32 %v3427, 1e-05
      %v3431 = vadd.f32 %v3428, 1e-05
      %v3432 = vadd.f32 %v3429, 1e-05
      %v3433 = vrsqrt.pop %v3430
      %v3434 = vrsqrt.pop %v3431
      %v3435 = vrsqrt.pop %v3432
      %v3436 = vmul.f32 %v3412, %v3433
      %v3437 = vmul.f32 %v3413, %v3434
      %v3438 = vmul.f32 %v3414, %v3435
      %v3440 = vlaneseq
      %v3441 = vshrl.u32 %v3440, 7
      %v3442 = vsub.s32 0, %v3441
      %v3443 = vrot.slane %v3398, %v3442
      %v3445 = vmul.f32 %v3436, %v3443
      %v3446 = vmul.f32 %v3437, %v3443
      %v3447 = vmul.f32 %v3438, %v3443
      %v3449 = vlaneseq
      %v3450 = vshrl.u32 %v3449, 7
      %v3451 = vsub.s32 0, %v3450
      %v3452 = vrot.slane %v3399, %v3451
      %v3454 = vadd.f32 %v3445, %v3452
      %v3455 = vadd.f32 %v3446, %v3452
      %v3456 = vadd.f32 %v3447, %v3452
      %v3457 = vpack.c.bf16 %v3455, %v3454
      %v3458 = vpack.c.bf16 %v3456, %v3456
      %v3459 = vld [vmem:[%s630] sm:$0xf]
      %v3460 = vld [vmem:[%s630 + $0x4] sm:$0xf]
      %v3461 = vld [vmem:[%s630 + $0x8] sm:$0xf]
      %v3462 = vld [vmem:[%s630 + $0xc] sm:$0xf]
      %v3463 = vld [vmem:[%s633] sm:$0x1]
      %v3465 = vlaneseq
      %v3466 = vshrl.u32 %v3465, 7
      %v3467 = vsub.s32 0, %v3466
      %v3468 = vrot.slane %v3463, %v3467
      %v3474 = vunpack.c.l.b16 %v3459
      %v3475 = vunpack.c.l.b16 %v3460
      %v3476 = vunpack.c.l.b16 %v3461
      %v3477 = vunpack.c.l.b16 %v3462
      %v3478 = vpack.c.b16 %v3475, %v3474
      %v3479 = vpack.c.b16 %v3477, %v3476
      %v3483 = vsel %vm869, %v3457, 0
      %v3486 = vsel %vm869, %v3458, 0
      %3488 = vmatprep.subr.bf16.mxu0 0
      %3489 = vmatpush1.bf16.msra.mxu0 0
      %3490 = vmatprep.subr.bf16.mxu0 0
      %3491 = vmatpush1.bf16.msra.mxu0 0
      %3492 = vmatprep.subr.bf16.mxu0 0
      %3493 = vmatpush1.bf16.msra.mxu0 0
      %3494 = vmatprep.subr.bf16.mxu0 0
      %3495 = vmatpush1.bf16.msra.mxu0 0
      %3496 = vmatprep.subr.bf16.mxu0 0
      %3497 = vmatpush1.bf16.msra.mxu0 0
      %3498 = vmatprep.subr.bf16.mxu0 0
      %3499 = vmatpush1.bf16.msra.mxu0 0
      %3500 = vmatprep.subr.bf16.mxu0 0
      %3501 = vmatpush1.bf16.msra.mxu0 %v3479
      %3502 = vmatprep.subr.bf16.mxu0 0
      %3503 = vmatpush1.bf16.msra.mxu0 %v3478
      %3504 = vmatprep.subr.bf16.mxu0 0
      %3505 = vmatpush2.bf16.msra.mxu0 0
      %3506 = vmatprep.subr.bf16.mxu0 0
      %3507 = vmatpush2.bf16.msra.mxu0 0
      %3508 = vmatprep.subr.bf16.mxu0 0
      %3509 = vmatpush2.bf16.msra.mxu0 0
      %3510 = vmatprep.subr.bf16.mxu0 0
      %3511 = vmatpush2.bf16.msra.mxu0 0
      %3512 = vmatprep.subr.bf16.mxu0 0
      %3513 = vmatpush2.bf16.msra.mxu0 0
      %3514 = vmatprep.subr.bf16.mxu0 0
      %3515 = vmatpush2.bf16.msra.mxu0 0
      %3516 = vmatprep.subr.bf16.mxu0 0
      %3517 = vmatpush2.bf16.msra.mxu0 0
      %3518 = vmatprep.subr.bf16.mxu0 0
      %3519 = vmatpush2.bf16.msra.mxu0 0
      %3520 = vmatprep.mubr.bf16.mxu0 0
      %3521 = vmatmul.mubr.bf16.gmra.mxu0 %v3483
      %v3522 = vpop.f32.mrf.mxu0
      %v3523 = vadd.f32 %v3468, %v3522
      %v3524 = vpop.f32.mrf.mxu0
      %v3525 = vpop.f32.mrf.mxu0
      %v3526 = vadd.f32 %v3468, %v3525
      %v3527 = vpop.f32.mrf.mxu0
      %3528 = vmatprep.mubr.bf16.mxu0 0
      %3529 = vmatmul.mubr.bf16.gmra.mxu0 %v3486
      %v3530 = vpop.f32.mrf.mxu0
      %v3531 = vadd.f32 %v3468, %v3530
      %v3532 = vpop.f32.mrf.mxu0
      %v3533 = vpop.f32.mrf.mxu0
      %v3534 = vpop.f32.mrf.mxu0
      %3535 = vdwg.mxu0
      %v3536 = vmul.f32 %v3523, %v3523
      %v3537 = vmul.f32 %v3526, %v3526
      %v3538 = vmul.f32 %v3531, %v3531
      %v3539 = vmul.f32 %v3523, %v3536
      %v3540 = vmul.f32 %v3526, %v3537
      %v3541 = vmul.f32 %v3531, %v3538
      %v3542 = vmul.f32 %v3539, 0.044715
      %v3543 = vmul.f32 %v3540, 0.044715
      %v3544 = vmul.f32 %v3541, 0.044715
      %v3545 = vadd.f32 %v3523, %v3542
      %v3546 = vadd.f32 %v3526, %v3543
      %v3547 = vadd.f32 %v3531, %v3544
      %v3548 = vmul.f32 %v3545, 0.7978846
      %v3549 = vmul.f32 %v3546, 0.7978846
      %v3550 = vmul.f32 %v3547, 0.7978846
      %v3551 = vtanh.pop %v3548
      %v3552 = vtanh.pop %v3549
      %v3553 = vtanh.pop %v3550
      %v3554 = vadd.f32 %v3551, 1.0
      %v3555 = vadd.f32 %v3552, 1.0
      %v3556 = vadd.f32 %v3553, 1.0
      %v3557 = vmul.f32 %v3554, 0.5
      %v3558 = vmul.f32 %v3555, 0.5
      %v3559 = vmul.f32 %v3556, 0.5
      %v3560 = vmul.f32 %v3523, %v3557
      %v3561 = vmul.f32 %v3526, %v3558
      %v3562 = vmul.f32 %v3531, %v3559
      %v3563 = vpack.c.bf16 %v3561, %v3560
      %v3564 = vpack.c.bf16 %v3562, %v3562
      %v3565 = vld [vmem:[%s638] sm:$0xf]
      %v3566 = vld [vmem:[%s638 + $0x4] sm:$0xf]
      %v3567 = vld [vmem:[%s638 + $0x8] sm:$0xf]
      %v3568 = vld [vmem:[%s638 + $0xc] sm:$0xf]
      %v3569 = vld [vmem:[%s638 + $0x10] sm:$0xf]
      %v3570 = vld [vmem:[%s638 + $0x14] sm:$0xf]
      %v3571 = vld [vmem:[%s638 + $0x18] sm:$0xf]
      %v3572 = vld [vmem:[%s638 + $0x1c] sm:$0xf]
      %v3573 = vld [vmem:[%s638 + $0x20] sm:$0xf]
      %v3574 = vld [vmem:[%s638 + $0x24] sm:$0xf]
      %v3575 = vld [vmem:[%s638 + $0x28] sm:$0xf]
      %v3576 = vld [vmem:[%s638 + $0x2c] sm:$0xf]
      %v3577 = vld [vmem:[%s638 + $0x30] sm:$0xf]
      %v3578 = vld [vmem:[%s638 + $0x34] sm:$0xf]
      %v3579 = vld [vmem:[%s638 + $0x38] sm:$0xf]
      %v3580 = vld [vmem:[%s638 + $0x3c] sm:$0xf]
      %v3597 = vunpack.c.l.b16 %v3565
      %v3598 = vunpack.c.l.b16 %v3566
      %v3599 = vunpack.c.l.b16 %v3567
      %v3600 = vunpack.c.l.b16 %v3568
      %v3601 = vunpack.c.l.b16 %v3569
      %v3602 = vunpack.c.l.b16 %v3570
      %v3603 = vunpack.c.l.b16 %v3571
      %v3604 = vunpack.c.l.b16 %v3572
      %v3605 = vunpack.c.l.b16 %v3573
      %v3606 = vunpack.c.l.b16 %v3574
      %v3607 = vunpack.c.l.b16 %v3575
      %v3608 = vunpack.c.l.b16 %v3576
      %v3609 = vunpack.c.l.b16 %v3577
      %v3610 = vunpack.c.l.b16 %v3578
      %v3611 = vunpack.c.l.b16 %v3579
      %v3612 = vunpack.c.l.b16 %v3580
      %v3613 = vpack.c.b16 %v3598, %v3597
      %v3614 = vpack.c.b16 %v3600, %v3599
      %v3615 = vpack.c.b16 %v3602, %v3601
      %v3616 = vpack.c.b16 %v3604, %v3603
      %v3617 = vpack.c.b16 %v3606, %v3605
      %v3618 = vpack.c.b16 %v3608, %v3607
      %v3619 = vpack.c.b16 %v3610, %v3609
      %v3620 = vpack.c.b16 %v3612, %v3611
      %3629 = vmatprep.subr.bf16.mxu0 0
      %3630 = vmatpush1.bf16.msra.mxu0 %v3620
      %3631 = vmatprep.subr.bf16.mxu0 0
      %3632 = vmatpush1.bf16.msra.mxu0 %v3619
      %3633 = vmatprep.subr.bf16.mxu0 0
      %3634 = vmatpush1.bf16.msra.mxu0 %v3618
      %3635 = vmatprep.subr.bf16.mxu0 0
      %3636 = vmatpush1.bf16.msra.mxu0 %v3617
      %3637 = vmatprep.subr.bf16.mxu0 0
      %3638 = vmatpush1.bf16.msra.mxu0 %v3616
      %3639 = vmatprep.subr.bf16.mxu0 0
      %3640 = vmatpush1.bf16.msra.mxu0 %v3615
      %3641 = vmatprep.subr.bf16.mxu0 0
      %3642 = vmatpush1.bf16.msra.mxu0 %v3614
      %3643 = vmatprep.subr.bf16.mxu0 0
      %3644 = vmatpush1.bf16.msra.mxu0 %v3613
      %3645 = vmatprep.subr.bf16.mxu0 0
      %3646 = vmatpush2.bf16.msra.mxu0 0
      %3647 = vmatprep.subr.bf16.mxu0 0
      %3648 = vmatpush2.bf16.msra.mxu0 0
      %3649 = vmatprep.subr.bf16.mxu0 0
      %3650 = vmatpush2.bf16.msra.mxu0 0
      %3651 = vmatprep.subr.bf16.mxu0 0
      %3652 = vmatpush2.bf16.msra.mxu0 0
      %3653 = vmatprep.subr.bf16.mxu0 0
      %3654 = vmatpush2.bf16.msra.mxu0 0
      %3655 = vmatprep.subr.bf16.mxu0 0
      %3656 = vmatpush2.bf16.msra.mxu0 0
      %3657 = vmatprep.subr.bf16.mxu0 0
      %3658 = vmatpush2.bf16.msra.mxu0 0
      %3659 = vmatprep.subr.bf16.mxu0 0
      %3660 = vmatpush2.bf16.msra.mxu0 0
      %3661 = vmatprep.mubr.bf16.mxu0 0
      %3662 = vmatmul.mubr.bf16.gmra.mxu0 %v3563
      %v3663 = vpop.f32.mrf.mxu0
      %v3664 = vadd.f32 0.0, %v3663
      %v3665 = vpop.f32.mrf.mxu0
      %v3666 = vpop.f32.mrf.mxu0
      %v3667 = vadd.f32 0.0, %v3666
      %v3668 = vpop.f32.mrf.mxu0
      %3669 = vmatprep.mubr.bf16.mxu0 0
      %3670 = vmatmul.mubr.bf16.gmra.mxu0 %v3564
      %v3671 = vpop.f32.mrf.mxu0
      %v3672 = vadd.f32 0.0, %v3671
      %v3673 = vpop.f32.mrf.mxu0
      %v3674 = vpop.f32.mrf.mxu0
      %v3675 = vpop.f32.mrf.mxu0
      %3676 = vdwg.mxu0
      %v3677 = vadd.f32 %v3395, %v3664
      %v3678 = vadd.f32 %v3396, %v3667
      %v3679 = vadd.f32 %v3397, %v3672
      %v3680 = vld [vmem:[%s641] sm:$0x1]
      %v3682 = vlaneseq
      %v3683 = vshrl.u32 %v3682, 7
      %v3684 = vsub.s32 0, %v3683
      %v3685 = vrot.slane %v3680, %v3684
      %v3687 = vadd.f32 %v3677, %v3685
      %v3688 = vadd.f32 %v3678, %v3685
      %v3689 = vadd.f32 %v3679, %v3685
      %3690 = vst.msk [vmem:[#allocation2] sm:$0xff] %vm869, %v3687
      %3691 = vst.msk [vmem:[#allocation2 + $0x8] sm:$0xff] %vm869, %v3688
      %3692 = vst.msk [vmem:[#allocation2 + $0x10] sm:$0xf] %vm876, %v3689
      %p3693 = scmp.eq.s32.totalorder %s29, 1
      // Predicated region
      $region77: #{_lambda_.5} parent=71 // pred_check
        %p3694 = pneg %p3693
      $region78: #{_lambda_.5} parent=71 // pred_check_branch
        %3696 = sbr.rel (%p3694) target = $region80
      $region79: #{_lambda_.5} parent=71 // pred_region
        %v3700 = vcombine.high %v3687, %v3687
        %v3702 = vunpack.c.l.s4 1966171168
        %v3703 = vunpack.c.0.s8 %v3702
        %v3704 = vlaneseq
        %v3705 = vshrl.u32 %v3704, 7
        %v3706 = vsub.s32 %v3703, %v3705
        %v3707 = vrot.slane %v3687, %v3706
        %v3709 = vunpack.c.l.s4 1966171168
        %v3710 = vunpack.c.0.s8 %v3709
        %v3711 = vlaneseq
        %v3712 = vshrl.u32 %v3711, 7
        %v3713 = vsub.s32 %v3710, %v3712
        %v3714 = vrot.slane %v3700, %v3713
        %v3715 = vcombine.high %v3707, %v3707
        %v3716 = vcombine.high %v3714, %v3714
        %v3718 = vunpack.c.l.s4 1966171168
        %v3719 = vunpack.c.0.s8 %v3718
        %v3720 = vlaneseq
        %v3721 = vshrl.u32 %v3720, 7
        %v3722 = vsub.s32 %v3719, %v3721
        %v3723 = vrot.slane %v3707, %v3722
        %v3725 = vunpack.c.l.s4 1966171168
        %v3726 = vunpack.c.0.s8 %v3725
        %v3727 = vlaneseq
        %v3728 = vshrl.u32 %v3727, 7
        %v3729 = vsub.s32 %v3726, %v3728
        %v3730 = vrot.slane %v3714, %v3729
        %v3732 = vunpack.c.l.s4 1966171168
        %v3733 = vunpack.c.0.s8 %v3732
        %v3734 = vlaneseq
        %v3735 = vshrl.u32 %v3734, 7
        %v3736 = vsub.s32 %v3733, %v3735
        %v3737 = vrot.slane %v3715, %v3736
        %v3739 = vunpack.c.l.s4 1966171168
        %v3740 = vunpack.c.0.s8 %v3739
        %v3741 = vlaneseq
        %v3742 = vshrl.u32 %v3741, 7
        %v3743 = vsub.s32 %v3740, %v3742
        %v3744 = vrot.slane %v3716, %v3743
        %v3745 = vcombine.high %v3723, %v3723
        %v3746 = vcombine.high %v3730, %v3730
        %v3747 = vcombine.high %v3737, %v3737
        %v3748 = vcombine.high %v3744, %v3744
        %v3749 = vcombine.high %v3688, %v3688
        %v3751 = vunpack.c.l.s4 1966171168
        %v3752 = vunpack.c.0.s8 %v3751
        %v3753 = vlaneseq
        %v3754 = vshrl.u32 %v3753, 7
        %v3755 = vsub.s32 %v3752, %v3754
        %v3756 = vrot.slane %v3688, %v3755
        %v3758 = vunpack.c.l.s4 1966171168
        %v3759 = vunpack.c.0.s8 %v3758
        %v3760 = vlaneseq
        %v3761 = vshrl.u32 %v3760, 7
        %v3762 = vsub.s32 %v3759, %v3761
        %v3763 = vrot.slane %v3749, %v3762
        %v3764 = vcombine.high %v3756, %v3756
        %v3765 = vcombine.high %v3763, %v3763
        %v3767 = vunpack.c.l.s4 1966171168
        %v3768 = vunpack.c.0.s8 %v3767
        %v3769 = vlaneseq
        %v3770 = vshrl.u32 %v3769, 7
        %v3771 = vsub.s32 %v3768, %v3770
        %v3772 = vrot.slane %v3756, %v3771
        %v3774 = vunpack.c.l.s4 1966171168
        %v3775 = vunpack.c.0.s8 %v3774
        %v3776 = vlaneseq
        %v3777 = vshrl.u32 %v3776, 7
        %v3778 = vsub.s32 %v3775, %v3777
        %v3779 = vrot.slane %v3763, %v3778
        %v3781 = vunpack.c.l.s4 1966171168
        %v3782 = vunpack.c.0.s8 %v3781
        %v3783 = vlaneseq
        %v3784 = vshrl.u32 %v3783, 7
        %v3785 = vsub.s32 %v3782, %v3784
        %v3786 = vrot.slane %v3764, %v3785
        %v3788 = vunpack.c.l.s4 1966171168
        %v3789 = vunpack.c.0.s8 %v3788
        %v3790 = vlaneseq
        %v3791 = vshrl.u32 %v3790, 7
        %v3792 = vsub.s32 %v3789, %v3791
        %v3793 = vrot.slane %v3765, %v3792
        %v3794 = vcombine.high %v3772, %v3772
        %v3795 = vcombine.high %v3779, %v3779
        %v3796 = vcombine.high %v3786, %v3786
        %v3797 = vcombine.high %v3793, %v3793
        %v3799 = vunpack.c.l.s4 1966171168
        %v3800 = vunpack.c.0.s8 %v3799
        %v3801 = vlaneseq
        %v3802 = vshrl.u32 %v3801, 7
        %v3803 = vsub.s32 %v3800, %v3802
        %v3804 = vrot.slane %v3689, %v3803
        %v3805 = vcombine.high %v3804, %v3804
        %v3807 = vunpack.c.l.s4 1966171168
        %v3808 = vunpack.c.0.s8 %v3807
        %v3809 = vlaneseq
        %v3810 = vshrl.u32 %v3809, 7
        %v3811 = vsub.s32 %v3808, %v3810
        %v3812 = vrot.slane %v3804, %v3811
        %v3814 = vunpack.c.l.s4 1966171168
        %v3815 = vunpack.c.0.s8 %v3814
        %v3816 = vlaneseq
        %v3817 = vshrl.u32 %v3816, 7
        %v3818 = vsub.s32 %v3815, %v3817
        %v3819 = vrot.slane %v3805, %v3818
        %v3820 = vcombine.high %v3812, %v3812
        %v3821 = vcombine.high %v3819, %v3819
        %v3822 = vcombine.low %v3723, %v3737
        %v3823 = vcombine.low %v3745, %v3747
        %v3825 = vunpack.c.l.s4 1966171168
        %v3826 = vunpack.c.0.s8 %v3825
        %v3827 = vlaneseq
        %v3828 = vshrl.u32 %v3827, 7
        %v3829 = vsub.s32 %v3826, %v3828
        %v3830 = vrot.slane %v3822, %v3829
        %v3832 = vunpack.c.l.s4 1966171168
        %v3833 = vunpack.c.0.s8 %v3832
        %v3834 = vlaneseq
        %v3835 = vshrl.u32 %v3834, 7
        %v3836 = vsub.s32 %v3833, %v3835
        %v3837 = vrot.slane %v3823, %v3836
        %v3839 = vunpack.c.l.s4 1966171168
        %v3840 = vunpack.c.0.s8 %v3839
        %v3841 = vlaneseq
        %v3842 = vshrl.u32 %v3841, 7
        %v3843 = vsub.s32 %v3840, %v3842
        %v3844 = vrot.slane %v3730, %v3843
        %v3845 = vcombine.low %v3830, %v3837
        %v3847 = vunpack.c.l.s4 1966171168
        %v3848 = vunpack.c.0.s8 %v3847
        %v3849 = vlaneseq
        %v3850 = vshrl.u32 %v3849, 7
        %v3851 = vsub.s32 %v3848, %v3850
        %v3852 = vrot.slane %v3845, %v3851
        %v3854 = vunpack.c.l.s4 1966171168
        %v3855 = vunpack.c.0.s8 %v3854
        %v3856 = vlaneseq
        %v3857 = vshrl.u32 %v3856, 7
        %v3858 = vsub.s32 %v3855, %v3857
        %v3859 = vrot.slane %v3844, %v3858
        %v3860 = vcombine.low %v3852, %v3859
        %v3861 = vcombine.low %v3744, %v3746
        %v3862 = vcombine.low %v3748, %v3772
        %v3864 = vunpack.c.l.s4 1966171168
        %v3865 = vunpack.c.0.s8 %v3864
        %v3866 = vlaneseq
        %v3867 = vshrl.u32 %v3866, 7
        %v3868 = vsub.s32 %v3865, %v3867
        %v3869 = vrot.slane %v3861, %v3868
        %v3871 = vunpack.c.l.s4 1966171168
        %v3872 = vunpack.c.0.s8 %v3871
        %v3873 = vlaneseq
        %v3874 = vshrl.u32 %v3873, 7
        %v3875 = vsub.s32 %v3872, %v3874
        %v3876 = vrot.slane %v3862, %v3875
        %v3878 = vunpack.c.l.s4 1966171168
        %v3879 = vunpack.c.0.s8 %v3878
        %v3880 = vlaneseq
        %v3881 = vshrl.u32 %v3880, 7
        %v3882 = vsub.s32 %v3879, %v3881
        %v3883 = vrot.slane %v3786, %v3882
        %v3884 = vcombine.low %v3869, %v3876
        %v3886 = vunpack.c.l.s4 1966171168
        %v3887 = vunpack.c.0.s8 %v3886
        %v3888 = vlaneseq
        %v3889 = vshrl.u32 %v3888, 7
        %v3890 = vsub.s32 %v3887, %v3889
        %v3891 = vrot.slane %v3884, %v3890
        %v3893 = vunpack.c.l.s4 1966171168
        %v3894 = vunpack.c.0.s8 %v3893
        %v3895 = vlaneseq
        %v3896 = vshrl.u32 %v3895, 7
        %v3897 = vsub.s32 %v3894, %v3896
        %v3898 = vrot.slane %v3883, %v3897
        %v3899 = vcombine.low %v3891, %v3898
        %v3900 = vcombine.low %v3794, %v3796
        %v3901 = vcombine.low %v3779, %v3793
        %v3903 = vunpack.c.l.s4 1966171168
        %v3904 = vunpack.c.0.s8 %v3903
        %v3905 = vlaneseq
        %v3906 = vshrl.u32 %v3905, 7
        %v3907 = vsub.s32 %v3904, %v3906
        %v3908 = vrot.slane %v3900, %v3907
        %v3910 = vunpack.c.l.s4 1966171168
        %v3911 = vunpack.c.0.s8 %v3910
        %v3912 = vlaneseq
        %v3913 = vshrl.u32 %v3912, 7
        %v3914 = vsub.s32 %v3911, %v3913
        %v3915 = vrot.slane %v3901, %v3914
        %v3917 = vunpack.c.l.s4 1966171168
        %v3918 = vunpack.c.0.s8 %v3917
        %v3919 = vlaneseq
        %v3920 = vshrl.u32 %v3919, 7
        %v3921 = vsub.s32 %v3918, %v3920
        %v3922 = vrot.slane %v3795, %v3921
        %v3923 = vcombine.low %v3908, %v3915
        %v3925 = vunpack.c.l.s4 1966171168
        %v3926 = vunpack.c.0.s8 %v3925
        %v3927 = vlaneseq
        %v3928 = vshrl.u32 %v3927, 7
        %v3929 = vsub.s32 %v3926, %v3928
        %v3930 = vrot.slane %v3923, %v3929
        %v3932 = vunpack.c.l.s4 1966171168
        %v3933 = vunpack.c.0.s8 %v3932
        %v3934 = vlaneseq
        %v3935 = vshrl.u32 %v3934, 7
        %v3936 = vsub.s32 %v3933, %v3935
        %v3937 = vrot.slane %v3922, %v3936
        %v3938 = vcombine.low %v3930, %v3937
        %v3939 = vcombine.low %v3797, %v3812
        %v3940 = vcombine.low %v3819, %v3820
        %v3942 = vunpack.c.l.s4 1966171168
        %v3943 = vunpack.c.0.s8 %v3942
        %v3944 = vlaneseq
        %v3945 = vshrl.u32 %v3944, 7
        %v3946 = vsub.s32 %v3943, %v3945
        %v3947 = vrot.slane %v3939, %v3946
        %v3949 = vunpack.c.l.s4 1966171168
        %v3950 = vunpack.c.0.s8 %v3949
        %v3951 = vlaneseq
        %v3952 = vshrl.u32 %v3951, 7
        %v3953 = vsub.s32 %v3950, %v3952
        %v3954 = vrot.slane %v3940, %v3953
        %v3956 = vunpack.c.l.s4 1966171168
        %v3957 = vunpack.c.0.s8 %v3956
        %v3958 = vlaneseq
        %v3959 = vshrl.u32 %v3958, 7
        %v3960 = vsub.s32 %v3957, %v3959
        %v3961 = vrot.slane %v3821, %v3960
        %v3962 = vcombine.low %v3947, %v3954
        %v3964 = vunpack.c.l.s4 1966171168
        %v3965 = vunpack.c.0.s8 %v3964
        %v3966 = vlaneseq
        %v3967 = vshrl.u32 %v3966, 7
        %v3968 = vsub.s32 %v3965, %v3967
        %v3969 = vrot.slane %v3962, %v3968
        %v3971 = vunpack.c.l.s4 1966171168
        %v3972 = vunpack.c.0.s8 %v3971
        %v3973 = vlaneseq
        %v3974 = vshrl.u32 %v3973, 7
        %v3975 = vsub.s32 %v3972, %v3974
        %v3976 = vrot.slane %v3961, %v3975
        %v3977 = vcombine.low %v3969, %v3976
        %v3982 = vpack.c.bf16 %v3860, %v3860
        %v3983 = vpack.c.bf16 %v3899, %v3899
        %v3984 = vpack.c.bf16 %v3938, %v3938
        %v3985 = vpack.c.bf16 %v3977, %v3977
        %vm3986 = vcmask 256000
        %vm3987 = vsmask.f32 2304
        %vm3988 = vmand %vm3986, %vm3987
        %v3989 = vld [vmem:[%s646] sm:$0x7]
        %v3990 = vsel %vm3988, %v3982, %v3989
        %3991 = vst [vmem:[%s646] sm:$0x7] %v3990
        %v3992 = vld [vmem:[%s646 + $0x4] sm:$0x7]
        %v3993 = vsel %vm3988, %v3983, %v3992
        %3994 = vst [vmem:[%s646 + $0x4] sm:$0x7] %v3993
        %v3995 = vld [vmem:[%s646 + $0x8] sm:$0x7]
        %v3996 = vsel %vm3988, %v3984, %v3995
        %3997 = vst [vmem:[%s646 + $0x8] sm:$0x7] %v3996
        %v3998 = vld [vmem:[%s646 + $0xc] sm:$0x7]
        %v3999 = vsel %vm3988, %v3985, %v3998
        %4000 = vst [vmem:[%s646 + $0xc] sm:$0x7] %v3999
      $region80: #{_lambda_.5} parent=71 // pred_fallthru
        _
      %s4001 = smul.u32 4, %s28
      %p4002 = scmp.lt.s32.totalorder %s4001, 7
      %s4003 = scalar_select %p4002, %s4001, 7
      %s4004 = smul.addr %s4003, 4
      %s4005 = scalar_lea.vmem %s13, %s4004
      // Predicated region
      $region81: #{_lambda_.5} parent=71 // pred_check
        %p4006 = pneg %p392
      $region82: #{_lambda_.5} parent=71 // pred_check_branch
        %4008 = sbr.rel (%p4006) target = $region84
      $region83: #{_lambda_.5} parent=71 // pred_region
        %s4009 = smul.u32 4, %s28
      $region84: #{_lambda_.5} parent=71 // pred_fallthru
        _
    $region72: #{_lambda_.5} parent=5 // pred_fallthru
      _
    %p4010 = scmp.le.s32.totalorder 2, %s19
    // Predicated region
    $region85: #{_lambda_.5} parent=5 // pred_check
      %p4011 = pneg %p4010
    $region86: #{_lambda_.5} parent=5 // pred_check_branch
      %4013 = sbr.rel (%p4011) target = $region88
    $region87: #{_lambda_.5} parent=5 // pred_region
      %s4014 = ssub.s32 %s19, 2
      // Predicated region
      $region89: #{_lambda_.5} parent=87 // pred_check
        %p4015 = pneg %p398
      $region90: #{_lambda_.5} parent=87 // pred_check_branch
        %4017 = sbr.rel (%p4015) target = $region92
      $region91: #{_lambda_.5} parent=87 // pred_region
        %s4018 = smul.u32 4, %s30
        %p4019 = scmp.lt.s32.totalorder %s4018, 7
        %s4020 = scalar_select %p4019, %s4018, 7
        %s4021 = smul.addr %s4020, 4
        %s4022 = scalar_lea.vmem %s13, %s4021
      $region92: #{_lambda_.5} parent=87 // pred_fallthru
        _
    $region88: #{_lambda_.5} parent=5 // pred_fallthru
      _
  $region6: #{_lambda_.5} parent=0 // loop_footer
    %s23 = sadd.s32 1, %s19
  $region7: #{_lambda_.5} parent=0 // loop_footer_branch
    %18 = sbr.rel target = $region3
  $region8: #{_lambda_.5} parent=0 // loop_exit
    _

// kernel: _lambda_.6
$region0: #{_lambda_.6}
  #allocation0 [shape = 'u32[]', space=smem, size = 0x4, offset = 0x4, fixed_abs, tag = 'smem constant byte address 0x4 - core index']
  #allocation1 [shape = 'u32[144,128]{1,0:T(1,128)}', space=vmem, size = 0x12000, scoped, tag = 'internal scratch']
  #allocation2 [shape = 'f32[10,32]{1,0:T(8,128)}', space=vmem, size = 0x2000, scoped, tag = 'scratch operand']
  %s0 = inlined_call_operand.vmem [shape: bf16[2,5,32], index: 0, kind: input, shape index: {}]
  %s1 = inlined_call_operand.vmem [shape: f32[4,1,32], index: 1, kind: input, shape index: {}]
  %s2 = inlined_call_operand.vmem [shape: f32[4,1,32], index: 2, kind: input, shape index: {}]
  %s3 = inlined_call_operand.vmem [shape: bf16[4,32,96], index: 3, kind: input, shape index: {}]
  %s4 = inlined_call_operand.vmem [shape: f32[4,1,96], index: 4, kind: input, shape index: {}]
  %s5 = inlined_call_operand.vmem [shape: bf16[4,32,32], index: 5, kind: input, shape index: {}]
  %s6 = inlined_call_operand.vmem [shape: f32[4,1,32], index: 6, kind: input, shape index: {}]
  %s7 = inlined_call_operand.vmem [shape: f32[4,1,32], index: 7, kind: input, shape index: {}]
  %s8 = inlined_call_operand.vmem [shape: f32[4,1,32], index: 8, kind: input, shape index: {}]
  %s9 = inlined_call_operand.vmem [shape: bf16[4,32,128], index: 9, kind: input, shape index: {}]
  %s10 = inlined_call_operand.vmem [shape: f32[4,1,128], index: 10, kind: input, shape index: {}]
  %s11 = inlined_call_operand.vmem [shape: bf16[4,128,32], index: 11, kind: input, shape index: {}]
  %s12 = inlined_call_operand.vmem [shape: f32[4,1,32], index: 12, kind: input, shape index: {}]
  %s13 = inlined_call_operand.vmem [shape: bf16[2,5,32], index: 13, kind: output, shape index: {}]
  %s14 = sld [smem:[#allocation0]]
  $region93: #{_lambda_.6} parent=0
    _
  %s16 = ssub.s32 1, %s14
  %s17 = scalar_select 0, %s16, %s14
  loop: start=0, step=1, limit=6
  $region2: #{_lambda_.6} parent=0 // loop_pre_header
    _
  $region3: #{_lambda_.6} parent=0 // loop_header
    %s19 = sphi 0, %s23
    %p20 = scmp.ge.s32.totalorder %s19, 6
    %s26 = sphi 0, %s38
    %s27 = sphi 0, %s34
    %s28 = sphi 0, %s26
    %s29 = sphi 0, %s27
    %s30 = sphi 0, %s28
    %s31 = sphi 0, %s29
    %s41 = sphi 0, %s43
    %s44 = sphi 0, %s41
    %s45 = sphi 0, %s44
    %s61 = sphi 0, %s45
    %s67 = sphi 0, %s69
    %s70 = sphi 0, %s67
    %s71 = sphi 0, %s70
    %s87 = sphi 0, %s71
    %s93 = sphi 0, %s95
    %s96 = sphi 0, %s93
    %s97 = sphi 0, %s96
    %s113 = sphi 0, %s97
    %s119 = sphi 0, %s121
    %s122 = sphi 0, %s119
    %s123 = sphi 0, %s122
    %s139 = sphi 0, %s123
    %s145 = sphi 0, %s147
    %s148 = sphi 0, %s145
    %s149 = sphi 0, %s148
    %s165 = sphi 0, %s149
    %s171 = sphi 0, %s173
    %s174 = sphi 0, %s171
    %s175 = sphi 0, %s174
    %s191 = sphi 0, %s175
    %s197 = sphi 0, %s199
    %s200 = sphi 0, %s197
    %s201 = sphi 0, %s200
    %s217 = sphi 0, %s201
    %s223 = sphi 0, %s225
    %s226 = sphi 0, %s223
    %s227 = sphi 0, %s226
    %s243 = sphi 0, %s227
    %s249 = sphi 0, %s251
    %s252 = sphi 0, %s249
    %s253 = sphi 0, %s252
    %s269 = sphi 0, %s253
    %s275 = sphi 0, %s277
    %s278 = sphi 0, %s275
    %s279 = sphi 0, %s278
    %s295 = sphi 0, %s279
    %s301 = sphi 0, %s303
    %s304 = sphi 0, %s301
    %s305 = sphi 0, %s304
    %s321 = sphi 0, %s305
    %s327 = sphi 0, %s329
    %s330 = sphi 0, %s327
    %s331 = sphi 0, %s330
    %s347 = sphi 0, %s331
    %s353 = sphi 0, %s355
    %s356 = sphi 0, %s353
    %s357 = sphi 0, %s356
    %s373 = sphi 0, %s357
    %s379 = sphi 0, %s381
    %s382 = sphi 0, %s379
    %s383 = sphi 0, %s382
    %s399 = sphi 0, %s383
  $region4: #{_lambda_.6} parent=0 // loop_header_branch
    %22 = sbr.rel (%p20) target = $region8
  $region5: #{_lambda_.6} parent=0 // loop_body
    %s24 = ssub.s32 %s19, 1
    %s25 = ssub.s32 %s19, 2
    %s32 = sadd.s32 1, %s27
    %p33 = scmp.ge.s32.totalorder %s32, 4
    %s34 = scalar_select %p33, 0, %s32
    %s35 = sadd.s32 1, %s26
    %s36 = scalar_select %p33, %s35, %s26
    %p37 = scmp.ge.s32.totalorder %s36, 1
    %s38 = scalar_select %p37, 0, %s36
    %s39 = ssub.s32 %s26, %s38
    %p40 = scmp.eq.s32.totalorder %s39, 0
    %s42 = sadd.s32 %s41, 1
    %s43 = scalar_select %p40, %s41, %s42
    %p46 = pneg %p40
    %p47 = scmp.eq.s32.totalorder %s19, 3
    %p48 = por %p46, %p47
    %p49 = scmp.ne.s32.totalorder %s41, %s44
    %p50 = scmp.eq.s32.totalorder %s19, 0
    %p51 = por %p49, %p50
    %p52 = scmp.ne.s32.totalorder %s41, %s44
    %p53 = scmp.eq.s32.totalorder %s24, 3
    %p54 = por %p52, %p53
    %p55 = scmp.ne.s32.totalorder %s44, %s45
    %p56 = scmp.eq.s32.totalorder %s24, 0
    %p57 = por %p55, %p56
    %p58 = scmp.ne.s32.totalorder %s44, %s45
    %p59 = scmp.eq.s32.totalorder %s25, 3
    %p60 = por %p58, %p59
    %p62 = scmp.ne.s32.totalorder %s45, %s61
    %p63 = scmp.eq.s32.totalorder %s25, 0
    %p64 = por %p62, %p63
    %s65 = ssub.s32 %s27, %s34
    %p66 = scmp.eq.s32.totalorder %s65, 0
    %s68 = sadd.s32 %s67, 1
    %s69 = scalar_select %p66, %s67, %s68
    %p72 = pneg %p66
    %p73 = scmp.eq.s32.totalorder %s19, 3
    %p74 = por %p72, %p73
    %p75 = scmp.ne.s32.totalorder %s67, %s70
    %p76 = scmp.eq.s32.totalorder %s19, 0
    %p77 = por %p75, %p76
    %p78 = scmp.ne.s32.totalorder %s67, %s70
    %p79 = scmp.eq.s32.totalorder %s24, 3
    %p80 = por %p78, %p79
    %p81 = scmp.ne.s32.totalorder %s70, %s71
    %p82 = scmp.eq.s32.totalorder %s24, 0
    %p83 = por %p81, %p82
    %p84 = scmp.ne.s32.totalorder %s70, %s71
    %p85 = scmp.eq.s32.totalorder %s25, 3
    %p86 = por %p84, %p85
    %p88 = scmp.ne.s32.totalorder %s71, %s87
    %p89 = scmp.eq.s32.totalorder %s25, 0
    %p90 = por %p88, %p89
    %s91 = ssub.s32 %s27, %s34
    %p92 = scmp.eq.s32.totalorder %s91, 0
    %s94 = sadd.s32 %s93, 1
    %s95 = scalar_select %p92, %s93, %s94
    %p98 = pneg %p92
    %p99 = scmp.eq.s32.totalorder %s19, 3
    %p100 = por %p98, %p99
    %p101 = scmp.ne.s32.totalorder %s93, %s96
    %p102 = scmp.eq.s32.totalorder %s19, 0
    %p103 = por %p101, %p102
    %p104 = scmp.ne.s32.totalorder %s93, %s96
    %p105 = scmp.eq.s32.totalorder %s24, 3
    %p106 = por %p104, %p105
    %p107 = scmp.ne.s32.totalorder %s96, %s97
    %p108 = scmp.eq.s32.totalorder %s24, 0
    %p109 = por %p107, %p108
    %p110 = scmp.ne.s32.totalorder %s96, %s97
    %p111 = scmp.eq.s32.totalorder %s25, 3
    %p112 = por %p110, %p111
    %p114 = scmp.ne.s32.totalorder %s97, %s113
    %p115 = scmp.eq.s32.totalorder %s25, 0
    %p116 = por %p114, %p115
    %s117 = ssub.s32 %s27, %s34
    %p118 = scmp.eq.s32.totalorder %s117, 0
    %s120 = sadd.s32 %s119, 1
    %s121 = scalar_select %p118, %s119, %s120
    %p124 = pneg %p118
    %p125 = scmp.eq.s32.totalorder %s19, 3
    %p126 = por %p124, %p125
    %p127 = scmp.ne.s32.totalorder %s119, %s122
    %p128 = scmp.eq.s32.totalorder %s19, 0
    %p129 = por %p127, %p128
    %p130 = scmp.ne.s32.totalorder %s119, %s122
    %p131 = scmp.eq.s32.totalorder %s24, 3
    %p132 = por %p130, %p131
    %p133 = scmp.ne.s32.totalorder %s122, %s123
    %p134 = scmp.eq.s32.totalorder %s24, 0
    %p135 = por %p133, %p134
    %p136 = scmp.ne.s32.totalorder %s122, %s123
    %p137 = scmp.eq.s32.totalorder %s25, 3
    %p138 = por %p136, %p137
    %p140 = scmp.ne.s32.totalorder %s123, %s139
    %p141 = scmp.eq.s32.totalorder %s25, 0
    %p142 = por %p140, %p141
    %s143 = ssub.s32 %s27, %s34
    %p144 = scmp.eq.s32.totalorder %s143, 0
    %s146 = sadd.s32 %s145, 1
    %s147 = scalar_select %p144, %s145, %s146
    %p150 = pneg %p144
    %p151 = scmp.eq.s32.totalorder %s19, 3
    %p152 = por %p150, %p151
    %p153 = scmp.ne.s32.totalorder %s145, %s148
    %p154 = scmp.eq.s32.totalorder %s19, 0
    %p155 = por %p153, %p154
    %p156 = scmp.ne.s32.totalorder %s145, %s148
    %p157 = scmp.eq.s32.totalorder %s24, 3
    %p158 = por %p156, %p157
    %p159 = scmp.ne.s32.totalorder %s148, %s149
    %p160 = scmp.eq.s32.totalorder %s24, 0
    %p161 = por %p159, %p160
    %p162 = scmp.ne.s32.totalorder %s148, %s149
    %p163 = scmp.eq.s32.totalorder %s25, 3
    %p164 = por %p162, %p163
    %p166 = scmp.ne.s32.totalorder %s149, %s165
    %p167 = scmp.eq.s32.totalorder %s25, 0
    %p168 = por %p166, %p167
    %s169 = ssub.s32 %s27, %s34
    %p170 = scmp.eq.s32.totalorder %s169, 0
    %s172 = sadd.s32 %s171, 1
    %s173 = scalar_select %p170, %s171, %s172
    %p176 = pneg %p170
    %p177 = scmp.eq.s32.totalorder %s19, 3
    %p178 = por %p176, %p177
    %p179 = scmp.ne.s32.totalorder %s171, %s174
    %p180 = scmp.eq.s32.totalorder %s19, 0
    %p181 = por %p179, %p180
    %p182 = scmp.ne.s32.totalorder %s171, %s174
    %p183 = scmp.eq.s32.totalorder %s24, 3
    %p184 = por %p182, %p183
    %p185 = scmp.ne.s32.totalorder %s174, %s175
    %p186 = scmp.eq.s32.totalorder %s24, 0
    %p187 = por %p185, %p186
    %p188 = scmp.ne.s32.totalorder %s174, %s175
    %p189 = scmp.eq.s32.totalorder %s25, 3
    %p190 = por %p188, %p189
    %p192 = scmp.ne.s32.totalorder %s175, %s191
    %p193 = scmp.eq.s32.totalorder %s25, 0
    %p194 = por %p192, %p193
    %s195 = ssub.s32 %s27, %s34
    %p196 = scmp.eq.s32.totalorder %s195, 0
    %s198 = sadd.s32 %s197, 1
    %s199 = scalar_select %p196, %s197, %s198
    %p202 = pneg %p196
    %p203 = scmp.eq.s32.totalorder %s19, 3
    %p204 = por %p202, %p203
    %p205 = scmp.ne.s32.totalorder %s197, %s200
    %p206 = scmp.eq.s32.totalorder %s19, 0
    %p207 = por %p205, %p206
    %p208 = scmp.ne.s32.totalorder %s197, %s200
    %p209 = scmp.eq.s32.totalorder %s24, 3
    %p210 = por %p208, %p209
    %p211 = scmp.ne.s32.totalorder %s200, %s201
    %p212 = scmp.eq.s32.totalorder %s24, 0
    %p213 = por %p211, %p212
    %p214 = scmp.ne.s32.totalorder %s200, %s201
    %p215 = scmp.eq.s32.totalorder %s25, 3
    %p216 = por %p214, %p215
    %p218 = scmp.ne.s32.totalorder %s201, %s217
    %p219 = scmp.eq.s32.totalorder %s25, 0
    %p220 = por %p218, %p219
    %s221 = ssub.s32 %s27, %s34
    %p222 = scmp.eq.s32.totalorder %s221, 0
    %s224 = sadd.s32 %s223, 1
    %s225 = scalar_select %p222, %s223, %s224
    %p228 = pneg %p222
    %p229 = scmp.eq.s32.totalorder %s19, 3
    %p230 = por %p228, %p229
    %p231 = scmp.ne.s32.totalorder %s223, %s226
    %p232 = scmp.eq.s32.totalorder %s19, 0
    %p233 = por %p231, %p232
    %p234 = scmp.ne.s32.totalorder %s223, %s226
    %p235 = scmp.eq.s32.totalorder %s24, 3
    %p236 = por %p234, %p235
    %p237 = scmp.ne.s32.totalorder %s226, %s227
    %p238 = scmp.eq.s32.totalorder %s24, 0
    %p239 = por %p237, %p238
    %p240 = scmp.ne.s32.totalorder %s226, %s227
    %p241 = scmp.eq.s32.totalorder %s25, 3
    %p242 = por %p240, %p241
    %p244 = scmp.ne.s32.totalorder %s227, %s243
    %p245 = scmp.eq.s32.totalorder %s25, 0
    %p246 = por %p244, %p245
    %s247 = ssub.s32 %s27, %s34
    %p248 = scmp.eq.s32.totalorder %s247, 0
    %s250 = sadd.s32 %s249, 1
    %s251 = scalar_select %p248, %s249, %s250
    %p254 = pneg %p248
    %p255 = scmp.eq.s32.totalorder %s19, 3
    %p256 = por %p254, %p255
    %p257 = scmp.ne.s32.totalorder %s249, %s252
    %p258 = scmp.eq.s32.totalorder %s19, 0
    %p259 = por %p257, %p258
    %p260 = scmp.ne.s32.totalorder %s249, %s252
    %p261 = scmp.eq.s32.totalorder %s24, 3
    %p262 = por %p260, %p261
    %p263 = scmp.ne.s32.totalorder %s252, %s253
    %p264 = scmp.eq.s32.totalorder %s24, 0
    %p265 = por %p263, %p264
    %p266 = scmp.ne.s32.totalorder %s252, %s253
    %p267 = scmp.eq.s32.totalorder %s25, 3
    %p268 = por %p266, %p267
    %p270 = scmp.ne.s32.totalorder %s253, %s269
    %p271 = scmp.eq.s32.totalorder %s25, 0
    %p272 = por %p270, %p271
    %s273 = ssub.s32 %s27, %s34
    %p274 = scmp.eq.s32.totalorder %s273, 0
    %s276 = sadd.s32 %s275, 1
    %s277 = scalar_select %p274, %s275, %s276
    %p280 = pneg %p274
    %p281 = scmp.eq.s32.totalorder %s19, 3
    %p282 = por %p280, %p281
    %p283 = scmp.ne.s32.totalorder %s275, %s278
    %p284 = scmp.eq.s32.totalorder %s19, 0
    %p285 = por %p283, %p284
    %p286 = scmp.ne.s32.totalorder %s275, %s278
    %p287 = scmp.eq.s32.totalorder %s24, 3
    %p288 = por %p286, %p287
    %p289 = scmp.ne.s32.totalorder %s278, %s279
    %p290 = scmp.eq.s32.totalorder %s24, 0
    %p291 = por %p289, %p290
    %p292 = scmp.ne.s32.totalorder %s278, %s279
    %p293 = scmp.eq.s32.totalorder %s25, 3
    %p294 = por %p292, %p293
    %p296 = scmp.ne.s32.totalorder %s279, %s295
    %p297 = scmp.eq.s32.totalorder %s25, 0
    %p298 = por %p296, %p297
    %s299 = ssub.s32 %s27, %s34
    %p300 = scmp.eq.s32.totalorder %s299, 0
    %s302 = sadd.s32 %s301, 1
    %s303 = scalar_select %p300, %s301, %s302
    %p306 = pneg %p300
    %p307 = scmp.eq.s32.totalorder %s19, 3
    %p308 = por %p306, %p307
    %p309 = scmp.ne.s32.totalorder %s301, %s304
    %p310 = scmp.eq.s32.totalorder %s19, 0
    %p311 = por %p309, %p310
    %p312 = scmp.ne.s32.totalorder %s301, %s304
    %p313 = scmp.eq.s32.totalorder %s24, 3
    %p314 = por %p312, %p313
    %p315 = scmp.ne.s32.totalorder %s304, %s305
    %p316 = scmp.eq.s32.totalorder %s24, 0
    %p317 = por %p315, %p316
    %p318 = scmp.ne.s32.totalorder %s304, %s305
    %p319 = scmp.eq.s32.totalorder %s25, 3
    %p320 = por %p318, %p319
    %p322 = scmp.ne.s32.totalorder %s305, %s321
    %p323 = scmp.eq.s32.totalorder %s25, 0
    %p324 = por %p322, %p323
    %s325 = ssub.s32 %s27, %s34
    %p326 = scmp.eq.s32.totalorder %s325, 0
    %s328 = sadd.s32 %s327, 1
    %s329 = scalar_select %p326, %s327, %s328
    %p332 = pneg %p326
    %p333 = scmp.eq.s32.totalorder %s19, 3
    %p334 = por %p332, %p333
    %p335 = scmp.ne.s32.totalorder %s327, %s330
    %p336 = scmp.eq.s32.totalorder %s19, 0
    %p337 = por %p335, %p336
    %p338 = scmp.ne.s32.totalorder %s327, %s330
    %p339 = scmp.eq.s32.totalorder %s24, 3
    %p340 = por %p338, %p339
    %p341 = scmp.ne.s32.totalorder %s330, %s331
    %p342 = scmp.eq.s32.totalorder %s24, 0
    %p343 = por %p341, %p342
    %p344 = scmp.ne.s32.totalorder %s330, %s331
    %p345 = scmp.eq.s32.totalorder %s25, 3
    %p346 = por %p344, %p345
    %p348 = scmp.ne.s32.totalorder %s331, %s347
    %p349 = scmp.eq.s32.totalorder %s25, 0
    %p350 = por %p348, %p349
    %s351 = ssub.s32 %s27, %s34
    %p352 = scmp.eq.s32.totalorder %s351, 0
    %s354 = sadd.s32 %s353, 1
    %s355 = scalar_select %p352, %s353, %s354
    %p358 = pneg %p352
    %p359 = scmp.eq.s32.totalorder %s19, 3
    %p360 = por %p358, %p359
    %p361 = scmp.ne.s32.totalorder %s353, %s356
    %p362 = scmp.eq.s32.totalorder %s19, 0
    %p363 = por %p361, %p362
    %p364 = scmp.ne.s32.totalorder %s353, %s356
    %p365 = scmp.eq.s32.totalorder %s24, 3
    %p366 = por %p364, %p365
    %p367 = scmp.ne.s32.totalorder %s356, %s357
    %p368 = scmp.eq.s32.totalorder %s24, 0
    %p369 = por %p367, %p368
    %p370 = scmp.ne.s32.totalorder %s356, %s357
    %p371 = scmp.eq.s32.totalorder %s25, 3
    %p372 = por %p370, %p371
    %p374 = scmp.ne.s32.totalorder %s357, %s373
    %p375 = scmp.eq.s32.totalorder %s25, 0
    %p376 = por %p374, %p375
    %s377 = ssub.s32 %s26, %s38
    %p378 = scmp.eq.s32.totalorder %s377, 0
    %s380 = sadd.s32 %s379, 1
    %s381 = scalar_select %p378, %s379, %s380
    %p384 = pneg %p378
    %p385 = scmp.eq.s32.totalorder %s19, 3
    %p386 = por %p384, %p385
    %p387 = scmp.ne.s32.totalorder %s379, %s382
    %p388 = scmp.eq.s32.totalorder %s19, 0
    %p389 = por %p387, %p388
    %p390 = scmp.ne.s32.totalorder %s379, %s382
    %p391 = scmp.eq.s32.totalorder %s24, 3
    %p392 = por %p390, %p391
    %p393 = scmp.ne.s32.totalorder %s382, %s383
    %p394 = scmp.eq.s32.totalorder %s24, 0
    %p395 = por %p393, %p394
    %p396 = scmp.ne.s32.totalorder %s382, %s383
    %p397 = scmp.eq.s32.totalorder %s25, 3
    %p398 = por %p396, %p397
    %p400 = scmp.ne.s32.totalorder %s383, %s399
    %p401 = scmp.eq.s32.totalorder %s25, 0
    %p402 = por %p400, %p401
    %p403 = scmp.le.s32.totalorder 1, %s19
    %p404 = scmp.lt.s32.totalorder %s19, 5
    %p405 = pnand %p403, %p404
    %p406 = pneg %p405
    // Predicated region
    $region9: #{_lambda_.6} parent=5 // pred_check
      _
    $region10: #{_lambda_.6} parent=5 // pred_check_branch
      %408 = sbr.rel (%p405) target = $region12
    $region11: #{_lambda_.6} parent=5 // pred_region
      %s409 = ssub.s32 %s19, 1
      // Predicated region
      $region13: #{_lambda_.6} parent=11 // pred_check
        %p410 = pneg %p57
      $region14: #{_lambda_.6} parent=11 // pred_check_branch
        %412 = sbr.rel (%p410) target = $region16
      $region15: #{_lambda_.6} parent=11 // pred_region
        %s413 = smul.u32 2, %s28
        %p414 = scmp.lt.s32.totalorder %s413, 1
        %s415 = scalar_select %p414, %s413, 1
        %s416 = smul.addr %s415, 4
        %s417 = scalar_lea.vmem %s0, %s416
        %s418 = smul.u32 2, %s28
      $region16: #{_lambda_.6} parent=11 // pred_fallthru
        _
    $region12: #{_lambda_.6} parent=5 // pred_fallthru
      _
    %p419 = scmp.lt.s32.totalorder %s19, 4
    // Predicated region
    $region17: #{_lambda_.6} parent=5 // pred_check
      %p420 = pneg %p419
    $region18: #{_lambda_.6} parent=5 // pred_check_branch
      %422 = sbr.rel (%p420) target = $region20
    $region19: #{_lambda_.6} parent=5 // pred_region
      // Predicated region
      $region21: #{_lambda_.6} parent=19 // pred_check
        %p423 = pneg %p77
      $region22: #{_lambda_.6} parent=19 // pred_check_branch
        %425 = sbr.rel (%p423) target = $region24
      $region23: #{_lambda_.6} parent=19 // pred_region
        %p426 = scmp.lt.s32.totalorder %s27, 3
        %s427 = scalar_select %p426, %s27, 3
        %s428 = scalar_lea.vmem %s1, %s427
      $region24: #{_lambda_.6} parent=19 // pred_fallthru
        _
      // Predicated region
      $region25: #{_lambda_.6} parent=19 // pred_check
        %p429 = pneg %p103
      $region26: #{_lambda_.6} parent=19 // pred_check_branch
        %431 = sbr.rel (%p429) target = $region28
      $region27: #{_lambda_.6} parent=19 // pred_region
        %p432 = scmp.lt.s32.totalorder %s27, 3
        %s433 = scalar_select %p432, %s27, 3
        %s434 = scalar_lea.vmem %s2, %s433
      $region28: #{_lambda_.6} parent=19 // pred_fallthru
        _
      // Predicated region
      $region29: #{_lambda_.6} parent=19 // pred_check
        %p435 = pneg %p129
      $region30: #{_lambda_.6} parent=19 // pred_check_branch
        %437 = sbr.rel (%p435) target = $region32
      $region31: #{_lambda_.6} parent=19 // pred_region
        %p438 = scmp.lt.s32.totalorder %s27, 3
        %s439 = scalar_select %p438, %s27, 3
        %s440 = smul.addr %s439, 4
        %s441 = smul.addr %s440, 4
        %s442 = scalar_lea.vmem %s3, %s441
      $region32: #{_lambda_.6} parent=19 // pred_fallthru
        _
      // Predicated region
      $region33: #{_lambda_.6} parent=19 // pred_check
        %p443 = pneg %p155
      $region34: #{_lambda_.6} parent=19 // pred_check_branch
        %445 = sbr.rel (%p443) target = $region36
      $region35: #{_lambda_.6} parent=19 // pred_region
        %p446 = scmp.lt.s32.totalorder %s27, 3
        %s447 = scalar_select %p446, %s27, 3
        %s448 = scalar_lea.vmem %s4, %s447
      $region36: #{_lambda_.6} parent=19 // pred_fallthru
        _
      // Predicated region
      $region37: #{_lambda_.6} parent=19 // pred_check
        %p449 = pneg %p181
      $region38: #{_lambda_.6} parent=19 // pred_check_branch
        %451 = sbr.rel (%p449) target = $region40
      $region39: #{_lambda_.6} parent=19 // pred_region
        %p452 = scmp.lt.s32.totalorder %s27, 3
        %s453 = scalar_select %p452, %s27, 3
        %s454 = smul.addr %s453, 4
        %s455 = smul.addr %s454, 4
        %s456 = scalar_lea.vmem %s5, %s455
      $region40: #{_lambda_.6} parent=19 // pred_fallthru
        _
      // Predicated region
      $region41: #{_lambda_.6} parent=19 // pred_check
        %p457 = pneg %p207
      $region42: #{_lambda_.6} parent=19 // pred_check_branch
        %459 = sbr.rel (%p457) target = $region44
      $region43: #{_lambda_.6} parent=19 // pred_region
        %p460 = scmp.lt.s32.totalorder %s27, 3
        %s461 = scalar_select %p460, %s27, 3
        %s462 = scalar_lea.vmem %s6, %s461
      $region44: #{_lambda_.6} parent=19 // pred_fallthru
        _
      // Predicated region
      $region45: #{_lambda_.6} parent=19 // pred_check
        %p463 = pneg %p233
      $region46: #{_lambda_.6} parent=19 // pred_check_branch
        %465 = sbr.rel (%p463) target = $region48
      $region47: #{_lambda_.6} parent=19 // pred_region
        %p466 = scmp.lt.s32.totalorder %s27, 3
        %s467 = scalar_select %p466, %s27, 3
        %s468 = scalar_lea.vmem %s7, %s467
      $region48: #{_lambda_.6} parent=19 // pred_fallthru
        _
      // Predicated region
      $region49: #{_lambda_.6} parent=19 // pred_check
        %p469 = pneg %p259
      $region50: #{_lambda_.6} parent=19 // pred_check_branch
        %471 = sbr.rel (%p469) target = $region52
      $region51: #{_lambda_.6} parent=19 // pred_region
        %p472 = scmp.lt.s32.totalorder %s27, 3
        %s473 = scalar_select %p472, %s27, 3
        %s474 = scalar_lea.vmem %s8, %s473
      $region52: #{_lambda_.6} parent=19 // pred_fallthru
        _
      // Predicated region
      $region53: #{_lambda_.6} parent=19 // pred_check
        %p475 = pneg %p285
      $region54: #{_lambda_.6} parent=19 // pred_check_branch
        %477 = sbr.rel (%p475) target = $region56
      $region55: #{_lambda_.6} parent=19 // pred_region
        %p478 = scmp.lt.s32.totalorder %s27, 3
        %s479 = scalar_select %p478, %s27, 3
        %s480 = smul.addr %s479, 4
        %s481 = smul.addr %s480, 4
        %s482 = scalar_lea.vmem %s9, %s481
      $region56: #{_lambda_.6} parent=19 // pred_fallthru
        _
      // Predicated region
      $region57: #{_lambda_.6} parent=19 // pred_check
        %p483 = pneg %p311
      $region58: #{_lambda_.6} parent=19 // pred_check_branch
        %485 = sbr.rel (%p483) target = $region60
      $region59: #{_lambda_.6} parent=19 // pred_region
        %p486 = scmp.lt.s32.totalorder %s27, 3
        %s487 = scalar_select %p486, %s27, 3
        %s488 = scalar_lea.vmem %s10, %s487
      $region60: #{_lambda_.6} parent=19 // pred_fallthru
        _
      // Predicated region
      $region61: #{_lambda_.6} parent=19 // pred_check
        %p489 = pneg %p337
      $region62: #{_lambda_.6} parent=19 // pred_check_branch
        %491 = sbr.rel (%p489) target = $region64
      $region63: #{_lambda_.6} parent=19 // pred_region
        %p492 = scmp.lt.s32.totalorder %s27, 3
        %s493 = scalar_select %p492, %s27, 3
        %s494 = smul.addr %s493, 16
        %s495 = smul.addr %s494, 4
        %s496 = scalar_lea.vmem %s11, %s495
      $region64: #{_lambda_.6} parent=19 // pred_fallthru
        _
      // Predicated region
      $region65: #{_lambda_.6} parent=19 // pred_check
        %p497 = pneg %p363
      $region66: #{_lambda_.6} parent=19 // pred_check_branch
        %499 = sbr.rel (%p497) target = $region68
      $region67: #{_lambda_.6} parent=19 // pred_region
        %p500 = scmp.lt.s32.totalorder %s27, 3
        %s501 = scalar_select %p500, %s27, 3
        %s502 = scalar_lea.vmem %s12, %s501
      $region68: #{_lambda_.6} parent=19 // pred_fallthru
        _
    $region20: #{_lambda_.6} parent=5 // pred_fallthru
      _
    %p503 = scmp.le.s32.totalorder 1, %s19
    %p504 = scmp.lt.s32.totalorder %s19, 5
    %p505 = pnand %p503, %p504
    %p506 = pneg %p505
    // Predicated region
    $region69: #{_lambda_.6} parent=5 // pred_check
      _
    $region70: #{_lambda_.6} parent=5 // pred_check_branch
      %508 = sbr.rel (%p505) target = $region72
    $region71: #{_lambda_.6} parent=5 // pred_region
      %s509 = ssub.s32 %s19, 1
      %s510 = smul.u32 2, %s28
      %p511 = scmp.lt.s32.totalorder %s510, 1
      %s512 = scalar_select %p511, %s510, 1
      %s513 = smul.addr %s512, 4
      %s514 = scalar_lea.vmem %s0, %s513
      %p515 = pneg %p57
      %p516 = pneg %p54
      %p517 = scmp.lt.s32.totalorder %s29, 3
      %s518 = scalar_select %p517, %s29, 3
      %s519 = scalar_lea.vmem %s1, %s518
      %p520 = pneg %p83
      %p521 = pneg %p80
      %p522 = scmp.lt.s32.totalorder %s29, 3
      %s523 = scalar_select %p522, %s29, 3
      %s524 = scalar_lea.vmem %s2, %s523
      %p525 = pneg %p109
      %p526 = pneg %p106
      %p527 = scmp.lt.s32.totalorder %s29, 3
      %s528 = scalar_select %p527, %s29, 3
      %s529 = smul.addr %s528, 4
      %s530 = smul.addr %s529, 4
      %s531 = scalar_lea.vmem %s3, %s530
      %p532 = pneg %p135
      %p533 = pneg %p132
      %p534 = scmp.lt.s32.totalorder %s29, 3
      %s535 = scalar_select %p534, %s29, 3
      %s536 = scalar_lea.vmem %s4, %s535
      %p537 = pneg %p161
      %p538 = pneg %p158
      %p539 = scmp.lt.s32.totalorder %s29, 3
      %s540 = scalar_select %p539, %s29, 3
      %s541 = smul.addr %s540, 4
      %s542 = smul.addr %s541, 4
      %s543 = scalar_lea.vmem %s5, %s542
      %p544 = pneg %p187
      %p545 = pneg %p184
      %p546 = scmp.lt.s32.totalorder %s29, 3
      %s547 = scalar_select %p546, %s29, 3
      %s548 = scalar_lea.vmem %s6, %s547
      %p549 = pneg %p213
      %p550 = pneg %p210
      %p551 = scmp.lt.s32.totalorder %s29, 3
      %s552 = scalar_select %p551, %s29, 3
      %s553 = scalar_lea.vmem %s7, %s552
      %p554 = pneg %p239
      %p555 = pneg %p236
      %p556 = scmp.lt.s32.totalorder %s29, 3
      %s557 = scalar_select %p556, %s29, 3
      %s558 = scalar_lea.vmem %s8, %s557
      %p559 = pneg %p265
      %p560 = pneg %p262
      %p561 = scmp.lt.s32.totalorder %s29, 3
      %s562 = scalar_select %p561, %s29, 3
      %s563 = smul.addr %s562, 4
      %s564 = smul.addr %s563, 4
      %s565 = scalar_lea.vmem %s9, %s564
      %p566 = pneg %p291
      %p567 = pneg %p288
      %p568 = scmp.lt.s32.totalorder %s29, 3
      %s569 = scalar_select %p568, %s29, 3
      %s570 = scalar_lea.vmem %s10, %s569
      %p571 = pneg %p317
      %p572 = pneg %p314
      %p573 = scmp.lt.s32.totalorder %s29, 3
      %s574 = scalar_select %p573, %s29, 3
      %s575 = smul.addr %s574, 16
      %s576 = smul.addr %s575, 4
      %s577 = scalar_lea.vmem %s11, %s576
      %p578 = pneg %p343
      %p579 = pneg %p340
      %p580 = scmp.lt.s32.totalorder %s29, 3
      %s581 = scalar_select %p580, %s29, 3
      %s582 = scalar_lea.vmem %s12, %s581
      %p583 = pneg %p369
      %p584 = pneg %p366
      %p585 = pneg %p395
      %p586 = pneg %p392
      %s587 = smul.u32 2, %s28
      %p588 = scmp.lt.s32.totalorder %s587, 1
      %s589 = scalar_select %p588, %s587, 1
      %s590 = smul.addr %s589, 4
      %s591 = scalar_lea.vmem %s13, %s590
      %s592 = smul.u32 2, %s28
      %p593 = scmp.lt.s32.totalorder %s592, 1
      %s594 = scalar_select %p593, %s592, 1
      %s595 = smul.addr %s594, 4
      %s596 = scalar_lea.vmem %s0, %s595
      %s597 = smul.u32 2, %s28
      %p598 = scmp.lt.s32.totalorder %s29, 3
      %s599 = scalar_select %p598, %s29, 3
      %s600 = scalar_lea.vmem %s1, %s599
      %p601 = scmp.lt.s32.totalorder %s29, 3
      %s602 = scalar_select %p601, %s29, 3
      %s603 = scalar_lea.vmem %s2, %s602
      %p604 = scmp.lt.s32.totalorder %s29, 3
      %s605 = scalar_select %p604, %s29, 3
      %s606 = smul.addr %s605, 4
      %s607 = smul.addr %s606, 4
      %s608 = scalar_lea.vmem %s3, %s607
      %p609 = scmp.lt.s32.totalorder %s29, 3
      %s610 = scalar_select %p609, %s29, 3
      %s611 = scalar_lea.vmem %s4, %s610
      %p612 = scmp.lt.s32.totalorder %s29, 3
      %s613 = scalar_select %p612, %s29, 3
      %s614 = smul.addr %s613, 4
      %s615 = smul.addr %s614, 4
      %s616 = scalar_lea.vmem %s5, %s615
      %p617 = scmp.lt.s32.totalorder %s29, 3
      %s618 = scalar_select %p617, %s29, 3
      %s619 = scalar_lea.vmem %s6, %s618
      %p620 = scmp.lt.s32.totalorder %s29, 3
      %s621 = scalar_select %p620, %s29, 3
      %s622 = scalar_lea.vmem %s7, %s621
      %p623 = scmp.lt.s32.totalorder %s29, 3
      %s624 = scalar_select %p623, %s29, 3
      %s625 = scalar_lea.vmem %s8, %s624
      %p626 = scmp.lt.s32.totalorder %s29, 3
      %s627 = scalar_select %p626, %s29, 3
      %s628 = smul.addr %s627, 4
      %s629 = smul.addr %s628, 4
      %s630 = scalar_lea.vmem %s9, %s629
      %p631 = scmp.lt.s32.totalorder %s29, 3
      %s632 = scalar_select %p631, %s29, 3
      %s633 = scalar_lea.vmem %s10, %s632
      %p634 = scmp.lt.s32.totalorder %s29, 3
      %s635 = scalar_select %p634, %s29, 3
      %s636 = smul.addr %s635, 16
      %s637 = smul.addr %s636, 4
      %s638 = scalar_lea.vmem %s11, %s637
      %p639 = scmp.lt.s32.totalorder %s29, 3
      %s640 = scalar_select %p639, %s29, 3
      %s641 = scalar_lea.vmem %s12, %s640
      %s642 = smul.u32 2, %s28
      %p643 = scmp.lt.s32.totalorder %s642, 1
      %s644 = scalar_select %p643, %s642, 1
      %s645 = smul.addr %s644, 4
      %s646 = scalar_lea.vmem %s13, %s645
      %s647 = smul.u32 2, %s28
      %p649 = scmp.eq.s32.totalorder %s29, 0
      // Predicated region
      $region73: #{_lambda_.6} parent=71 // pred_check
        %p650 = pneg %p649
      $region74: #{_lambda_.6} parent=71 // pred_check_branch
        %652 = sbr.rel (%p650) target = $region76
      $region75: #{_lambda_.6} parent=71 // pred_region
        %v653 = vld [vmem:[%s596] sm:$0x7]
        %v654 = vld [vmem:[%s596 + $0x4] sm:$0x7]
        %v658 = vunpack.c.l.s4 1966171168
        %v659 = vunpack.c.0.s8 %v658
        %v660 = vlaneseq
        %v661 = vshrl.u32 %v660, 7
        %v662 = vsub.s32 %v659, %v661
        %v663 = vrot.slane %v653, %v662
        %v664 = vcombine.high %v663, %v663
        %v666 = vunpack.c.l.s4 1966171168
        %v667 = vunpack.c.0.s8 %v666
        %v668 = vlaneseq
        %v669 = vshrl.u32 %v668, 7
        %v670 = vsub.s32 %v667, %v669
        %v671 = vrot.slane %v663, %v670
        %v673 = vunpack.c.l.s4 1966171168
        %v674 = vunpack.c.0.s8 %v673
        %v675 = vlaneseq
        %v676 = vshrl.u32 %v675, 7
        %v677 = vsub.s32 %v674, %v676
        %v678 = vrot.slane %v664, %v677
        %v679 = vcombine.high %v671, %v671
        %v681 = vunpack.c.l.s4 1966171168
        %v682 = vunpack.c.0.s8 %v681
        %v683 = vlaneseq
        %v684 = vshrl.u32 %v683, 7
        %v685 = vsub.s32 %v682, %v684
        %v686 = vrot.slane %v654, %v685
        %v687 = vcombine.high %v686, %v686
        %v689 = vunpack.c.l.s4 1966171168
        %v690 = vunpack.c.0.s8 %v689
        %v691 = vlaneseq
        %v692 = vshrl.u32 %v691, 7
        %v693 = vsub.s32 %v690, %v692
        %v694 = vrot.slane %v686, %v693
        %v696 = vunpack.c.l.s4 1966171168
        %v697 = vunpack.c.0.s8 %v696
        %v698 = vlaneseq
        %v699 = vshrl.u32 %v698, 7
        %v700 = vsub.s32 %v697, %v699
        %v701 = vrot.slane %v687, %v700
        %v702 = vcombine.high %v694, %v694
        %v703 = vunpack.i.l.s16 %v671
        %v704 = vunpack.i.h.s16 %v671
        %v705 = vunpack.i.l.s16 %v678
        %v706 = vunpack.i.h.s16 %v678
        %v707 = vunpack.i.l.s16 %v679
        %v708 = vunpack.i.l.s16 %v694
        %v709 = vunpack.i.h.s16 %v694
        %v710 = vunpack.i.l.s16 %v701
        %v711 = vunpack.i.h.s16 %v701
        %v712 = vunpack.i.l.s16 %v702
        %v713 = vpack.i.b16 %v704, %v703
        %v714 = vpack.i.b16 %v706, %v705
        %v715 = vpack.i.b16 %v708, %v707
        %v716 = vpack.i.b16 %v710, %v709
        %v717 = vpack.i.b16 %v712, %v711
        %v718 = vcombine.low %v713, %v715
        %v719 = vcombine.low %v714, %v716
        %v721 = vunpack.c.l.s4 1935823168
        %v722 = vunpack.c.0.s8 %v721
        %v723 = vlaneseq
        %v724 = vshrl.u32 %v723, 7
        %v725 = vsub.s32 %v722, %v724
        %v726 = vrot.slane %v718, %v725
        %v728 = vunpack.c.l.s4 1935823168
        %v729 = vunpack.c.0.s8 %v728
        %v730 = vlaneseq
        %v731 = vshrl.u32 %v730, 7
        %v732 = vsub.s32 %v729, %v731
        %v733 = vrot.slane %v719, %v732
        %v734 = vcombine.low %v726, %v733
        %v736 = vunpack.c.l.s4 1935823168
        %v737 = vunpack.c.0.s8 %v736
        %v738 = vlaneseq
        %v739 = vshrl.u32 %v738, 7
        %v740 = vsub.s32 %v737, %v739
        %v741 = vrot.slane %v734, %v740
        %v743 = vunpack.c.l.s4 1935823168
        %v744 = vunpack.c.0.s8 %v743
        %v745 = vlaneseq
        %v746 = vshrl.u32 %v745, 7
        %v747 = vsub.s32 %v744, %v746
        %v748 = vrot.slane %v717, %v747
        %v750 = vunpack.c.l.s4 1935823168
        %v751 = vunpack.c.0.s8 %v750
        %v752 = vlaneseq
        %v753 = vshrl.u32 %v752, 7
        %v754 = vsub.s32 %v751, %v753
        %v755 = vrot.slane %v748, %v754
        %v758 = vunpack.c.l.bf16 %v741
        %v759 = vunpack.c.l.bf16 %v755
        %vm760 = vcmask 261120
        %761 = vst.msk [vmem:[#allocation2] sm:$0xff] %vm760, %v758
        %vm762 = vcmask 254976
        %763 = vst.msk [vmem:[#allocation2 + $0x8] sm:$0x3] %vm762, %v759
      $region76: #{_lambda_.6} parent=71 // pred_fallthru
        _
      %v764 = vld [vmem:[#allocation2] sm:$0xff]
      %v765 = vld [vmem:[#allocation2 + $0x8] sm:$0x3]
      %v766 = vld [vmem:[%s600] sm:$0x1]
      %v767 = vld [vmem:[%s603] sm:$0x1]
      %vm768 = vcmask 261120
      %v769 = vsel %vm768, %v764, 0.0
      %770 = vadd.xlane.f32.xlu0 %v769
      %v771 = vpop.xlane.xlu0 %770
      %vm772 = vcmask 254976
      %v773 = vsel %vm772, %v765, 0.0
      %774 = vadd.xlane.f32.xlu0 %v773
      %v775 = vpop.xlane.xlu0 %774
      %v776 = vrcp.pop 32.0
      %v777 = vmul.f32 %v771, %v776
      %v778 = vmul.f32 %v775, %v776
      %v779 = vsub.f32 %v764, %v777
      %v780 = vsub.f32 %v765, %v778
      %v781 = vmul.f32 %v779, %v779
      %v782 = vmul.f32 %v780, %v780
      %v783 = vsel %vm768, %v781, 0.0
      %784 = vadd.xlane.f32.xlu0 %v783
      %v785 = vpop.xlane.xlu0 %784
      %v786 = vsel %vm772, %v782, 0.0
      %787 = vadd.xlane.f32.xlu0 %v786
      %v788 = vpop.xlane.xlu0 %787
      %v789 = vmul.f32 %v785, %v776
      %v790 = vmul.f32 %v788, %v776
      %v791 = vadd.f32 %v789, 1e-05
      %v792 = vadd.f32 %v790, 1e-05
      %v793 = vrsqrt.pop %v791
      %v794 = vrsqrt.pop %v792
      %v795 = vmul.f32 %v779, %v793
      %v796 = vmul.f32 %v780, %v794
      %v798 = vlaneseq
      %v799 = vshrl.u32 %v798, 7
      %v800 = vsub.s32 0, %v799
      %v801 = vrot.slane %v766, %v800
      %v803 = vmul.f32 %v795, %v801
      %v804 = vmul.f32 %v796, %v801
      %v806 = vlaneseq
      %v807 = vshrl.u32 %v806, 7
      %v808 = vsub.s32 0, %v807
      %v809 = vrot.slane %v767, %v808
      %v811 = vadd.f32 %v803, %v809
      %v812 = vadd.f32 %v804, %v809
      %v813 = vpack.c.bf16 %v812, %v811
      %v814 = vld [vmem:[%s608] sm:$0xf]
      %v815 = vld [vmem:[%s608 + $0x4] sm:$0xf]
      %v816 = vld [vmem:[%s608 + $0x8] sm:$0xf]
      %v817 = vld [vmem:[%s608 + $0xc] sm:$0xf]
      %v818 = vld [vmem:[%s611] sm:$0x1]
      %v820 = vlaneseq
      %v821 = vshrl.u32 %v820, 7
      %v822 = vsub.s32 0, %v821
      %v823 = vrot.slane %v818, %v822
      %v829 = vunpack.c.l.b16 %v814
      %v830 = vunpack.c.l.b16 %v815
      %v831 = vunpack.c.l.b16 %v816
      %v832 = vunpack.c.l.b16 %v817
      %v833 = vpack.c.b16 %v830, %v829
      %v834 = vpack.c.b16 %v832, %v831
      %v838 = vsel %vm768, %v813, 0
      %840 = vmatprep.subr.bf16.mxu0 0
      %841 = vmatpush1.bf16.msra.mxu0 0
      %842 = vmatprep.subr.bf16.mxu0 0
      %843 = vmatpush1.bf16.msra.mxu0 0
      %844 = vmatprep.subr.bf16.mxu0 0
      %845 = vmatpush1.bf16.msra.mxu0 0
      %846 = vmatprep.subr.bf16.mxu0 0
      %847 = vmatpush1.bf16.msra.mxu0 0
      %848 = vmatprep.subr.bf16.mxu0 0
      %849 = vmatpush1.bf16.msra.mxu0 0
      %850 = vmatprep.subr.bf16.mxu0 0
      %851 = vmatpush1.bf16.msra.mxu0 0
      %852 = vmatprep.subr.bf16.mxu0 0
      %853 = vmatpush1.bf16.msra.mxu0 %v834
      %854 = vmatprep.subr.bf16.mxu0 0
      %855 = vmatpush1.bf16.msra.mxu0 %v833
      %856 = vmatprep.subr.bf16.mxu0 0
      %857 = vmatpush2.bf16.msra.mxu0 0
      %858 = vmatprep.subr.bf16.mxu0 0
      %859 = vmatpush2.bf16.msra.mxu0 0
      %860 = vmatprep.subr.bf16.mxu0 0
      %861 = vmatpush2.bf16.msra.mxu0 0
      %862 = vmatprep.subr.bf16.mxu0 0
      %863 = vmatpush2.bf16.msra.mxu0 0
      %864 = vmatprep.subr.bf16.mxu0 0
      %865 = vmatpush2.bf16.msra.mxu0 0
      %866 = vmatprep.subr.bf16.mxu0 0
      %867 = vmatpush2.bf16.msra.mxu0 0
      %868 = vmatprep.subr.bf16.mxu0 0
      %869 = vmatpush2.bf16.msra.mxu0 0
      %870 = vmatprep.subr.bf16.mxu0 0
      %871 = vmatpush2.bf16.msra.mxu0 0
      %872 = vmatprep.mubr.bf16.mxu0 0
      %873 = vmatmul.mubr.bf16.gmra.mxu0 %v838
      %v874 = vpop.f32.mrf.mxu0
      %v875 = vadd.f32 %v823, %v874
      %v876 = vpop.f32.mrf.mxu0
      %v877 = vpop.f32.mrf.mxu0
      %v878 = vadd.f32 %v823, %v877
      %v879 = vpop.f32.mrf.mxu0
      %880 = vdwg.mxu0
      %v881 = vpack.c.bf16 %v878, %v875
      %v883 = vcombine.high %v881, %v881
      %v885 = vunpack.c.l.s4 1966171168
      %v886 = vunpack.c.0.s8 %v885
      %v887 = vlaneseq
      %v888 = vshrl.u32 %v887, 7
      %v889 = vsub.s32 %v886, %v888
      %v890 = vrot.slane %v881, %v889
      %v892 = vunpack.c.l.s4 1966171168
      %v893 = vunpack.c.0.s8 %v892
      %v894 = vlaneseq
      %v895 = vshrl.u32 %v894, 7
      %v896 = vsub.s32 %v893, %v895
      %v897 = vrot.slane %v883, %v896
      %v898 = vcombine.high %v890, %v890
      %v900 = vunpack.c.l.s4 1966171168
      %v901 = vunpack.c.0.s8 %v900
      %v902 = vlaneseq
      %v903 = vshrl.u32 %v902, 7
      %v904 = vsub.s32 %v901, %v903
      %v905 = vrot.slane %v890, %v904
      %v907 = vunpack.c.l.s4 1966171168
      %v908 = vunpack.c.0.s8 %v907
      %v909 = vlaneseq
      %v910 = vshrl.u32 %v909, 7
      %v911 = vsub.s32 %v908, %v910
      %v912 = vrot.slane %v897, %v911
      %v914 = vunpack.c.l.s4 1966171168
      %v915 = vunpack.c.0.s8 %v914
      %v916 = vlaneseq
      %v917 = vshrl.u32 %v916, 7
      %v918 = vsub.s32 %v915, %v917
      %v919 = vrot.slane %v898, %v918
      %v920 = vcombine.high %v905, %v905
      %v921 = vcombine.high %v919, %v919
      %v922 = vunpack.i.l.s16 %v905
      %v923 = vunpack.i.h.s16 %v905
      %v924 = vunpack.i.l.s16 %v919
      %v925 = vunpack.i.h.s16 %v919
      %v926 = vunpack.i.l.s16 %v920
      %v927 = vunpack.i.h.s16 %v920
      %v928 = vunpack.i.l.s16 %v921
      %v929 = vunpack.i.h.s16 %v921
      %v930 = vunpack.i.l.s16 %v912
      %v931 = vunpack.i.h.s16 %v912
      %v932 = vpack.i.b16 %v923, %v922
      %v933 = vpack.i.b16 %v925, %v924
      %v935 = vcombine.low %v932, %v933
      %v937 = vunpack.c.l.s4 1966171168
      %v938 = vunpack.c.0.s8 %v937
      %v939 = vlaneseq
      %v940 = vshrl.u32 %v939, 7
      %v941 = vsub.s32 %v938, %v940
      %v942 = vrot.slane %v935, %v941
      %v944 = vunpack.c.l.s4 1966171168
      %v945 = vunpack.c.0.s8 %v944
      %v946 = vlaneseq
      %v947 = vshrl.u32 %v946, 7
      %v948 = vsub.s32 %v945, %v947
      %v949 = vrot.slane %v926, %v948
      %v950 = vcombine.low %v942, %v949
      %v952 = vunpack.c.l.s4 1966171168
      %v953 = vunpack.c.0.s8 %v952
      %v954 = vlaneseq
      %v955 = vshrl.u32 %v954, 7
      %v956 = vsub.s32 %v953, %v955
      %v957 = vrot.slane %v950, %v956
      %958 = vrot.lane.b32.xlu0 %v957, 96
      %v959 = vpop.permute.xlu0 %958
      %vm960 = vcmask 64512
      %v962 = vsel %vm960, %v957, 0
      %v965 = vsel %vm960, %v959, 0
      %967 = vmatprep.subr.bf16.mxu0 0
      %968 = vmatpush1.bf16.xpose.msra.mxu0 0
      %969 = vmatprep.subr.bf16.mxu0 0
      %970 = vmatpush1.bf16.xpose.msra.mxu0 0
      %971 = vmatprep.subr.bf16.mxu0 0
      %972 = vmatpush1.bf16.xpose.msra.mxu0 0
      %973 = vmatprep.subr.bf16.mxu0 0
      %974 = vmatpush1.bf16.xpose.msra.mxu0 0
      %975 = vmatprep.subr.bf16.mxu0 0
      %976 = vmatpush1.bf16.xpose.msra.mxu0 0
      %977 = vmatprep.subr.bf16.mxu0 0
      %978 = vmatpush1.bf16.xpose.msra.mxu0 0
      %979 = vmatprep.subr.bf16.mxu0 0
      %980 = vmatpush1.bf16.xpose.msra.mxu0 0
      %981 = vmatprep.subr.bf16.mxu0 0
      %982 = vmatpush1.bf16.xpose.msra.mxu0 %v965
      %983 = vmatprep.subr.bf16.mxu0 0
      %984 = vmatpush2.bf16.xpose.msra.mxu0 0
      %985 = vmatprep.subr.bf16.mxu0 0
      %986 = vmatpush2.bf16.xpose.msra.mxu0 0
      %987 = vmatprep.subr.bf16.mxu0 0
      %988 = vmatpush2.bf16.xpose.msra.mxu0 0
      %989 = vmatprep.subr.bf16.mxu0 0
      %990 = vmatpush2.bf16.xpose.msra.mxu0 0
      %991 = vmatprep.subr.bf16.mxu0 0
      %992 = vmatpush2.bf16.xpose.msra.mxu0 0
      %993 = vmatprep.subr.bf16.mxu0 0
      %994 = vmatpush2.bf16.xpose.msra.mxu0 0
      %995 = vmatprep.subr.bf16.mxu0 0
      %996 = vmatpush2.bf16.xpose.msra.mxu0 0
      %997 = vmatprep.subr.bf16.mxu0 0
      %998 = vmatpush2.bf16.xpose.msra.mxu0 0
      %999 = vmatprep.mubr.bf16.mxu0 0
      %1000 = vmatmul.mubr.bf16.gmra.mxu0 %v962
      %v1001 = vpop.f32.mrf.mxu0
      %v1002 = vadd.f32 0.0, %v1001
      %v1003 = vpop.f32.mrf.mxu0
      %v1004 = vpop.f32.mrf.mxu0
      %v1005 = vpop.f32.mrf.mxu0
      %1006 = vdwg.mxu0
      %v1007 = vpack.i.b16 %v928, %v927
      %v1008 = vpack.i.b16 %v930, %v929
      %v1010 = vcombine.low %v1007, %v1008
      %v1012 = vunpack.c.l.s4 1966171168
      %v1013 = vunpack.c.0.s8 %v1012
      %v1014 = vlaneseq
      %v1015 = vshrl.u32 %v1014, 7
      %v1016 = vsub.s32 %v1013, %v1015
      %v1017 = vrot.slane %v1010, %v1016
      %v1019 = vunpack.c.l.s4 1966171168
      %v1020 = vunpack.c.0.s8 %v1019
      %v1021 = vlaneseq
      %v1022 = vshrl.u32 %v1021, 7
      %v1023 = vsub.s32 %v1020, %v1022
      %v1024 = vrot.slane %v931, %v1023
      %v1025 = vcombine.low %v1017, %v1024
      %v1027 = vunpack.c.l.s4 1966171168
      %v1028 = vunpack.c.0.s8 %v1027
      %v1029 = vlaneseq
      %v1030 = vshrl.u32 %v1029, 7
      %v1031 = vsub.s32 %v1028, %v1030
      %v1032 = vrot.slane %v1025, %v1031
      %1033 = vrot.lane.b32.xlu0 %v1032, 96
      %v1034 = vpop.permute.xlu0 %1033
      %v1036 = vsel %vm960, %v1032, 0
      %v1039 = vsel %vm960, %v1034, 0
      %1041 = vmatprep.subr.bf16.mxu0 0
      %1042 = vmatpush1.bf16.xpose.msra.mxu0 0
      %1043 = vmatprep.subr.bf16.mxu0 0
      %1044 = vmatpush1.bf16.xpose.msra.mxu0 0
      %1045 = vmatprep.subr.bf16.mxu0 0
      %1046 = vmatpush1.bf16.xpose.msra.mxu0 0
      %1047 = vmatprep.subr.bf16.mxu0 0
      %1048 = vmatpush1.bf16.xpose.msra.mxu0 0
      %1049 = vmatprep.subr.bf16.mxu0 0
      %1050 = vmatpush1.bf16.xpose.msra.mxu0 0
      %1051 = vmatprep.subr.bf16.mxu0 0
      %1052 = vmatpush1.bf16.xpose.msra.mxu0 0
      %1053 = vmatprep.subr.bf16.mxu0 0
      %1054 = vmatpush1.bf16.xpose.msra.mxu0 0
      %1055 = vmatprep.subr.bf16.mxu0 0
      %1056 = vmatpush1.bf16.xpose.msra.mxu0 %v1039
      %1057 = vmatprep.subr.bf16.mxu0 0
      %1058 = vmatpush2.bf16.xpose.msra.mxu0 0
      %1059 = vmatprep.subr.bf16.mxu0 0
      %1060 = vmatpush2.bf16.xpose.msra.mxu0 0
      %1061 = vmatprep.subr.bf16.mxu0 0
      %1062 = vmatpush2.bf16.xpose.msra.mxu0 0
      %1063 = vmatprep.subr.bf16.mxu0 0
      %1064 = vmatpush2.bf16.xpose.msra.mxu0 0
      %1065 = vmatprep.subr.bf16.mxu0 0
      %1066 = vmatpush2.bf16.xpose.msra.mxu0 0
      %1067 = vmatprep.subr.bf16.mxu0 0
      %1068 = vmatpush2.bf16.xpose.msra.mxu0 0
      %1069 = vmatprep.subr.bf16.mxu0 0
      %1070 = vmatpush2.bf16.xpose.msra.mxu0 0
      %1071 = vmatprep.subr.bf16.mxu0 0
      %1072 = vmatpush2.bf16.xpose.msra.mxu0 0
      %1073 = vmatprep.mubr.bf16.mxu0 0
      %1074 = vmatmul.mubr.bf16.gmra.mxu0 %v1036
      %v1075 = vpop.f32.mrf.mxu0
      %v1076 = vadd.f32 0.0, %v1075
      %v1077 = vpop.f32.mrf.mxu0
      %v1078 = vpop.f32.mrf.mxu0
      %v1079 = vpop.f32.mrf.mxu0
      %1080 = vdwg.mxu0
      %vm1081 = vcmask 36864
      %v1082 = vsel %vm1081, %v1002, -inf
      %1083 = vmax.xlane.f32.xlu0 %v1082
      %v1084 = vpop.xlane.xlu0 %1083
      %v1085 = vsel %vm1081, %v1076, -inf
      %1086 = vmax.xlane.f32.xlu0 %v1085
      %v1087 = vpop.xlane.xlu0 %1086
      %v1088 = vsub.f32 %v1002, %v1084
      %v1089 = vsub.f32 %v1076, %v1087
      %v1090 = vmul.f32 %v1088, 1.442695
      %v1091 = vpow.pop %v1090
      %v1092 = vmul.f32 %v1089, 1.442695
      %v1093 = vpow.pop %v1092
      %v1094 = vsel %vm1081, %v1091, 0.0
      %1095 = vadd.xlane.f32.xlu0 %v1094
      %v1096 = vpop.xlane.xlu0 %1095
      %v1097 = vsel %vm1081, %v1093, 0.0
      %1098 = vadd.xlane.f32.xlu0 %v1097
      %v1099 = vpop.xlane.xlu0 %1098
      %v1100 = vrcp.pop %v1096
      %v1101 = vrcp.pop %v1099
      %v1102 = vmul.f32 %v1091, %v1100
      %v1103 = vmul.f32 %v1093, %v1101
      %v1104 = vpack.c.bf16 %v1102, %v1102
      %v1105 = vpack.c.bf16 %v1103, %v1103
      %1106 = vrot.lane.b32.xlu0 %v957, 64
      %v1107 = vpop.permute.xlu0 %1106
      %vm1108 = vcmask 39936
      %v1110 = vsel %vm1108, %v1104, 0
      %vm1112 = vcmask 1041408
      %vm1113 = vcmask 1042432
      %v1114 = vsel %vm1112, 4294967295, 65535
      %v1115 = vsel %vm1113, %v1114, 0
      %v1117 = vand.u32 %v1107, %v1115
      %1119 = vmatprep.subr.bf16.mxu0 0
      %1120 = vmatpush1.bf16.msra.mxu0 0
      %1121 = vmatprep.subr.bf16.mxu0 0
      %1122 = vmatpush1.bf16.msra.mxu0 0
      %1123 = vmatprep.subr.bf16.mxu0 0
      %1124 = vmatpush1.bf16.msra.mxu0 0
      %1125 = vmatprep.subr.bf16.mxu0 0
      %1126 = vmatpush1.bf16.msra.mxu0 0
      %1127 = vmatprep.subr.bf16.mxu0 0
      %1128 = vmatpush1.bf16.msra.mxu0 0
      %1129 = vmatprep.subr.bf16.mxu0 0
      %1130 = vmatpush1.bf16.msra.mxu0 0
      %1131 = vmatprep.subr.bf16.mxu0 0
      %1132 = vmatpush1.bf16.msra.mxu0 0
      %1133 = vmatprep.subr.bf16.mxu0 0
      %1134 = vmatpush1.bf16.msra.mxu0 %v1117
      %1135 = vmatprep.subr.bf16.mxu0 0
      %1136 = vmatpush2.bf16.msra.mxu0 0
      %1137 = vmatprep.subr.bf16.mxu0 0
      %1138 = vmatpush2.bf16.msra.mxu0 0
      %1139 = vmatprep.subr.bf16.mxu0 0
      %1140 = vmatpush2.bf16.msra.mxu0 0
      %1141 = vmatprep.subr.bf16.mxu0 0
      %1142 = vmatpush2.bf16.msra.mxu0 0
      %1143 = vmatprep.subr.bf16.mxu0 0
      %1144 = vmatpush2.bf16.msra.mxu0 0
      %1145 = vmatprep.subr.bf16.mxu0 0
      %1146 = vmatpush2.bf16.msra.mxu0 0
      %1147 = vmatprep.subr.bf16.mxu0 0
      %1148 = vmatpush2.bf16.msra.mxu0 0
      %1149 = vmatprep.subr.bf16.mxu0 0
      %1150 = vmatpush2.bf16.msra.mxu0 0
      %1151 = vmatprep.mubr.bf16.mxu0 0
      %1152 = vmatmul.mubr.bf16.gmra.mxu0 %v1110
      %v1153 = vpop.f32.mrf.mxu0
      %v1154 = vadd.f32 0.0, %v1153
      %v1155 = vpop.f32.mrf.mxu0
      %v1156 = vpop.f32.mrf.mxu0
      %v1157 = vpop.f32.mrf.mxu0
      %1158 = vdwg.mxu0
      %1159 = vrot.lane.b32.xlu0 %v1032, 64
      %v1160 = vpop.permute.xlu0 %1159
      %v1162 = vsel %vm1108, %v1105, 0
      %v1165 = vand.u32 %v1160, %v1115
      %1167 = vmatprep.subr.bf16.mxu0 0
      %1168 = vmatpush1.bf16.msra.mxu0 0
      %1169 = vmatprep.subr.bf16.mxu0 0
      %1170 = vmatpush1.bf16.msra.mxu0 0
      %1171 = vmatprep.subr.bf16.mxu0 0
      %1172 = vmatpush1.bf16.msra.mxu0 0
      %1173 = vmatprep.subr.bf16.mxu0 0
      %1174 = vmatpush1.bf16.msra.mxu0 0
      %1175 = vmatprep.subr.bf16.mxu0 0
      %1176 = vmatpush1.bf16.msra.mxu0 0
      %1177 = vmatprep.subr.bf16.mxu0 0
      %1178 = vmatpush1.bf16.msra.mxu0 0
      %1179 = vmatprep.subr.bf16.mxu0 0
      %1180 = vmatpush1.bf16.msra.mxu0 0
      %1181 = vmatprep.subr.bf16.mxu0 0
      %1182 = vmatpush1.bf16.msra.mxu0 %v1165
      %1183 = vmatprep.subr.bf16.mxu0 0
      %1184 = vmatpush2.bf16.msra.mxu0 0
      %1185 = vmatprep.subr.bf16.mxu0 0
      %1186 = vmatpush2.bf16.msra.mxu0 0
      %1187 = vmatprep.subr.bf16.mxu0 0
      %1188 = vmatpush2.bf16.msra.mxu0 0
      %1189 = vmatprep.subr.bf16.mxu0 0
      %1190 = vmatpush2.bf16.msra.mxu0 0
      %1191 = vmatprep.subr.bf16.mxu0 0
      %1192 = vmatpush2.bf16.msra.mxu0 0
      %1193 = vmatprep.subr.bf16.mxu0 0
      %1194 = vmatpush2.bf16.msra.mxu0 0
      %1195 = vmatprep.subr.bf16.mxu0 0
      %1196 = vmatpush2.bf16.msra.mxu0 0
      %1197 = vmatprep.subr.bf16.mxu0 0
      %1198 = vmatpush2.bf16.msra.mxu0 0
      %1199 = vmatprep.mubr.bf16.mxu0 0
      %1200 = vmatmul.mubr.bf16.gmra.mxu0 %v1162
      %v1201 = vpop.f32.mrf.mxu0
      %v1202 = vadd.f32 0.0, %v1201
      %v1203 = vpop.f32.mrf.mxu0
      %v1204 = vpop.f32.mrf.mxu0
      %v1205 = vpop.f32.mrf.mxu0
      %1206 = vdwg.mxu0
      %1207 = vrot.lane.b32.xlu0 %v957, 120
      %v1208 = vpop.permute.xlu0 %1207
      %1209 = vrot.lane.b32.xlu0 %v957, 88
      %v1210 = vpop.permute.xlu0 %1209
      %v1212 = vsel %vm960, %v1208, 0
      %v1215 = vsel %vm960, %v1210, 0
      %1217 = vmatprep.subr.bf16.mxu0 0
      %1218 = vmatpush1.bf16.xpose.msra.mxu0 0
      %1219 = vmatprep.subr.bf16.mxu0 0
      %1220 = vmatpush1.bf16.xpose.msra.mxu0 0
      %1221 = vmatprep.subr.bf16.mxu0 0
      %1222 = vmatpush1.bf16.xpose.msra.mxu0 0
      %1223 = vmatprep.subr.bf16.mxu0 0
      %1224 = vmatpush1.bf16.xpose.msra.mxu0 0
      %1225 = vmatprep.subr.bf16.mxu0 0
      %1226 = vmatpush1.bf16.xpose.msra.mxu0 0
      %1227 = vmatprep.subr.bf16.mxu0 0
      %1228 = vmatpush1.bf16.xpose.msra.mxu0 0
      %1229 = vmatprep.subr.bf16.mxu0 0
      %1230 = vmatpush1.bf16.xpose.msra.mxu0 0
      %1231 = vmatprep.subr.bf16.mxu0 0
      %1232 = vmatpush1.bf16.xpose.msra.mxu0 %v1215
      %1233 = vmatprep.subr.bf16.mxu0 0
      %1234 = vmatpush2.bf16.xpose.msra.mxu0 0
      %1235 = vmatprep.subr.bf16.mxu0 0
      %1236 = vmatpush2.bf16.xpose.msra.mxu0 0
      %1237 = vmatprep.subr.bf16.mxu0 0
      %1238 = vmatpush2.bf16.xpose.msra.mxu0 0
      %1239 = vmatprep.subr.bf16.mxu0 0
      %1240 = vmatpush2.bf16.xpose.msra.mxu0 0
      %1241 = vmatprep.subr.bf16.mxu0 0
      %1242 = vmatpush2.bf16.xpose.msra.mxu0 0
      %1243 = vmatprep.subr.bf16.mxu0 0
      %1244 = vmatpush2.bf16.xpose.msra.mxu0 0
      %1245 = vmatprep.subr.bf16.mxu0 0
      %1246 = vmatpush2.bf16.xpose.msra.mxu0 0
      %1247 = vmatprep.subr.bf16.mxu0 0
      %1248 = vmatpush2.bf16.xpose.msra.mxu0 0
      %1249 = vmatprep.mubr.bf16.mxu0 0
      %1250 = vmatmul.mubr.bf16.gmra.mxu0 %v1212
      %v1251 = vpop.f32.mrf.mxu0
      %v1252 = vadd.f32 0.0, %v1251
      %v1253 = vpop.f32.mrf.mxu0
      %v1254 = vpop.f32.mrf.mxu0
      %v1255 = vpop.f32.mrf.mxu0
      %1256 = vdwg.mxu0
      %1257 = vrot.lane.b32.xlu0 %v1032, 120
      %v1258 = vpop.permute.xlu0 %1257
      %1259 = vrot.lane.b32.xlu0 %v1032, 88
      %v1260 = vpop.permute.xlu0 %1259
      %v1262 = vsel %vm960, %v1258, 0
      %v1265 = vsel %vm960, %v1260, 0
      %1267 = vmatprep.subr.bf16.mxu0 0
      %1268 = vmatpush1.bf16.xpose.msra.mxu0 0
      %1269 = vmatprep.subr.bf16.mxu0 0
      %1270 = vmatpush1.bf16.xpose.msra.mxu0 0
      %1271 = vmatprep.subr.bf16.mxu0 0
      %1272 = vmatpush1.bf16.xpose.msra.mxu0 0
      %1273 = vmatprep.subr.bf16.mxu0 0
      %1274 = vmatpush1.bf16.xpose.msra.mxu0 0
      %1275 = vmatprep.subr.bf16.mxu0 0
      %1276 = vmatpush1.bf16.xpose.msra.mxu0 0
      %1277 = vmatprep.subr.bf16.mxu0 0
      %1278 = vmatpush1.bf16.xpose.msra.mxu0 0
      %1279 = vmatprep.subr.bf16.mxu0 0
      %1280 = vmatpush1.bf16.xpose.msra.mxu0 0
      %1281 = vmatprep.subr.bf16.mxu0 0
      %1282 = vmatpush1.bf16.xpose.msra.mxu0 %v1265
      %1283 = vmatprep.subr.bf16.mxu0 0
      %1284 = vmatpush2.bf16.xpose.msra.mxu0 0
      %1285 = vmatprep.subr.bf16.mxu0 0
      %1286 = vmatpush2.bf16.xpose.msra.mxu0 0
      %1287 = vmatprep.subr.bf16.mxu0 0
      %1288 = vmatpush2.bf16.xpose.msra.mxu0 0
      %1289 = vmatprep.subr.bf16.mxu0 0
      %1290 = vmatpush2.bf16.xpose.msra.mxu0 0
      %1291 = vmatprep.subr.bf16.mxu0 0
      %1292 = vmatpush2.bf16.xpose.msra.mxu0 0
      %1293 = vmatprep.subr.bf16.mxu0 0
      %1294 = vmatpush2.bf16.xpose.msra.mxu0 0
      %1295 = vmatprep.subr.bf16.mxu0 0
      %1296 = vmatpush2.bf16.xpose.msra.mxu0 0
      %1297 = vmatprep.subr.bf16.mxu0 0
      %1298 = vmatpush2.bf16.xpose.msra.mxu0 0
      %1299 = vmatprep.mubr.bf16.mxu0 0
      %1300 = vmatmul.mubr.bf16.gmra.mxu0 %v1262
      %v1301 = vpop.f32.mrf.mxu0
      %v1302 = vadd.f32 0.0, %v1301
      %v1303 = vpop.f32.mrf.mxu0
      %v1304 = vpop.f32.mrf.mxu0
      %v1305 = vpop.f32.mrf.mxu0
      %1306 = vdwg.mxu0
      %v1307 = vsel %vm1081, %v1252, -inf
      %1308 = vmax.xlane.f32.xlu0 %v1307
      %v1309 = vpop.xlane.xlu0 %1308
      %v1310 = vsel %vm1081, %v1302, -inf
      %1311 = vmax.xlane.f32.xlu0 %v1310
      %v1312 = vpop.xlane.xlu0 %1311
      %v1313 = vsub.f32 %v1252, %v1309
      %v1314 = vsub.f32 %v1302, %v1312
      %v1315 = vmul.f32 %v1313, 1.442695
      %v1316 = vpow.pop %v1315
      %v1317 = vmul.f32 %v1314, 1.442695
      %v1318 = vpow.pop %v1317
      %v1319 = vsel %vm1081, %v1316, 0.0
      %1320 = vadd.xlane.f32.xlu0 %v1319
      %v1321 = vpop.xlane.xlu0 %1320
      %v1322 = vsel %vm1081, %v1318, 0.0
      %1323 = vadd.xlane.f32.xlu0 %v1322
      %v1324 = vpop.xlane.xlu0 %1323
      %v1325 = vrcp.pop %v1321
      %v1326 = vrcp.pop %v1324
      %v1327 = vmul.f32 %v1316, %v1325
      %v1328 = vmul.f32 %v1318, %v1326
      %v1329 = vpack.c.bf16 %v1327, %v1327
      %v1330 = vpack.c.bf16 %v1328, %v1328
      %1331 = vrot.lane.b32.xlu0 %v957, 56
      %v1332 = vpop.permute.xlu0 %1331
      %v1334 = vsel %vm1108, %v1329, 0
      %v1337 = vand.u32 %v1332, %v1115
      %1339 = vmatprep.subr.bf16.mxu0 0
      %1340 = vmatpush1.bf16.msra.mxu0 0
      %1341 = vmatprep.subr.bf16.mxu0 0
      %1342 = vmatpush1.bf16.msra.mxu0 0
      %1343 = vmatprep.subr.bf16.mxu0 0
      %1344 = vmatpush1.bf16.msra.mxu0 0
      %1345 = vmatprep.subr.bf16.mxu0 0
      %1346 = vmatpush1.bf16.msra.mxu0 0
      %1347 = vmatprep.subr.bf16.mxu0 0
      %1348 = vmatpush1.bf16.msra.mxu0 0
      %1349 = vmatprep.subr.bf16.mxu0 0
      %1350 = vmatpush1.bf16.msra.mxu0 0
      %1351 = vmatprep.subr.bf16.mxu0 0
      %1352 = vmatpush1.bf16.msra.mxu0 0
      %1353 = vmatprep.subr.bf16.mxu0 0
      %1354 = vmatpush1.bf16.msra.mxu0 %v1337
      %1355 = vmatprep.subr.bf16.mxu0 0
      %1356 = vmatpush2.bf16.msra.mxu0 0
      %1357 = vmatprep.subr.bf16.mxu0 0
      %1358 = vmatpush2.bf16.msra.mxu0 0
      %1359 = vmatprep.subr.bf16.mxu0 0
      %1360 = vmatpush2.bf16.msra.mxu0 0
      %1361 = vmatprep.subr.bf16.mxu0 0
      %1362 = vmatpush2.bf16.msra.mxu0 0
      %1363 = vmatprep.subr.bf16.mxu0 0
      %1364 = vmatpush2.bf16.msra.mxu0 0
      %1365 = vmatprep.subr.bf16.mxu0 0
      %1366 = vmatpush2.bf16.msra.mxu0 0
      %1367 = vmatprep.subr.bf16.mxu0 0
      %1368 = vmatpush2.bf16.msra.mxu0 0
      %1369 = vmatprep.subr.bf16.mxu0 0
      %1370 = vmatpush2.bf16.msra.mxu0 0
      %1371 = vmatprep.mubr.bf16.mxu0 0
      %1372 = vmatmul.mubr.bf16.gmra.mxu0 %v1334
      %v1373 = vpop.f32.mrf.mxu0
      %v1374 = vadd.f32 0.0, %v1373
      %v1375 = vpop.f32.mrf.mxu0
      %v1376 = vpop.f32.mrf.mxu0
      %v1377 = vpop.f32.mrf.mxu0
      %1378 = vdwg.mxu0
      %1379 = vrot.lane.b32.xlu0 %v1032, 56
      %v1380 = vpop.permute.xlu0 %1379
      %v1382 = vsel %vm1108, %v1330, 0
      %v1385 = vand.u32 %v1380, %v1115
      %1387 = vmatprep.subr.bf16.mxu0 0
      %1388 = vmatpush1.bf16.msra.mxu0 0
      %1389 = vmatprep.subr.bf16.mxu0 0
      %1390 = vmatpush1.bf16.msra.mxu0 0
      %1391 = vmatprep.subr.bf16.mxu0 0
      %1392 = vmatpush1.bf16.msra.mxu0 0
      %1393 = vmatprep.subr.bf16.mxu0 0
      %1394 = vmatpush1.bf16.msra.mxu0 0
      %1395 = vmatprep.subr.bf16.mxu0 0
      %1396 = vmatpush1.bf16.msra.mxu0 0
      %1397 = vmatprep.subr.bf16.mxu0 0
      %1398 = vmatpush1.bf16.msra.mxu0 0
      %1399 = vmatprep.subr.bf16.mxu0 0
      %1400 = vmatpush1.bf16.msra.mxu0 0
      %1401 = vmatprep.subr.bf16.mxu0 0
      %1402 = vmatpush1.bf16.msra.mxu0 %v1385
      %1403 = vmatprep.subr.bf16.mxu0 0
      %1404 = vmatpush2.bf16.msra.mxu0 0
      %1405 = vmatprep.subr.bf16.mxu0 0
      %1406 = vmatpush2.bf16.msra.mxu0 0
      %1407 = vmatprep.subr.bf16.mxu0 0
      %1408 = vmatpush2.bf16.msra.mxu0 0
      %1409 = vmatprep.subr.bf16.mxu0 0
      %1410 = vmatpush2.bf16.msra.mxu0 0
      %1411 = vmatprep.subr.bf16.mxu0 0
      %1412 = vmatpush2.bf16.msra.mxu0 0
      %1413 = vmatprep.subr.bf16.mxu0 0
      %1414 = vmatpush2.bf16.msra.mxu0 0
      %1415 = vmatprep.subr.bf16.mxu0 0
      %1416 = vmatpush2.bf16.msra.mxu0 0
      %1417 = vmatprep.subr.bf16.mxu0 0
      %1418 = vmatpush2.bf16.msra.mxu0 0
      %1419 = vmatprep.mubr.bf16.mxu0 0
      %1420 = vmatmul.mubr.bf16.gmra.mxu0 %v1382
      %v1421 = vpop.f32.mrf.mxu0
      %v1422 = vadd.f32 0.0, %v1421
      %v1423 = vpop.f32.mrf.mxu0
      %v1424 = vpop.f32.mrf.mxu0
      %v1425 = vpop.f32.mrf.mxu0
      %1426 = vdwg.mxu0
      %1427 = vrot.lane.b32.xlu0 %v957, 112
      %v1428 = vpop.permute.xlu0 %1427
      %1429 = vrot.lane.b32.xlu0 %v957, 80
      %v1430 = vpop.permute.xlu0 %1429
      %v1432 = vsel %vm960, %v1428, 0
      %v1435 = vsel %vm960, %v1430, 0
      %1437 = vmatprep.subr.bf16.mxu0 0
      %1438 = vmatpush1.bf16.xpose.msra.mxu0 0
      %1439 = vmatprep.subr.bf16.mxu0 0
      %1440 = vmatpush1.bf16.xpose.msra.mxu0 0
      %1441 = vmatprep.subr.bf16.mxu0 0
      %1442 = vmatpush1.bf16.xpose.msra.mxu0 0
      %1443 = vmatprep.subr.bf16.mxu0 0
      %1444 = vmatpush1.bf16.xpose.msra.mxu0 0
      %1445 = vmatprep.subr.bf16.mxu0 0
      %1446 = vmatpush1.bf16.xpose.msra.mxu0 0
      %1447 = vmatprep.subr.bf16.mxu0 0
      %1448 = vmatpush1.bf16.xpose.msra.mxu0 0
      %1449 = vmatprep.subr.bf16.mxu0 0
      %1450 = vmatpush1.bf16.xpose.msra.mxu0 0
      %1451 = vmatprep.subr.bf16.mxu0 0
      %1452 = vmatpush1.bf16.xpose.msra.mxu0 %v1435
      %1453 = vmatprep.subr.bf16.mxu0 0
      %1454 = vmatpush2.bf16.xpose.msra.mxu0 0
      %1455 = vmatprep.subr.bf16.mxu0 0
      %1456 = vmatpush2.bf16.xpose.msra.mxu0 0
      %1457 = vmatprep.subr.bf16.mxu0 0
      %1458 = vmatpush2.bf16.xpose.msra.mxu0 0
      %1459 = vmatprep.subr.bf16.mxu0 0
      %1460 = vmatpush2.bf16.xpose.msra.mxu0 0
      %1461 = vmatprep.subr.bf16.mxu0 0
      %1462 = vmatpush2.bf16.xpose.msra.mxu0 0
      %1463 = vmatprep.subr.bf16.mxu0 0
      %1464 = vmatpush2.bf16.xpose.msra.mxu0 0
      %1465 = vmatprep.subr.bf16.mxu0 0
      %1466 = vmatpush2.bf16.xpose.msra.mxu0 0
      %1467 = vmatprep.subr.bf16.mxu0 0
      %1468 = vmatpush2.bf16.xpose.msra.mxu0 0
      %1469 = vmatprep.mubr.bf16.mxu0 0
      %1470 = vmatmul.mubr.bf16.gmra.mxu0 %v1432
      %v1471 = vpop.f32.mrf.mxu0
      %v1472 = vadd.f32 0.0, %v1471
      %v1473 = vpop.f32.mrf.mxu0
      %v1474 = vpop.f32.mrf.mxu0
      %v1475 = vpop.f32.mrf.mxu0
      %1476 = vdwg.mxu0
      %1477 = vrot.lane.b32.xlu0 %v1032, 112
      %v1478 = vpop.permute.xlu0 %1477
      %1479 = vrot.lane.b32.xlu0 %v1032, 80
      %v1480 = vpop.permute.xlu0 %1479
      %v1482 = vsel %vm960, %v1478, 0
      %v1485 = vsel %vm960, %v1480, 0
      %1487 = vmatprep.subr.bf16.mxu0 0
      %1488 = vmatpush1.bf16.xpose.msra.mxu0 0
      %1489 = vmatprep.subr.bf16.mxu0 0
      %1490 = vmatpush1.bf16.xpose.msra.mxu0 0
      %1491 = vmatprep.subr.bf16.mxu0 0
      %1492 = vmatpush1.bf16.xpose.msra.mxu0 0
      %1493 = vmatprep.subr.bf16.mxu0 0
      %1494 = vmatpush1.bf16.xpose.msra.mxu0 0
      %1495 = vmatprep.subr.bf16.mxu0 0
      %1496 = vmatpush1.bf16.xpose.msra.mxu0 0
      %1497 = vmatprep.subr.bf16.mxu0 0
      %1498 = vmatpush1.bf16.xpose.msra.mxu0 0
      %1499 = vmatprep.subr.bf16.mxu0 0
      %1500 = vmatpush1.bf16.xpose.msra.mxu0 0
      %1501 = vmatprep.subr.bf16.mxu0 0
      %1502 = vmatpush1.bf16.xpose.msra.mxu0 %v1485
      %1503 = vmatprep.subr.bf16.mxu0 0
      %1504 = vmatpush2.bf16.xpose.msra.mxu0 0
      %1505 = vmatprep.subr.bf16.mxu0 0
      %1506 = vmatpush2.bf16.xpose.msra.mxu0 0
      %1507 = vmatprep.subr.bf16.mxu0 0
      %1508 = vmatpush2.bf16.xpose.msra.mxu0 0
      %1509 = vmatprep.subr.bf16.mxu0 0
      %1510 = vmatpush2.bf16.xpose.msra.mxu0 0
      %1511 = vmatprep.subr.bf16.mxu0 0
      %1512 = vmatpush2.bf16.xpose.msra.mxu0 0
      %1513 = vmatprep.subr.bf16.mxu0 0
      %1514 = vmatpush2.bf16.xpose.msra.mxu0 0
      %1515 = vmatprep.subr.bf16.mxu0 0
      %1516 = vmatpush2.bf16.xpose.msra.mxu0 0
      %1517 = vmatprep.subr.bf16.mxu0 0
      %1518 = vmatpush2.bf16.xpose.msra.mxu0 0
      %1519 = vmatprep.mubr.bf16.mxu0 0
      %1520 = vmatmul.mubr.bf16.gmra.mxu0 %v1482
      %v1521 = vpop.f32.mrf.mxu0
      %v1522 = vadd.f32 0.0, %v1521
      %v1523 = vpop.f32.mrf.mxu0
      %v1524 = vpop.f32.mrf.mxu0
      %v1525 = vpop.f32.mrf.mxu0
      %1526 = vdwg.mxu0
      %v1527 = vsel %vm1081, %v1472, -inf
      %1528 = vmax.xlane.f32.xlu0 %v1527
      %v1529 = vpop.xlane.xlu0 %1528
      %v1530 = vsel %vm1081, %v1522, -inf
      %1531 = vmax.xlane.f32.xlu0 %v1530
      %v1532 = vpop.xlane.xlu0 %1531
      %v1533 = vsub.f32 %v1472, %v1529
      %v1534 = vsub.f32 %v1522, %v1532
      %v1535 = vmul.f32 %v1533, 1.442695
      %v1536 = vpow.pop %v1535
      %v1537 = vmul.f32 %v1534, 1.442695
      %v1538 = vpow.pop %v1537
      %v1539 = vsel %vm1081, %v1536, 0.0
      %1540 = vadd.xlane.f32.xlu0 %v1539
      %v1541 = vpop.xlane.xlu0 %1540
      %v1542 = vsel %vm1081, %v1538, 0.0
      %1543 = vadd.xlane.f32.xlu0 %v1542
      %v1544 = vpop.xlane.xlu0 %1543
      %v1545 = vrcp.pop %v1541
      %v1546 = vrcp.pop %v1544
      %v1547 = vmul.f32 %v1536, %v1545
      %v1548 = vmul.f32 %v1538, %v1546
      %v1549 = vpack.c.bf16 %v1547, %v1547
      %v1550 = vpack.c.bf16 %v1548, %v1548
      %1551 = vrot.lane.b32.xlu0 %v957, 48
      %v1552 = vpop.permute.xlu0 %1551
      %v1554 = vsel %vm1108, %v1549, 0
      %v1557 = vand.u32 %v1552, %v1115
      %1559 = vmatprep.subr.bf16.mxu0 0
      %1560 = vmatpush1.bf16.msra.mxu0 0
      %1561 = vmatprep.subr.bf16.mxu0 0
      %1562 = vmatpush1.bf16.msra.mxu0 0
      %1563 = vmatprep.subr.bf16.mxu0 0
      %1564 = vmatpush1.bf16.msra.mxu0 0
      %1565 = vmatprep.subr.bf16.mxu0 0
      %1566 = vmatpush1.bf16.msra.mxu0 0
      %1567 = vmatprep.subr.bf16.mxu0 0
      %1568 = vmatpush1.bf16.msra.mxu0 0
      %1569 = vmatprep.subr.bf16.mxu0 0
      %1570 = vmatpush1.bf16.msra.mxu0 0
      %1571 = vmatprep.subr.bf16.mxu0 0
      %1572 = vmatpush1.bf16.msra.mxu0 0
      %1573 = vmatprep.subr.bf16.mxu0 0
      %1574 = vmatpush1.bf16.msra.mxu0 %v1557
      %1575 = vmatprep.subr.bf16.mxu0 0
      %1576 = vmatpush2.bf16.msra.mxu0 0
      %1577 = vmatprep.subr.bf16.mxu0 0
      %1578 = vmatpush2.bf16.msra.mxu0 0
      %1579 = vmatprep.subr.bf16.mxu0 0
      %1580 = vmatpush2.bf16.msra.mxu0 0
      %1581 = vmatprep.subr.bf16.mxu0 0
      %1582 = vmatpush2.bf16.msra.mxu0 0
      %1583 = vmatprep.subr.bf16.mxu0 0
      %1584 = vmatpush2.bf16.msra.mxu0 0
      %1585 = vmatprep.subr.bf16.mxu0 0
      %1586 = vmatpush2.bf16.msra.mxu0 0
      %1587 = vmatprep.subr.bf16.mxu0 0
      %1588 = vmatpush2.bf16.msra.mxu0 0
      %1589 = vmatprep.subr.bf16.mxu0 0
      %1590 = vmatpush2.bf16.msra.mxu0 0
      %1591 = vmatprep.mubr.bf16.mxu0 0
      %1592 = vmatmul.mubr.bf16.gmra.mxu0 %v1554
      %v1593 = vpop.f32.mrf.mxu0
      %v1594 = vadd.f32 0.0, %v1593
      %v1595 = vpop.f32.mrf.mxu0
      %v1596 = vpop.f32.mrf.mxu0
      %v1597 = vpop.f32.mrf.mxu0
      %1598 = vdwg.mxu0
      %1599 = vrot.lane.b32.xlu0 %v1032, 48
      %v1600 = vpop.permute.xlu0 %1599
      %v1602 = vsel %vm1108, %v1550, 0
      %v1605 = vand.u32 %v1600, %v1115
      %1607 = vmatprep.subr.bf16.mxu0 0
      %1608 = vmatpush1.bf16.msra.mxu0 0
      %1609 = vmatprep.subr.bf16.mxu0 0
      %1610 = vmatpush1.bf16.msra.mxu0 0
      %1611 = vmatprep.subr.bf16.mxu0 0
      %1612 = vmatpush1.bf16.msra.mxu0 0
      %1613 = vmatprep.subr.bf16.mxu0 0
      %1614 = vmatpush1.bf16.msra.mxu0 0
      %1615 = vmatprep.subr.bf16.mxu0 0
      %1616 = vmatpush1.bf16.msra.mxu0 0
      %1617 = vmatprep.subr.bf16.mxu0 0
      %1618 = vmatpush1.bf16.msra.mxu0 0
      %1619 = vmatprep.subr.bf16.mxu0 0
      %1620 = vmatpush1.bf16.msra.mxu0 0
      %1621 = vmatprep.subr.bf16.mxu0 0
      %1622 = vmatpush1.bf16.msra.mxu0 %v1605
      %1623 = vmatprep.subr.bf16.mxu0 0
      %1624 = vmatpush2.bf16.msra.mxu0 0
      %1625 = vmatprep.subr.bf16.mxu0 0
      %1626 = vmatpush2.bf16.msra.mxu0 0
      %1627 = vmatprep.subr.bf16.mxu0 0
      %1628 = vmatpush2.bf16.msra.mxu0 0
      %1629 = vmatprep.subr.bf16.mxu0 0
      %1630 = vmatpush2.bf16.msra.mxu0 0
      %1631 = vmatprep.subr.bf16.mxu0 0
      %1632 = vmatpush2.bf16.msra.mxu0 0
      %1633 = vmatprep.subr.bf16.mxu0 0
      %1634 = vmatpush2.bf16.msra.mxu0 0
      %1635 = vmatprep.subr.bf16.mxu0 0
      %1636 = vmatpush2.bf16.msra.mxu0 0
      %1637 = vmatprep.subr.bf16.mxu0 0
      %1638 = vmatpush2.bf16.msra.mxu0 0
      %1639 = vmatprep.mubr.bf16.mxu0 0
      %1640 = vmatmul.mubr.bf16.gmra.mxu0 %v1602
      %v1641 = vpop.f32.mrf.mxu0
      %v1642 = vadd.f32 0.0, %v1641
      %v1643 = vpop.f32.mrf.mxu0
      %v1644 = vpop.f32.mrf.mxu0
      %v1645 = vpop.f32.mrf.mxu0
      %1646 = vdwg.mxu0
      %1647 = vrot.lane.b32.xlu0 %v957, 104
      %v1648 = vpop.permute.xlu0 %1647
      %1649 = vrot.lane.b32.xlu0 %v957, 72
      %v1650 = vpop.permute.xlu0 %1649
      %v1652 = vsel %vm960, %v1648, 0
      %v1655 = vsel %vm960, %v1650, 0
      %1657 = vmatprep.subr.bf16.mxu0 0
      %1658 = vmatpush1.bf16.xpose.msra.mxu0 0
      %1659 = vmatprep.subr.bf16.mxu0 0
      %1660 = vmatpush1.bf16.xpose.msra.mxu0 0
      %1661 = vmatprep.subr.bf16.mxu0 0
      %1662 = vmatpush1.bf16.xpose.msra.mxu0 0
      %1663 = vmatprep.subr.bf16.mxu0 0
      %1664 = vmatpush1.bf16.xpose.msra.mxu0 0
      %1665 = vmatprep.subr.bf16.mxu0 0
      %1666 = vmatpush1.bf16.xpose.msra.mxu0 0
      %1667 = vmatprep.subr.bf16.mxu0 0
      %1668 = vmatpush1.bf16.xpose.msra.mxu0 0
      %1669 = vmatprep.subr.bf16.mxu0 0
      %1670 = vmatpush1.bf16.xpose.msra.mxu0 0
      %1671 = vmatprep.subr.bf16.mxu0 0
      %1672 = vmatpush1.bf16.xpose.msra.mxu0 %v1655
      %1673 = vmatprep.subr.bf16.mxu0 0
      %1674 = vmatpush2.bf16.xpose.msra.mxu0 0
      %1675 = vmatprep.subr.bf16.mxu0 0
      %1676 = vmatpush2.bf16.xpose.msra.mxu0 0
      %1677 = vmatprep.subr.bf16.mxu0 0
      %1678 = vmatpush2.bf16.xpose.msra.mxu0 0
      %1679 = vmatprep.subr.bf16.mxu0 0
      %1680 = vmatpush2.bf16.xpose.msra.mxu0 0
      %1681 = vmatprep.subr.bf16.mxu0 0
      %1682 = vmatpush2.bf16.xpose.msra.mxu0 0
      %1683 = vmatprep.subr.bf16.mxu0 0
      %1684 = vmatpush2.bf16.xpose.msra.mxu0 0
      %1685 = vmatprep.subr.bf16.mxu0 0
      %1686 = vmatpush2.bf16.xpose.msra.mxu0 0
      %1687 = vmatprep.subr.bf16.mxu0 0
      %1688 = vmatpush2.bf16.xpose.msra.mxu0 0
      %1689 = vmatprep.mubr.bf16.mxu0 0
      %1690 = vmatmul.mubr.bf16.gmra.mxu0 %v1652
      %v1691 = vpop.f32.mrf.mxu0
      %v1692 = vadd.f32 0.0, %v1691
      %v1693 = vpop.f32.mrf.mxu0
      %v1694 = vpop.f32.mrf.mxu0
      %v1695 = vpop.f32.mrf.mxu0
      %1696 = vdwg.mxu0
      %1697 = vrot.lane.b32.xlu0 %v1032, 104
      %v1698 = vpop.permute.xlu0 %1697
      %1699 = vrot.lane.b32.xlu0 %v1032, 72
      %v1700 = vpop.permute.xlu0 %1699
      %v1702 = vsel %vm960, %v1698, 0
      %v1705 = vsel %vm960, %v1700, 0
      %1707 = vmatprep.subr.bf16.mxu0 0
      %1708 = vmatpush1.bf16.xpose.msra.mxu0 0
      %1709 = vmatprep.subr.bf16.mxu0 0
      %1710 = vmatpush1.bf16.xpose.msra.mxu0 0
      %1711 = vmatprep.subr.bf16.mxu0 0
      %1712 = vmatpush1.bf16.xpose.msra.mxu0 0
      %1713 = vmatprep.subr.bf16.mxu0 0
      %1714 = vmatpush1.bf16.xpose.msra.mxu0 0
      %1715 = vmatprep.subr.bf16.mxu0 0
      %1716 = vmatpush1.bf16.xpose.msra.mxu0 0
      %1717 = vmatprep.subr.bf16.mxu0 0
      %1718 = vmatpush1.bf16.xpose.msra.mxu0 0
      %1719 = vmatprep.subr.bf16.mxu0 0
      %1720 = vmatpush1.bf16.xpose.msra.mxu0 0
      %1721 = vmatprep.subr.bf16.mxu0 0
      %1722 = vmatpush1.bf16.xpose.msra.mxu0 %v1705
      %1723 = vmatprep.subr.bf16.mxu0 0
      %1724 = vmatpush2.bf16.xpose.msra.mxu0 0
      %1725 = vmatprep.subr.bf16.mxu0 0
      %1726 = vmatpush2.bf16.xpose.msra.mxu0 0
      %1727 = vmatprep.subr.bf16.mxu0 0
      %1728 = vmatpush2.bf16.xpose.msra.mxu0 0
      %1729 = vmatprep.subr.bf16.mxu0 0
      %1730 = vmatpush2.bf16.xpose.msra.mxu0 0
      %1731 = vmatprep.subr.bf16.mxu0 0
      %1732 = vmatpush2.bf16.xpose.msra.mxu0 0
      %1733 = vmatprep.subr.bf16.mxu0 0
      %1734 = vmatpush2.bf16.xpose.msra.mxu0 0
      %1735 = vmatprep.subr.bf16.mxu0 0
      %1736 = vmatpush2.bf16.xpose.msra.mxu0 0
      %1737 = vmatprep.subr.bf16.mxu0 0
      %1738 = vmatpush2.bf16.xpose.msra.mxu0 0
      %1739 = vmatprep.mubr.bf16.mxu0 0
      %1740 = vmatmul.mubr.bf16.gmra.mxu0 %v1702
      %v1741 = vpop.f32.mrf.mxu0
      %v1742 = vadd.f32 0.0, %v1741
      %v1743 = vpop.f32.mrf.mxu0
      %v1744 = vpop.f32.mrf.mxu0
      %v1745 = vpop.f32.mrf.mxu0
      %1746 = vdwg.mxu0
      %v1747 = vsel %vm1081, %v1692, -inf
      %1748 = vmax.xlane.f32.xlu0 %v1747
      %v1749 = vpop.xlane.xlu0 %1748
      %v1750 = vsel %vm1081, %v1742, -inf
      %1751 = vmax.xlane.f32.xlu0 %v1750
      %v1752 = vpop.xlane.xlu0 %1751
      %v1753 = vsub.f32 %v1692, %v1749
      %v1754 = vsub.f32 %v1742, %v1752
      %v1755 = vmul.f32 %v1753, 1.442695
      %v1756 = vpow.pop %v1755
      %v1757 = vmul.f32 %v1754, 1.442695
      %v1758 = vpow.pop %v1757
      %v1759 = vsel %vm1081, %v1756, 0.0
      %1760 = vadd.xlane.f32.xlu0 %v1759
      %v1761 = vpop.xlane.xlu0 %1760
      %v1762 = vsel %vm1081, %v1758, 0.0
      %1763 = vadd.xlane.f32.xlu0 %v1762
      %v1764 = vpop.xlane.xlu0 %1763
      %v1765 = vrcp.pop %v1761
      %v1766 = vrcp.pop %v1764
      %v1767 = vmul.f32 %v1756, %v1765
      %v1768 = vmul.f32 %v1758, %v1766
      %v1769 = vpack.c.bf16 %v1767, %v1767
      %v1770 = vpack.c.bf16 %v1768, %v1768
      %1771 = vrot.lane.b32.xlu0 %v957, 40
      %v1772 = vpop.permute.xlu0 %1771
      %v1774 = vsel %vm1108, %v1769, 0
      %v1777 = vand.u32 %v1772, %v1115
      %1779 = vmatprep.subr.bf16.mxu0 0
      %1780 = vmatpush1.bf16.msra.mxu0 0
      %1781 = vmatprep.subr.bf16.mxu0 0
      %1782 = vmatpush1.bf16.msra.mxu0 0
      %1783 = vmatprep.subr.bf16.mxu0 0
      %1784 = vmatpush1.bf16.msra.mxu0 0
      %1785 = vmatprep.subr.bf16.mxu0 0
      %1786 = vmatpush1.bf16.msra.mxu0 0
      %1787 = vmatprep.subr.bf16.mxu0 0
      %1788 = vmatpush1.bf16.msra.mxu0 0
      %1789 = vmatprep.subr.bf16.mxu0 0
      %1790 = vmatpush1.bf16.msra.mxu0 0
      %1791 = vmatprep.subr.bf16.mxu0 0
      %1792 = vmatpush1.bf16.msra.mxu0 0
      %1793 = vmatprep.subr.bf16.mxu0 0
      %1794 = vmatpush1.bf16.msra.mxu0 %v1777
      %1795 = vmatprep.subr.bf16.mxu0 0
      %1796 = vmatpush2.bf16.msra.mxu0 0
      %1797 = vmatprep.subr.bf16.mxu0 0
      %1798 = vmatpush2.bf16.msra.mxu0 0
      %1799 = vmatprep.subr.bf16.mxu0 0
      %1800 = vmatpush2.bf16.msra.mxu0 0
      %1801 = vmatprep.subr.bf16.mxu0 0
      %1802 = vmatpush2.bf16.msra.mxu0 0
      %1803 = vmatprep.subr.bf16.mxu0 0
      %1804 = vmatpush2.bf16.msra.mxu0 0
      %1805 = vmatprep.subr.bf16.mxu0 0
      %1806 = vmatpush2.bf16.msra.mxu0 0
      %1807 = vmatprep.subr.bf16.mxu0 0
      %1808 = vmatpush2.bf16.msra.mxu0 0
      %1809 = vmatprep.subr.bf16.mxu0 0
      %1810 = vmatpush2.bf16.msra.mxu0 0
      %1811 = vmatprep.mubr.bf16.mxu0 0
      %1812 = vmatmul.mubr.bf16.gmra.mxu0 %v1774
      %v1813 = vpop.f32.mrf.mxu0
      %v1814 = vadd.f32 0.0, %v1813
      %v1815 = vpop.f32.mrf.mxu0
      %v1816 = vpop.f32.mrf.mxu0
      %v1817 = vpop.f32.mrf.mxu0
      %1818 = vdwg.mxu0
      %1819 = vrot.lane.b32.xlu0 %v1032, 40
      %v1820 = vpop.permute.xlu0 %1819
      %v1822 = vsel %vm1108, %v1770, 0
      %v1825 = vand.u32 %v1820, %v1115
      %1827 = vmatprep.subr.bf16.mxu0 0
      %1828 = vmatpush1.bf16.msra.mxu0 0
      %1829 = vmatprep.subr.bf16.mxu0 0
      %1830 = vmatpush1.bf16.msra.mxu0 0
      %1831 = vmatprep.subr.bf16.mxu0 0
      %1832 = vmatpush1.bf16.msra.mxu0 0
      %1833 = vmatprep.subr.bf16.mxu0 0
      %1834 = vmatpush1.bf16.msra.mxu0 0
      %1835 = vmatprep.subr.bf16.mxu0 0
      %1836 = vmatpush1.bf16.msra.mxu0 0
      %1837 = vmatprep.subr.bf16.mxu0 0
      %1838 = vmatpush1.bf16.msra.mxu0 0
      %1839 = vmatprep.subr.bf16.mxu0 0
      %1840 = vmatpush1.bf16.msra.mxu0 0
      %1841 = vmatprep.subr.bf16.mxu0 0
      %1842 = vmatpush1.bf16.msra.mxu0 %v1825
      %1843 = vmatprep.subr.bf16.mxu0 0
      %1844 = vmatpush2.bf16.msra.mxu0 0
      %1845 = vmatprep.subr.bf16.mxu0 0
      %1846 = vmatpush2.bf16.msra.mxu0 0
      %1847 = vmatprep.subr.bf16.mxu0 0
      %1848 = vmatpush2.bf16.msra.mxu0 0
      %1849 = vmatprep.subr.bf16.mxu0 0
      %1850 = vmatpush2.bf16.msra.mxu0 0
      %1851 = vmatprep.subr.bf16.mxu0 0
      %1852 = vmatpush2.bf16.msra.mxu0 0
      %1853 = vmatprep.subr.bf16.mxu0 0
      %1854 = vmatpush2.bf16.msra.mxu0 0
      %1855 = vmatprep.subr.bf16.mxu0 0
      %1856 = vmatpush2.bf16.msra.mxu0 0
      %1857 = vmatprep.subr.bf16.mxu0 0
      %1858 = vmatpush2.bf16.msra.mxu0 0
      %1859 = vmatprep.mubr.bf16.mxu0 0
      %1860 = vmatmul.mubr.bf16.gmra.mxu0 %v1822
      %v1861 = vpop.f32.mrf.mxu0
      %v1862 = vadd.f32 0.0, %v1861
      %v1863 = vpop.f32.mrf.mxu0
      %v1864 = vpop.f32.mrf.mxu0
      %v1865 = vpop.f32.mrf.mxu0
      %1866 = vdwg.mxu0
      %1869 = vrot.lane.b32.xlu0 %v1374, 8
      %v1870 = vpop.permute.xlu0 %1869
      %1871 = vrot.lane.b32.xlu0 %v1422, 8
      %v1872 = vpop.permute.xlu0 %1871
      %1877 = vrot.lane.b32.xlu0 %v1594, 16
      %v1878 = vpop.permute.xlu0 %1877
      %1879 = vrot.lane.b32.xlu0 %v1642, 16
      %v1880 = vpop.permute.xlu0 %1879
      %1885 = vrot.lane.b32.xlu0 %v1814, 24
      %v1886 = vpop.permute.xlu0 %1885
      %1887 = vrot.lane.b32.xlu0 %v1862, 24
      %v1888 = vpop.permute.xlu0 %1887
      %v1891 = vsel %vm960, %v1154, %v1870
      %v1892 = vsel %vm960, %v1202, %v1872
      %vm1893 = vcmask 130048
      %v1894 = vsel %vm1893, %v1891, %v1878
      %v1895 = vsel %vm1893, %v1892, %v1880
      %vm1896 = vcmask 195584
      %v1897 = vsel %vm1896, %v1894, %v1886
      %v1898 = vsel %vm1896, %v1895, %v1888
      %v1901 = vcombine.high %v1897, %v1897
      %v1903 = vunpack.c.l.s4 1966171168
      %v1904 = vunpack.c.0.s8 %v1903
      %v1905 = vlaneseq
      %v1906 = vshrl.u32 %v1905, 7
      %v1907 = vsub.s32 %v1904, %v1906
      %v1908 = vrot.slane %v1897, %v1907
      %v1910 = vunpack.c.l.s4 1966171168
      %v1911 = vunpack.c.0.s8 %v1910
      %v1912 = vlaneseq
      %v1913 = vshrl.u32 %v1912, 7
      %v1914 = vsub.s32 %v1911, %v1913
      %v1915 = vrot.slane %v1901, %v1914
      %v1916 = vcombine.high %v1908, %v1908
      %v1918 = vunpack.c.l.s4 1966171168
      %v1919 = vunpack.c.0.s8 %v1918
      %v1920 = vlaneseq
      %v1921 = vshrl.u32 %v1920, 7
      %v1922 = vsub.s32 %v1919, %v1921
      %v1923 = vrot.slane %v1908, %v1922
      %v1925 = vunpack.c.l.s4 1966171168
      %v1926 = vunpack.c.0.s8 %v1925
      %v1927 = vlaneseq
      %v1928 = vshrl.u32 %v1927, 7
      %v1929 = vsub.s32 %v1926, %v1928
      %v1930 = vrot.slane %v1915, %v1929
      %v1932 = vunpack.c.l.s4 1966171168
      %v1933 = vunpack.c.0.s8 %v1932
      %v1934 = vlaneseq
      %v1935 = vshrl.u32 %v1934, 7
      %v1936 = vsub.s32 %v1933, %v1935
      %v1937 = vrot.slane %v1916, %v1936
      %v1938 = vcombine.high %v1923, %v1923
      %v1939 = vcombine.high %v1937, %v1937
      %v1940 = vcombine.high %v1898, %v1898
      %v1942 = vunpack.c.l.s4 1966171168
      %v1943 = vunpack.c.0.s8 %v1942
      %v1944 = vlaneseq
      %v1945 = vshrl.u32 %v1944, 7
      %v1946 = vsub.s32 %v1943, %v1945
      %v1947 = vrot.slane %v1898, %v1946
      %v1949 = vunpack.c.l.s4 1966171168
      %v1950 = vunpack.c.0.s8 %v1949
      %v1951 = vlaneseq
      %v1952 = vshrl.u32 %v1951, 7
      %v1953 = vsub.s32 %v1950, %v1952
      %v1954 = vrot.slane %v1940, %v1953
      %v1955 = vcombine.high %v1947, %v1947
      %v1957 = vunpack.c.l.s4 1966171168
      %v1958 = vunpack.c.0.s8 %v1957
      %v1959 = vlaneseq
      %v1960 = vshrl.u32 %v1959, 7
      %v1961 = vsub.s32 %v1958, %v1960
      %v1962 = vrot.slane %v1947, %v1961
      %v1964 = vunpack.c.l.s4 1966171168
      %v1965 = vunpack.c.0.s8 %v1964
      %v1966 = vlaneseq
      %v1967 = vshrl.u32 %v1966, 7
      %v1968 = vsub.s32 %v1965, %v1967
      %v1969 = vrot.slane %v1954, %v1968
      %v1971 = vunpack.c.l.s4 1966171168
      %v1972 = vunpack.c.0.s8 %v1971
      %v1973 = vlaneseq
      %v1974 = vshrl.u32 %v1973, 7
      %v1975 = vsub.s32 %v1972, %v1974
      %v1976 = vrot.slane %v1955, %v1975
      %v1977 = vcombine.high %v1962, %v1962
      %v1978 = vcombine.high %v1976, %v1976
      %v1979 = vcombine.low %v1923, %v1937
      %v1980 = vcombine.low %v1938, %v1939
      %v1981 = vcombine.low %v1930, %v1962
      %v1982 = vcombine.low %v1976, %v1977
      %v1984 = vunpack.c.l.s4 1966171168
      %v1985 = vunpack.c.0.s8 %v1984
      %v1986 = vlaneseq
      %v1987 = vshrl.u32 %v1986, 7
      %v1988 = vsub.s32 %v1985, %v1987
      %v1989 = vrot.slane %v1979, %v1988
      %v1991 = vunpack.c.l.s4 1966171168
      %v1992 = vunpack.c.0.s8 %v1991
      %v1993 = vlaneseq
      %v1994 = vshrl.u32 %v1993, 7
      %v1995 = vsub.s32 %v1992, %v1994
      %v1996 = vrot.slane %v1980, %v1995
      %v1998 = vunpack.c.l.s4 1966171168
      %v1999 = vunpack.c.0.s8 %v1998
      %v2000 = vlaneseq
      %v2001 = vshrl.u32 %v2000, 7
      %v2002 = vsub.s32 %v1999, %v2001
      %v2003 = vrot.slane %v1981, %v2002
      %v2005 = vunpack.c.l.s4 1966171168
      %v2006 = vunpack.c.0.s8 %v2005
      %v2007 = vlaneseq
      %v2008 = vshrl.u32 %v2007, 7
      %v2009 = vsub.s32 %v2006, %v2008
      %v2010 = vrot.slane %v1982, %v2009
      %v2011 = vcombine.low %v1989, %v1996
      %v2012 = vcombine.low %v2003, %v2010
      %v2014 = vunpack.c.l.s4 1966171168
      %v2015 = vunpack.c.0.s8 %v2014
      %v2016 = vlaneseq
      %v2017 = vshrl.u32 %v2016, 7
      %v2018 = vsub.s32 %v2015, %v2017
      %v2019 = vrot.slane %v2011, %v2018
      %v2021 = vunpack.c.l.s4 1966171168
      %v2022 = vunpack.c.0.s8 %v2021
      %v2023 = vlaneseq
      %v2024 = vshrl.u32 %v2023, 7
      %v2025 = vsub.s32 %v2022, %v2024
      %v2026 = vrot.slane %v2012, %v2025
      %v2027 = vcombine.low %v2019, %v2026
      %v2028 = vcombine.low %v1978, %v1969
      %v2030 = vunpack.c.l.s4 1966171168
      %v2031 = vunpack.c.0.s8 %v2030
      %v2032 = vlaneseq
      %v2033 = vshrl.u32 %v2032, 7
      %v2034 = vsub.s32 %v2031, %v2033
      %v2035 = vrot.slane %v2028, %v2034
      %v2037 = vunpack.c.l.s4 1966171168
      %v2038 = vunpack.c.0.s8 %v2037
      %v2039 = vlaneseq
      %v2040 = vshrl.u32 %v2039, 7
      %v2041 = vsub.s32 %v2038, %v2040
      %v2042 = vrot.slane %v2035, %v2041
      %v2045 = vpack.c.bf16 %v2042, %v2027
      %v2046 = vld [vmem:[%s616] sm:$0xf]
      %v2047 = vld [vmem:[%s616 + $0x4] sm:$0xf]
      %v2048 = vld [vmem:[%s616 + $0x8] sm:$0xf]
      %v2049 = vld [vmem:[%s616 + $0xc] sm:$0xf]
      %v2054 = vunpack.c.l.b16 %v2046
      %v2055 = vunpack.c.l.b16 %v2047
      %v2056 = vunpack.c.l.b16 %v2048
      %v2057 = vunpack.c.l.b16 %v2049
      %v2058 = vpack.c.b16 %v2055, %v2054
      %v2059 = vpack.c.b16 %v2057, %v2056
      %v2063 = vsel %vm768, %v2045, 0
      %2065 = vmatprep.subr.bf16.mxu0 0
      %2066 = vmatpush1.bf16.msra.mxu0 0
      %2067 = vmatprep.subr.bf16.mxu0 0
      %2068 = vmatpush1.bf16.msra.mxu0 0
      %2069 = vmatprep.subr.bf16.mxu0 0
      %2070 = vmatpush1.bf16.msra.mxu0 0
      %2071 = vmatprep.subr.bf16.mxu0 0
      %2072 = vmatpush1.bf16.msra.mxu0 0
      %2073 = vmatprep.subr.bf16.mxu0 0
      %2074 = vmatpush1.bf16.msra.mxu0 0
      %2075 = vmatprep.subr.bf16.mxu0 0
      %2076 = vmatpush1.bf16.msra.mxu0 0
      %2077 = vmatprep.subr.bf16.mxu0 0
      %2078 = vmatpush1.bf16.msra.mxu0 %v2059
      %2079 = vmatprep.subr.bf16.mxu0 0
      %2080 = vmatpush1.bf16.msra.mxu0 %v2058
      %2081 = vmatprep.subr.bf16.mxu0 0
      %2082 = vmatpush2.bf16.msra.mxu0 0
      %2083 = vmatprep.subr.bf16.mxu0 0
      %2084 = vmatpush2.bf16.msra.mxu0 0
      %2085 = vmatprep.subr.bf16.mxu0 0
      %2086 = vmatpush2.bf16.msra.mxu0 0
      %2087 = vmatprep.subr.bf16.mxu0 0
      %2088 = vmatpush2.bf16.msra.mxu0 0
      %2089 = vmatprep.subr.bf16.mxu0 0
      %2090 = vmatpush2.bf16.msra.mxu0 0
      %2091 = vmatprep.subr.bf16.mxu0 0
      %2092 = vmatpush2.bf16.msra.mxu0 0
      %2093 = vmatprep.subr.bf16.mxu0 0
      %2094 = vmatpush2.bf16.msra.mxu0 0
      %2095 = vmatprep.subr.bf16.mxu0 0
      %2096 = vmatpush2.bf16.msra.mxu0 0
      %2097 = vmatprep.mubr.bf16.mxu0 0
      %2098 = vmatmul.mubr.bf16.gmra.mxu0 %v2063
      %v2099 = vpop.f32.mrf.mxu0
      %v2100 = vadd.f32 0.0, %v2099
      %v2101 = vpop.f32.mrf.mxu0
      %v2102 = vpop.f32.mrf.mxu0
      %v2103 = vadd.f32 0.0, %v2102
      %v2104 = vpop.f32.mrf.mxu0
      %2105 = vdwg.mxu0
      %v2106 = vadd.f32 %v764, %v2100
      %v2107 = vadd.f32 %v765, %v2103
      %v2108 = vld [vmem:[%s619] sm:$0x1]
      %v2110 = vlaneseq
      %v2111 = vshrl.u32 %v2110, 7
      %v2112 = vsub.s32 0, %v2111
      %v2113 = vrot.slane %v2108, %v2112
      %v2115 = vadd.f32 %v2106, %v2113
      %v2116 = vadd.f32 %v2107, %v2113
      %v2117 = vld [vmem:[%s622] sm:$0x1]
      %v2118 = vld [vmem:[%s625] sm:$0x1]
      %v2119 = vsel %vm768, %v2115, 0.0
      %2120 = vadd.xlane.f32.xlu0 %v2119
      %v2121 = vpop.xlane.xlu0 %2120
      %v2122 = vsel %vm772, %v2116, 0.0
      %2123 = vadd.xlane.f32.xlu0 %v2122
      %v2124 = vpop.xlane.xlu0 %2123
      %v2125 = vmul.f32 %v2121, %v776
      %v2126 = vmul.f32 %v2124, %v776
      %v2127 = vsub.f32 %v2115, %v2125
      %v2128 = vsub.f32 %v2116, %v2126
      %v2129 = vmul.f32 %v2127, %v2127
      %v2130 = vmul.f32 %v2128, %v2128
      %v2131 = vsel %vm768, %v2129, 0.0
      %2132 = vadd.xlane.f32.xlu0 %v2131
      %v2133 = vpop.xlane.xlu0 %2132
      %v2134 = vsel %vm772, %v2130, 0.0
      %2135 = vadd.xlane.f32.xlu0 %v2134
      %v2136 = vpop.xlane.xlu0 %2135
      %v2137 = vmul.f32 %v2133, %v776
      %v2138 = vmul.f32 %v2136, %v776
      %v2139 = vadd.f32 %v2137, 1e-05
      %v2140 = vadd.f32 %v2138, 1e-05
      %v2141 = vrsqrt.pop %v2139
      %v2142 = vrsqrt.pop %v2140
      %v2143 = vmul.f32 %v2127, %v2141
      %v2144 = vmul.f32 %v2128, %v2142
      %v2146 = vlaneseq
      %v2147 = vshrl.u32 %v2146, 7
      %v2148 = vsub.s32 0, %v2147
      %v2149 = vrot.slane %v2117, %v2148
      %v2151 = vmul.f32 %v2143, %v2149
      %v2152 = vmul.f32 %v2144, %v2149
      %v2154 = vlaneseq
      %v2155 = vshrl.u32 %v2154, 7
      %v2156 = vsub.s32 0, %v2155
      %v2157 = vrot.slane %v2118, %v2156
      %v2159 = vadd.f32 %v2151, %v2157
      %v2160 = vadd.f32 %v2152, %v2157
      %v2161 = vpack.c.bf16 %v2160, %v2159
      %v2162 = vld [vmem:[%s630] sm:$0xf]
      %v2163 = vld [vmem:[%s630 + $0x4] sm:$0xf]
      %v2164 = vld [vmem:[%s630 + $0x8] sm:$0xf]
      %v2165 = vld [vmem:[%s630 + $0xc] sm:$0xf]
      %v2166 = vld [vmem:[%s633] sm:$0x1]
      %v2168 = vlaneseq
      %v2169 = vshrl.u32 %v2168, 7
      %v2170 = vsub.s32 0, %v2169
      %v2171 = vrot.slane %v2166, %v2170
      %v2177 = vunpack.c.l.b16 %v2162
      %v2178 = vunpack.c.l.b16 %v2163
      %v2179 = vunpack.c.l.b16 %v2164
      %v2180 = vunpack.c.l.b16 %v2165
      %v2181 = vpack.c.b16 %v2178, %v2177
      %v2182 = vpack.c.b16 %v2180, %v2179
      %v2186 = vsel %vm768, %v2161, 0
      %2188 = vmatprep.subr.bf16.mxu0 0
      %2189 = vmatpush1.bf16.msra.mxu0 0
      %2190 = vmatprep.subr.bf16.mxu0 0
      %2191 = vmatpush1.bf16.msra.mxu0 0
      %2192 = vmatprep.subr.bf16.mxu0 0
      %2193 = vmatpush1.bf16.msra.mxu0 0
      %2194 = vmatprep.subr.bf16.mxu0 0
      %2195 = vmatpush1.bf16.msra.mxu0 0
      %2196 = vmatprep.subr.bf16.mxu0 0
      %2197 = vmatpush1.bf16.msra.mxu0 0
      %2198 = vmatprep.subr.bf16.mxu0 0
      %2199 = vmatpush1.bf16.msra.mxu0 0
      %2200 = vmatprep.subr.bf16.mxu0 0
      %2201 = vmatpush1.bf16.msra.mxu0 %v2182
      %2202 = vmatprep.subr.bf16.mxu0 0
      %2203 = vmatpush1.bf16.msra.mxu0 %v2181
      %2204 = vmatprep.subr.bf16.mxu0 0
      %2205 = vmatpush2.bf16.msra.mxu0 0
      %2206 = vmatprep.subr.bf16.mxu0 0
      %2207 = vmatpush2.bf16.msra.mxu0 0
      %2208 = vmatprep.subr.bf16.mxu0 0
      %2209 = vmatpush2.bf16.msra.mxu0 0
      %2210 = vmatprep.subr.bf16.mxu0 0
      %2211 = vmatpush2.bf16.msra.mxu0 0
      %2212 = vmatprep.subr.bf16.mxu0 0
      %2213 = vmatpush2.bf16.msra.mxu0 0
      %2214 = vmatprep.subr.bf16.mxu0 0
      %2215 = vmatpush2.bf16.msra.mxu0 0
      %2216 = vmatprep.subr.bf16.mxu0 0
      %2217 = vmatpush2.bf16.msra.mxu0 0
      %2218 = vmatprep.subr.bf16.mxu0 0
      %2219 = vmatpush2.bf16.msra.mxu0 0
      %2220 = vmatprep.mubr.bf16.mxu0 0
      %2221 = vmatmul.mubr.bf16.gmra.mxu0 %v2186
      %v2222 = vpop.f32.mrf.mxu0
      %v2223 = vadd.f32 %v2171, %v2222
      %v2224 = vpop.f32.mrf.mxu0
      %v2225 = vpop.f32.mrf.mxu0
      %v2226 = vadd.f32 %v2171, %v2225
      %v2227 = vpop.f32.mrf.mxu0
      %2228 = vdwg.mxu0
      %v2229 = vmul.f32 %v2223, %v2223
      %v2230 = vmul.f32 %v2226, %v2226
      %v2231 = vmul.f32 %v2223, %v2229
      %v2232 = vmul.f32 %v2226, %v2230
      %v2233 = vmul.f32 %v2231, 0.044715
      %v2234 = vmul.f32 %v2232, 0.044715
      %v2235 = vadd.f32 %v2223, %v2233
      %v2236 = vadd.f32 %v2226, %v2234
      %v2237 = vmul.f32 %v2235, 0.7978846
      %v2238 = vmul.f32 %v2236, 0.7978846
      %v2239 = vtanh.pop %v2237
      %v2240 = vtanh.pop %v2238
      %v2241 = vadd.f32 %v2239, 1.0
      %v2242 = vadd.f32 %v2240, 1.0
      %v2243 = vmul.f32 %v2241, 0.5
      %v2244 = vmul.f32 %v2242, 0.5
      %v2245 = vmul.f32 %v2223, %v2243
      %v2246 = vmul.f32 %v2226, %v2244
      %v2247 = vpack.c.bf16 %v2246, %v2245
      %v2248 = vld [vmem:[%s638] sm:$0xf]
      %v2249 = vld [vmem:[%s638 + $0x4] sm:$0xf]
      %v2250 = vld [vmem:[%s638 + $0x8] sm:$0xf]
      %v2251 = vld [vmem:[%s638 + $0xc] sm:$0xf]
      %v2252 = vld [vmem:[%s638 + $0x10] sm:$0xf]
      %v2253 = vld [vmem:[%s638 + $0x14] sm:$0xf]
      %v2254 = vld [vmem:[%s638 + $0x18] sm:$0xf]
      %v2255 = vld [vmem:[%s638 + $0x1c] sm:$0xf]
      %v2256 = vld [vmem:[%s638 + $0x20] sm:$0xf]
      %v2257 = vld [vmem:[%s638 + $0x24] sm:$0xf]
      %v2258 = vld [vmem:[%s638 + $0x28] sm:$0xf]
      %v2259 = vld [vmem:[%s638 + $0x2c] sm:$0xf]
      %v2260 = vld [vmem:[%s638 + $0x30] sm:$0xf]
      %v2261 = vld [vmem:[%s638 + $0x34] sm:$0xf]
      %v2262 = vld [vmem:[%s638 + $0x38] sm:$0xf]
      %v2263 = vld [vmem:[%s638 + $0x3c] sm:$0xf]
      %v2280 = vunpack.c.l.b16 %v2248
      %v2281 = vunpack.c.l.b16 %v2249
      %v2282 = vunpack.c.l.b16 %v2250
      %v2283 = vunpack.c.l.b16 %v2251
      %v2284 = vunpack.c.l.b16 %v2252
      %v2285 = vunpack.c.l.b16 %v2253
      %v2286 = vunpack.c.l.b16 %v2254
      %v2287 = vunpack.c.l.b16 %v2255
      %v2288 = vunpack.c.l.b16 %v2256
      %v2289 = vunpack.c.l.b16 %v2257
      %v2290 = vunpack.c.l.b16 %v2258
      %v2291 = vunpack.c.l.b16 %v2259
      %v2292 = vunpack.c.l.b16 %v2260
      %v2293 = vunpack.c.l.b16 %v2261
      %v2294 = vunpack.c.l.b16 %v2262
      %v2295 = vunpack.c.l.b16 %v2263
      %v2296 = vpack.c.b16 %v2281, %v2280
      %v2297 = vpack.c.b16 %v2283, %v2282
      %v2298 = vpack.c.b16 %v2285, %v2284
      %v2299 = vpack.c.b16 %v2287, %v2286
      %v2300 = vpack.c.b16 %v2289, %v2288
      %v2301 = vpack.c.b16 %v2291, %v2290
      %v2302 = vpack.c.b16 %v2293, %v2292
      %v2303 = vpack.c.b16 %v2295, %v2294
      %2312 = vmatprep.subr.bf16.mxu0 0
      %2313 = vmatpush1.bf16.msra.mxu0 %v2303
      %2314 = vmatprep.subr.bf16.mxu0 0
      %2315 = vmatpush1.bf16.msra.mxu0 %v2302
      %2316 = vmatprep.subr.bf16.mxu0 0
      %2317 = vmatpush1.bf16.msra.mxu0 %v2301
      %2318 = vmatprep.subr.bf16.mxu0 0
      %2319 = vmatpush1.bf16.msra.mxu0 %v2300
      %2320 = vmatprep.subr.bf16.mxu0 0
      %2321 = vmatpush1.bf16.msra.mxu0 %v2299
      %2322 = vmatprep.subr.bf16.mxu0 0
      %2323 = vmatpush1.bf16.msra.mxu0 %v2298
      %2324 = vmatprep.subr.bf16.mxu0 0
      %2325 = vmatpush1.bf16.msra.mxu0 %v2297
      %2326 = vmatprep.subr.bf16.mxu0 0
      %2327 = vmatpush1.bf16.msra.mxu0 %v2296
      %2328 = vmatprep.subr.bf16.mxu0 0
      %2329 = vmatpush2.bf16.msra.mxu0 0
      %2330 = vmatprep.subr.bf16.mxu0 0
      %2331 = vmatpush2.bf16.msra.mxu0 0
      %2332 = vmatprep.subr.bf16.mxu0 0
      %2333 = vmatpush2.bf16.msra.mxu0 0
      %2334 = vmatprep.subr.bf16.mxu0 0
      %2335 = vmatpush2.bf16.msra.mxu0 0
      %2336 = vmatprep.subr.bf16.mxu0 0
      %2337 = vmatpush2.bf16.msra.mxu0 0
      %2338 = vmatprep.subr.bf16.mxu0 0
      %2339 = vmatpush2.bf16.msra.mxu0 0
      %2340 = vmatprep.subr.bf16.mxu0 0
      %2341 = vmatpush2.bf16.msra.mxu0 0
      %2342 = vmatprep.subr.bf16.mxu0 0
      %2343 = vmatpush2.bf16.msra.mxu0 0
      %2344 = vmatprep.mubr.bf16.mxu0 0
      %2345 = vmatmul.mubr.bf16.gmra.mxu0 %v2247
      %v2346 = vpop.f32.mrf.mxu0
      %v2347 = vadd.f32 0.0, %v2346
      %v2348 = vpop.f32.mrf.mxu0
      %v2349 = vpop.f32.mrf.mxu0
      %v2350 = vadd.f32 0.0, %v2349
      %v2351 = vpop.f32.mrf.mxu0
      %2352 = vdwg.mxu0
      %v2353 = vadd.f32 %v2115, %v2347
      %v2354 = vadd.f32 %v2116, %v2350
      %v2355 = vld [vmem:[%s641] sm:$0x1]
      %v2357 = vlaneseq
      %v2358 = vshrl.u32 %v2357, 7
      %v2359 = vsub.s32 0, %v2358
      %v2360 = vrot.slane %v2355, %v2359
      %v2362 = vadd.f32 %v2353, %v2360
      %v2363 = vadd.f32 %v2354, %v2360
      %2364 = vst.msk [vmem:[#allocation2] sm:$0xff] %vm768, %v2362
      %2365 = vst.msk [vmem:[#allocation2 + $0x8] sm:$0x3] %vm772, %v2363
      %p2366 = scmp.eq.s32.totalorder %s29, 3
      // Predicated region
      $region77: #{_lambda_.6} parent=71 // pred_check
        %p2367 = pneg %p2366
      $region78: #{_lambda_.6} parent=71 // pred_check_branch
        %2369 = sbr.rel (%p2367) target = $region80
      $region79: #{_lambda_.6} parent=71 // pred_region
        %v2372 = vcombine.high %v2362, %v2362
        %v2374 = vunpack.c.l.s4 1966171168
        %v2375 = vunpack.c.0.s8 %v2374
        %v2376 = vlaneseq
        %v2377 = vshrl.u32 %v2376, 7
        %v2378 = vsub.s32 %v2375, %v2377
        %v2379 = vrot.slane %v2362, %v2378
        %v2381 = vunpack.c.l.s4 1966171168
        %v2382 = vunpack.c.0.s8 %v2381
        %v2383 = vlaneseq
        %v2384 = vshrl.u32 %v2383, 7
        %v2385 = vsub.s32 %v2382, %v2384
        %v2386 = vrot.slane %v2372, %v2385
        %v2387 = vcombine.high %v2379, %v2379
        %v2388 = vcombine.high %v2386, %v2386
        %v2390 = vunpack.c.l.s4 1966171168
        %v2391 = vunpack.c.0.s8 %v2390
        %v2392 = vlaneseq
        %v2393 = vshrl.u32 %v2392, 7
        %v2394 = vsub.s32 %v2391, %v2393
        %v2395 = vrot.slane %v2379, %v2394
        %v2397 = vunpack.c.l.s4 1966171168
        %v2398 = vunpack.c.0.s8 %v2397
        %v2399 = vlaneseq
        %v2400 = vshrl.u32 %v2399, 7
        %v2401 = vsub.s32 %v2398, %v2400
        %v2402 = vrot.slane %v2386, %v2401
        %v2404 = vunpack.c.l.s4 1966171168
        %v2405 = vunpack.c.0.s8 %v2404
        %v2406 = vlaneseq
        %v2407 = vshrl.u32 %v2406, 7
        %v2408 = vsub.s32 %v2405, %v2407
        %v2409 = vrot.slane %v2387, %v2408
        %v2411 = vunpack.c.l.s4 1966171168
        %v2412 = vunpack.c.0.s8 %v2411
        %v2413 = vlaneseq
        %v2414 = vshrl.u32 %v2413, 7
        %v2415 = vsub.s32 %v2412, %v2414
        %v2416 = vrot.slane %v2388, %v2415
        %v2417 = vcombine.high %v2395, %v2395
        %v2418 = vcombine.high %v2402, %v2402
        %v2419 = vcombine.high %v2409, %v2409
        %v2420 = vcombine.high %v2416, %v2416
        %v2422 = vunpack.c.l.s4 1966171168
        %v2423 = vunpack.c.0.s8 %v2422
        %v2424 = vlaneseq
        %v2425 = vshrl.u32 %v2424, 7
        %v2426 = vsub.s32 %v2423, %v2425
        %v2427 = vrot.slane %v2363, %v2426
        %v2428 = vcombine.high %v2427, %v2427
        %v2430 = vunpack.c.l.s4 1966171168
        %v2431 = vunpack.c.0.s8 %v2430
        %v2432 = vlaneseq
        %v2433 = vshrl.u32 %v2432, 7
        %v2434 = vsub.s32 %v2431, %v2433
        %v2435 = vrot.slane %v2427, %v2434
        %v2437 = vunpack.c.l.s4 1966171168
        %v2438 = vunpack.c.0.s8 %v2437
        %v2439 = vlaneseq
        %v2440 = vshrl.u32 %v2439, 7
        %v2441 = vsub.s32 %v2438, %v2440
        %v2442 = vrot.slane %v2428, %v2441
        %v2443 = vcombine.low %v2395, %v2409
        %v2444 = vcombine.low %v2417, %v2419
        %v2446 = vunpack.c.l.s4 1966171168
        %v2447 = vunpack.c.0.s8 %v2446
        %v2448 = vlaneseq
        %v2449 = vshrl.u32 %v2448, 7
        %v2450 = vsub.s32 %v2447, %v2449
        %v2451 = vrot.slane %v2443, %v2450
        %v2453 = vunpack.c.l.s4 1966171168
        %v2454 = vunpack.c.0.s8 %v2453
        %v2455 = vlaneseq
        %v2456 = vshrl.u32 %v2455, 7
        %v2457 = vsub.s32 %v2454, %v2456
        %v2458 = vrot.slane %v2444, %v2457
        %v2460 = vunpack.c.l.s4 1966171168
        %v2461 = vunpack.c.0.s8 %v2460
        %v2462 = vlaneseq
        %v2463 = vshrl.u32 %v2462, 7
        %v2464 = vsub.s32 %v2461, %v2463
        %v2465 = vrot.slane %v2402, %v2464
        %v2466 = vcombine.low %v2451, %v2458
        %v2468 = vunpack.c.l.s4 1966171168
        %v2469 = vunpack.c.0.s8 %v2468
        %v2470 = vlaneseq
        %v2471 = vshrl.u32 %v2470, 7
        %v2472 = vsub.s32 %v2469, %v2471
        %v2473 = vrot.slane %v2466, %v2472
        %v2475 = vunpack.c.l.s4 1966171168
        %v2476 = vunpack.c.0.s8 %v2475
        %v2477 = vlaneseq
        %v2478 = vshrl.u32 %v2477, 7
        %v2479 = vsub.s32 %v2476, %v2478
        %v2480 = vrot.slane %v2465, %v2479
        %v2481 = vcombine.low %v2473, %v2480
        %v2482 = vcombine.low %v2416, %v2418
        %v2483 = vcombine.low %v2420, %v2435
        %v2485 = vunpack.c.l.s4 1966171168
        %v2486 = vunpack.c.0.s8 %v2485
        %v2487 = vlaneseq
        %v2488 = vshrl.u32 %v2487, 7
        %v2489 = vsub.s32 %v2486, %v2488
        %v2490 = vrot.slane %v2482, %v2489
        %v2492 = vunpack.c.l.s4 1966171168
        %v2493 = vunpack.c.0.s8 %v2492
        %v2494 = vlaneseq
        %v2495 = vshrl.u32 %v2494, 7
        %v2496 = vsub.s32 %v2493, %v2495
        %v2497 = vrot.slane %v2483, %v2496
        %v2499 = vunpack.c.l.s4 1966171168
        %v2500 = vunpack.c.0.s8 %v2499
        %v2501 = vlaneseq
        %v2502 = vshrl.u32 %v2501, 7
        %v2503 = vsub.s32 %v2500, %v2502
        %v2504 = vrot.slane %v2442, %v2503
        %v2505 = vcombine.low %v2490, %v2497
        %v2507 = vunpack.c.l.s4 1966171168
        %v2508 = vunpack.c.0.s8 %v2507
        %v2509 = vlaneseq
        %v2510 = vshrl.u32 %v2509, 7
        %v2511 = vsub.s32 %v2508, %v2510
        %v2512 = vrot.slane %v2505, %v2511
        %v2514 = vunpack.c.l.s4 1966171168
        %v2515 = vunpack.c.0.s8 %v2514
        %v2516 = vlaneseq
        %v2517 = vshrl.u32 %v2516, 7
        %v2518 = vsub.s32 %v2515, %v2517
        %v2519 = vrot.slane %v2504, %v2518
        %v2520 = vcombine.low %v2512, %v2519
        %v2523 = vpack.c.bf16 %v2481, %v2481
        %v2524 = vpack.c.bf16 %v2520, %v2520
        %vm2525 = vcmask 256000
        %vm2526 = vsmask.f32 2304
        %vm2527 = vmand %vm2525, %vm2526
        %v2528 = vld [vmem:[%s646] sm:$0x7]
        %v2529 = vsel %vm2527, %v2523, %v2528
        %2530 = vst [vmem:[%s646] sm:$0x7] %v2529
        %v2531 = vld [vmem:[%s646 + $0x4] sm:$0x7]
        %v2532 = vsel %vm2527, %v2524, %v2531
        %2533 = vst [vmem:[%s646 + $0x4] sm:$0x7] %v2532
      $region80: #{_lambda_.6} parent=71 // pred_fallthru
        _
      %s2534 = smul.u32 2, %s28
      %p2535 = scmp.lt.s32.totalorder %s2534, 1
      %s2536 = scalar_select %p2535, %s2534, 1
      %s2537 = smul.addr %s2536, 4
      %s2538 = scalar_lea.vmem %s13, %s2537
      // Predicated region
      $region81: #{_lambda_.6} parent=71 // pred_check
        %p2539 = pneg %p392
      $region82: #{_lambda_.6} parent=71 // pred_check_branch
        %2541 = sbr.rel (%p2539) target = $region84
      $region83: #{_lambda_.6} parent=71 // pred_region
        %s2542 = smul.u32 2, %s28
      $region84: #{_lambda_.6} parent=71 // pred_fallthru
        _
      // Predicated region
      $region85: #{_lambda_.6} parent=71 // pred_check
        %p2543 = pneg %p392
      $region86: #{_lambda_.6} parent=71 // pred_check_branch
        %2545 = sbr.rel (%p2543) target = $region88
      $region87: #{_lambda_.6} parent=71 // pred_region
        %s2546 = smul.u32 2, %s28
        %p2547 = scmp.lt.s32.totalorder %s2546, 1
        %s2548 = scalar_select %p2547, %s2546, 1
        %s2549 = smul.addr %s2548, 4
        %s2550 = scalar_lea.vmem %s13, %s2549
      $region88: #{_lambda_.6} parent=71 // pred_fallthru
        _
    $region72: #{_lambda_.6} parent=5 // pred_fallthru
      _
    %p2551 = scmp.le.s32.totalorder 2, %s19
    // Predicated region
    $region89: #{_lambda_.6} parent=5 // pred_check
      %p2552 = pneg %p2551
    $region90: #{_lambda_.6} parent=5 // pred_check_branch
      %2554 = sbr.rel (%p2552) target = $region92
    $region91: #{_lambda_.6} parent=5 // pred_region
      %s2555 = ssub.s32 %s19, 2
    $region92: #{_lambda_.6} parent=5 // pred_fallthru
      _
  $region6: #{_lambda_.6} parent=0 // loop_footer
    %s23 = sadd.s32 1, %s19
  $region7: #{_lambda_.6} parent=0 // loop_footer_branch
    %18 = sbr.rel target = $region3
  $region8: #{_lambda_.6} parent=0 // loop_exit
    _

</llo_original>
